<compile_context>
chip_gen: v6e
topology: v6e:2x2x1
jax: 0.10.0
libtpu: 0.0.40
codegen_flags: <defaults>
</compile_context>

<pallas_src>
import jax
import jax.numpy as jnp
from jax.experimental import pallas as pl
from jax.experimental.pallas import tpu as pltpu


# -----------------------------------------------------------------------------
# Fused kernel: backbone stand-in + fc projection + full greedy decode loop.
# -----------------------------------------------------------------------------
def attention_ocr_kernel(xp_ref, convw_ref, convb_ref, fcw_ref, fcb_ref,
                         emb_ref, wattn_ref, battn_ref, wcomb_ref, bcomb_ref,
                         wih_ref, whh_ref, bih_ref, bhh_ref,
                         wout_ref, bout_ref, out_ref):
    B, T, C = out_ref.shape
    H = wattn_ref.shape[0]
    E = emb_ref.shape[1]
    L = wcomb_ref.shape[0] - E          # attn_combine in_features = E + h*w

    # --- Backbone stand-in (stride-8 patch conv + ReLU) fused with self.fc ---
    feats512 = jnp.maximum(
        jnp.dot(xp_ref[...], convw_ref[...], preferred_element_type=jnp.float32)
        + convb_ref[...], 0.0)                                     # (B*L, 512)
    feat2d = (jnp.dot(feats512, fcw_ref[...], preferred_element_type=jnp.float32)
              + fcb_ref[...])                                      # (B*L, H)

    # Hoisted per-batch transposed feature maps (H, L) for the attention bmm.
    feat_t = [feat2d[b * L:(b + 1) * L, :].T for b in range(B)]

    emb = emb_ref[...]
    wattn = wattn_ref[...]
    battn = battn_ref[...]
    wout = wout_ref[...]
    bout = bout_ref[...]

    # Fold attn_combine into the LSTM input weight and merge ih/hh matmuls:
    #   gates = cat(embedded, attn_applied, hidden) @ w_big + b_big
    # (valid: no nonlinearity between attn_combine and the LSTM in the ref).
    w_in = jnp.dot(wcomb_ref[...], wih_ref[...],
                   preferred_element_type=jnp.float32)             # (E+L, 4H)
    w_big = jnp.concatenate([w_in, whh_ref[...]], axis=0)          # (E+L+H, 4H)
    b_big = (jnp.dot(bcomb_ref[...], wih_ref[...],
                     preferred_element_type=jnp.float32)
             + bih_ref[...] + bhh_ref[...])                        # (1, 4H)

    # Hoisted class iota (one-hot embedding lookup + greedy argmax feedback).
    iota_c = jax.lax.broadcasted_iota(jnp.int32, (B, C), 1)

    hidden = jnp.zeros((B, H), jnp.float32)
    input_char = jnp.zeros((B, 1), jnp.int32)

    # Fully unrolled greedy decode; the argmax feedback makes it a serial chain.
    for t in range(T):
        # embedding lookup as a one-hot matmul (exact, MXU friendly)
        onehot = (iota_c == input_char).astype(jnp.float32)                 # (B, C)
        embedded = jnp.dot(onehot, emb, preferred_element_type=jnp.float32)  # (B, E)

        # attn_weights = softmax(attn(hidden), dim=-1)  -> softmax over H
        scores = jnp.dot(hidden, wattn, preferred_element_type=jnp.float32) + battn
        scores = scores - jnp.max(scores, axis=-1, keepdims=True)
        e = jnp.exp(scores)
        attn_weights = e / jnp.sum(e, axis=-1, keepdims=True)               # (B, H)

        # bmm(attn_w.unsqueeze(1), features.transpose(1,2)).squeeze(1) -> (B, L)
        attn_applied = jnp.concatenate(
            [jnp.dot(attn_weights[b:b + 1, :], feat_t[b],
                     preferred_element_type=jnp.float32) for b in range(B)],
            axis=0)                                                         # (B, L)

        # folded attn_combine + single-step LSTM (h0 = c0 = hidden)
        x_step = jnp.concatenate([embedded, attn_applied, hidden], axis=-1)  # (B, E+L+H)
        gates = jnp.dot(x_step, w_big, preferred_element_type=jnp.float32) + b_big

        i_g = jax.nn.sigmoid(gates[:, 0:H])
        f_g = jax.nn.sigmoid(gates[:, H:2 * H])
        g_g = jnp.tanh(gates[:, 2 * H:3 * H])
        o_g = jax.nn.sigmoid(gates[:, 3 * H:4 * H])
        c_new = f_g * hidden + i_g * g_g
        hidden = o_g * jnp.tanh(c_new)                                      # (B, H)

        # fc_out + greedy argmax feedback
        logits = (jnp.dot(hidden, wout, preferred_element_type=jnp.float32)
                  + bout)                                                   # (B, C)
        out_ref[:, t, :] = logits

        maxv = jnp.max(logits, axis=-1, keepdims=True)
        input_char = jnp.min(jnp.where(logits >= maxv, iota_c, C),
                             axis=-1, keepdims=True)                        # (B, 1) int32


def run_attention_ocr(x_patches, params, *, batch, max_length):
    num_classes = params["out_w"].shape[1]
    args = (x_patches,
            params["conv_w"], params["conv_b"],
            params["fc_w"], params["fc_b"],
            params["emb"],
            params["attn_w"], params["attn_b"],
            params["comb_w"], params["comb_b"],
            params["lstm_wih"], params["lstm_whh"],
            params["lstm_bih"], params["lstm_bhh"],
            params["out_w"], params["out_b"])
    return pl.pallas_call(
        attention_ocr_kernel,
        out_shape=jax.ShapeDtypeStruct((batch, max_length, num_classes),
                                       jnp.float32),
        in_specs=[pl.BlockSpec(memory_space=pltpu.MemorySpace.VMEM)
                  for _ in args],
        out_specs=pl.BlockSpec(memory_space=pltpu.MemorySpace.VMEM),
    )(*args)


# -----------------------------------------------------------------------------
# Glue: patch extraction, parameter init, end-to-end forward.
# -----------------------------------------------------------------------------
def extract_patches(images, patch):
    B, Cin, Himg, Wimg = images.shape
    hf, wf = Himg // patch, Wimg // patch
    x = images.reshape(B, Cin, hf, patch, wf, patch)
    x = x.transpose(0, 2, 4, 1, 3, 5)            # (B, hf, wf, Cin, ph, pw)
    return x.reshape(B * hf * wf, Cin * patch * patch)


def init_params(key, *, num_classes=10, hidden=32, embed=32,
                in_ch=3, patch=8, feat_ch=512):
    keys = jax.random.split(key, 8)

    def lin(k, fan_in, fan_out):
        w = jax.random.normal(k, (fan_in, fan_out), jnp.float32) / jnp.sqrt(fan_in)
        b = jnp.zeros((1, fan_out), jnp.float32)
        return w, b

    conv_w, conv_b = lin(keys[0], in_ch * patch * patch, feat_ch)
    fc_w, fc_b = lin(keys[1], feat_ch, hidden)
    emb = jax.random.normal(keys[2], (num_classes, embed), jnp.float32) * 0.1
    attn_w, attn_b = lin(keys[3], hidden, hidden)
    comb_w, comb_b = lin(keys[4], hidden + 64, hidden + embed)
    lstm_wih, lstm_bih = lin(keys[5], embed + hidden, 4 * hidden)
    lstm_whh, lstm_bhh = lin(keys[6], hidden, 4 * hidden)
    out_w, out_b = lin(keys[7], hidden, num_classes)
    return dict(conv_w=conv_w, conv_b=conv_b, fc_w=fc_w, fc_b=fc_b, emb=emb,
                attn_w=attn_w, attn_b=attn_b, comb_w=comb_w, comb_b=comb_b,
                lstm_wih=lstm_wih, lstm_whh=lstm_whh,
                lstm_bih=lstm_bih, lstm_bhh=lstm_bhh,
                out_w=out_w, out_b=out_b)


def attention_ocr_forward(images, params, *, max_length=8, patch=8):
    x_patches = extract_patches(images, patch)               # (B*L, Cin*p*p)
    return run_attention_ocr(x_patches, params,
                             batch=images.shape[0],
                             max_length=max_length)           # (B, T, num_classes)


if __name__ == "__main__":
    key = jax.random.PRNGKey(0)
    k_img, k_par = jax.random.split(key)

    # feature map must be 8x8 (h*w = 64, hard-coded by attn_combine's in_features)
    images = jax.random.normal(k_img, (2, 3, 64, 64), jnp.float32)   # NCHW
    params = init_params(k_par, num_classes=10, hidden=32, embed=32)

    fwd = jax.jit(lambda imgs, prm: attention_ocr_forward(imgs, prm, max_length=8))
    logits = jax.block_until_ready(fwd(images, params))
    assert logits.shape == (2, 8, 10), logits.shape
    assert bool(jnp.all(jnp.isfinite(logits)))
    print("KERNEL_OK")
</pallas_src>

<mosaic_0001>
module attributes {stable_mosaic.version = 11 : i64} {
  func.func @attention_ocr_kernel(%arg0: memref<128x192xf32, #tpu.memory_space<vmem>>, %arg1: memref<192x512xf32, #tpu.memory_space<vmem>>, %arg2: memref<1x512xf32, #tpu.memory_space<vmem>>, %arg3: memref<512x32xf32, #tpu.memory_space<vmem>>, %arg4: memref<1x32xf32, #tpu.memory_space<vmem>>, %arg5: memref<10x32xf32, #tpu.memory_space<vmem>>, %arg6: memref<32x32xf32, #tpu.memory_space<vmem>>, %arg7: memref<1x32xf32, #tpu.memory_space<vmem>>, %arg8: memref<96x64xf32, #tpu.memory_space<vmem>>, %arg9: memref<1x64xf32, #tpu.memory_space<vmem>>, %arg10: memref<64x128xf32, #tpu.memory_space<vmem>>, %arg11: memref<32x128xf32, #tpu.memory_space<vmem>>, %arg12: memref<1x128xf32, #tpu.memory_space<vmem>>, %arg13: memref<1x128xf32, #tpu.memory_space<vmem>>, %arg14: memref<32x10xf32, #tpu.memory_space<vmem>>, %arg15: memref<1x10xf32, #tpu.memory_space<vmem>>, %arg16: memref<2x8x10xf32, #tpu.memory_space<vmem>>) attributes {dimension_semantics = [], scalar_prefetch = 0 : i64, scratch_operands = 0 : i64, tpu.core_type = #tpu.core_type<tc>} {
    %c0 = arith.constant 0 : index
    %c0_0 = arith.constant 0 : index
    %0 = vector.load %arg0[%c0, %c0_0] : memref<128x192xf32, #tpu.memory_space<vmem>>, vector<128x192xf32>
    %c0_1 = arith.constant 0 : index
    %c0_2 = arith.constant 0 : index
    %1 = vector.load %arg1[%c0_1, %c0_2] : memref<192x512xf32, #tpu.memory_space<vmem>>, vector<192x512xf32>
    %cst = arith.constant dense<0.000000e+00> : vector<128x512xf32>
    %2 = tpu.matmul %0, %1, %cst {dimension_numbers = #tpu.dot_dimension_numbers<[1], [0], [0], [1], [0, 0, 1, 1], [], []>} : vector<128x192xf32>, vector<192x512xf32>, vector<128x512xf32> -> vector<128x512xf32>
    %c0_3 = arith.constant 0 : index
    %c0_4 = arith.constant 0 : index
    %3 = vector.load %arg2[%c0_3, %c0_4] : memref<1x512xf32, #tpu.memory_space<vmem>>, vector<1x512xf32>
    %4 = vector.broadcast %3 : vector<1x512xf32> to vector<128x512xf32>
    %5 = arith.addf %2, %4 : vector<128x512xf32>
    %cst_5 = arith.constant 0.000000e+00 : f32
    %6 = vector.broadcast %cst_5 : f32 to vector<128x512xf32>
    %7 = arith.maximumf %5, %6 : vector<128x512xf32>
    %c0_6 = arith.constant 0 : index
    %c0_7 = arith.constant 0 : index
    %8 = vector.load %arg3[%c0_6, %c0_7] : memref<512x32xf32, #tpu.memory_space<vmem>>, vector<512x32xf32>
    %cst_8 = arith.constant dense<0.000000e+00> : vector<128x32xf32>
    %9 = tpu.matmul %7, %8, %cst_8 {dimension_numbers = #tpu.dot_dimension_numbers<[1], [0], [0], [1], [0, 0, 1, 1], [], []>} : vector<128x512xf32>, vector<512x32xf32>, vector<128x32xf32> -> vector<128x32xf32>
    %c0_9 = arith.constant 0 : index
    %c0_10 = arith.constant 0 : index
    %10 = vector.load %arg4[%c0_9, %c0_10] : memref<1x32xf32, #tpu.memory_space<vmem>>, vector<1x32xf32>
    %11 = vector.broadcast %10 : vector<1x32xf32> to vector<128x32xf32>
    %12 = arith.addf %9, %11 : vector<128x32xf32>
    %13 = vector.extract_strided_slice %12 {offsets = [0, 0], sizes = [64, 32], strides = [1, 1]} : vector<128x32xf32> to vector<64x32xf32>
    %14 = tpu.transpose %13, [1, 0] : vector<64x32xf32> -> vector<32x64xf32>
    %15 = vector.extract_strided_slice %12 {offsets = [64, 0], sizes = [64, 32], strides = [1, 1]} : vector<128x32xf32> to vector<64x32xf32>
    %16 = tpu.transpose %15, [1, 0] : vector<64x32xf32> -> vector<32x64xf32>
    %c0_11 = arith.constant 0 : index
    %c0_12 = arith.constant 0 : index
    %17 = vector.load %arg5[%c0_11, %c0_12] : memref<10x32xf32, #tpu.memory_space<vmem>>, vector<10x32xf32>
    %c0_13 = arith.constant 0 : index
    %c0_14 = arith.constant 0 : index
    %18 = vector.load %arg6[%c0_13, %c0_14] : memref<32x32xf32, #tpu.memory_space<vmem>>, vector<32x32xf32>
    %c0_15 = arith.constant 0 : index
    %c0_16 = arith.constant 0 : index
    %19 = vector.load %arg7[%c0_15, %c0_16] : memref<1x32xf32, #tpu.memory_space<vmem>>, vector<1x32xf32>
    %c0_17 = arith.constant 0 : index
    %c0_18 = arith.constant 0 : index
    %20 = vector.load %arg14[%c0_17, %c0_18] : memref<32x10xf32, #tpu.memory_space<vmem>>, vector<32x10xf32>
    %c0_19 = arith.constant 0 : index
    %c0_20 = arith.constant 0 : index
    %21 = vector.load %arg15[%c0_19, %c0_20] : memref<1x10xf32, #tpu.memory_space<vmem>>, vector<1x10xf32>
    %c0_21 = arith.constant 0 : index
    %c0_22 = arith.constant 0 : index
    %22 = vector.load %arg8[%c0_21, %c0_22] : memref<96x64xf32, #tpu.memory_space<vmem>>, vector<96x64xf32>
    %c0_23 = arith.constant 0 : index
    %c0_24 = arith.constant 0 : index
    %23 = vector.load %arg10[%c0_23, %c0_24] : memref<64x128xf32, #tpu.memory_space<vmem>>, vector<64x128xf32>
    %cst_25 = arith.constant dense<0.000000e+00> : vector<96x128xf32>
    %24 = tpu.matmul %22, %23, %cst_25 {dimension_numbers = #tpu.dot_dimension_numbers<[1], [0], [0], [1], [0, 0, 1, 1], [], []>} : vector<96x64xf32>, vector<64x128xf32>, vector<96x128xf32> -> vector<96x128xf32>
    %c0_26 = arith.constant 0 : index
    %c0_27 = arith.constant 0 : index
    %25 = vector.load %arg11[%c0_26, %c0_27] : memref<32x128xf32, #tpu.memory_space<vmem>>, vector<32x128xf32>
    %26 = tpu.concatenate %24, %25 in 0 : vector<96x128xf32>, vector<32x128xf32> -> vector<128x128xf32>
    %c0_28 = arith.constant 0 : index
    %c0_29 = arith.constant 0 : index
    %27 = vector.load %arg9[%c0_28, %c0_29] : memref<1x64xf32, #tpu.memory_space<vmem>>, vector<1x64xf32>
    %c0_30 = arith.constant 0 : index
    %c0_31 = arith.constant 0 : index
    %28 = vector.load %arg10[%c0_30, %c0_31] : memref<64x128xf32, #tpu.memory_space<vmem>>, vector<64x128xf32>
    %cst_32 = arith.constant dense<0.000000e+00> : vector<1x128xf32>
    %29 = tpu.matmul %27, %28, %cst_32 {dimension_numbers = #tpu.dot_dimension_numbers<[1], [0], [0], [1], [0, 0, 1, 1], [], []>} : vector<1x64xf32>, vector<64x128xf32>, vector<1x128xf32> -> vector<1x128xf32>
    %c0_33 = arith.constant 0 : index
    %c0_34 = arith.constant 0 : index
    %30 = vector.load %arg12[%c0_33, %c0_34] : memref<1x128xf32, #tpu.memory_space<vmem>>, vector<1x128xf32>
    %31 = arith.addf %29, %30 : vector<1x128xf32>
    %c0_35 = arith.constant 0 : index
    %c0_36 = arith.constant 0 : index
    %32 = vector.load %arg13[%c0_35, %c0_36] : memref<1x128xf32, #tpu.memory_space<vmem>>, vector<1x128xf32>
    %33 = arith.addf %31, %32 : vector<1x128xf32>
    %34 = tpu.iota {dimensions = array<i32: 1>} : vector<2x10xi32>
    %cst_37 = arith.constant 0.000000e+00 : f32
    %35 = vector.broadcast %cst_37 : f32 to vector<2x32xf32>
    %c0_i32 = arith.constant 0 : i32
    %36 = vector.broadcast %c0_i32 : i32 to vector<2x1xi32>
    %37 = vector.broadcast %36 : vector<2x1xi32> to vector<2x10xi32>
    %38 = arith.cmpi eq, %34, %37 : vector<2x10xi32>
    %39 = arith.extui %38 : vector<2x10xi1> to vector<2x10xi32>
    %40 = arith.sitofp %39 : vector<2x10xi32> to vector<2x10xf32>
    %cst_38 = arith.constant dense<0.000000e+00> : vector<2x32xf32>
    %41 = tpu.matmul %40, %17, %cst_38 {dimension_numbers = #tpu.dot_dimension_numbers<[1], [0], [0], [1], [0, 0, 1, 1], [], []>} : vector<2x10xf32>, vector<10x32xf32>, vector<2x32xf32> -> vector<2x32xf32>
    %cst_39 = arith.constant dense<0.000000e+00> : vector<2x32xf32>
    %42 = tpu.matmul %35, %18, %cst_39 {dimension_numbers = #tpu.dot_dimension_numbers<[1], [0], [0], [1], [0, 0, 1, 1], [], []>} : vector<2x32xf32>, vector<32x32xf32>, vector<2x32xf32> -> vector<2x32xf32>
    %43 = vector.broadcast %19 : vector<1x32xf32> to vector<2x32xf32>
    %44 = arith.addf %42, %43 : vector<2x32xf32>
    %cst_40 = arith.constant dense<0xFF800000> : vector<2xf32>
    %45 = vector.multi_reduction <maximumf>, %44, %cst_40 [1] : vector<2x32xf32> to vector<2xf32>
    %46 = vector.shape_cast %45 : vector<2xf32> to vector<2x1xf32>
    %47 = vector.broadcast %46 : vector<2x1xf32> to vector<2x32xf32>
    %48 = arith.subf %44, %47 : vector<2x32xf32>
    %49 = math.exp %48 : vector<2x32xf32>
    %cst_41 = arith.constant dense<0.000000e+00> : vector<2xf32>
    %50 = vector.multi_reduction <add>, %49, %cst_41 [1] : vector<2x32xf32> to vector<2xf32>
    %51 = vector.shape_cast %50 : vector<2xf32> to vector<2x1xf32>
    %52 = vector.broadcast %51 : vector<2x1xf32> to vector<2x32xf32>
    %53 = arith.divf %49, %52 : vector<2x32xf32>
    %54 = vector.extract_strided_slice %53 {offsets = [0, 0], sizes = [1, 32], strides = [1, 1]} : vector<2x32xf32> to vector<1x32xf32>
    %cst_42 = arith.constant dense<0.000000e+00> : vector<1x64xf32>
    %55 = tpu.matmul %54, %14, %cst_42 {dimension_numbers = #tpu.dot_dimension_numbers<[1], [0], [0], [1], [0, 0, 1, 1], [], []>} : vector<1x32xf32>, vector<32x64xf32>, vector<1x64xf32> -> vector<1x64xf32>
    %56 = vector.extract_strided_slice %53 {offsets = [1, 0], sizes = [1, 32], strides = [1, 1]} : vector<2x32xf32> to vector<1x32xf32>
    %cst_43 = arith.constant dense<0.000000e+00> : vector<1x64xf32>
    %57 = tpu.matmul %56, %16, %cst_43 {dimension_numbers = #tpu.dot_dimension_numbers<[1], [0], [0], [1], [0, 0, 1, 1], [], []>} : vector<1x32xf32>, vector<32x64xf32>, vector<1x64xf32> -> vector<1x64xf32>
    %58 = tpu.concatenate %55, %57 in 0 : vector<1x64xf32>, vector<1x64xf32> -> vector<2x64xf32>
    %59 = tpu.concatenate %41, %58, %35 in 1 : vector<2x32xf32>, vector<2x64xf32>, vector<2x32xf32> -> vector<2x128xf32>
    %cst_44 = arith.constant dense<0.000000e+00> : vector<2x128xf32>
    %60 = tpu.matmul %59, %26, %cst_44 {dimension_numbers = #tpu.dot_dimension_numbers<[1], [0], [0], [1], [0, 0, 1, 1], [], []>} : vector<2x128xf32>, vector<128x128xf32>, vector<2x128xf32> -> vector<2x128xf32>
    %61 = vector.broadcast %33 : vector<1x128xf32> to vector<2x128xf32>
    %62 = arith.addf %60, %61 : vector<2x128xf32>
    %63 = vector.extract_strided_slice %62 {offsets = [0, 0], sizes = [2, 32], strides = [1, 1]} : vector<2x128xf32> to vector<2x32xf32>
    %64 = arith.negf %63 : vector<2x32xf32>
    %65 = math.exp %64 : vector<2x32xf32>
    %cst_45 = arith.constant 1.000000e+00 : f32
    %66 = vector.broadcast %cst_45 : f32 to vector<2x32xf32>
    %67 = arith.addf %66, %65 : vector<2x32xf32>
    %68 = arith.divf %66, %67 : vector<2x32xf32>
    %69 = vector.extract_strided_slice %62 {offsets = [0, 32], sizes = [2, 32], strides = [1, 1]} : vector<2x128xf32> to vector<2x32xf32>
    %70 = arith.negf %69 : vector<2x32xf32>
    %71 = math.exp %70 : vector<2x32xf32>
    %cst_46 = arith.constant 1.000000e+00 : f32
    %72 = vector.broadcast %cst_46 : f32 to vector<2x32xf32>
    %73 = arith.addf %72, %71 : vector<2x32xf32>
    %74 = arith.divf %72, %73 : vector<2x32xf32>
    %75 = vector.extract_strided_slice %62 {offsets = [0, 64], sizes = [2, 32], strides = [1, 1]} : vector<2x128xf32> to vector<2x32xf32>
    %76 = math.tanh %75 : vector<2x32xf32>
    %77 = vector.extract_strided_slice %62 {offsets = [0, 96], sizes = [2, 32], strides = [1, 1]} : vector<2x128xf32> to vector<2x32xf32>
    %78 = arith.negf %77 : vector<2x32xf32>
    %79 = math.exp %78 : vector<2x32xf32>
    %cst_47 = arith.constant 1.000000e+00 : f32
    %80 = vector.broadcast %cst_47 : f32 to vector<2x32xf32>
    %81 = arith.addf %80, %79 : vector<2x32xf32>
    %82 = arith.divf %80, %81 : vector<2x32xf32>
    %83 = arith.mulf %74, %35 : vector<2x32xf32>
    %84 = arith.mulf %68, %76 : vector<2x32xf32>
    %85 = arith.addf %83, %84 : vector<2x32xf32>
    %86 = math.tanh %85 : vector<2x32xf32>
    %87 = arith.mulf %82, %86 : vector<2x32xf32>
    %cst_48 = arith.constant dense<0.000000e+00> : vector<2x10xf32>
    %88 = tpu.matmul %87, %20, %cst_48 {dimension_numbers = #tpu.dot_dimension_numbers<[1], [0], [0], [1], [0, 0, 1, 1], [], []>} : vector<2x32xf32>, vector<32x10xf32>, vector<2x10xf32> -> vector<2x10xf32>
    %89 = vector.broadcast %21 : vector<1x10xf32> to vector<2x10xf32>
    %90 = arith.addf %88, %89 : vector<2x10xf32>
    %c0_49 = arith.constant 0 : index
    %c0_50 = arith.constant 0 : index
    %c0_51 = arith.constant 0 : index
    %91 = vector.load %arg16[%c0_49, %c0_50, %c0_51] : memref<2x8x10xf32, #tpu.memory_space<vmem>>, vector<2x1x10xf32>
    %92 = vector.shape_cast %91 : vector<2x1x10xf32> to vector<2x10xf32>
    %93 = vector.shape_cast %90 : vector<2x10xf32> to vector<2x1x10xf32>
    tpu.vector_store %arg16[%c0_49, %c0_50, %c0_51], %93 {strides = array<i32>} : memref<2x8x10xf32, #tpu.memory_space<vmem>>, vector<2x1x10xf32>,
    %cst_52 = arith.constant dense<0xFF800000> : vector<2xf32>
    %94 = vector.multi_reduction <maximumf>, %90, %cst_52 [1] : vector<2x10xf32> to vector<2xf32>
    %95 = vector.shape_cast %94 : vector<2xf32> to vector<2x1xf32>
    %96 = vector.broadcast %95 : vector<2x1xf32> to vector<2x10xf32>
    %97 = arith.cmpf oge, %90, %96 : vector<2x10xf32>
    %c10_i32 = arith.constant 10 : i32
    %98 = vector.broadcast %c10_i32 : i32 to vector<2x10xi32>
    %99 = arith.select %97, %34, %98 : vector<2x10xi1>, vector<2x10xi32>
    %cst_53 = arith.constant dense<2147483647> : vector<2xi32>
    %100 = vector.multi_reduction <minsi>, %99, %cst_53 [1] : vector<2x10xi32> to vector<2xi32>
    %101 = vector.shape_cast %100 : vector<2xi32> to vector<2x1xi32>
    %102 = vector.broadcast %101 : vector<2x1xi32> to vector<2x10xi32>
    %103 = arith.cmpi eq, %34, %102 : vector<2x10xi32>
    %104 = arith.extui %103 : vector<2x10xi1> to vector<2x10xi32>
    %105 = arith.sitofp %104 : vector<2x10xi32> to vector<2x10xf32>
    %cst_54 = arith.constant dense<0.000000e+00> : vector<2x32xf32>
    %106 = tpu.matmul %105, %17, %cst_54 {dimension_numbers = #tpu.dot_dimension_numbers<[1], [0], [0], [1], [0, 0, 1, 1], [], []>} : vector<2x10xf32>, vector<10x32xf32>, vector<2x32xf32> -> vector<2x32xf32>
    %cst_55 = arith.constant dense<0.000000e+00> : vector<2x32xf32>
    %107 = tpu.matmul %87, %18, %cst_55 {dimension_numbers = #tpu.dot_dimension_numbers<[1], [0], [0], [1], [0, 0, 1, 1], [], []>} : vector<2x32xf32>, vector<32x32xf32>, vector<2x32xf32> -> vector<2x32xf32>
    %108 = vector.broadcast %19 : vector<1x32xf32> to vector<2x32xf32>
    %109 = arith.addf %107, %108 : vector<2x32xf32>
    %cst_56 = arith.constant dense<0xFF800000> : vector<2xf32>
    %110 = vector.multi_reduction <maximumf>, %109, %cst_56 [1] : vector<2x32xf32> to vector<2xf32>
    %111 = vector.shape_cast %110 : vector<2xf32> to vector<2x1xf32>
    %112 = vector.broadcast %111 : vector<2x1xf32> to vector<2x32xf32>
    %113 = arith.subf %109, %112 : vector<2x32xf32>
    %114 = math.exp %113 : vector<2x32xf32>
    %cst_57 = arith.constant dense<0.000000e+00> : vector<2xf32>
    %115 = vector.multi_reduction <add>, %114, %cst_57 [1] : vector<2x32xf32> to vector<2xf32>
    %116 = vector.shape_cast %115 : vector<2xf32> to vector<2x1xf32>
    %117 = vector.broadcast %116 : vector<2x1xf32> to vector<2x32xf32>
    %118 = arith.divf %114, %117 : vector<2x32xf32>
    %119 = vector.extract_strided_slice %118 {offsets = [0, 0], sizes = [1, 32], strides = [1, 1]} : vector<2x32xf32> to vector<1x32xf32>
    %cst_58 = arith.constant dense<0.000000e+00> : vector<1x64xf32>
    %120 = tpu.matmul %119, %14, %cst_58 {dimension_numbers = #tpu.dot_dimension_numbers<[1], [0], [0], [1], [0, 0, 1, 1], [], []>} : vector<1x32xf32>, vector<32x64xf32>, vector<1x64xf32> -> vector<1x64xf32>
    %121 = vector.extract_strided_slice %118 {offsets = [1, 0], sizes = [1, 32], strides = [1, 1]} : vector<2x32xf32> to vector<1x32xf32>
    %cst_59 = arith.constant dense<0.000000e+00> : vector<1x64xf32>
    %122 = tpu.matmul %121, %16, %cst_59 {dimension_numbers = #tpu.dot_dimension_numbers<[1], [0], [0], [1], [0, 0, 1, 1], [], []>} : vector<1x32xf32>, vector<32x64xf32>, vector<1x64xf32> -> vector<1x64xf32>
    %123 = tpu.concatenate %120, %122 in 0 : vector<1x64xf32>, vector<1x64xf32> -> vector<2x64xf32>
    %124 = tpu.concatenate %106, %123, %87 in 1 : vector<2x32xf32>, vector<2x64xf32>, vector<2x32xf32> -> vector<2x128xf32>
    %cst_60 = arith.constant dense<0.000000e+00> : vector<2x128xf32>
    %125 = tpu.matmul %124, %26, %cst_60 {dimension_numbers = #tpu.dot_dimension_numbers<[1], [0], [0], [1], [0, 0, 1, 1], [], []>} : vector<2x128xf32>, vector<128x128xf32>, vector<2x128xf32> -> vector<2x128xf32>
    %126 = vector.broadcast %33 : vector<1x128xf32> to vector<2x128xf32>
    %127 = arith.addf %125, %126 : vector<2x128xf32>
    %128 = vector.extract_strided_slice %127 {offsets = [0, 0], sizes = [2, 32], strides = [1, 1]} : vector<2x128xf32> to vector<2x32xf32>
    %129 = arith.negf %128 : vector<2x32xf32>
    %130 = math.exp %129 : vector<2x32xf32>
    %cst_61 = arith.constant 1.000000e+00 : f32
    %131 = vector.broadcast %cst_61 : f32 to vector<2x32xf32>
    %132 = arith.addf %131, %130 : vector<2x32xf32>
    %133 = arith.divf %131, %132 : vector<2x32xf32>
    %134 = vector.extract_strided_slice %127 {offsets = [0, 32], sizes = [2, 32], strides = [1, 1]} : vector<2x128xf32> to vector<2x32xf32>
    %135 = arith.negf %134 : vector<2x32xf32>
    %136 = math.exp %135 : vector<2x32xf32>
    %cst_62 = arith.constant 1.000000e+00 : f32
    %137 = vector.broadcast %cst_62 : f32 to vector<2x32xf32>
    %138 = arith.addf %137, %136 : vector<2x32xf32>
    %139 = arith.divf %137, %138 : vector<2x32xf32>
    %140 = vector.extract_strided_slice %127 {offsets = [0, 64], sizes = [2, 32], strides = [1, 1]} : vector<2x128xf32> to vector<2x32xf32>
    %141 = math.tanh %140 : vector<2x32xf32>
    %142 = vector.extract_strided_slice %127 {offsets = [0, 96], sizes = [2, 32], strides = [1, 1]} : vector<2x128xf32> to vector<2x32xf32>
    %143 = arith.negf %142 : vector<2x32xf32>
    %144 = math.exp %143 : vector<2x32xf32>
    %cst_63 = arith.constant 1.000000e+00 : f32
    %145 = vector.broadcast %cst_63 : f32 to vector<2x32xf32>
    %146 = arith.addf %145, %144 : vector<2x32xf32>
    %147 = arith.divf %145, %146 : vector<2x32xf32>
    %148 = arith.mulf %139, %87 : vector<2x32xf32>
    %149 = arith.mulf %133, %141 : vector<2x32xf32>
    %150 = arith.addf %148, %149 : vector<2x32xf32>
    %151 = math.tanh %150 : vector<2x32xf32>
    %152 = arith.mulf %147, %151 : vector<2x32xf32>
    %cst_64 = arith.constant dense<0.000000e+00> : vector<2x10xf32>
    %153 = tpu.matmul %152, %20, %cst_64 {dimension_numbers = #tpu.dot_dimension_numbers<[1], [0], [0], [1], [0, 0, 1, 1], [], []>} : vector<2x32xf32>, vector<32x10xf32>, vector<2x10xf32> -> vector<2x10xf32>
    %154 = vector.broadcast %21 : vector<1x10xf32> to vector<2x10xf32>
    %155 = arith.addf %153, %154 : vector<2x10xf32>
    %c0_65 = arith.constant 0 : index
    %c1 = arith.constant 1 : index
    %c0_66 = arith.constant 0 : index
    %156 = vector.load %arg16[%c0_65, %c1, %c0_66] : memref<2x8x10xf32, #tpu.memory_space<vmem>>, vector<2x1x10xf32>
    %157 = vector.shape_cast %156 : vector<2x1x10xf32> to vector<2x10xf32>
    %158 = vector.shape_cast %155 : vector<2x10xf32> to vector<2x1x10xf32>
    tpu.vector_store %arg16[%c0_65, %c1, %c0_66], %158 {strides = array<i32>} : memref<2x8x10xf32, #tpu.memory_space<vmem>>, vector<2x1x10xf32>,
    %cst_67 = arith.constant dense<0xFF800000> : vector<2xf32>
    %159 = vector.multi_reduction <maximumf>, %155, %cst_67 [1] : vector<2x10xf32> to vector<2xf32>
    %160 = vector.shape_cast %159 : vector<2xf32> to vector<2x1xf32>
    %161 = vector.broadcast %160 : vector<2x1xf32> to vector<2x10xf32>
    %162 = arith.cmpf oge, %155, %161 : vector<2x10xf32>
    %c10_i32_68 = arith.constant 10 : i32
    %163 = vector.broadcast %c10_i32_68 : i32 to vector<2x10xi32>
    %164 = arith.select %162, %34, %163 : vector<2x10xi1>, vector<2x10xi32>
    %cst_69 = arith.constant dense<2147483647> : vector<2xi32>
    %165 = vector.multi_reduction <minsi>, %164, %cst_69 [1] : vector<2x10xi32> to vector<2xi32>
    %166 = vector.shape_cast %165 : vector<2xi32> to vector<2x1xi32>
    %167 = vector.broadcast %166 : vector<2x1xi32> to vector<2x10xi32>
    %168 = arith.cmpi eq, %34, %167 : vector<2x10xi32>
    %169 = arith.extui %168 : vector<2x10xi1> to vector<2x10xi32>
    %170 = arith.sitofp %169 : vector<2x10xi32> to vector<2x10xf32>
    %cst_70 = arith.constant dense<0.000000e+00> : vector<2x32xf32>
    %171 = tpu.matmul %170, %17, %cst_70 {dimension_numbers = #tpu.dot_dimension_numbers<[1], [0], [0], [1], [0, 0, 1, 1], [], []>} : vector<2x10xf32>, vector<10x32xf32>, vector<2x32xf32> -> vector<2x32xf32>
    %cst_71 = arith.constant dense<0.000000e+00> : vector<2x32xf32>
    %172 = tpu.matmul %152, %18, %cst_71 {dimension_numbers = #tpu.dot_dimension_numbers<[1], [0], [0], [1], [0, 0, 1, 1], [], []>} : vector<2x32xf32>, vector<32x32xf32>, vector<2x32xf32> -> vector<2x32xf32>
    %173 = vector.broadcast %19 : vector<1x32xf32> to vector<2x32xf32>
    %174 = arith.addf %172, %173 : vector<2x32xf32>
    %cst_72 = arith.constant dense<0xFF800000> : vector<2xf32>
    %175 = vector.multi_reduction <maximumf>, %174, %cst_72 [1] : vector<2x32xf32> to vector<2xf32>
    %176 = vector.shape_cast %175 : vector<2xf32> to vector<2x1xf32>
    %177 = vector.broadcast %176 : vector<2x1xf32> to vector<2x32xf32>
    %178 = arith.subf %174, %177 : vector<2x32xf32>
    %179 = math.exp %178 : vector<2x32xf32>
    %cst_73 = arith.constant dense<0.000000e+00> : vector<2xf32>
    %180 = vector.multi_reduction <add>, %179, %cst_73 [1] : vector<2x32xf32> to vector<2xf32>
    %181 = vector.shape_cast %180 : vector<2xf32> to vector<2x1xf32>
    %182 = vector.broadcast %181 : vector<2x1xf32> to vector<2x32xf32>
    %183 = arith.divf %179, %182 : vector<2x32xf32>
    %184 = vector.extract_strided_slice %183 {offsets = [0, 0], sizes = [1, 32], strides = [1, 1]} : vector<2x32xf32> to vector<1x32xf32>
    %cst_74 = arith.constant dense<0.000000e+00> : vector<1x64xf32>
    %185 = tpu.matmul %184, %14, %cst_74 {dimension_numbers = #tpu.dot_dimension_numbers<[1], [0], [0], [1], [0, 0, 1, 1], [], []>} : vector<1x32xf32>, vector<32x64xf32>, vector<1x64xf32> -> vector<1x64xf32>
    %186 = vector.extract_strided_slice %183 {offsets = [1, 0], sizes = [1, 32], strides = [1, 1]} : vector<2x32xf32> to vector<1x32xf32>
    %cst_75 = arith.constant dense<0.000000e+00> : vector<1x64xf32>
    %187 = tpu.matmul %186, %16, %cst_75 {dimension_numbers = #tpu.dot_dimension_numbers<[1], [0], [0], [1], [0, 0, 1, 1], [], []>} : vector<1x32xf32>, vector<32x64xf32>, vector<1x64xf32> -> vector<1x64xf32>
    %188 = tpu.concatenate %185, %187 in 0 : vector<1x64xf32>, vector<1x64xf32> -> vector<2x64xf32>
    %189 = tpu.concatenate %171, %188, %152 in 1 : vector<2x32xf32>, vector<2x64xf32>, vector<2x32xf32> -> vector<2x128xf32>
    %cst_76 = arith.constant dense<0.000000e+00> : vector<2x128xf32>
    %190 = tpu.matmul %189, %26, %cst_76 {dimension_numbers = #tpu.dot_dimension_numbers<[1], [0], [0], [1], [0, 0, 1, 1], [], []>} : vector<2x128xf32>, vector<128x128xf32>, vector<2x128xf32> -> vector<2x128xf32>
    %191 = vector.broadcast %33 : vector<1x128xf32> to vector<2x128xf32>
    %192 = arith.addf %190, %191 : vector<2x128xf32>
    %193 = vector.extract_strided_slice %192 {offsets = [0, 0], sizes = [2, 32], strides = [1, 1]} : vector<2x128xf32> to vector<2x32xf32>
    %194 = arith.negf %193 : vector<2x32xf32>
    %195 = math.exp %194 : vector<2x32xf32>
    %cst_77 = arith.constant 1.000000e+00 : f32
    %196 = vector.broadcast %cst_77 : f32 to vector<2x32xf32>
    %197 = arith.addf %196, %195 : vector<2x32xf32>
    %198 = arith.divf %196, %197 : vector<2x32xf32>
    %199 = vector.extract_strided_slice %192 {offsets = [0, 32], sizes = [2, 32], strides = [1, 1]} : vector<2x128xf32> to vector<2x32xf32>
    %200 = arith.negf %199 : vector<2x32xf32>
    %201 = math.exp %200 : vector<2x32xf32>
    %cst_78 = arith.constant 1.000000e+00 : f32
    %202 = vector.broadcast %cst_78 : f32 to vector<2x32xf32>
    %203 = arith.addf %202, %201 : vector<2x32xf32>
    %204 = arith.divf %202, %203 : vector<2x32xf32>
    %205 = vector.extract_strided_slice %192 {offsets = [0, 64], sizes = [2, 32], strides = [1, 1]} : vector<2x128xf32> to vector<2x32xf32>
    %206 = math.tanh %205 : vector<2x32xf32>
    %207 = vector.extract_strided_slice %192 {offsets = [0, 96], sizes = [2, 32], strides = [1, 1]} : vector<2x128xf32> to vector<2x32xf32>
    %208 = arith.negf %207 : vector<2x32xf32>
    %209 = math.exp %208 : vector<2x32xf32>
    %cst_79 = arith.constant 1.000000e+00 : f32
    %210 = vector.broadcast %cst_79 : f32 to vector<2x32xf32>
    %211 = arith.addf %210, %209 : vector<2x32xf32>
    %212 = arith.divf %210, %211 : vector<2x32xf32>
    %213 = arith.mulf %204, %152 : vector<2x32xf32>
    %214 = arith.mulf %198, %206 : vector<2x32xf32>
    %215 = arith.addf %213, %214 : vector<2x32xf32>
    %216 = math.tanh %215 : vector<2x32xf32>
    %217 = arith.mulf %212, %216 : vector<2x32xf32>
    %cst_80 = arith.constant dense<0.000000e+00> : vector<2x10xf32>
    %218 = tpu.matmul %217, %20, %cst_80 {dimension_numbers = #tpu.dot_dimension_numbers<[1], [0], [0], [1], [0, 0, 1, 1], [], []>} : vector<2x32xf32>, vector<32x10xf32>, vector<2x10xf32> -> vector<2x10xf32>
    %219 = vector.broadcast %21 : vector<1x10xf32> to vector<2x10xf32>
    %220 = arith.addf %218, %219 : vector<2x10xf32>
    %c0_81 = arith.constant 0 : index
    %c2 = arith.constant 2 : index
    %c0_82 = arith.constant 0 : index
    %221 = vector.load %arg16[%c0_81, %c2, %c0_82] : memref<2x8x10xf32, #tpu.memory_space<vmem>>, vector<2x1x10xf32>
    %222 = vector.shape_cast %221 : vector<2x1x10xf32> to vector<2x10xf32>
    %223 = vector.shape_cast %220 : vector<2x10xf32> to vector<2x1x10xf32>
    tpu.vector_store %arg16[%c0_81, %c2, %c0_82], %223 {strides = array<i32>} : memref<2x8x10xf32, #tpu.memory_space<vmem>>, vector<2x1x10xf32>,
    %cst_83 = arith.constant dense<0xFF800000> : vector<2xf32>
    %224 = vector.multi_reduction <maximumf>, %220, %cst_83 [1] : vector<2x10xf32> to vector<2xf32>
    %225 = vector.shape_cast %224 : vector<2xf32> to vector<2x1xf32>
    %226 = vector.broadcast %225 : vector<2x1xf32> to vector<2x10xf32>
    %227 = arith.cmpf oge, %220, %226 : vector<2x10xf32>
    %c10_i32_84 = arith.constant 10 : i32
    %228 = vector.broadcast %c10_i32_84 : i32 to vector<2x10xi32>
    %229 = arith.select %227, %34, %228 : vector<2x10xi1>, vector<2x10xi32>
    %cst_85 = arith.constant dense<2147483647> : vector<2xi32>
    %230 = vector.multi_reduction <minsi>, %229, %cst_85 [1] : vector<2x10xi32> to vector<2xi32>
    %231 = vector.shape_cast %230 : vector<2xi32> to vector<2x1xi32>
    %232 = vector.broadcast %231 : vector<2x1xi32> to vector<2x10xi32>
    %233 = arith.cmpi eq, %34, %232 : vector<2x10xi32>
    %234 = arith.extui %233 : vector<2x10xi1> to vector<2x10xi32>
    %235 = arith.sitofp %234 : vector<2x10xi32> to vector<2x10xf32>
    %cst_86 = arith.constant dense<0.000000e+00> : vector<2x32xf32>
    %236 = tpu.matmul %235, %17, %cst_86 {dimension_numbers = #tpu.dot_dimension_numbers<[1], [0], [0], [1], [0, 0, 1, 1], [], []>} : vector<2x10xf32>, vector<10x32xf32>, vector<2x32xf32> -> vector<2x32xf32>
    %cst_87 = arith.constant dense<0.000000e+00> : vector<2x32xf32>
    %237 = tpu.matmul %217, %18, %cst_87 {dimension_numbers = #tpu.dot_dimension_numbers<[1], [0], [0], [1], [0, 0, 1, 1], [], []>} : vector<2x32xf32>, vector<32x32xf32>, vector<2x32xf32> -> vector<2x32xf32>
    %238 = vector.broadcast %19 : vector<1x32xf32> to vector<2x32xf32>
    %239 = arith.addf %237, %238 : vector<2x32xf32>
    %cst_88 = arith.constant dense<0xFF800000> : vector<2xf32>
    %240 = vector.multi_reduction <maximumf>, %239, %cst_88 [1] : vector<2x32xf32> to vector<2xf32>
    %241 = vector.shape_cast %240 : vector<2xf32> to vector<2x1xf32>
    %242 = vector.broadcast %241 : vector<2x1xf32> to vector<2x32xf32>
    %243 = arith.subf %239, %242 : vector<2x32xf32>
    %244 = math.exp %243 : vector<2x32xf32>
    %cst_89 = arith.constant dense<0.000000e+00> : vector<2xf32>
    %245 = vector.multi_reduction <add>, %244, %cst_89 [1] : vector<2x32xf32> to vector<2xf32>
    %246 = vector.shape_cast %245 : vector<2xf32> to vector<2x1xf32>
    %247 = vector.broadcast %246 : vector<2x1xf32> to vector<2x32xf32>
    %248 = arith.divf %244, %247 : vector<2x32xf32>
    %249 = vector.extract_strided_slice %248 {offsets = [0, 0], sizes = [1, 32], strides = [1, 1]} : vector<2x32xf32> to vector<1x32xf32>
    %cst_90 = arith.constant dense<0.000000e+00> : vector<1x64xf32>
    %250 = tpu.matmul %249, %14, %cst_90 {dimension_numbers = #tpu.dot_dimension_numbers<[1], [0], [0], [1], [0, 0, 1, 1], [], []>} : vector<1x32xf32>, vector<32x64xf32>, vector<1x64xf32> -> vector<1x64xf32>
    %251 = vector.extract_strided_slice %248 {offsets = [1, 0], sizes = [1, 32], strides = [1, 1]} : vector<2x32xf32> to vector<1x32xf32>
    %cst_91 = arith.constant dense<0.000000e+00> : vector<1x64xf32>
    %252 = tpu.matmul %251, %16, %cst_91 {dimension_numbers = #tpu.dot_dimension_numbers<[1], [0], [0], [1], [0, 0, 1, 1], [], []>} : vector<1x32xf32>, vector<32x64xf32>, vector<1x64xf32> -> vector<1x64xf32>
    %253 = tpu.concatenate %250, %252 in 0 : vector<1x64xf32>, vector<1x64xf32> -> vector<2x64xf32>
    %254 = tpu.concatenate %236, %253, %217 in 1 : vector<2x32xf32>, vector<2x64xf32>, vector<2x32xf32> -> vector<2x128xf32>
    %cst_92 = arith.constant dense<0.000000e+00> : vector<2x128xf32>
    %255 = tpu.matmul %254, %26, %cst_92 {dimension_numbers = #tpu.dot_dimension_numbers<[1], [0], [0], [1], [0, 0, 1, 1], [], []>} : vector<2x128xf32>, vector<128x128xf32>, vector<2x128xf32> -> vector<2x128xf32>
    %256 = vector.broadcast %33 : vector<1x128xf32> to vector<2x128xf32>
    %257 = arith.addf %255, %256 : vector<2x128xf32>
    %258 = vector.extract_strided_slice %257 {offsets = [0, 0], sizes = [2, 32], strides = [1, 1]} : vector<2x128xf32> to vector<2x32xf32>
    %259 = arith.negf %258 : vector<2x32xf32>
    %260 = math.exp %259 : vector<2x32xf32>
    %cst_93 = arith.constant 1.000000e+00 : f32
    %261 = vector.broadcast %cst_93 : f32 to vector<2x32xf32>
    %262 = arith.addf %261, %260 : vector<2x32xf32>
    %263 = arith.divf %261, %262 : vector<2x32xf32>
    %264 = vector.extract_strided_slice %257 {offsets = [0, 32], sizes = [2, 32], strides = [1, 1]} : vector<2x128xf32> to vector<2x32xf32>
    %265 = arith.negf %264 : vector<2x32xf32>
    %266 = math.exp %265 : vector<2x32xf32>
    %cst_94 = arith.constant 1.000000e+00 : f32
    %267 = vector.broadcast %cst_94 : f32 to vector<2x32xf32>
    %268 = arith.addf %267, %266 : vector<2x32xf32>
    %269 = arith.divf %267, %268 : vector<2x32xf32>
    %270 = vector.extract_strided_slice %257 {offsets = [0, 64], sizes = [2, 32], strides = [1, 1]} : vector<2x128xf32> to vector<2x32xf32>
    %271 = math.tanh %270 : vector<2x32xf32>
    %272 = vector.extract_strided_slice %257 {offsets = [0, 96], sizes = [2, 32], strides = [1, 1]} : vector<2x128xf32> to vector<2x32xf32>
    %273 = arith.negf %272 : vector<2x32xf32>
    %274 = math.exp %273 : vector<2x32xf32>
    %cst_95 = arith.constant 1.000000e+00 : f32
    %275 = vector.broadcast %cst_95 : f32 to vector<2x32xf32>
    %276 = arith.addf %275, %274 : vector<2x32xf32>
    %277 = arith.divf %275, %276 : vector<2x32xf32>
    %278 = arith.mulf %269, %217 : vector<2x32xf32>
    %279 = arith.mulf %263, %271 : vector<2x32xf32>
    %280 = arith.addf %278, %279 : vector<2x32xf32>
    %281 = math.tanh %280 : vector<2x32xf32>
    %282 = arith.mulf %277, %281 : vector<2x32xf32>
    %cst_96 = arith.constant dense<0.000000e+00> : vector<2x10xf32>
    %283 = tpu.matmul %282, %20, %cst_96 {dimension_numbers = #tpu.dot_dimension_numbers<[1], [0], [0], [1], [0, 0, 1, 1], [], []>} : vector<2x32xf32>, vector<32x10xf32>, vector<2x10xf32> -> vector<2x10xf32>
    %284 = vector.broadcast %21 : vector<1x10xf32> to vector<2x10xf32>
    %285 = arith.addf %283, %284 : vector<2x10xf32>
    %c0_97 = arith.constant 0 : index
    %c3 = arith.constant 3 : index
    %c0_98 = arith.constant 0 : index
    %286 = vector.load %arg16[%c0_97, %c3, %c0_98] : memref<2x8x10xf32, #tpu.memory_space<vmem>>, vector<2x1x10xf32>
    %287 = vector.shape_cast %286 : vector<2x1x10xf32> to vector<2x10xf32>
    %288 = vector.shape_cast %285 : vector<2x10xf32> to vector<2x1x10xf32>
    tpu.vector_store %arg16[%c0_97, %c3, %c0_98], %288 {strides = array<i32>} : memref<2x8x10xf32, #tpu.memory_space<vmem>>, vector<2x1x10xf32>,
    %cst_99 = arith.constant dense<0xFF800000> : vector<2xf32>
    %289 = vector.multi_reduction <maximumf>, %285, %cst_99 [1] : vector<2x10xf32> to vector<2xf32>
    %290 = vector.shape_cast %289 : vector<2xf32> to vector<2x1xf32>
    %291 = vector.broadcast %290 : vector<2x1xf32> to vector<2x10xf32>
    %292 = arith.cmpf oge, %285, %291 : vector<2x10xf32>
    %c10_i32_100 = arith.constant 10 : i32
    %293 = vector.broadcast %c10_i32_100 : i32 to vector<2x10xi32>
    %294 = arith.select %292, %34, %293 : vector<2x10xi1>, vector<2x10xi32>
    %cst_101 = arith.constant dense<2147483647> : vector<2xi32>
    %295 = vector.multi_reduction <minsi>, %294, %cst_101 [1] : vector<2x10xi32> to vector<2xi32>
    %296 = vector.shape_cast %295 : vector<2xi32> to vector<2x1xi32>
    %297 = vector.broadcast %296 : vector<2x1xi32> to vector<2x10xi32>
    %298 = arith.cmpi eq, %34, %297 : vector<2x10xi32>
    %299 = arith.extui %298 : vector<2x10xi1> to vector<2x10xi32>
    %300 = arith.sitofp %299 : vector<2x10xi32> to vector<2x10xf32>
    %cst_102 = arith.constant dense<0.000000e+00> : vector<2x32xf32>
    %301 = tpu.matmul %300, %17, %cst_102 {dimension_numbers = #tpu.dot_dimension_numbers<[1], [0], [0], [1], [0, 0, 1, 1], [], []>} : vector<2x10xf32>, vector<10x32xf32>, vector<2x32xf32> -> vector<2x32xf32>
    %cst_103 = arith.constant dense<0.000000e+00> : vector<2x32xf32>
    %302 = tpu.matmul %282, %18, %cst_103 {dimension_numbers = #tpu.dot_dimension_numbers<[1], [0], [0], [1], [0, 0, 1, 1], [], []>} : vector<2x32xf32>, vector<32x32xf32>, vector<2x32xf32> -> vector<2x32xf32>
    %303 = vector.broadcast %19 : vector<1x32xf32> to vector<2x32xf32>
    %304 = arith.addf %302, %303 : vector<2x32xf32>
    %cst_104 = arith.constant dense<0xFF800000> : vector<2xf32>
    %305 = vector.multi_reduction <maximumf>, %304, %cst_104 [1] : vector<2x32xf32> to vector<2xf32>
    %306 = vector.shape_cast %305 : vector<2xf32> to vector<2x1xf32>
    %307 = vector.broadcast %306 : vector<2x1xf32> to vector<2x32xf32>
    %308 = arith.subf %304, %307 : vector<2x32xf32>
    %309 = math.exp %308 : vector<2x32xf32>
    %cst_105 = arith.constant dense<0.000000e+00> : vector<2xf32>
    %310 = vector.multi_reduction <add>, %309, %cst_105 [1] : vector<2x32xf32> to vector<2xf32>
    %311 = vector.shape_cast %310 : vector<2xf32> to vector<2x1xf32>
    %312 = vector.broadcast %311 : vector<2x1xf32> to vector<2x32xf32>
    %313 = arith.divf %309, %312 : vector<2x32xf32>
    %314 = vector.extract_strided_slice %313 {offsets = [0, 0], sizes = [1, 32], strides = [1, 1]} : vector<2x32xf32> to vector<1x32xf32>
    %cst_106 = arith.constant dense<0.000000e+00> : vector<1x64xf32>
    %315 = tpu.matmul %314, %14, %cst_106 {dimension_numbers = #tpu.dot_dimension_numbers<[1], [0], [0], [1], [0, 0, 1, 1], [], []>} : vector<1x32xf32>, vector<32x64xf32>, vector<1x64xf32> -> vector<1x64xf32>
    %316 = vector.extract_strided_slice %313 {offsets = [1, 0], sizes = [1, 32], strides = [1, 1]} : vector<2x32xf32> to vector<1x32xf32>
    %cst_107 = arith.constant dense<0.000000e+00> : vector<1x64xf32>
    %317 = tpu.matmul %316, %16, %cst_107 {dimension_numbers = #tpu.dot_dimension_numbers<[1], [0], [0], [1], [0, 0, 1, 1], [], []>} : vector<1x32xf32>, vector<32x64xf32>, vector<1x64xf32> -> vector<1x64xf32>
    %318 = tpu.concatenate %315, %317 in 0 : vector<1x64xf32>, vector<1x64xf32> -> vector<2x64xf32>
    %319 = tpu.concatenate %301, %318, %282 in 1 : vector<2x32xf32>, vector<2x64xf32>, vector<2x32xf32> -> vector<2x128xf32>
    %cst_108 = arith.constant dense<0.000000e+00> : vector<2x128xf32>
    %320 = tpu.matmul %319, %26, %cst_108 {dimension_numbers = #tpu.dot_dimension_numbers<[1], [0], [0], [1], [0, 0, 1, 1], [], []>} : vector<2x128xf32>, vector<128x128xf32>, vector<2x128xf32> -> vector<2x128xf32>
    %321 = vector.broadcast %33 : vector<1x128xf32> to vector<2x128xf32>
    %322 = arith.addf %320, %321 : vector<2x128xf32>
    %323 = vector.extract_strided_slice %322 {offsets = [0, 0], sizes = [2, 32], strides = [1, 1]} : vector<2x128xf32> to vector<2x32xf32>
    %324 = arith.negf %323 : vector<2x32xf32>
    %325 = math.exp %324 : vector<2x32xf32>
    %cst_109 = arith.constant 1.000000e+00 : f32
    %326 = vector.broadcast %cst_109 : f32 to vector<2x32xf32>
    %327 = arith.addf %326, %325 : vector<2x32xf32>
    %328 = arith.divf %326, %327 : vector<2x32xf32>
    %329 = vector.extract_strided_slice %322 {offsets = [0, 32], sizes = [2, 32], strides = [1, 1]} : vector<2x128xf32> to vector<2x32xf32>
    %330 = arith.negf %329 : vector<2x32xf32>
    %331 = math.exp %330 : vector<2x32xf32>
    %cst_110 = arith.constant 1.000000e+00 : f32
    %332 = vector.broadcast %cst_110 : f32 to vector<2x32xf32>
    %333 = arith.addf %332, %331 : vector<2x32xf32>
    %334 = arith.divf %332, %333 : vector<2x32xf32>
    %335 = vector.extract_strided_slice %322 {offsets = [0, 64], sizes = [2, 32], strides = [1, 1]} : vector<2x128xf32> to vector<2x32xf32>
    %336 = math.tanh %335 : vector<2x32xf32>
    %337 = vector.extract_strided_slice %322 {offsets = [0, 96], sizes = [2, 32], strides = [1, 1]} : vector<2x128xf32> to vector<2x32xf32>
    %338 = arith.negf %337 : vector<2x32xf32>
    %339 = math.exp %338 : vector<2x32xf32>
    %cst_111 = arith.constant 1.000000e+00 : f32
    %340 = vector.broadcast %cst_111 : f32 to vector<2x32xf32>
    %341 = arith.addf %340, %339 : vector<2x32xf32>
    %342 = arith.divf %340, %341 : vector<2x32xf32>
    %343 = arith.mulf %334, %282 : vector<2x32xf32>
    %344 = arith.mulf %328, %336 : vector<2x32xf32>
    %345 = arith.addf %343, %344 : vector<2x32xf32>
    %346 = math.tanh %345 : vector<2x32xf32>
    %347 = arith.mulf %342, %346 : vector<2x32xf32>
    %cst_112 = arith.constant dense<0.000000e+00> : vector<2x10xf32>
    %348 = tpu.matmul %347, %20, %cst_112 {dimension_numbers = #tpu.dot_dimension_numbers<[1], [0], [0], [1], [0, 0, 1, 1], [], []>} : vector<2x32xf32>, vector<32x10xf32>, vector<2x10xf32> -> vector<2x10xf32>
    %349 = vector.broadcast %21 : vector<1x10xf32> to vector<2x10xf32>
    %350 = arith.addf %348, %349 : vector<2x10xf32>
    %c0_113 = arith.constant 0 : index
    %c4 = arith.constant 4 : index
    %c0_114 = arith.constant 0 : index
    %351 = vector.load %arg16[%c0_113, %c4, %c0_114] : memref<2x8x10xf32, #tpu.memory_space<vmem>>, vector<2x1x10xf32>
    %352 = vector.shape_cast %351 : vector<2x1x10xf32> to vector<2x10xf32>
    %353 = vector.shape_cast %350 : vector<2x10xf32> to vector<2x1x10xf32>
    tpu.vector_store %arg16[%c0_113, %c4, %c0_114], %353 {strides = array<i32>} : memref<2x8x10xf32, #tpu.memory_space<vmem>>, vector<2x1x10xf32>,
    %cst_115 = arith.constant dense<0xFF800000> : vector<2xf32>
    %354 = vector.multi_reduction <maximumf>, %350, %cst_115 [1] : vector<2x10xf32> to vector<2xf32>
    %355 = vector.shape_cast %354 : vector<2xf32> to vector<2x1xf32>
    %356 = vector.broadcast %355 : vector<2x1xf32> to vector<2x10xf32>
    %357 = arith.cmpf oge, %350, %356 : vector<2x10xf32>
    %c10_i32_116 = arith.constant 10 : i32
    %358 = vector.broadcast %c10_i32_116 : i32 to vector<2x10xi32>
    %359 = arith.select %357, %34, %358 : vector<2x10xi1>, vector<2x10xi32>
    %cst_117 = arith.constant dense<2147483647> : vector<2xi32>
    %360 = vector.multi_reduction <minsi>, %359, %cst_117 [1] : vector<2x10xi32> to vector<2xi32>
    %361 = vector.shape_cast %360 : vector<2xi32> to vector<2x1xi32>
    %362 = vector.broadcast %361 : vector<2x1xi32> to vector<2x10xi32>
    %363 = arith.cmpi eq, %34, %362 : vector<2x10xi32>
    %364 = arith.extui %363 : vector<2x10xi1> to vector<2x10xi32>
    %365 = arith.sitofp %364 : vector<2x10xi32> to vector<2x10xf32>
    %cst_118 = arith.constant dense<0.000000e+00> : vector<2x32xf32>
    %366 = tpu.matmul %365, %17, %cst_118 {dimension_numbers = #tpu.dot_dimension_numbers<[1], [0], [0], [1], [0, 0, 1, 1], [], []>} : vector<2x10xf32>, vector<10x32xf32>, vector<2x32xf32> -> vector<2x32xf32>
    %cst_119 = arith.constant dense<0.000000e+00> : vector<2x32xf32>
    %367 = tpu.matmul %347, %18, %cst_119 {dimension_numbers = #tpu.dot_dimension_numbers<[1], [0], [0], [1], [0, 0, 1, 1], [], []>} : vector<2x32xf32>, vector<32x32xf32>, vector<2x32xf32> -> vector<2x32xf32>
    %368 = vector.broadcast %19 : vector<1x32xf32> to vector<2x32xf32>
    %369 = arith.addf %367, %368 : vector<2x32xf32>
    %cst_120 = arith.constant dense<0xFF800000> : vector<2xf32>
    %370 = vector.multi_reduction <maximumf>, %369, %cst_120 [1] : vector<2x32xf32> to vector<2xf32>
    %371 = vector.shape_cast %370 : vector<2xf32> to vector<2x1xf32>
    %372 = vector.broadcast %371 : vector<2x1xf32> to vector<2x32xf32>
    %373 = arith.subf %369, %372 : vector<2x32xf32>
    %374 = math.exp %373 : vector<2x32xf32>
    %cst_121 = arith.constant dense<0.000000e+00> : vector<2xf32>
    %375 = vector.multi_reduction <add>, %374, %cst_121 [1] : vector<2x32xf32> to vector<2xf32>
    %376 = vector.shape_cast %375 : vector<2xf32> to vector<2x1xf32>
    %377 = vector.broadcast %376 : vector<2x1xf32> to vector<2x32xf32>
    %378 = arith.divf %374, %377 : vector<2x32xf32>
    %379 = vector.extract_strided_slice %378 {offsets = [0, 0], sizes = [1, 32], strides = [1, 1]} : vector<2x32xf32> to vector<1x32xf32>
    %cst_122 = arith.constant dense<0.000000e+00> : vector<1x64xf32>
    %380 = tpu.matmul %379, %14, %cst_122 {dimension_numbers = #tpu.dot_dimension_numbers<[1], [0], [0], [1], [0, 0, 1, 1], [], []>} : vector<1x32xf32>, vector<32x64xf32>, vector<1x64xf32> -> vector<1x64xf32>
    %381 = vector.extract_strided_slice %378 {offsets = [1, 0], sizes = [1, 32], strides = [1, 1]} : vector<2x32xf32> to vector<1x32xf32>
    %cst_123 = arith.constant dense<0.000000e+00> : vector<1x64xf32>
    %382 = tpu.matmul %381, %16, %cst_123 {dimension_numbers = #tpu.dot_dimension_numbers<[1], [0], [0], [1], [0, 0, 1, 1], [], []>} : vector<1x32xf32>, vector<32x64xf32>, vector<1x64xf32> -> vector<1x64xf32>
    %383 = tpu.concatenate %380, %382 in 0 : vector<1x64xf32>, vector<1x64xf32> -> vector<2x64xf32>
    %384 = tpu.concatenate %366, %383, %347 in 1 : vector<2x32xf32>, vector<2x64xf32>, vector<2x32xf32> -> vector<2x128xf32>
    %cst_124 = arith.constant dense<0.000000e+00> : vector<2x128xf32>
    %385 = tpu.matmul %384, %26, %cst_124 {dimension_numbers = #tpu.dot_dimension_numbers<[1], [0], [0], [1], [0, 0, 1, 1], [], []>} : vector<2x128xf32>, vector<128x128xf32>, vector<2x128xf32> -> vector<2x128xf32>
    %386 = vector.broadcast %33 : vector<1x128xf32> to vector<2x128xf32>
    %387 = arith.addf %385, %386 : vector<2x128xf32>
    %388 = vector.extract_strided_slice %387 {offsets = [0, 0], sizes = [2, 32], strides = [1, 1]} : vector<2x128xf32> to vector<2x32xf32>
    %389 = arith.negf %388 : vector<2x32xf32>
    %390 = math.exp %389 : vector<2x32xf32>
    %cst_125 = arith.constant 1.000000e+00 : f32
    %391 = vector.broadcast %cst_125 : f32 to vector<2x32xf32>
    %392 = arith.addf %391, %390 : vector<2x32xf32>
    %393 = arith.divf %391, %392 : vector<2x32xf32>
    %394 = vector.extract_strided_slice %387 {offsets = [0, 32], sizes = [2, 32], strides = [1, 1]} : vector<2x128xf32> to vector<2x32xf32>
    %395 = arith.negf %394 : vector<2x32xf32>
    %396 = math.exp %395 : vector<2x32xf32>
    %cst_126 = arith.constant 1.000000e+00 : f32
    %397 = vector.broadcast %cst_126 : f32 to vector<2x32xf32>
    %398 = arith.addf %397, %396 : vector<2x32xf32>
    %399 = arith.divf %397, %398 : vector<2x32xf32>
    %400 = vector.extract_strided_slice %387 {offsets = [0, 64], sizes = [2, 32], strides = [1, 1]} : vector<2x128xf32> to vector<2x32xf32>
    %401 = math.tanh %400 : vector<2x32xf32>
    %402 = vector.extract_strided_slice %387 {offsets = [0, 96], sizes = [2, 32], strides = [1, 1]} : vector<2x128xf32> to vector<2x32xf32>
    %403 = arith.negf %402 : vector<2x32xf32>
    %404 = math.exp %403 : vector<2x32xf32>
    %cst_127 = arith.constant 1.000000e+00 : f32
    %405 = vector.broadcast %cst_127 : f32 to vector<2x32xf32>
    %406 = arith.addf %405, %404 : vector<2x32xf32>
    %407 = arith.divf %405, %406 : vector<2x32xf32>
    %408 = arith.mulf %399, %347 : vector<2x32xf32>
    %409 = arith.mulf %393, %401 : vector<2x32xf32>
    %410 = arith.addf %408, %409 : vector<2x32xf32>
    %411 = math.tanh %410 : vector<2x32xf32>
    %412 = arith.mulf %407, %411 : vector<2x32xf32>
    %cst_128 = arith.constant dense<0.000000e+00> : vector<2x10xf32>
    %413 = tpu.matmul %412, %20, %cst_128 {dimension_numbers = #tpu.dot_dimension_numbers<[1], [0], [0], [1], [0, 0, 1, 1], [], []>} : vector<2x32xf32>, vector<32x10xf32>, vector<2x10xf32> -> vector<2x10xf32>
    %414 = vector.broadcast %21 : vector<1x10xf32> to vector<2x10xf32>
    %415 = arith.addf %413, %414 : vector<2x10xf32>
    %c0_129 = arith.constant 0 : index
    %c5 = arith.constant 5 : index
    %c0_130 = arith.constant 0 : index
    %416 = vector.load %arg16[%c0_129, %c5, %c0_130] : memref<2x8x10xf32, #tpu.memory_space<vmem>>, vector<2x1x10xf32>
    %417 = vector.shape_cast %416 : vector<2x1x10xf32> to vector<2x10xf32>
    %418 = vector.shape_cast %415 : vector<2x10xf32> to vector<2x1x10xf32>
    tpu.vector_store %arg16[%c0_129, %c5, %c0_130], %418 {strides = array<i32>} : memref<2x8x10xf32, #tpu.memory_space<vmem>>, vector<2x1x10xf32>,
    %cst_131 = arith.constant dense<0xFF800000> : vector<2xf32>
    %419 = vector.multi_reduction <maximumf>, %415, %cst_131 [1] : vector<2x10xf32> to vector<2xf32>
    %420 = vector.shape_cast %419 : vector<2xf32> to vector<2x1xf32>
    %421 = vector.broadcast %420 : vector<2x1xf32> to vector<2x10xf32>
    %422 = arith.cmpf oge, %415, %421 : vector<2x10xf32>
    %c10_i32_132 = arith.constant 10 : i32
    %423 = vector.broadcast %c10_i32_132 : i32 to vector<2x10xi32>
    %424 = arith.select %422, %34, %423 : vector<2x10xi1>, vector<2x10xi32>
    %cst_133 = arith.constant dense<2147483647> : vector<2xi32>
    %425 = vector.multi_reduction <minsi>, %424, %cst_133 [1] : vector<2x10xi32> to vector<2xi32>
    %426 = vector.shape_cast %425 : vector<2xi32> to vector<2x1xi32>
    %427 = vector.broadcast %426 : vector<2x1xi32> to vector<2x10xi32>
    %428 = arith.cmpi eq, %34, %427 : vector<2x10xi32>
    %429 = arith.extui %428 : vector<2x10xi1> to vector<2x10xi32>
    %430 = arith.sitofp %429 : vector<2x10xi32> to vector<2x10xf32>
    %cst_134 = arith.constant dense<0.000000e+00> : vector<2x32xf32>
    %431 = tpu.matmul %430, %17, %cst_134 {dimension_numbers = #tpu.dot_dimension_numbers<[1], [0], [0], [1], [0, 0, 1, 1], [], []>} : vector<2x10xf32>, vector<10x32xf32>, vector<2x32xf32> -> vector<2x32xf32>
    %cst_135 = arith.constant dense<0.000000e+00> : vector<2x32xf32>
    %432 = tpu.matmul %412, %18, %cst_135 {dimension_numbers = #tpu.dot_dimension_numbers<[1], [0], [0], [1], [0, 0, 1, 1], [], []>} : vector<2x32xf32>, vector<32x32xf32>, vector<2x32xf32> -> vector<2x32xf32>
    %433 = vector.broadcast %19 : vector<1x32xf32> to vector<2x32xf32>
    %434 = arith.addf %432, %433 : vector<2x32xf32>
    %cst_136 = arith.constant dense<0xFF800000> : vector<2xf32>
    %435 = vector.multi_reduction <maximumf>, %434, %cst_136 [1] : vector<2x32xf32> to vector<2xf32>
    %436 = vector.shape_cast %435 : vector<2xf32> to vector<2x1xf32>
    %437 = vector.broadcast %436 : vector<2x1xf32> to vector<2x32xf32>
    %438 = arith.subf %434, %437 : vector<2x32xf32>
    %439 = math.exp %438 : vector<2x32xf32>
    %cst_137 = arith.constant dense<0.000000e+00> : vector<2xf32>
    %440 = vector.multi_reduction <add>, %439, %cst_137 [1] : vector<2x32xf32> to vector<2xf32>
    %441 = vector.shape_cast %440 : vector<2xf32> to vector<2x1xf32>
    %442 = vector.broadcast %441 : vector<2x1xf32> to vector<2x32xf32>
    %443 = arith.divf %439, %442 : vector<2x32xf32>
    %444 = vector.extract_strided_slice %443 {offsets = [0, 0], sizes = [1, 32], strides = [1, 1]} : vector<2x32xf32> to vector<1x32xf32>
    %cst_138 = arith.constant dense<0.000000e+00> : vector<1x64xf32>
    %445 = tpu.matmul %444, %14, %cst_138 {dimension_numbers = #tpu.dot_dimension_numbers<[1], [0], [0], [1], [0, 0, 1, 1], [], []>} : vector<1x32xf32>, vector<32x64xf32>, vector<1x64xf32> -> vector<1x64xf32>
    %446 = vector.extract_strided_slice %443 {offsets = [1, 0], sizes = [1, 32], strides = [1, 1]} : vector<2x32xf32> to vector<1x32xf32>
    %cst_139 = arith.constant dense<0.000000e+00> : vector<1x64xf32>
    %447 = tpu.matmul %446, %16, %cst_139 {dimension_numbers = #tpu.dot_dimension_numbers<[1], [0], [0], [1], [0, 0, 1, 1], [], []>} : vector<1x32xf32>, vector<32x64xf32>, vector<1x64xf32> -> vector<1x64xf32>
    %448 = tpu.concatenate %445, %447 in 0 : vector<1x64xf32>, vector<1x64xf32> -> vector<2x64xf32>
    %449 = tpu.concatenate %431, %448, %412 in 1 : vector<2x32xf32>, vector<2x64xf32>, vector<2x32xf32> -> vector<2x128xf32>
    %cst_140 = arith.constant dense<0.000000e+00> : vector<2x128xf32>
    %450 = tpu.matmul %449, %26, %cst_140 {dimension_numbers = #tpu.dot_dimension_numbers<[1], [0], [0], [1], [0, 0, 1, 1], [], []>} : vector<2x128xf32>, vector<128x128xf32>, vector<2x128xf32> -> vector<2x128xf32>
    %451 = vector.broadcast %33 : vector<1x128xf32> to vector<2x128xf32>
    %452 = arith.addf %450, %451 : vector<2x128xf32>
    %453 = vector.extract_strided_slice %452 {offsets = [0, 0], sizes = [2, 32], strides = [1, 1]} : vector<2x128xf32> to vector<2x32xf32>
    %454 = arith.negf %453 : vector<2x32xf32>
    %455 = math.exp %454 : vector<2x32xf32>
    %cst_141 = arith.constant 1.000000e+00 : f32
    %456 = vector.broadcast %cst_141 : f32 to vector<2x32xf32>
    %457 = arith.addf %456, %455 : vector<2x32xf32>
    %458 = arith.divf %456, %457 : vector<2x32xf32>
    %459 = vector.extract_strided_slice %452 {offsets = [0, 32], sizes = [2, 32], strides = [1, 1]} : vector<2x128xf32> to vector<2x32xf32>
    %460 = arith.negf %459 : vector<2x32xf32>
    %461 = math.exp %460 : vector<2x32xf32>
    %cst_142 = arith.constant 1.000000e+00 : f32
    %462 = vector.broadcast %cst_142 : f32 to vector<2x32xf32>
    %463 = arith.addf %462, %461 : vector<2x32xf32>
    %464 = arith.divf %462, %463 : vector<2x32xf32>
    %465 = vector.extract_strided_slice %452 {offsets = [0, 64], sizes = [2, 32], strides = [1, 1]} : vector<2x128xf32> to vector<2x32xf32>
    %466 = math.tanh %465 : vector<2x32xf32>
    %467 = vector.extract_strided_slice %452 {offsets = [0, 96], sizes = [2, 32], strides = [1, 1]} : vector<2x128xf32> to vector<2x32xf32>
    %468 = arith.negf %467 : vector<2x32xf32>
    %469 = math.exp %468 : vector<2x32xf32>
    %cst_143 = arith.constant 1.000000e+00 : f32
    %470 = vector.broadcast %cst_143 : f32 to vector<2x32xf32>
    %471 = arith.addf %470, %469 : vector<2x32xf32>
    %472 = arith.divf %470, %471 : vector<2x32xf32>
    %473 = arith.mulf %464, %412 : vector<2x32xf32>
    %474 = arith.mulf %458, %466 : vector<2x32xf32>
    %475 = arith.addf %473, %474 : vector<2x32xf32>
    %476 = math.tanh %475 : vector<2x32xf32>
    %477 = arith.mulf %472, %476 : vector<2x32xf32>
    %cst_144 = arith.constant dense<0.000000e+00> : vector<2x10xf32>
    %478 = tpu.matmul %477, %20, %cst_144 {dimension_numbers = #tpu.dot_dimension_numbers<[1], [0], [0], [1], [0, 0, 1, 1], [], []>} : vector<2x32xf32>, vector<32x10xf32>, vector<2x10xf32> -> vector<2x10xf32>
    %479 = vector.broadcast %21 : vector<1x10xf32> to vector<2x10xf32>
    %480 = arith.addf %478, %479 : vector<2x10xf32>
    %c0_145 = arith.constant 0 : index
    %c6 = arith.constant 6 : index
    %c0_146 = arith.constant 0 : index
    %481 = vector.load %arg16[%c0_145, %c6, %c0_146] : memref<2x8x10xf32, #tpu.memory_space<vmem>>, vector<2x1x10xf32>
    %482 = vector.shape_cast %481 : vector<2x1x10xf32> to vector<2x10xf32>
    %483 = vector.shape_cast %480 : vector<2x10xf32> to vector<2x1x10xf32>
    tpu.vector_store %arg16[%c0_145, %c6, %c0_146], %483 {strides = array<i32>} : memref<2x8x10xf32, #tpu.memory_space<vmem>>, vector<2x1x10xf32>,
    %cst_147 = arith.constant dense<0xFF800000> : vector<2xf32>
    %484 = vector.multi_reduction <maximumf>, %480, %cst_147 [1] : vector<2x10xf32> to vector<2xf32>
    %485 = vector.shape_cast %484 : vector<2xf32> to vector<2x1xf32>
    %486 = vector.broadcast %485 : vector<2x1xf32> to vector<2x10xf32>
    %487 = arith.cmpf oge, %480, %486 : vector<2x10xf32>
    %c10_i32_148 = arith.constant 10 : i32
    %488 = vector.broadcast %c10_i32_148 : i32 to vector<2x10xi32>
    %489 = arith.select %487, %34, %488 : vector<2x10xi1>, vector<2x10xi32>
    %cst_149 = arith.constant dense<2147483647> : vector<2xi32>
    %490 = vector.multi_reduction <minsi>, %489, %cst_149 [1] : vector<2x10xi32> to vector<2xi32>
    %491 = vector.shape_cast %490 : vector<2xi32> to vector<2x1xi32>
    %492 = vector.broadcast %491 : vector<2x1xi32> to vector<2x10xi32>
    %493 = arith.cmpi eq, %34, %492 : vector<2x10xi32>
    %494 = arith.extui %493 : vector<2x10xi1> to vector<2x10xi32>
    %495 = arith.sitofp %494 : vector<2x10xi32> to vector<2x10xf32>
    %cst_150 = arith.constant dense<0.000000e+00> : vector<2x32xf32>
    %496 = tpu.matmul %495, %17, %cst_150 {dimension_numbers = #tpu.dot_dimension_numbers<[1], [0], [0], [1], [0, 0, 1, 1], [], []>} : vector<2x10xf32>, vector<10x32xf32>, vector<2x32xf32> -> vector<2x32xf32>
    %cst_151 = arith.constant dense<0.000000e+00> : vector<2x32xf32>
    %497 = tpu.matmul %477, %18, %cst_151 {dimension_numbers = #tpu.dot_dimension_numbers<[1], [0], [0], [1], [0, 0, 1, 1], [], []>} : vector<2x32xf32>, vector<32x32xf32>, vector<2x32xf32> -> vector<2x32xf32>
    %498 = vector.broadcast %19 : vector<1x32xf32> to vector<2x32xf32>
    %499 = arith.addf %497, %498 : vector<2x32xf32>
    %cst_152 = arith.constant dense<0xFF800000> : vector<2xf32>
    %500 = vector.multi_reduction <maximumf>, %499, %cst_152 [1] : vector<2x32xf32> to vector<2xf32>
    %501 = vector.shape_cast %500 : vector<2xf32> to vector<2x1xf32>
    %502 = vector.broadcast %501 : vector<2x1xf32> to vector<2x32xf32>
    %503 = arith.subf %499, %502 : vector<2x32xf32>
    %504 = math.exp %503 : vector<2x32xf32>
    %cst_153 = arith.constant dense<0.000000e+00> : vector<2xf32>
    %505 = vector.multi_reduction <add>, %504, %cst_153 [1] : vector<2x32xf32> to vector<2xf32>
    %506 = vector.shape_cast %505 : vector<2xf32> to vector<2x1xf32>
    %507 = vector.broadcast %506 : vector<2x1xf32> to vector<2x32xf32>
    %508 = arith.divf %504, %507 : vector<2x32xf32>
    %509 = vector.extract_strided_slice %508 {offsets = [0, 0], sizes = [1, 32], strides = [1, 1]} : vector<2x32xf32> to vector<1x32xf32>
    %cst_154 = arith.constant dense<0.000000e+00> : vector<1x64xf32>
    %510 = tpu.matmul %509, %14, %cst_154 {dimension_numbers = #tpu.dot_dimension_numbers<[1], [0], [0], [1], [0, 0, 1, 1], [], []>} : vector<1x32xf32>, vector<32x64xf32>, vector<1x64xf32> -> vector<1x64xf32>
    %511 = vector.extract_strided_slice %508 {offsets = [1, 0], sizes = [1, 32], strides = [1, 1]} : vector<2x32xf32> to vector<1x32xf32>
    %cst_155 = arith.constant dense<0.000000e+00> : vector<1x64xf32>
    %512 = tpu.matmul %511, %16, %cst_155 {dimension_numbers = #tpu.dot_dimension_numbers<[1], [0], [0], [1], [0, 0, 1, 1], [], []>} : vector<1x32xf32>, vector<32x64xf32>, vector<1x64xf32> -> vector<1x64xf32>
    %513 = tpu.concatenate %510, %512 in 0 : vector<1x64xf32>, vector<1x64xf32> -> vector<2x64xf32>
    %514 = tpu.concatenate %496, %513, %477 in 1 : vector<2x32xf32>, vector<2x64xf32>, vector<2x32xf32> -> vector<2x128xf32>
    %cst_156 = arith.constant dense<0.000000e+00> : vector<2x128xf32>
    %515 = tpu.matmul %514, %26, %cst_156 {dimension_numbers = #tpu.dot_dimension_numbers<[1], [0], [0], [1], [0, 0, 1, 1], [], []>} : vector<2x128xf32>, vector<128x128xf32>, vector<2x128xf32> -> vector<2x128xf32>
    %516 = vector.broadcast %33 : vector<1x128xf32> to vector<2x128xf32>
    %517 = arith.addf %515, %516 : vector<2x128xf32>
    %518 = vector.extract_strided_slice %517 {offsets = [0, 0], sizes = [2, 32], strides = [1, 1]} : vector<2x128xf32> to vector<2x32xf32>
    %519 = arith.negf %518 : vector<2x32xf32>
    %520 = math.exp %519 : vector<2x32xf32>
    %cst_157 = arith.constant 1.000000e+00 : f32
    %521 = vector.broadcast %cst_157 : f32 to vector<2x32xf32>
    %522 = arith.addf %521, %520 : vector<2x32xf32>
    %523 = arith.divf %521, %522 : vector<2x32xf32>
    %524 = vector.extract_strided_slice %517 {offsets = [0, 32], sizes = [2, 32], strides = [1, 1]} : vector<2x128xf32> to vector<2x32xf32>
    %525 = arith.negf %524 : vector<2x32xf32>
    %526 = math.exp %525 : vector<2x32xf32>
    %cst_158 = arith.constant 1.000000e+00 : f32
    %527 = vector.broadcast %cst_158 : f32 to vector<2x32xf32>
    %528 = arith.addf %527, %526 : vector<2x32xf32>
    %529 = arith.divf %527, %528 : vector<2x32xf32>
    %530 = vector.extract_strided_slice %517 {offsets = [0, 64], sizes = [2, 32], strides = [1, 1]} : vector<2x128xf32> to vector<2x32xf32>
    %531 = math.tanh %530 : vector<2x32xf32>
    %532 = vector.extract_strided_slice %517 {offsets = [0, 96], sizes = [2, 32], strides = [1, 1]} : vector<2x128xf32> to vector<2x32xf32>
    %533 = arith.negf %532 : vector<2x32xf32>
    %534 = math.exp %533 : vector<2x32xf32>
    %cst_159 = arith.constant 1.000000e+00 : f32
    %535 = vector.broadcast %cst_159 : f32 to vector<2x32xf32>
    %536 = arith.addf %535, %534 : vector<2x32xf32>
    %537 = arith.divf %535, %536 : vector<2x32xf32>
    %538 = arith.mulf %529, %477 : vector<2x32xf32>
    %539 = arith.mulf %523, %531 : vector<2x32xf32>
    %540 = arith.addf %538, %539 : vector<2x32xf32>
    %541 = math.tanh %540 : vector<2x32xf32>
    %542 = arith.mulf %537, %541 : vector<2x32xf32>
    %cst_160 = arith.constant dense<0.000000e+00> : vector<2x10xf32>
    %543 = tpu.matmul %542, %20, %cst_160 {dimension_numbers = #tpu.dot_dimension_numbers<[1], [0], [0], [1], [0, 0, 1, 1], [], []>} : vector<2x32xf32>, vector<32x10xf32>, vector<2x10xf32> -> vector<2x10xf32>
    %544 = vector.broadcast %21 : vector<1x10xf32> to vector<2x10xf32>
    %545 = arith.addf %543, %544 : vector<2x10xf32>
    %c0_161 = arith.constant 0 : index
    %c7 = arith.constant 7 : index
    %c0_162 = arith.constant 0 : index
    %546 = vector.load %arg16[%c0_161, %c7, %c0_162] : memref<2x8x10xf32, #tpu.memory_space<vmem>>, vector<2x1x10xf32>
    %547 = vector.shape_cast %546 : vector<2x1x10xf32> to vector<2x10xf32>
    %548 = vector.shape_cast %545 : vector<2x10xf32> to vector<2x1x10xf32>
    tpu.vector_store %arg16[%c0_161, %c7, %c0_162], %548 {strides = array<i32>} : memref<2x8x10xf32, #tpu.memory_space<vmem>>, vector<2x1x10xf32>,
    return
  }
}

</mosaic_0001>

<llo_original>
// kernel: _lambda_.1
$region0: #{_lambda_.1}
  #allocation0 [shape = 'u32[]', space=smem, size = 0x4, offset = 0x4, fixed_abs, tag = 'smem constant byte address 0x4 - core index']
  #allocation1 [shape = 'u32[144,128]{1,0:T(1,128)}', space=vmem, size = 0x12000, scoped, tag = 'internal scratch']
  %s0 = inlined_call_operand.vmem [shape: f32[128,192], index: 0, kind: input, shape index: {}]
  %s1 = inlined_call_operand.vmem [shape: f32[192,512], index: 1, kind: input, shape index: {}]
  %s2 = inlined_call_operand.vmem [shape: f32[1,512], index: 2, kind: input, shape index: {}]
  %s3 = inlined_call_operand.vmem [shape: f32[512,32], index: 3, kind: input, shape index: {}]
  %s4 = inlined_call_operand.vmem [shape: f32[1,32], index: 4, kind: input, shape index: {}]
  %s5 = inlined_call_operand.vmem [shape: f32[10,32], index: 5, kind: input, shape index: {}]
  %s6 = inlined_call_operand.vmem [shape: f32[32,32], index: 6, kind: input, shape index: {}]
  %s7 = inlined_call_operand.vmem [shape: f32[1,32], index: 7, kind: input, shape index: {}]
  %s8 = inlined_call_operand.vmem [shape: f32[96,64], index: 8, kind: input, shape index: {}]
  %s9 = inlined_call_operand.vmem [shape: f32[1,64], index: 9, kind: input, shape index: {}]
  %s10 = inlined_call_operand.vmem [shape: f32[64,128], index: 10, kind: input, shape index: {}]
  %s11 = inlined_call_operand.vmem [shape: f32[32,128], index: 11, kind: input, shape index: {}]
  %s12 = inlined_call_operand.vmem [shape: f32[1,128], index: 12, kind: input, shape index: {}]
  %s13 = inlined_call_operand.vmem [shape: f32[1,128], index: 13, kind: input, shape index: {}]
  %s14 = inlined_call_operand.vmem [shape: f32[32,10], index: 14, kind: input, shape index: {}]
  %s15 = inlined_call_operand.vmem [shape: f32[1,10], index: 15, kind: input, shape index: {}]
  %s16 = inlined_call_operand.hbm [shape: f32[2,8,10], index: 16, kind: output, shape index: {}]
  %s17 = sld [smem:[#allocation0]]
  $region74: #{_lambda_.1} parent=0
    _
  %s19 = ssub.s32 1, %s17
  %s20 = scalar_select 0, %s19, %s17
  $region1: #{_lambda_.1} parent=0
    #allocation2 [shape = 'u8[8192]{0}', space=vmem, size = 0x2000, scoped, tag = 'output window, operand 0, single buffered']
    #allocation3 [shape = 's32[1]{0}', space=sflag, size = 0x4, scoped, tag = 'scoped memory for _lambda_.1']
    %21 = vsyncpa [#allocation3], 0
    // Predicated region
    $region2: #{_lambda_.1} parent=1 // pred_check
      _
    $region3: #{_lambda_.1} parent=1 // pred_check_branch
      %23 = sbr.rel (0) target = $region5
    $region4: #{_lambda_.1} parent=1 // pred_region
      _
    $region5: #{_lambda_.1} parent=1 // pred_fallthru
      _
    // Predicated region
    $region6: #{_lambda_.1} parent=1 // pred_check
      _
    $region7: #{_lambda_.1} parent=1 // pred_check_branch
      %25 = sbr.rel (0) target = $region9
    $region8: #{_lambda_.1} parent=1 // pred_region
      _
    $region9: #{_lambda_.1} parent=1 // pred_fallthru
      _
    // Predicated region
    $region10: #{_lambda_.1} parent=1 // pred_check
      _
    $region11: #{_lambda_.1} parent=1 // pred_check_branch
      %27 = sbr.rel (0) target = $region13
    $region12: #{_lambda_.1} parent=1 // pred_region
      _
    $region13: #{_lambda_.1} parent=1 // pred_fallthru
      _
    // Predicated region
    $region14: #{_lambda_.1} parent=1 // pred_check
      _
    $region15: #{_lambda_.1} parent=1 // pred_check_branch
      %29 = sbr.rel (0) target = $region17
    $region16: #{_lambda_.1} parent=1 // pred_region
      _
    $region17: #{_lambda_.1} parent=1 // pred_fallthru
      _
    // Predicated region
    $region18: #{_lambda_.1} parent=1 // pred_check
      _
    $region19: #{_lambda_.1} parent=1 // pred_check_branch
      %31 = sbr.rel (0) target = $region21
    $region20: #{_lambda_.1} parent=1 // pred_region
      _
    $region21: #{_lambda_.1} parent=1 // pred_fallthru
      _
    // Predicated region
    $region22: #{_lambda_.1} parent=1 // pred_check
      _
    $region23: #{_lambda_.1} parent=1 // pred_check_branch
      %33 = sbr.rel (0) target = $region25
    $region24: #{_lambda_.1} parent=1 // pred_region
      _
    $region25: #{_lambda_.1} parent=1 // pred_fallthru
      _
    // Predicated region
    $region26: #{_lambda_.1} parent=1 // pred_check
      _
    $region27: #{_lambda_.1} parent=1 // pred_check_branch
      %35 = sbr.rel (0) target = $region29
    $region28: #{_lambda_.1} parent=1 // pred_region
      _
    $region29: #{_lambda_.1} parent=1 // pred_fallthru
      _
    // Predicated region
    $region30: #{_lambda_.1} parent=1 // pred_check
      _
    $region31: #{_lambda_.1} parent=1 // pred_check_branch
      %37 = sbr.rel (0) target = $region33
    $region32: #{_lambda_.1} parent=1 // pred_region
      _
    $region33: #{_lambda_.1} parent=1 // pred_fallthru
      _
    // Predicated region
    $region34: #{_lambda_.1} parent=1 // pred_check
      _
    $region35: #{_lambda_.1} parent=1 // pred_check_branch
      %39 = sbr.rel (0) target = $region37
    $region36: #{_lambda_.1} parent=1 // pred_region
      _
    $region37: #{_lambda_.1} parent=1 // pred_fallthru
      _
    // Predicated region
    $region38: #{_lambda_.1} parent=1 // pred_check
      _
    $region39: #{_lambda_.1} parent=1 // pred_check_branch
      %41 = sbr.rel (0) target = $region41
    $region40: #{_lambda_.1} parent=1 // pred_region
      _
    $region41: #{_lambda_.1} parent=1 // pred_fallthru
      _
    // Predicated region
    $region42: #{_lambda_.1} parent=1 // pred_check
      _
    $region43: #{_lambda_.1} parent=1 // pred_check_branch
      %43 = sbr.rel (0) target = $region45
    $region44: #{_lambda_.1} parent=1 // pred_region
      _
    $region45: #{_lambda_.1} parent=1 // pred_fallthru
      _
    // Predicated region
    $region46: #{_lambda_.1} parent=1 // pred_check
      _
    $region47: #{_lambda_.1} parent=1 // pred_check_branch
      %45 = sbr.rel (0) target = $region49
    $region48: #{_lambda_.1} parent=1 // pred_region
      _
    $region49: #{_lambda_.1} parent=1 // pred_fallthru
      _
    // Predicated region
    $region50: #{_lambda_.1} parent=1 // pred_check
      _
    $region51: #{_lambda_.1} parent=1 // pred_check_branch
      %47 = sbr.rel (0) target = $region53
    $region52: #{_lambda_.1} parent=1 // pred_region
      _
    $region53: #{_lambda_.1} parent=1 // pred_fallthru
      _
    // Predicated region
    $region54: #{_lambda_.1} parent=1 // pred_check
      _
    $region55: #{_lambda_.1} parent=1 // pred_check_branch
      %49 = sbr.rel (0) target = $region57
    $region56: #{_lambda_.1} parent=1 // pred_region
      _
    $region57: #{_lambda_.1} parent=1 // pred_fallthru
      _
    // Predicated region
    $region58: #{_lambda_.1} parent=1 // pred_check
      _
    $region59: #{_lambda_.1} parent=1 // pred_check_branch
      %51 = sbr.rel (0) target = $region61
    $region60: #{_lambda_.1} parent=1 // pred_region
      _
    $region61: #{_lambda_.1} parent=1 // pred_fallthru
      _
    // Predicated region
    $region62: #{_lambda_.1} parent=1 // pred_check
      _
    $region63: #{_lambda_.1} parent=1 // pred_check_branch
      %53 = sbr.rel (0) target = $region65
    $region64: #{_lambda_.1} parent=1 // pred_region
      _
    $region65: #{_lambda_.1} parent=1 // pred_fallthru
      _
    %v54 = vld [vmem:[%s0] sm:$0xff]
    %v55 = vld [vmem:[%s0 + $0x8] sm:$0xff]
    %v56 = vld [vmem:[%s0 + $0x10] sm:$0xff]
    %v57 = vld [vmem:[%s0 + $0x18] sm:$0xff]
    %v58 = vld [vmem:[%s0 + $0x20] sm:$0xff]
    %v59 = vld [vmem:[%s0 + $0x28] sm:$0xff]
    %v60 = vld [vmem:[%s0 + $0x30] sm:$0xff]
    %v61 = vld [vmem:[%s0 + $0x38] sm:$0xff]
    %v62 = vld [vmem:[%s0 + $0x40] sm:$0xff]
    %v63 = vld [vmem:[%s0 + $0x48] sm:$0xff]
    %v64 = vld [vmem:[%s0 + $0x50] sm:$0xff]
    %v65 = vld [vmem:[%s0 + $0x58] sm:$0xff]
    %v66 = vld [vmem:[%s0 + $0x60] sm:$0xff]
    %v67 = vld [vmem:[%s0 + $0x68] sm:$0xff]
    %v68 = vld [vmem:[%s0 + $0x70] sm:$0xff]
    %v69 = vld [vmem:[%s0 + $0x78] sm:$0xff]
    %v70 = vld [vmem:[%s0 + $0x80] sm:$0xff]
    %v71 = vld [vmem:[%s0 + $0x88] sm:$0xff]
    %v72 = vld [vmem:[%s0 + $0x90] sm:$0xff]
    %v73 = vld [vmem:[%s0 + $0x98] sm:$0xff]
    %v74 = vld [vmem:[%s0 + $0xa0] sm:$0xff]
    %v75 = vld [vmem:[%s0 + $0xa8] sm:$0xff]
    %v76 = vld [vmem:[%s0 + $0xb0] sm:$0xff]
    %v77 = vld [vmem:[%s0 + $0xb8] sm:$0xff]
    %v78 = vld [vmem:[%s0 + $0xc0] sm:$0xff]
    %v79 = vld [vmem:[%s0 + $0xc8] sm:$0xff]
    %v80 = vld [vmem:[%s0 + $0xd0] sm:$0xff]
    %v81 = vld [vmem:[%s0 + $0xd8] sm:$0xff]
    %v82 = vld [vmem:[%s0 + $0xe0] sm:$0xff]
    %v83 = vld [vmem:[%s0 + $0xe8] sm:$0xff]
    %v84 = vld [vmem:[%s0 + $0xf0] sm:$0xff]
    %v85 = vld [vmem:[%s0 + $0xf8] sm:$0xff]
    %v86 = vld [vmem:[%s1] sm:$0xff]
    %v87 = vld [vmem:[%s1 + $0x8] sm:$0xff]
    %v88 = vld [vmem:[%s1 + $0x10] sm:$0xff]
    %v89 = vld [vmem:[%s1 + $0x18] sm:$0xff]
    %v90 = vld [vmem:[%s1 + $0x20] sm:$0xff]
    %v91 = vld [vmem:[%s1 + $0x28] sm:$0xff]
    %v92 = vld [vmem:[%s1 + $0x30] sm:$0xff]
    %v93 = vld [vmem:[%s1 + $0x38] sm:$0xff]
    %v94 = vld [vmem:[%s1 + $0x40] sm:$0xff]
    %v95 = vld [vmem:[%s1 + $0x48] sm:$0xff]
    %v96 = vld [vmem:[%s1 + $0x50] sm:$0xff]
    %v97 = vld [vmem:[%s1 + $0x58] sm:$0xff]
    %v98 = vld [vmem:[%s1 + $0x60] sm:$0xff]
    %v99 = vld [vmem:[%s1 + $0x68] sm:$0xff]
    %v100 = vld [vmem:[%s1 + $0x70] sm:$0xff]
    %v101 = vld [vmem:[%s1 + $0x78] sm:$0xff]
    %v102 = vld [vmem:[%s1 + $0x80] sm:$0xff]
    %v103 = vld [vmem:[%s1 + $0x88] sm:$0xff]
    %v104 = vld [vmem:[%s1 + $0x90] sm:$0xff]
    %v105 = vld [vmem:[%s1 + $0x98] sm:$0xff]
    %v106 = vld [vmem:[%s1 + $0xa0] sm:$0xff]
    %v107 = vld [vmem:[%s1 + $0xa8] sm:$0xff]
    %v108 = vld [vmem:[%s1 + $0xb0] sm:$0xff]
    %v109 = vld [vmem:[%s1 + $0xb8] sm:$0xff]
    %v110 = vld [vmem:[%s1 + $0xc0] sm:$0xff]
    %v111 = vld [vmem:[%s1 + $0xc8] sm:$0xff]
    %v112 = vld [vmem:[%s1 + $0xd0] sm:$0xff]
    %v113 = vld [vmem:[%s1 + $0xd8] sm:$0xff]
    %v114 = vld [vmem:[%s1 + $0xe0] sm:$0xff]
    %v115 = vld [vmem:[%s1 + $0xe8] sm:$0xff]
    %v116 = vld [vmem:[%s1 + $0xf0] sm:$0xff]
    %v117 = vld [vmem:[%s1 + $0xf8] sm:$0xff]
    %v118 = vld [vmem:[%s1 + $0x100] sm:$0xff]
    %v119 = vld [vmem:[%s1 + $0x108] sm:$0xff]
    %v120 = vld [vmem:[%s1 + $0x110] sm:$0xff]
    %v121 = vld [vmem:[%s1 + $0x118] sm:$0xff]
    %v122 = vld [vmem:[%s1 + $0x120] sm:$0xff]
    %v123 = vld [vmem:[%s1 + $0x128] sm:$0xff]
    %v124 = vld [vmem:[%s1 + $0x130] sm:$0xff]
    %v125 = vld [vmem:[%s1 + $0x138] sm:$0xff]
    %v126 = vld [vmem:[%s1 + $0x140] sm:$0xff]
    %v127 = vld [vmem:[%s1 + $0x148] sm:$0xff]
    %v128 = vld [vmem:[%s1 + $0x150] sm:$0xff]
    %v129 = vld [vmem:[%s1 + $0x158] sm:$0xff]
    %v130 = vld [vmem:[%s1 + $0x160] sm:$0xff]
    %v131 = vld [vmem:[%s1 + $0x168] sm:$0xff]
    %v132 = vld [vmem:[%s1 + $0x170] sm:$0xff]
    %v133 = vld [vmem:[%s1 + $0x178] sm:$0xff]
    %v134 = vld [vmem:[%s1 + $0x180] sm:$0xff]
    %v135 = vld [vmem:[%s1 + $0x188] sm:$0xff]
    %v136 = vld [vmem:[%s1 + $0x190] sm:$0xff]
    %v137 = vld [vmem:[%s1 + $0x198] sm:$0xff]
    %v138 = vld [vmem:[%s1 + $0x1a0] sm:$0xff]
    %v139 = vld [vmem:[%s1 + $0x1a8] sm:$0xff]
    %v140 = vld [vmem:[%s1 + $0x1b0] sm:$0xff]
    %v141 = vld [vmem:[%s1 + $0x1b8] sm:$0xff]
    %v142 = vld [vmem:[%s1 + $0x1c0] sm:$0xff]
    %v143 = vld [vmem:[%s1 + $0x1c8] sm:$0xff]
    %v144 = vld [vmem:[%s1 + $0x1d0] sm:$0xff]
    %v145 = vld [vmem:[%s1 + $0x1d8] sm:$0xff]
    %v146 = vld [vmem:[%s1 + $0x1e0] sm:$0xff]
    %v147 = vld [vmem:[%s1 + $0x1e8] sm:$0xff]
    %v148 = vld [vmem:[%s1 + $0x1f0] sm:$0xff]
    %v149 = vld [vmem:[%s1 + $0x1f8] sm:$0xff]
    %v150 = vld [vmem:[%s1 + $0x200] sm:$0xff]
    %v151 = vld [vmem:[%s1 + $0x208] sm:$0xff]
    %v152 = vld [vmem:[%s1 + $0x210] sm:$0xff]
    %v153 = vld [vmem:[%s1 + $0x218] sm:$0xff]
    %v154 = vld [vmem:[%s1 + $0x220] sm:$0xff]
    %v155 = vld [vmem:[%s1 + $0x228] sm:$0xff]
    %v156 = vld [vmem:[%s1 + $0x230] sm:$0xff]
    %v157 = vld [vmem:[%s1 + $0x238] sm:$0xff]
    %v158 = vld [vmem:[%s1 + $0x240] sm:$0xff]
    %v159 = vld [vmem:[%s1 + $0x248] sm:$0xff]
    %v160 = vld [vmem:[%s1 + $0x250] sm:$0xff]
    %v161 = vld [vmem:[%s1 + $0x258] sm:$0xff]
    %v162 = vld [vmem:[%s1 + $0x260] sm:$0xff]
    %v163 = vld [vmem:[%s1 + $0x268] sm:$0xff]
    %v164 = vld [vmem:[%s1 + $0x270] sm:$0xff]
    %v165 = vld [vmem:[%s1 + $0x278] sm:$0xff]
    %v166 = vld [vmem:[%s1 + $0x280] sm:$0xff]
    %v167 = vld [vmem:[%s1 + $0x288] sm:$0xff]
    %v168 = vld [vmem:[%s1 + $0x290] sm:$0xff]
    %v169 = vld [vmem:[%s1 + $0x298] sm:$0xff]
    %v170 = vld [vmem:[%s1 + $0x2a0] sm:$0xff]
    %v171 = vld [vmem:[%s1 + $0x2a8] sm:$0xff]
    %v172 = vld [vmem:[%s1 + $0x2b0] sm:$0xff]
    %v173 = vld [vmem:[%s1 + $0x2b8] sm:$0xff]
    %v174 = vld [vmem:[%s1 + $0x2c0] sm:$0xff]
    %v175 = vld [vmem:[%s1 + $0x2c8] sm:$0xff]
    %v176 = vld [vmem:[%s1 + $0x2d0] sm:$0xff]
    %v177 = vld [vmem:[%s1 + $0x2d8] sm:$0xff]
    %v178 = vld [vmem:[%s1 + $0x2e0] sm:$0xff]
    %v179 = vld [vmem:[%s1 + $0x2e8] sm:$0xff]
    %v180 = vld [vmem:[%s1 + $0x2f0] sm:$0xff]
    %v181 = vld [vmem:[%s1 + $0x2f8] sm:$0xff]
    %v182 = vld [vmem:[%s2] sm:$0xf]
    %v184 = vlaneseq
    %v185 = vshrl.u32 %v184, 7
    %v186 = vsub.s32 0, %v185
    %v187 = vrot.slane %v182, %v186
    %v188 = vlaneseq
    %v189 = vshrl.u32 %v188, 7
    %v190 = vsub.s32 1, %v189
    %v191 = vrot.slane %v182, %v190
    %v192 = vlaneseq
    %v193 = vshrl.u32 %v192, 7
    %v194 = vsub.s32 2, %v193
    %v195 = vrot.slane %v182, %v194
    %v196 = vlaneseq
    %v197 = vshrl.u32 %v196, 7
    %v198 = vsub.s32 3, %v197
    %v199 = vrot.slane %v182, %v198
    %vm204 = vcmask 523264
    %v206 = vsel %vm204, %v55, 0
    %v209 = vsel %vm204, %v57, 0
    %v212 = vsel %vm204, %v59, 0
    %v215 = vsel %vm204, %v61, 0
    %v218 = vsel %vm204, %v63, 0
    %v221 = vsel %vm204, %v65, 0
    %v224 = vsel %vm204, %v67, 0
    %v227 = vsel %vm204, %v69, 0
    %v230 = vsel %vm204, %v71, 0
    %v233 = vsel %vm204, %v73, 0
    %v236 = vsel %vm204, %v75, 0
    %v239 = vsel %vm204, %v77, 0
    %v242 = vsel %vm204, %v79, 0
    %v245 = vsel %vm204, %v81, 0
    %v248 = vsel %vm204, %v83, 0
    %v251 = vsel %vm204, %v85, 0
    %253 = vmatprep.subr.mxu0 %v147
    %254 = vmatpush1.msra.mxu0 %v146
    %255 = vmatprep.subr.mxu0 %v143
    %256 = vmatpush1.msra.mxu0 %v142
    %257 = vmatprep.subr.mxu0 %v139
    %258 = vmatpush1.msra.mxu0 %v138
    %259 = vmatprep.subr.mxu0 %v135
    %260 = vmatpush1.msra.mxu0 %v134
    %261 = vmatprep.subr.mxu0 %v131
    %262 = vmatpush1.msra.mxu0 %v130
    %263 = vmatprep.subr.mxu0 %v127
    %264 = vmatpush1.msra.mxu0 %v126
    %265 = vmatprep.subr.mxu0 %v123
    %266 = vmatpush1.msra.mxu0 %v122
    %267 = vmatprep.subr.mxu0 %v119
    %268 = vmatpush1.msra.mxu0 %v118
    %269 = vmatprep.subr.mxu0 %v115
    %270 = vmatpush1.msra.mxu0 %v114
    %271 = vmatprep.subr.mxu0 %v111
    %272 = vmatpush1.msra.mxu0 %v110
    %273 = vmatprep.subr.mxu0 %v107
    %274 = vmatpush1.msra.mxu0 %v106
    %275 = vmatprep.subr.mxu0 %v103
    %276 = vmatpush1.msra.mxu0 %v102
    %277 = vmatprep.subr.mxu0 %v99
    %278 = vmatpush1.msra.mxu0 %v98
    %279 = vmatprep.subr.mxu0 %v95
    %280 = vmatpush1.msra.mxu0 %v94
    %281 = vmatprep.subr.mxu0 %v91
    %282 = vmatpush1.msra.mxu0 %v90
    %283 = vmatprep.subr.mxu0 %v87
    %284 = vmatpush1.msra.mxu0 %v86
    %285 = vmatprep.subr.mxu0 0.0
    %286 = vmatpush2.msra.mxu0 0.0
    %287 = vmatprep.subr.mxu0 0.0
    %288 = vmatpush2.msra.mxu0 0.0
    %289 = vmatprep.subr.mxu0 0.0
    %290 = vmatpush2.msra.mxu0 0.0
    %291 = vmatprep.subr.mxu0 0.0
    %292 = vmatpush2.msra.mxu0 0.0
    %293 = vmatprep.subr.mxu0 0.0
    %294 = vmatpush2.msra.mxu0 0.0
    %295 = vmatprep.subr.mxu0 0.0
    %296 = vmatpush2.msra.mxu0 0.0
    %297 = vmatprep.subr.mxu0 0.0
    %298 = vmatpush2.msra.mxu0 0.0
    %299 = vmatprep.subr.mxu0 0.0
    %300 = vmatpush2.msra.mxu0 0.0
    %301 = vmatprep.subr.mxu0 %v179
    %302 = vmatpush2.msra.mxu0 %v178
    %303 = vmatprep.subr.mxu0 %v175
    %304 = vmatpush2.msra.mxu0 %v174
    %305 = vmatprep.subr.mxu0 %v171
    %306 = vmatpush2.msra.mxu0 %v170
    %307 = vmatprep.subr.mxu0 %v167
    %308 = vmatpush2.msra.mxu0 %v166
    %309 = vmatprep.subr.mxu0 %v163
    %310 = vmatpush2.msra.mxu0 %v162
    %311 = vmatprep.subr.mxu0 %v159
    %312 = vmatpush2.msra.mxu0 %v158
    %313 = vmatprep.subr.mxu0 %v155
    %314 = vmatpush2.msra.mxu0 %v154
    %315 = vmatprep.subr.mxu0 %v151
    %316 = vmatpush2.msra.mxu0 %v150
    %317 = vmatprep.mubr.f32.mxu0 %v206
    %318 = vmatmul.mubr.f32.gmra.mxu0 %v54
    %v319 = vpop.f32.mrf.mxu0
    %v320 = vadd.f32 %v187, %v319
    %v321 = vpop.f32.mrf.mxu0
    %v322 = vadd.f32 %v191, %v321
    %323 = vmatprep.mubr.f32.mxu0 %v209
    %324 = vmatmul.mubr.f32.gmra.mxu0 %v56
    %v325 = vpop.f32.mrf.mxu0
    %v326 = vadd.f32 %v187, %v325
    %v327 = vpop.f32.mrf.mxu0
    %v328 = vadd.f32 %v191, %v327
    %329 = vmatprep.mubr.f32.mxu0 %v212
    %330 = vmatmul.mubr.f32.gmra.mxu0 %v58
    %v331 = vpop.f32.mrf.mxu0
    %v332 = vadd.f32 %v187, %v331
    %v333 = vpop.f32.mrf.mxu0
    %v334 = vadd.f32 %v191, %v333
    %335 = vmatprep.mubr.f32.mxu0 %v215
    %336 = vmatmul.mubr.f32.gmra.mxu0 %v60
    %v337 = vpop.f32.mrf.mxu0
    %v338 = vadd.f32 %v187, %v337
    %v339 = vpop.f32.mrf.mxu0
    %v340 = vadd.f32 %v191, %v339
    %341 = vmatprep.mubr.f32.mxu0 %v218
    %342 = vmatmul.mubr.f32.gmra.mxu0 %v62
    %v343 = vpop.f32.mrf.mxu0
    %v344 = vadd.f32 %v187, %v343
    %v345 = vpop.f32.mrf.mxu0
    %v346 = vadd.f32 %v191, %v345
    %347 = vmatprep.mubr.f32.mxu0 %v221
    %348 = vmatmul.mubr.f32.gmra.mxu0 %v64
    %v349 = vpop.f32.mrf.mxu0
    %v350 = vadd.f32 %v187, %v349
    %v351 = vpop.f32.mrf.mxu0
    %v352 = vadd.f32 %v191, %v351
    %353 = vmatprep.mubr.f32.mxu0 %v224
    %354 = vmatmul.mubr.f32.gmra.mxu0 %v66
    %v355 = vpop.f32.mrf.mxu0
    %v356 = vadd.f32 %v187, %v355
    %v357 = vpop.f32.mrf.mxu0
    %v358 = vadd.f32 %v191, %v357
    %359 = vmatprep.mubr.f32.mxu0 %v227
    %360 = vmatmul.mubr.f32.gmra.mxu0 %v68
    %v361 = vpop.f32.mrf.mxu0
    %v362 = vadd.f32 %v187, %v361
    %v363 = vpop.f32.mrf.mxu0
    %v364 = vadd.f32 %v191, %v363
    %365 = vmatprep.mubr.f32.mxu0 %v230
    %366 = vmatmul.mubr.f32.gmra.mxu0 %v70
    %v367 = vpop.f32.mrf.mxu0
    %v368 = vadd.f32 %v187, %v367
    %v369 = vpop.f32.mrf.mxu0
    %v370 = vadd.f32 %v191, %v369
    %371 = vmatprep.mubr.f32.mxu0 %v233
    %372 = vmatmul.mubr.f32.gmra.mxu0 %v72
    %v373 = vpop.f32.mrf.mxu0
    %v374 = vadd.f32 %v187, %v373
    %v375 = vpop.f32.mrf.mxu0
    %v376 = vadd.f32 %v191, %v375
    %377 = vmatprep.mubr.f32.mxu0 %v236
    %378 = vmatmul.mubr.f32.gmra.mxu0 %v74
    %v379 = vpop.f32.mrf.mxu0
    %v380 = vadd.f32 %v187, %v379
    %v381 = vpop.f32.mrf.mxu0
    %v382 = vadd.f32 %v191, %v381
    %383 = vmatprep.mubr.f32.mxu0 %v239
    %384 = vmatmul.mubr.f32.gmra.mxu0 %v76
    %v385 = vpop.f32.mrf.mxu0
    %v386 = vadd.f32 %v187, %v385
    %v387 = vpop.f32.mrf.mxu0
    %v388 = vadd.f32 %v191, %v387
    %389 = vmatprep.mubr.f32.mxu0 %v242
    %390 = vmatmul.mubr.f32.gmra.mxu0 %v78
    %v391 = vpop.f32.mrf.mxu0
    %v392 = vadd.f32 %v187, %v391
    %v393 = vpop.f32.mrf.mxu0
    %v394 = vadd.f32 %v191, %v393
    %395 = vmatprep.mubr.f32.mxu0 %v245
    %396 = vmatmul.mubr.f32.gmra.mxu0 %v80
    %v397 = vpop.f32.mrf.mxu0
    %v398 = vadd.f32 %v187, %v397
    %v399 = vpop.f32.mrf.mxu0
    %v400 = vadd.f32 %v191, %v399
    %401 = vmatprep.mubr.f32.mxu0 %v248
    %402 = vmatmul.mubr.f32.gmra.mxu0 %v82
    %v403 = vpop.f32.mrf.mxu0
    %v404 = vadd.f32 %v187, %v403
    %v405 = vpop.f32.mrf.mxu0
    %v406 = vadd.f32 %v191, %v405
    %407 = vmatprep.mubr.f32.mxu0 %v251
    %408 = vmatmul.mubr.f32.gmra.mxu0 %v84
    %v409 = vpop.f32.mrf.mxu0
    %v410 = vadd.f32 %v187, %v409
    %v411 = vpop.f32.mrf.mxu0
    %v412 = vadd.f32 %v191, %v411
    %413 = vdwg.mxu0
    %414 = vmatprep.subr.mxu0 %v149
    %415 = vmatpush1.msra.mxu0 %v148
    %416 = vmatprep.subr.mxu0 %v145
    %417 = vmatpush1.msra.mxu0 %v144
    %418 = vmatprep.subr.mxu0 %v141
    %419 = vmatpush1.msra.mxu0 %v140
    %420 = vmatprep.subr.mxu0 %v137
    %421 = vmatpush1.msra.mxu0 %v136
    %422 = vmatprep.subr.mxu0 %v133
    %423 = vmatpush1.msra.mxu0 %v132
    %424 = vmatprep.subr.mxu0 %v129
    %425 = vmatpush1.msra.mxu0 %v128
    %426 = vmatprep.subr.mxu0 %v125
    %427 = vmatpush1.msra.mxu0 %v124
    %428 = vmatprep.subr.mxu0 %v121
    %429 = vmatpush1.msra.mxu0 %v120
    %430 = vmatprep.subr.mxu0 %v117
    %431 = vmatpush1.msra.mxu0 %v116
    %432 = vmatprep.subr.mxu0 %v113
    %433 = vmatpush1.msra.mxu0 %v112
    %434 = vmatprep.subr.mxu0 %v109
    %435 = vmatpush1.msra.mxu0 %v108
    %436 = vmatprep.subr.mxu0 %v105
    %437 = vmatpush1.msra.mxu0 %v104
    %438 = vmatprep.subr.mxu0 %v101
    %439 = vmatpush1.msra.mxu0 %v100
    %440 = vmatprep.subr.mxu0 %v97
    %441 = vmatpush1.msra.mxu0 %v96
    %442 = vmatprep.subr.mxu0 %v93
    %443 = vmatpush1.msra.mxu0 %v92
    %444 = vmatprep.subr.mxu0 %v89
    %445 = vmatpush1.msra.mxu0 %v88
    %446 = vmatprep.subr.mxu0 0.0
    %447 = vmatpush2.msra.mxu0 0.0
    %448 = vmatprep.subr.mxu0 0.0
    %449 = vmatpush2.msra.mxu0 0.0
    %450 = vmatprep.subr.mxu0 0.0
    %451 = vmatpush2.msra.mxu0 0.0
    %452 = vmatprep.subr.mxu0 0.0
    %453 = vmatpush2.msra.mxu0 0.0
    %454 = vmatprep.subr.mxu0 0.0
    %455 = vmatpush2.msra.mxu0 0.0
    %456 = vmatprep.subr.mxu0 0.0
    %457 = vmatpush2.msra.mxu0 0.0
    %458 = vmatprep.subr.mxu0 0.0
    %459 = vmatpush2.msra.mxu0 0.0
    %460 = vmatprep.subr.mxu0 0.0
    %461 = vmatpush2.msra.mxu0 0.0
    %462 = vmatprep.subr.mxu0 %v181
    %463 = vmatpush2.msra.mxu0 %v180
    %464 = vmatprep.subr.mxu0 %v177
    %465 = vmatpush2.msra.mxu0 %v176
    %466 = vmatprep.subr.mxu0 %v173
    %467 = vmatpush2.msra.mxu0 %v172
    %468 = vmatprep.subr.mxu0 %v169
    %469 = vmatpush2.msra.mxu0 %v168
    %470 = vmatprep.subr.mxu0 %v165
    %471 = vmatpush2.msra.mxu0 %v164
    %472 = vmatprep.subr.mxu0 %v161
    %473 = vmatpush2.msra.mxu0 %v160
    %474 = vmatprep.subr.mxu0 %v157
    %475 = vmatpush2.msra.mxu0 %v156
    %476 = vmatprep.subr.mxu0 %v153
    %477 = vmatpush2.msra.mxu0 %v152
    %478 = vmatprep.mubr.f32.mxu0 %v206
    %479 = vmatmul.mubr.f32.gmra.mxu0 %v54
    %v480 = vpop.f32.mrf.mxu0
    %v481 = vadd.f32 %v195, %v480
    %v482 = vpop.f32.mrf.mxu0
    %v483 = vadd.f32 %v199, %v482
    %484 = vmatprep.mubr.f32.mxu0 %v209
    %485 = vmatmul.mubr.f32.gmra.mxu0 %v56
    %v486 = vpop.f32.mrf.mxu0
    %v487 = vadd.f32 %v195, %v486
    %v488 = vpop.f32.mrf.mxu0
    %v489 = vadd.f32 %v199, %v488
    %490 = vmatprep.mubr.f32.mxu0 %v212
    %491 = vmatmul.mubr.f32.gmra.mxu0 %v58
    %v492 = vpop.f32.mrf.mxu0
    %v493 = vadd.f32 %v195, %v492
    %v494 = vpop.f32.mrf.mxu0
    %v495 = vadd.f32 %v199, %v494
    %496 = vmatprep.mubr.f32.mxu0 %v215
    %497 = vmatmul.mubr.f32.gmra.mxu0 %v60
    %v498 = vpop.f32.mrf.mxu0
    %v499 = vadd.f32 %v195, %v498
    %v500 = vpop.f32.mrf.mxu0
    %v501 = vadd.f32 %v199, %v500
    %502 = vmatprep.mubr.f32.mxu0 %v218
    %503 = vmatmul.mubr.f32.gmra.mxu0 %v62
    %v504 = vpop.f32.mrf.mxu0
    %v505 = vadd.f32 %v195, %v504
    %v506 = vpop.f32.mrf.mxu0
    %v507 = vadd.f32 %v199, %v506
    %508 = vmatprep.mubr.f32.mxu0 %v221
    %509 = vmatmul.mubr.f32.gmra.mxu0 %v64
    %v510 = vpop.f32.mrf.mxu0
    %v511 = vadd.f32 %v195, %v510
    %v512 = vpop.f32.mrf.mxu0
    %v513 = vadd.f32 %v199, %v512
    %514 = vmatprep.mubr.f32.mxu0 %v224
    %515 = vmatmul.mubr.f32.gmra.mxu0 %v66
    %v516 = vpop.f32.mrf.mxu0
    %v517 = vadd.f32 %v195, %v516
    %v518 = vpop.f32.mrf.mxu0
    %v519 = vadd.f32 %v199, %v518
    %520 = vmatprep.mubr.f32.mxu0 %v227
    %521 = vmatmul.mubr.f32.gmra.mxu0 %v68
    %v522 = vpop.f32.mrf.mxu0
    %v523 = vadd.f32 %v195, %v522
    %v524 = vpop.f32.mrf.mxu0
    %v525 = vadd.f32 %v199, %v524
    %526 = vmatprep.mubr.f32.mxu0 %v230
    %527 = vmatmul.mubr.f32.gmra.mxu0 %v70
    %v528 = vpop.f32.mrf.mxu0
    %v529 = vadd.f32 %v195, %v528
    %v530 = vpop.f32.mrf.mxu0
    %v531 = vadd.f32 %v199, %v530
    %532 = vmatprep.mubr.f32.mxu0 %v233
    %533 = vmatmul.mubr.f32.gmra.mxu0 %v72
    %v534 = vpop.f32.mrf.mxu0
    %v535 = vadd.f32 %v195, %v534
    %v536 = vpop.f32.mrf.mxu0
    %v537 = vadd.f32 %v199, %v536
    %538 = vmatprep.mubr.f32.mxu0 %v236
    %539 = vmatmul.mubr.f32.gmra.mxu0 %v74
    %v540 = vpop.f32.mrf.mxu0
    %v541 = vadd.f32 %v195, %v540
    %v542 = vpop.f32.mrf.mxu0
    %v543 = vadd.f32 %v199, %v542
    %544 = vmatprep.mubr.f32.mxu0 %v239
    %545 = vmatmul.mubr.f32.gmra.mxu0 %v76
    %v546 = vpop.f32.mrf.mxu0
    %v547 = vadd.f32 %v195, %v546
    %v548 = vpop.f32.mrf.mxu0
    %v549 = vadd.f32 %v199, %v548
    %550 = vmatprep.mubr.f32.mxu0 %v242
    %551 = vmatmul.mubr.f32.gmra.mxu0 %v78
    %v552 = vpop.f32.mrf.mxu0
    %v553 = vadd.f32 %v195, %v552
    %v554 = vpop.f32.mrf.mxu0
    %v555 = vadd.f32 %v199, %v554
    %556 = vmatprep.mubr.f32.mxu0 %v245
    %557 = vmatmul.mubr.f32.gmra.mxu0 %v80
    %v558 = vpop.f32.mrf.mxu0
    %v559 = vadd.f32 %v195, %v558
    %v560 = vpop.f32.mrf.mxu0
    %v561 = vadd.f32 %v199, %v560
    %562 = vmatprep.mubr.f32.mxu0 %v248
    %563 = vmatmul.mubr.f32.gmra.mxu0 %v82
    %v564 = vpop.f32.mrf.mxu0
    %v565 = vadd.f32 %v195, %v564
    %v566 = vpop.f32.mrf.mxu0
    %v567 = vadd.f32 %v199, %v566
    %568 = vmatprep.mubr.f32.mxu0 %v251
    %569 = vmatmul.mubr.f32.gmra.mxu0 %v84
    %v570 = vpop.f32.mrf.mxu0
    %v571 = vadd.f32 %v195, %v570
    %v572 = vpop.f32.mrf.mxu0
    %v573 = vadd.f32 %v199, %v572
    %574 = vdwg.mxu0
    %v575 = vmax.f32 %v320, 0.0
    %v576 = vmax.f32 %v322, 0.0
    %v577 = vmax.f32 %v481, 0.0
    %v578 = vmax.f32 %v483, 0.0
    %v579 = vmax.f32 %v326, 0.0
    %v580 = vmax.f32 %v328, 0.0
    %v581 = vmax.f32 %v487, 0.0
    %v582 = vmax.f32 %v489, 0.0
    %v583 = vmax.f32 %v332, 0.0
    %v584 = vmax.f32 %v334, 0.0
    %v585 = vmax.f32 %v493, 0.0
    %v586 = vmax.f32 %v495, 0.0
    %v587 = vmax.f32 %v338, 0.0
    %v588 = vmax.f32 %v340, 0.0
    %v589 = vmax.f32 %v499, 0.0
    %v590 = vmax.f32 %v501, 0.0
    %v591 = vmax.f32 %v344, 0.0
    %v592 = vmax.f32 %v346, 0.0
    %v593 = vmax.f32 %v505, 0.0
    %v594 = vmax.f32 %v507, 0.0
    %v595 = vmax.f32 %v350, 0.0
    %v596 = vmax.f32 %v352, 0.0
    %v597 = vmax.f32 %v511, 0.0
    %v598 = vmax.f32 %v513, 0.0
    %v599 = vmax.f32 %v356, 0.0
    %v600 = vmax.f32 %v358, 0.0
    %v601 = vmax.f32 %v517, 0.0
    %v602 = vmax.f32 %v519, 0.0
    %v603 = vmax.f32 %v362, 0.0
    %v604 = vmax.f32 %v364, 0.0
    %v605 = vmax.f32 %v523, 0.0
    %v606 = vmax.f32 %v525, 0.0
    %v607 = vmax.f32 %v368, 0.0
    %v608 = vmax.f32 %v370, 0.0
    %v609 = vmax.f32 %v529, 0.0
    %v610 = vmax.f32 %v531, 0.0
    %v611 = vmax.f32 %v374, 0.0
    %v612 = vmax.f32 %v376, 0.0
    %v613 = vmax.f32 %v535, 0.0
    %v614 = vmax.f32 %v537, 0.0
    %v615 = vmax.f32 %v380, 0.0
    %v616 = vmax.f32 %v382, 0.0
    %v617 = vmax.f32 %v541, 0.0
    %v618 = vmax.f32 %v543, 0.0
    %v619 = vmax.f32 %v386, 0.0
    %v620 = vmax.f32 %v388, 0.0
    %v621 = vmax.f32 %v547, 0.0
    %v622 = vmax.f32 %v549, 0.0
    %v623 = vmax.f32 %v392, 0.0
    %v624 = vmax.f32 %v394, 0.0
    %v625 = vmax.f32 %v553, 0.0
    %v626 = vmax.f32 %v555, 0.0
    %v627 = vmax.f32 %v398, 0.0
    %v628 = vmax.f32 %v400, 0.0
    %v629 = vmax.f32 %v559, 0.0
    %v630 = vmax.f32 %v561, 0.0
    %v631 = vmax.f32 %v404, 0.0
    %v632 = vmax.f32 %v406, 0.0
    %v633 = vmax.f32 %v565, 0.0
    %v634 = vmax.f32 %v567, 0.0
    %v635 = vmax.f32 %v410, 0.0
    %v636 = vmax.f32 %v412, 0.0
    %v637 = vmax.f32 %v571, 0.0
    %v638 = vmax.f32 %v573, 0.0
    %v639 = vld [vmem:[%s3] sm:$0xff]
    %v640 = vld [vmem:[%s3 + $0x8] sm:$0xff]
    %v641 = vld [vmem:[%s3 + $0x10] sm:$0xff]
    %v642 = vld [vmem:[%s3 + $0x18] sm:$0xff]
    %v643 = vld [vmem:[%s3 + $0x20] sm:$0xff]
    %v644 = vld [vmem:[%s3 + $0x28] sm:$0xff]
    %v645 = vld [vmem:[%s3 + $0x30] sm:$0xff]
    %v646 = vld [vmem:[%s3 + $0x38] sm:$0xff]
    %v647 = vld [vmem:[%s3 + $0x40] sm:$0xff]
    %v648 = vld [vmem:[%s3 + $0x48] sm:$0xff]
    %v649 = vld [vmem:[%s3 + $0x50] sm:$0xff]
    %v650 = vld [vmem:[%s3 + $0x58] sm:$0xff]
    %v651 = vld [vmem:[%s3 + $0x60] sm:$0xff]
    %v652 = vld [vmem:[%s3 + $0x68] sm:$0xff]
    %v653 = vld [vmem:[%s3 + $0x70] sm:$0xff]
    %v654 = vld [vmem:[%s3 + $0x78] sm:$0xff]
    %v655 = vld [vmem:[%s3 + $0x80] sm:$0xff]
    %v656 = vld [vmem:[%s3 + $0x88] sm:$0xff]
    %v657 = vld [vmem:[%s3 + $0x90] sm:$0xff]
    %v658 = vld [vmem:[%s3 + $0x98] sm:$0xff]
    %v659 = vld [vmem:[%s3 + $0xa0] sm:$0xff]
    %v660 = vld [vmem:[%s3 + $0xa8] sm:$0xff]
    %v661 = vld [vmem:[%s3 + $0xb0] sm:$0xff]
    %v662 = vld [vmem:[%s3 + $0xb8] sm:$0xff]
    %v663 = vld [vmem:[%s3 + $0xc0] sm:$0xff]
    %v664 = vld [vmem:[%s3 + $0xc8] sm:$0xff]
    %v665 = vld [vmem:[%s3 + $0xd0] sm:$0xff]
    %v666 = vld [vmem:[%s3 + $0xd8] sm:$0xff]
    %v667 = vld [vmem:[%s3 + $0xe0] sm:$0xff]
    %v668 = vld [vmem:[%s3 + $0xe8] sm:$0xff]
    %v669 = vld [vmem:[%s3 + $0xf0] sm:$0xff]
    %v670 = vld [vmem:[%s3 + $0xf8] sm:$0xff]
    %v671 = vld [vmem:[%s3 + $0x100] sm:$0xff]
    %v672 = vld [vmem:[%s3 + $0x108] sm:$0xff]
    %v673 = vld [vmem:[%s3 + $0x110] sm:$0xff]
    %v674 = vld [vmem:[%s3 + $0x118] sm:$0xff]
    %v675 = vld [vmem:[%s3 + $0x120] sm:$0xff]
    %v676 = vld [vmem:[%s3 + $0x128] sm:$0xff]
    %v677 = vld [vmem:[%s3 + $0x130] sm:$0xff]
    %v678 = vld [vmem:[%s3 + $0x138] sm:$0xff]
    %v679 = vld [vmem:[%s3 + $0x140] sm:$0xff]
    %v680 = vld [vmem:[%s3 + $0x148] sm:$0xff]
    %v681 = vld [vmem:[%s3 + $0x150] sm:$0xff]
    %v682 = vld [vmem:[%s3 + $0x158] sm:$0xff]
    %v683 = vld [vmem:[%s3 + $0x160] sm:$0xff]
    %v684 = vld [vmem:[%s3 + $0x168] sm:$0xff]
    %v685 = vld [vmem:[%s3 + $0x170] sm:$0xff]
    %v686 = vld [vmem:[%s3 + $0x178] sm:$0xff]
    %v687 = vld [vmem:[%s3 + $0x180] sm:$0xff]
    %v688 = vld [vmem:[%s3 + $0x188] sm:$0xff]
    %v689 = vld [vmem:[%s3 + $0x190] sm:$0xff]
    %v690 = vld [vmem:[%s3 + $0x198] sm:$0xff]
    %v691 = vld [vmem:[%s3 + $0x1a0] sm:$0xff]
    %v692 = vld [vmem:[%s3 + $0x1a8] sm:$0xff]
    %v693 = vld [vmem:[%s3 + $0x1b0] sm:$0xff]
    %v694 = vld [vmem:[%s3 + $0x1b8] sm:$0xff]
    %v695 = vld [vmem:[%s3 + $0x1c0] sm:$0xff]
    %v696 = vld [vmem:[%s3 + $0x1c8] sm:$0xff]
    %v697 = vld [vmem:[%s3 + $0x1d0] sm:$0xff]
    %v698 = vld [vmem:[%s3 + $0x1d8] sm:$0xff]
    %v699 = vld [vmem:[%s3 + $0x1e0] sm:$0xff]
    %v700 = vld [vmem:[%s3 + $0x1e8] sm:$0xff]
    %v701 = vld [vmem:[%s3 + $0x1f0] sm:$0xff]
    %v702 = vld [vmem:[%s3 + $0x1f8] sm:$0xff]
    %v703 = vld [vmem:[%s4] sm:$0x1]
    %v705 = vlaneseq
    %v706 = vshrl.u32 %v705, 7
    %v707 = vsub.s32 0, %v706
    %v708 = vrot.slane %v703, %v707
    %710 = vmatprep.subr.mxu0 0.0
    %711 = vmatpush1.msra.mxu0 %v654
    %712 = vmatprep.subr.mxu0 0.0
    %713 = vmatpush1.msra.mxu0 %v653
    %714 = vmatprep.subr.mxu0 0.0
    %715 = vmatpush1.msra.mxu0 %v652
    %716 = vmatprep.subr.mxu0 0.0
    %717 = vmatpush1.msra.mxu0 %v651
    %718 = vmatprep.subr.mxu0 0.0
    %719 = vmatpush1.msra.mxu0 %v650
    %720 = vmatprep.subr.mxu0 0.0
    %721 = vmatpush1.msra.mxu0 %v649
    %722 = vmatprep.subr.mxu0 0.0
    %723 = vmatpush1.msra.mxu0 %v648
    %724 = vmatprep.subr.mxu0 0.0
    %725 = vmatpush1.msra.mxu0 %v647
    %726 = vmatprep.subr.mxu0 0.0
    %727 = vmatpush1.msra.mxu0 %v646
    %728 = vmatprep.subr.mxu0 0.0
    %729 = vmatpush1.msra.mxu0 %v645
    %730 = vmatprep.subr.mxu0 0.0
    %731 = vmatpush1.msra.mxu0 %v644
    %732 = vmatprep.subr.mxu0 0.0
    %733 = vmatpush1.msra.mxu0 %v643
    %734 = vmatprep.subr.mxu0 0.0
    %735 = vmatpush1.msra.mxu0 %v642
    %736 = vmatprep.subr.mxu0 0.0
    %737 = vmatpush1.msra.mxu0 %v641
    %738 = vmatprep.subr.mxu0 0.0
    %739 = vmatpush1.msra.mxu0 %v640
    %740 = vmatprep.subr.mxu0 0.0
    %741 = vmatpush1.msra.mxu0 %v639
    %742 = vmatprep.subr.mxu0 0.0
    %743 = vmatpush2.msra.mxu0 %v670
    %744 = vmatprep.subr.mxu0 0.0
    %745 = vmatpush2.msra.mxu0 %v669
    %746 = vmatprep.subr.mxu0 0.0
    %747 = vmatpush2.msra.mxu0 %v668
    %748 = vmatprep.subr.mxu0 0.0
    %749 = vmatpush2.msra.mxu0 %v667
    %750 = vmatprep.subr.mxu0 0.0
    %751 = vmatpush2.msra.mxu0 %v666
    %752 = vmatprep.subr.mxu0 0.0
    %753 = vmatpush2.msra.mxu0 %v665
    %754 = vmatprep.subr.mxu0 0.0
    %755 = vmatpush2.msra.mxu0 %v664
    %756 = vmatprep.subr.mxu0 0.0
    %757 = vmatpush2.msra.mxu0 %v663
    %758 = vmatprep.subr.mxu0 0.0
    %759 = vmatpush2.msra.mxu0 %v662
    %760 = vmatprep.subr.mxu0 0.0
    %761 = vmatpush2.msra.mxu0 %v661
    %762 = vmatprep.subr.mxu0 0.0
    %763 = vmatpush2.msra.mxu0 %v660
    %764 = vmatprep.subr.mxu0 0.0
    %765 = vmatpush2.msra.mxu0 %v659
    %766 = vmatprep.subr.mxu0 0.0
    %767 = vmatpush2.msra.mxu0 %v658
    %768 = vmatprep.subr.mxu0 0.0
    %769 = vmatpush2.msra.mxu0 %v657
    %770 = vmatprep.subr.mxu0 0.0
    %771 = vmatpush2.msra.mxu0 %v656
    %772 = vmatprep.subr.mxu0 0.0
    %773 = vmatpush2.msra.mxu0 %v655
    %774 = vmatprep.mubr.f32.mxu0 %v576
    %775 = vmatmul.mubr.f32.gmra.mxu0 %v575
    %v776 = vpop.f32.mrf.mxu0
    %v777 = vadd.f32 %v708, %v776
    %v778 = vpop.f32.mrf.mxu0
    %779 = vmatprep.mubr.f32.mxu0 %v580
    %780 = vmatmul.mubr.f32.gmra.mxu0 %v579
    %v781 = vpop.f32.mrf.mxu0
    %v782 = vadd.f32 %v708, %v781
    %v783 = vpop.f32.mrf.mxu0
    %784 = vmatprep.mubr.f32.mxu0 %v584
    %785 = vmatmul.mubr.f32.gmra.mxu0 %v583
    %v786 = vpop.f32.mrf.mxu0
    %v787 = vadd.f32 %v708, %v786
    %v788 = vpop.f32.mrf.mxu0
    %789 = vmatprep.mubr.f32.mxu0 %v588
    %790 = vmatmul.mubr.f32.gmra.mxu0 %v587
    %v791 = vpop.f32.mrf.mxu0
    %v792 = vadd.f32 %v708, %v791
    %v793 = vpop.f32.mrf.mxu0
    %794 = vmatprep.mubr.f32.mxu0 %v592
    %795 = vmatmul.mubr.f32.gmra.mxu0 %v591
    %v796 = vpop.f32.mrf.mxu0
    %v797 = vadd.f32 %v708, %v796
    %v798 = vpop.f32.mrf.mxu0
    %799 = vmatprep.mubr.f32.mxu0 %v596
    %800 = vmatmul.mubr.f32.gmra.mxu0 %v595
    %v801 = vpop.f32.mrf.mxu0
    %v802 = vadd.f32 %v708, %v801
    %v803 = vpop.f32.mrf.mxu0
    %804 = vmatprep.mubr.f32.mxu0 %v600
    %805 = vmatmul.mubr.f32.gmra.mxu0 %v599
    %v806 = vpop.f32.mrf.mxu0
    %v807 = vadd.f32 %v708, %v806
    %v808 = vpop.f32.mrf.mxu0
    %809 = vmatprep.mubr.f32.mxu0 %v604
    %810 = vmatmul.mubr.f32.gmra.mxu0 %v603
    %v811 = vpop.f32.mrf.mxu0
    %v812 = vadd.f32 %v708, %v811
    %v813 = vpop.f32.mrf.mxu0
    %814 = vmatprep.mubr.f32.mxu0 %v608
    %815 = vmatmul.mubr.f32.gmra.mxu0 %v607
    %v816 = vpop.f32.mrf.mxu0
    %v817 = vadd.f32 %v708, %v816
    %v818 = vpop.f32.mrf.mxu0
    %819 = vmatprep.mubr.f32.mxu0 %v612
    %820 = vmatmul.mubr.f32.gmra.mxu0 %v611
    %v821 = vpop.f32.mrf.mxu0
    %v822 = vadd.f32 %v708, %v821
    %v823 = vpop.f32.mrf.mxu0
    %824 = vmatprep.mubr.f32.mxu0 %v616
    %825 = vmatmul.mubr.f32.gmra.mxu0 %v615
    %v826 = vpop.f32.mrf.mxu0
    %v827 = vadd.f32 %v708, %v826
    %v828 = vpop.f32.mrf.mxu0
    %829 = vmatprep.mubr.f32.mxu0 %v620
    %830 = vmatmul.mubr.f32.gmra.mxu0 %v619
    %v831 = vpop.f32.mrf.mxu0
    %v832 = vadd.f32 %v708, %v831
    %v833 = vpop.f32.mrf.mxu0
    %834 = vmatprep.mubr.f32.mxu0 %v624
    %835 = vmatmul.mubr.f32.gmra.mxu0 %v623
    %v836 = vpop.f32.mrf.mxu0
    %v837 = vadd.f32 %v708, %v836
    %v838 = vpop.f32.mrf.mxu0
    %839 = vmatprep.mubr.f32.mxu0 %v628
    %840 = vmatmul.mubr.f32.gmra.mxu0 %v627
    %v841 = vpop.f32.mrf.mxu0
    %v842 = vadd.f32 %v708, %v841
    %v843 = vpop.f32.mrf.mxu0
    %844 = vmatprep.mubr.f32.mxu0 %v632
    %845 = vmatmul.mubr.f32.gmra.mxu0 %v631
    %v846 = vpop.f32.mrf.mxu0
    %v847 = vadd.f32 %v708, %v846
    %v848 = vpop.f32.mrf.mxu0
    %849 = vmatprep.mubr.f32.mxu0 %v636
    %850 = vmatmul.mubr.f32.gmra.mxu0 %v635
    %v851 = vpop.f32.mrf.mxu0
    %v852 = vadd.f32 %v708, %v851
    %v853 = vpop.f32.mrf.mxu0
    %854 = vdwg.mxu0
    %855 = vmatprep.subr.mxu0 0.0
    %856 = vmatpush1.msra.mxu0 %v686
    %857 = vmatprep.subr.mxu0 0.0
    %858 = vmatpush1.msra.mxu0 %v685
    %859 = vmatprep.subr.mxu0 0.0
    %860 = vmatpush1.msra.mxu0 %v684
    %861 = vmatprep.subr.mxu0 0.0
    %862 = vmatpush1.msra.mxu0 %v683
    %863 = vmatprep.subr.mxu0 0.0
    %864 = vmatpush1.msra.mxu0 %v682
    %865 = vmatprep.subr.mxu0 0.0
    %866 = vmatpush1.msra.mxu0 %v681
    %867 = vmatprep.subr.mxu0 0.0
    %868 = vmatpush1.msra.mxu0 %v680
    %869 = vmatprep.subr.mxu0 0.0
    %870 = vmatpush1.msra.mxu0 %v679
    %871 = vmatprep.subr.mxu0 0.0
    %872 = vmatpush1.msra.mxu0 %v678
    %873 = vmatprep.subr.mxu0 0.0
    %874 = vmatpush1.msra.mxu0 %v677
    %875 = vmatprep.subr.mxu0 0.0
    %876 = vmatpush1.msra.mxu0 %v676
    %877 = vmatprep.subr.mxu0 0.0
    %878 = vmatpush1.msra.mxu0 %v675
    %879 = vmatprep.subr.mxu0 0.0
    %880 = vmatpush1.msra.mxu0 %v674
    %881 = vmatprep.subr.mxu0 0.0
    %882 = vmatpush1.msra.mxu0 %v673
    %883 = vmatprep.subr.mxu0 0.0
    %884 = vmatpush1.msra.mxu0 %v672
    %885 = vmatprep.subr.mxu0 0.0
    %886 = vmatpush1.msra.mxu0 %v671
    %887 = vmatprep.subr.mxu0 0.0
    %888 = vmatpush2.msra.mxu0 %v702
    %889 = vmatprep.subr.mxu0 0.0
    %890 = vmatpush2.msra.mxu0 %v701
    %891 = vmatprep.subr.mxu0 0.0
    %892 = vmatpush2.msra.mxu0 %v700
    %893 = vmatprep.subr.mxu0 0.0
    %894 = vmatpush2.msra.mxu0 %v699
    %895 = vmatprep.subr.mxu0 0.0
    %896 = vmatpush2.msra.mxu0 %v698
    %897 = vmatprep.subr.mxu0 0.0
    %898 = vmatpush2.msra.mxu0 %v697
    %899 = vmatprep.subr.mxu0 0.0
    %900 = vmatpush2.msra.mxu0 %v696
    %901 = vmatprep.subr.mxu0 0.0
    %902 = vmatpush2.msra.mxu0 %v695
    %903 = vmatprep.subr.mxu0 0.0
    %904 = vmatpush2.msra.mxu0 %v694
    %905 = vmatprep.subr.mxu0 0.0
    %906 = vmatpush2.msra.mxu0 %v693
    %907 = vmatprep.subr.mxu0 0.0
    %908 = vmatpush2.msra.mxu0 %v692
    %909 = vmatprep.subr.mxu0 0.0
    %910 = vmatpush2.msra.mxu0 %v691
    %911 = vmatprep.subr.mxu0 0.0
    %912 = vmatpush2.msra.mxu0 %v690
    %913 = vmatprep.subr.mxu0 0.0
    %914 = vmatpush2.msra.mxu0 %v689
    %915 = vmatprep.subr.mxu0 0.0
    %916 = vmatpush2.msra.mxu0 %v688
    %917 = vmatprep.subr.mxu0 0.0
    %918 = vmatpush2.msra.mxu0 %v687
    %919 = vmatprep.mubr.f32.mxu0 %v578
    %920 = vmatmul.mubr.f32.gmra.mxu0 %v577
    %v921 = vpop.f32.mrf.mxu0
    %v922 = vadd.f32 %v777, %v921
    %v923 = vpop.f32.mrf.mxu0
    %924 = vmatprep.mubr.f32.mxu0 %v582
    %925 = vmatmul.mubr.f32.gmra.mxu0 %v581
    %v926 = vpop.f32.mrf.mxu0
    %v927 = vadd.f32 %v782, %v926
    %v928 = vpop.f32.mrf.mxu0
    %929 = vmatprep.mubr.f32.mxu0 %v586
    %930 = vmatmul.mubr.f32.gmra.mxu0 %v585
    %v931 = vpop.f32.mrf.mxu0
    %v932 = vadd.f32 %v787, %v931
    %v933 = vpop.f32.mrf.mxu0
    %934 = vmatprep.mubr.f32.mxu0 %v590
    %935 = vmatmul.mubr.f32.gmra.mxu0 %v589
    %v936 = vpop.f32.mrf.mxu0
    %v937 = vadd.f32 %v792, %v936
    %v938 = vpop.f32.mrf.mxu0
    %939 = vmatprep.mubr.f32.mxu0 %v594
    %940 = vmatmul.mubr.f32.gmra.mxu0 %v593
    %v941 = vpop.f32.mrf.mxu0
    %v942 = vadd.f32 %v797, %v941
    %v943 = vpop.f32.mrf.mxu0
    %944 = vmatprep.mubr.f32.mxu0 %v598
    %945 = vmatmul.mubr.f32.gmra.mxu0 %v597
    %v946 = vpop.f32.mrf.mxu0
    %v947 = vadd.f32 %v802, %v946
    %v948 = vpop.f32.mrf.mxu0
    %949 = vmatprep.mubr.f32.mxu0 %v602
    %950 = vmatmul.mubr.f32.gmra.mxu0 %v601
    %v951 = vpop.f32.mrf.mxu0
    %v952 = vadd.f32 %v807, %v951
    %v953 = vpop.f32.mrf.mxu0
    %954 = vmatprep.mubr.f32.mxu0 %v606
    %955 = vmatmul.mubr.f32.gmra.mxu0 %v605
    %v956 = vpop.f32.mrf.mxu0
    %v957 = vadd.f32 %v812, %v956
    %v958 = vpop.f32.mrf.mxu0
    %959 = vmatprep.mubr.f32.mxu0 %v610
    %960 = vmatmul.mubr.f32.gmra.mxu0 %v609
    %v961 = vpop.f32.mrf.mxu0
    %v962 = vadd.f32 %v817, %v961
    %v963 = vpop.f32.mrf.mxu0
    %964 = vmatprep.mubr.f32.mxu0 %v614
    %965 = vmatmul.mubr.f32.gmra.mxu0 %v613
    %v966 = vpop.f32.mrf.mxu0
    %v967 = vadd.f32 %v822, %v966
    %v968 = vpop.f32.mrf.mxu0
    %969 = vmatprep.mubr.f32.mxu0 %v618
    %970 = vmatmul.mubr.f32.gmra.mxu0 %v617
    %v971 = vpop.f32.mrf.mxu0
    %v972 = vadd.f32 %v827, %v971
    %v973 = vpop.f32.mrf.mxu0
    %974 = vmatprep.mubr.f32.mxu0 %v622
    %975 = vmatmul.mubr.f32.gmra.mxu0 %v621
    %v976 = vpop.f32.mrf.mxu0
    %v977 = vadd.f32 %v832, %v976
    %v978 = vpop.f32.mrf.mxu0
    %979 = vmatprep.mubr.f32.mxu0 %v626
    %980 = vmatmul.mubr.f32.gmra.mxu0 %v625
    %v981 = vpop.f32.mrf.mxu0
    %v982 = vadd.f32 %v837, %v981
    %v983 = vpop.f32.mrf.mxu0
    %984 = vmatprep.mubr.f32.mxu0 %v630
    %985 = vmatmul.mubr.f32.gmra.mxu0 %v629
    %v986 = vpop.f32.mrf.mxu0
    %v987 = vadd.f32 %v842, %v986
    %v988 = vpop.f32.mrf.mxu0
    %989 = vmatprep.mubr.f32.mxu0 %v634
    %990 = vmatmul.mubr.f32.gmra.mxu0 %v633
    %v991 = vpop.f32.mrf.mxu0
    %v992 = vadd.f32 %v847, %v991
    %v993 = vpop.f32.mrf.mxu0
    %994 = vmatprep.mubr.f32.mxu0 %v638
    %995 = vmatmul.mubr.f32.gmra.mxu0 %v637
    %v996 = vpop.f32.mrf.mxu0
    %v997 = vadd.f32 %v852, %v996
    %v998 = vpop.f32.mrf.mxu0
    %999 = vdwg.mxu0
    %v1000 = vld [vmem:[%s5] sm:$0xff]
    %v1001 = vld [vmem:[%s5 + $0x8] sm:$0x3]
    %v1002 = vld [vmem:[%s6] sm:$0xff]
    %v1003 = vld [vmem:[%s6 + $0x8] sm:$0xff]
    %v1004 = vld [vmem:[%s6 + $0x10] sm:$0xff]
    %v1005 = vld [vmem:[%s6 + $0x18] sm:$0xff]
    %v1006 = vld [vmem:[%s7] sm:$0x1]
    %v1007 = vld [vmem:[%s14] sm:$0xff]
    %v1008 = vld [vmem:[%s14 + $0x8] sm:$0xff]
    %v1009 = vld [vmem:[%s14 + $0x10] sm:$0xff]
    %v1010 = vld [vmem:[%s14 + $0x18] sm:$0xff]
    %v1011 = vld [vmem:[%s15] sm:$0x1]
    %v1012 = vld [vmem:[%s8] sm:$0xff]
    %v1013 = vld [vmem:[%s8 + $0x8] sm:$0xff]
    %v1014 = vld [vmem:[%s8 + $0x10] sm:$0xff]
    %v1015 = vld [vmem:[%s8 + $0x18] sm:$0xff]
    %v1016 = vld [vmem:[%s8 + $0x20] sm:$0xff]
    %v1017 = vld [vmem:[%s8 + $0x28] sm:$0xff]
    %v1018 = vld [vmem:[%s8 + $0x30] sm:$0xff]
    %v1019 = vld [vmem:[%s8 + $0x38] sm:$0xff]
    %v1020 = vld [vmem:[%s8 + $0x40] sm:$0xff]
    %v1021 = vld [vmem:[%s8 + $0x48] sm:$0xff]
    %v1022 = vld [vmem:[%s8 + $0x50] sm:$0xff]
    %v1023 = vld [vmem:[%s8 + $0x58] sm:$0xff]
    %v1024 = vld [vmem:[%s10] sm:$0xff]
    %v1025 = vld [vmem:[%s10 + $0x8] sm:$0xff]
    %v1026 = vld [vmem:[%s10 + $0x10] sm:$0xff]
    %v1027 = vld [vmem:[%s10 + $0x18] sm:$0xff]
    %v1028 = vld [vmem:[%s10 + $0x20] sm:$0xff]
    %v1029 = vld [vmem:[%s10 + $0x28] sm:$0xff]
    %v1030 = vld [vmem:[%s10 + $0x30] sm:$0xff]
    %v1031 = vld [vmem:[%s10 + $0x38] sm:$0xff]
    %v1033 = vsel %vm204, %v1012, 0
    %v1036 = vsel %vm204, %v1013, 0
    %v1039 = vsel %vm204, %v1014, 0
    %v1042 = vsel %vm204, %v1015, 0
    %v1045 = vsel %vm204, %v1016, 0
    %v1048 = vsel %vm204, %v1017, 0
    %v1051 = vsel %vm204, %v1018, 0
    %v1054 = vsel %vm204, %v1019, 0
    %v1057 = vsel %vm204, %v1020, 0
    %v1060 = vsel %vm204, %v1021, 0
    %v1063 = vsel %vm204, %v1022, 0
    %v1066 = vsel %vm204, %v1023, 0
    %1068 = vmatprep.subr.mxu0 0.0
    %1069 = vmatpush1.msra.mxu0 0.0
    %1070 = vmatprep.subr.mxu0 0.0
    %1071 = vmatpush1.msra.mxu0 0.0
    %1072 = vmatprep.subr.mxu0 0.0
    %1073 = vmatpush1.msra.mxu0 0.0
    %1074 = vmatprep.subr.mxu0 0.0
    %1075 = vmatpush1.msra.mxu0 0.0
    %1076 = vmatprep.subr.mxu0 0.0
    %1077 = vmatpush1.msra.mxu0 0.0
    %1078 = vmatprep.subr.mxu0 0.0
    %1079 = vmatpush1.msra.mxu0 0.0
    %1080 = vmatprep.subr.mxu0 0.0
    %1081 = vmatpush1.msra.mxu0 0.0
    %1082 = vmatprep.subr.mxu0 0.0
    %1083 = vmatpush1.msra.mxu0 0.0
    %1084 = vmatprep.subr.mxu0 0.0
    %1085 = vmatpush1.msra.mxu0 %v1031
    %1086 = vmatprep.subr.mxu0 0.0
    %1087 = vmatpush1.msra.mxu0 %v1030
    %1088 = vmatprep.subr.mxu0 0.0
    %1089 = vmatpush1.msra.mxu0 %v1029
    %1090 = vmatprep.subr.mxu0 0.0
    %1091 = vmatpush1.msra.mxu0 %v1028
    %1092 = vmatprep.subr.mxu0 0.0
    %1093 = vmatpush1.msra.mxu0 %v1027
    %1094 = vmatprep.subr.mxu0 0.0
    %1095 = vmatpush1.msra.mxu0 %v1026
    %1096 = vmatprep.subr.mxu0 0.0
    %1097 = vmatpush1.msra.mxu0 %v1025
    %1098 = vmatprep.subr.mxu0 0.0
    %1099 = vmatpush1.msra.mxu0 %v1024
    %1100 = vmatprep.subr.mxu0 0.0
    %1101 = vmatpush2.msra.mxu0 0.0
    %1102 = vmatprep.subr.mxu0 0.0
    %1103 = vmatpush2.msra.mxu0 0.0
    %1104 = vmatprep.subr.mxu0 0.0
    %1105 = vmatpush2.msra.mxu0 0.0
    %1106 = vmatprep.subr.mxu0 0.0
    %1107 = vmatpush2.msra.mxu0 0.0
    %1108 = vmatprep.subr.mxu0 0.0
    %1109 = vmatpush2.msra.mxu0 0.0
    %1110 = vmatprep.subr.mxu0 0.0
    %1111 = vmatpush2.msra.mxu0 0.0
    %1112 = vmatprep.subr.mxu0 0.0
    %1113 = vmatpush2.msra.mxu0 0.0
    %1114 = vmatprep.subr.mxu0 0.0
    %1115 = vmatpush2.msra.mxu0 0.0
    %1116 = vmatprep.subr.mxu0 0.0
    %1117 = vmatpush2.msra.mxu0 0.0
    %1118 = vmatprep.subr.mxu0 0.0
    %1119 = vmatpush2.msra.mxu0 0.0
    %1120 = vmatprep.subr.mxu0 0.0
    %1121 = vmatpush2.msra.mxu0 0.0
    %1122 = vmatprep.subr.mxu0 0.0
    %1123 = vmatpush2.msra.mxu0 0.0
    %1124 = vmatprep.subr.mxu0 0.0
    %1125 = vmatpush2.msra.mxu0 0.0
    %1126 = vmatprep.subr.mxu0 0.0
    %1127 = vmatpush2.msra.mxu0 0.0
    %1128 = vmatprep.subr.mxu0 0.0
    %1129 = vmatpush2.msra.mxu0 0.0
    %1130 = vmatprep.subr.mxu0 0.0
    %1131 = vmatpush2.msra.mxu0 0.0
    %1132 = vmatprep.mubr.f32.mxu0 0.0
    %1133 = vmatmul.mubr.f32.gmra.mxu0 %v1033
    %v1134 = vpop.f32.mrf.mxu0
    %v1135 = vadd.f32 0.0, %v1134
    %v1136 = vpop.f32.mrf.mxu0
    %1137 = vmatprep.mubr.f32.mxu0 0.0
    %1138 = vmatmul.mubr.f32.gmra.mxu0 %v1036
    %v1139 = vpop.f32.mrf.mxu0
    %v1140 = vadd.f32 0.0, %v1139
    %v1141 = vpop.f32.mrf.mxu0
    %1142 = vmatprep.mubr.f32.mxu0 0.0
    %1143 = vmatmul.mubr.f32.gmra.mxu0 %v1039
    %v1144 = vpop.f32.mrf.mxu0
    %v1145 = vadd.f32 0.0, %v1144
    %v1146 = vpop.f32.mrf.mxu0
    %1147 = vmatprep.mubr.f32.mxu0 0.0
    %1148 = vmatmul.mubr.f32.gmra.mxu0 %v1042
    %v1149 = vpop.f32.mrf.mxu0
    %v1150 = vadd.f32 0.0, %v1149
    %v1151 = vpop.f32.mrf.mxu0
    %1152 = vmatprep.mubr.f32.mxu0 0.0
    %1153 = vmatmul.mubr.f32.gmra.mxu0 %v1045
    %v1154 = vpop.f32.mrf.mxu0
    %v1155 = vadd.f32 0.0, %v1154
    %v1156 = vpop.f32.mrf.mxu0
    %1157 = vmatprep.mubr.f32.mxu0 0.0
    %1158 = vmatmul.mubr.f32.gmra.mxu0 %v1048
    %v1159 = vpop.f32.mrf.mxu0
    %v1160 = vadd.f32 0.0, %v1159
    %v1161 = vpop.f32.mrf.mxu0
    %1162 = vmatprep.mubr.f32.mxu0 0.0
    %1163 = vmatmul.mubr.f32.gmra.mxu0 %v1051
    %v1164 = vpop.f32.mrf.mxu0
    %v1165 = vadd.f32 0.0, %v1164
    %v1166 = vpop.f32.mrf.mxu0
    %1167 = vmatprep.mubr.f32.mxu0 0.0
    %1168 = vmatmul.mubr.f32.gmra.mxu0 %v1054
    %v1169 = vpop.f32.mrf.mxu0
    %v1170 = vadd.f32 0.0, %v1169
    %v1171 = vpop.f32.mrf.mxu0
    %1172 = vmatprep.mubr.f32.mxu0 0.0
    %1173 = vmatmul.mubr.f32.gmra.mxu0 %v1057
    %v1174 = vpop.f32.mrf.mxu0
    %v1175 = vadd.f32 0.0, %v1174
    %v1176 = vpop.f32.mrf.mxu0
    %1177 = vmatprep.mubr.f32.mxu0 0.0
    %1178 = vmatmul.mubr.f32.gmra.mxu0 %v1060
    %v1179 = vpop.f32.mrf.mxu0
    %v1180 = vadd.f32 0.0, %v1179
    %v1181 = vpop.f32.mrf.mxu0
    %1182 = vmatprep.mubr.f32.mxu0 0.0
    %1183 = vmatmul.mubr.f32.gmra.mxu0 %v1063
    %v1184 = vpop.f32.mrf.mxu0
    %v1185 = vadd.f32 0.0, %v1184
    %v1186 = vpop.f32.mrf.mxu0
    %1187 = vmatprep.mubr.f32.mxu0 0.0
    %1188 = vmatmul.mubr.f32.gmra.mxu0 %v1066
    %v1189 = vpop.f32.mrf.mxu0
    %v1190 = vadd.f32 0.0, %v1189
    %v1191 = vpop.f32.mrf.mxu0
    %1192 = vdwg.mxu0
    %v1193 = vld [vmem:[%s11] sm:$0xff]
    %v1194 = vld [vmem:[%s11 + $0x8] sm:$0xff]
    %v1195 = vld [vmem:[%s11 + $0x10] sm:$0xff]
    %v1196 = vld [vmem:[%s11 + $0x18] sm:$0xff]
    %v1197 = vld [vmem:[%s9] sm:$0x1]
    %v1198 = vld [vmem:[%s12] sm:$0x1]
    %v1200 = vsel %vm204, %v1197, 0
    %1202 = vmatprep.subr.mxu0 0.0
    %1203 = vmatpush1.msra.mxu0 0.0
    %1204 = vmatprep.subr.mxu0 0.0
    %1205 = vmatpush1.msra.mxu0 0.0
    %1206 = vmatprep.subr.mxu0 0.0
    %1207 = vmatpush1.msra.mxu0 0.0
    %1208 = vmatprep.subr.mxu0 0.0
    %1209 = vmatpush1.msra.mxu0 0.0
    %1210 = vmatprep.subr.mxu0 0.0
    %1211 = vmatpush1.msra.mxu0 0.0
    %1212 = vmatprep.subr.mxu0 0.0
    %1213 = vmatpush1.msra.mxu0 0.0
    %1214 = vmatprep.subr.mxu0 0.0
    %1215 = vmatpush1.msra.mxu0 0.0
    %1216 = vmatprep.subr.mxu0 0.0
    %1217 = vmatpush1.msra.mxu0 0.0
    %1218 = vmatprep.subr.mxu0 0.0
    %1219 = vmatpush1.msra.mxu0 %v1031
    %1220 = vmatprep.subr.mxu0 0.0
    %1221 = vmatpush1.msra.mxu0 %v1030
    %1222 = vmatprep.subr.mxu0 0.0
    %1223 = vmatpush1.msra.mxu0 %v1029
    %1224 = vmatprep.subr.mxu0 0.0
    %1225 = vmatpush1.msra.mxu0 %v1028
    %1226 = vmatprep.subr.mxu0 0.0
    %1227 = vmatpush1.msra.mxu0 %v1027
    %1228 = vmatprep.subr.mxu0 0.0
    %1229 = vmatpush1.msra.mxu0 %v1026
    %1230 = vmatprep.subr.mxu0 0.0
    %1231 = vmatpush1.msra.mxu0 %v1025
    %1232 = vmatprep.subr.mxu0 0.0
    %1233 = vmatpush1.msra.mxu0 %v1024
    %1234 = vmatprep.subr.mxu0 0.0
    %1235 = vmatpush2.msra.mxu0 0.0
    %1236 = vmatprep.subr.mxu0 0.0
    %1237 = vmatpush2.msra.mxu0 0.0
    %1238 = vmatprep.subr.mxu0 0.0
    %1239 = vmatpush2.msra.mxu0 0.0
    %1240 = vmatprep.subr.mxu0 0.0
    %1241 = vmatpush2.msra.mxu0 0.0
    %1242 = vmatprep.subr.mxu0 0.0
    %1243 = vmatpush2.msra.mxu0 0.0
    %1244 = vmatprep.subr.mxu0 0.0
    %1245 = vmatpush2.msra.mxu0 0.0
    %1246 = vmatprep.subr.mxu0 0.0
    %1247 = vmatpush2.msra.mxu0 0.0
    %1248 = vmatprep.subr.mxu0 0.0
    %1249 = vmatpush2.msra.mxu0 0.0
    %1250 = vmatprep.subr.mxu0 0.0
    %1251 = vmatpush2.msra.mxu0 0.0
    %1252 = vmatprep.subr.mxu0 0.0
    %1253 = vmatpush2.msra.mxu0 0.0
    %1254 = vmatprep.subr.mxu0 0.0
    %1255 = vmatpush2.msra.mxu0 0.0
    %1256 = vmatprep.subr.mxu0 0.0
    %1257 = vmatpush2.msra.mxu0 0.0
    %1258 = vmatprep.subr.mxu0 0.0
    %1259 = vmatpush2.msra.mxu0 0.0
    %1260 = vmatprep.subr.mxu0 0.0
    %1261 = vmatpush2.msra.mxu0 0.0
    %1262 = vmatprep.subr.mxu0 0.0
    %1263 = vmatpush2.msra.mxu0 0.0
    %1264 = vmatprep.subr.mxu0 0.0
    %1265 = vmatpush2.msra.mxu0 0.0
    %1266 = vmatprep.mubr.f32.mxu0 0.0
    %1267 = vmatmul.mubr.f32.gmra.mxu0 %v1200
    %v1268 = vpop.f32.mrf.mxu0
    %v1269 = vadd.f32 %v1198, %v1268
    %v1270 = vpop.f32.mrf.mxu0
    %1271 = vdwg.mxu0
    %v1272 = vld [vmem:[%s13] sm:$0x1]
    %v1273 = vadd.f32 %v1269, %v1272
    %v1274 = vlaneseq
    %v1275 = vand.u32 %v1274, 127
    %vm1276 = vcmp.eq.s32.totalorder %v1275, 0
    %v1277 = vsel %vm1276, 1, 0
    %v1278 = vcvt.s32.f32 %v1277
    %vm1279 = vcmask 80896
    %v1281 = vsel %vm1279, %v1278, 0
    %vm1283 = vcmask 1041408
    %v1285 = vsel %vm1283, %v1001, 0
    %1287 = vmatprep.subr.mxu0 0.0
    %1288 = vmatpush1.msra.mxu0 0.0
    %1289 = vmatprep.subr.mxu0 0.0
    %1290 = vmatpush1.msra.mxu0 0.0
    %1291 = vmatprep.subr.mxu0 0.0
    %1292 = vmatpush1.msra.mxu0 0.0
    %1293 = vmatprep.subr.mxu0 0.0
    %1294 = vmatpush1.msra.mxu0 0.0
    %1295 = vmatprep.subr.mxu0 0.0
    %1296 = vmatpush1.msra.mxu0 0.0
    %1297 = vmatprep.subr.mxu0 0.0
    %1298 = vmatpush1.msra.mxu0 0.0
    %1299 = vmatprep.subr.mxu0 0.0
    %1300 = vmatpush1.msra.mxu0 0.0
    %1301 = vmatprep.subr.mxu0 0.0
    %1302 = vmatpush1.msra.mxu0 0.0
    %1303 = vmatprep.subr.mxu0 0.0
    %1304 = vmatpush1.msra.mxu0 0.0
    %1305 = vmatprep.subr.mxu0 0.0
    %1306 = vmatpush1.msra.mxu0 0.0
    %1307 = vmatprep.subr.mxu0 0.0
    %1308 = vmatpush1.msra.mxu0 0.0
    %1309 = vmatprep.subr.mxu0 0.0
    %1310 = vmatpush1.msra.mxu0 0.0
    %1311 = vmatprep.subr.mxu0 0.0
    %1312 = vmatpush1.msra.mxu0 0.0
    %1313 = vmatprep.subr.mxu0 0.0
    %1314 = vmatpush1.msra.mxu0 0.0
    %1315 = vmatprep.subr.mxu0 0.0
    %1316 = vmatpush1.msra.mxu0 %v1285
    %1317 = vmatprep.subr.mxu0 0.0
    %1318 = vmatpush1.msra.mxu0 %v1000
    %1319 = vmatprep.subr.mxu0 0.0
    %1320 = vmatpush2.msra.mxu0 0.0
    %1321 = vmatprep.subr.mxu0 0.0
    %1322 = vmatpush2.msra.mxu0 0.0
    %1323 = vmatprep.subr.mxu0 0.0
    %1324 = vmatpush2.msra.mxu0 0.0
    %1325 = vmatprep.subr.mxu0 0.0
    %1326 = vmatpush2.msra.mxu0 0.0
    %1327 = vmatprep.subr.mxu0 0.0
    %1328 = vmatpush2.msra.mxu0 0.0
    %1329 = vmatprep.subr.mxu0 0.0
    %1330 = vmatpush2.msra.mxu0 0.0
    %1331 = vmatprep.subr.mxu0 0.0
    %1332 = vmatpush2.msra.mxu0 0.0
    %1333 = vmatprep.subr.mxu0 0.0
    %1334 = vmatpush2.msra.mxu0 0.0
    %1335 = vmatprep.subr.mxu0 0.0
    %1336 = vmatpush2.msra.mxu0 0.0
    %1337 = vmatprep.subr.mxu0 0.0
    %1338 = vmatpush2.msra.mxu0 0.0
    %1339 = vmatprep.subr.mxu0 0.0
    %1340 = vmatpush2.msra.mxu0 0.0
    %1341 = vmatprep.subr.mxu0 0.0
    %1342 = vmatpush2.msra.mxu0 0.0
    %1343 = vmatprep.subr.mxu0 0.0
    %1344 = vmatpush2.msra.mxu0 0.0
    %1345 = vmatprep.subr.mxu0 0.0
    %1346 = vmatpush2.msra.mxu0 0.0
    %1347 = vmatprep.subr.mxu0 0.0
    %1348 = vmatpush2.msra.mxu0 0.0
    %1349 = vmatprep.subr.mxu0 0.0
    %1350 = vmatpush2.msra.mxu0 0.0
    %1351 = vmatprep.mubr.f32.mxu0 0.0
    %1352 = vmatmul.mubr.f32.gmra.mxu0 %v1281
    %v1353 = vpop.f32.mrf.mxu0
    %v1354 = vadd.f32 0.0, %v1353
    %v1355 = vpop.f32.mrf.mxu0
    %1356 = vdwg.mxu0
    %v1358 = vlaneseq
    %v1359 = vshrl.u32 %v1358, 7
    %v1360 = vsub.s32 0, %v1359
    %v1361 = vrot.slane %v1006, %v1360
    %vm1363 = vcmask 261120
    %v1365 = vsel %vm1363, 0.0, 0
    %1367 = vmatprep.subr.mxu0 0.0
    %1368 = vmatpush1.msra.mxu0 0.0
    %1369 = vmatprep.subr.mxu0 0.0
    %1370 = vmatpush1.msra.mxu0 0.0
    %1371 = vmatprep.subr.mxu0 0.0
    %1372 = vmatpush1.msra.mxu0 0.0
    %1373 = vmatprep.subr.mxu0 0.0
    %1374 = vmatpush1.msra.mxu0 0.0
    %1375 = vmatprep.subr.mxu0 0.0
    %1376 = vmatpush1.msra.mxu0 0.0
    %1377 = vmatprep.subr.mxu0 0.0
    %1378 = vmatpush1.msra.mxu0 0.0
    %1379 = vmatprep.subr.mxu0 0.0
    %1380 = vmatpush1.msra.mxu0 0.0
    %1381 = vmatprep.subr.mxu0 0.0
    %1382 = vmatpush1.msra.mxu0 0.0
    %1383 = vmatprep.subr.mxu0 0.0
    %1384 = vmatpush1.msra.mxu0 0.0
    %1385 = vmatprep.subr.mxu0 0.0
    %1386 = vmatpush1.msra.mxu0 0.0
    %1387 = vmatprep.subr.mxu0 0.0
    %1388 = vmatpush1.msra.mxu0 0.0
    %1389 = vmatprep.subr.mxu0 0.0
    %1390 = vmatpush1.msra.mxu0 0.0
    %1391 = vmatprep.subr.mxu0 0.0
    %1392 = vmatpush1.msra.mxu0 %v1005
    %1393 = vmatprep.subr.mxu0 0.0
    %1394 = vmatpush1.msra.mxu0 %v1004
    %1395 = vmatprep.subr.mxu0 0.0
    %1396 = vmatpush1.msra.mxu0 %v1003
    %1397 = vmatprep.subr.mxu0 0.0
    %1398 = vmatpush1.msra.mxu0 %v1002
    %1399 = vmatprep.subr.mxu0 0.0
    %1400 = vmatpush2.msra.mxu0 0.0
    %1401 = vmatprep.subr.mxu0 0.0
    %1402 = vmatpush2.msra.mxu0 0.0
    %1403 = vmatprep.subr.mxu0 0.0
    %1404 = vmatpush2.msra.mxu0 0.0
    %1405 = vmatprep.subr.mxu0 0.0
    %1406 = vmatpush2.msra.mxu0 0.0
    %1407 = vmatprep.subr.mxu0 0.0
    %1408 = vmatpush2.msra.mxu0 0.0
    %1409 = vmatprep.subr.mxu0 0.0
    %1410 = vmatpush2.msra.mxu0 0.0
    %1411 = vmatprep.subr.mxu0 0.0
    %1412 = vmatpush2.msra.mxu0 0.0
    %1413 = vmatprep.subr.mxu0 0.0
    %1414 = vmatpush2.msra.mxu0 0.0
    %1415 = vmatprep.subr.mxu0 0.0
    %1416 = vmatpush2.msra.mxu0 0.0
    %1417 = vmatprep.subr.mxu0 0.0
    %1418 = vmatpush2.msra.mxu0 0.0
    %1419 = vmatprep.subr.mxu0 0.0
    %1420 = vmatpush2.msra.mxu0 0.0
    %1421 = vmatprep.subr.mxu0 0.0
    %1422 = vmatpush2.msra.mxu0 0.0
    %1423 = vmatprep.subr.mxu0 0.0
    %1424 = vmatpush2.msra.mxu0 0.0
    %1425 = vmatprep.subr.mxu0 0.0
    %1426 = vmatpush2.msra.mxu0 0.0
    %1427 = vmatprep.subr.mxu0 0.0
    %1428 = vmatpush2.msra.mxu0 0.0
    %1429 = vmatprep.subr.mxu0 0.0
    %1430 = vmatpush2.msra.mxu0 0.0
    %1431 = vmatprep.mubr.f32.mxu0 0.0
    %1432 = vmatmul.mubr.f32.gmra.mxu0 %v1365
    %v1433 = vpop.f32.mrf.mxu0
    %v1434 = vadd.f32 %v1361, %v1433
    %v1435 = vpop.f32.mrf.mxu0
    %1436 = vdwg.mxu0
    %vm1437 = vcmask 254976
    %v1438 = vsel %vm1437, %v1434, -inf
    %1439 = vmax.xlane.f32.xlu0 %v1438
    %v1440 = vpop.xlane.xlu0 %1439
    %v1441 = vsub.f32 %v1434, %v1440
    %v1442 = vmul.f32 %v1441, 1.442695
    %v1443 = vpow.pop %v1442
    %v1444 = vsel %vm1437, %v1443, 0.0
    %1445 = vadd.xlane.f32.xlu0 %v1444
    %v1446 = vpop.xlane.xlu0 %1445
    %v1447 = vrcp.pop %v1446
    %v1448 = vmul.f32 %v1443, %v1447
    %v1450 = vsel %vm1363, %v1448, 0
    %v1453 = vsel %vm1363, %v922, 0
    %v1456 = vsel %vm1363, %v927, 0
    %v1459 = vsel %vm1363, %v932, 0
    %v1462 = vsel %vm1363, %v937, 0
    %v1465 = vsel %vm1363, %v942, 0
    %v1468 = vsel %vm1363, %v947, 0
    %v1471 = vsel %vm1363, %v952, 0
    %v1474 = vsel %vm1363, %v957, 0
    %1476 = vmatprep.subr.mxu0 0.0
    %1477 = vmatpush1.xpose.msra.mxu0 0.0
    %1478 = vmatprep.subr.mxu0 0.0
    %1479 = vmatpush1.xpose.msra.mxu0 0.0
    %1480 = vmatprep.subr.mxu0 0.0
    %1481 = vmatpush1.xpose.msra.mxu0 0.0
    %1482 = vmatprep.subr.mxu0 0.0
    %1483 = vmatpush1.xpose.msra.mxu0 0.0
    %1484 = vmatprep.subr.mxu0 0.0
    %1485 = vmatpush1.xpose.msra.mxu0 0.0
    %1486 = vmatprep.subr.mxu0 0.0
    %1487 = vmatpush1.xpose.msra.mxu0 0.0
    %1488 = vmatprep.subr.mxu0 0.0
    %1489 = vmatpush1.xpose.msra.mxu0 0.0
    %1490 = vmatprep.subr.mxu0 0.0
    %1491 = vmatpush1.xpose.msra.mxu0 0.0
    %1492 = vmatprep.subr.mxu0 0.0
    %1493 = vmatpush1.xpose.msra.mxu0 %v1474
    %1494 = vmatprep.subr.mxu0 0.0
    %1495 = vmatpush1.xpose.msra.mxu0 %v1471
    %1496 = vmatprep.subr.mxu0 0.0
    %1497 = vmatpush1.xpose.msra.mxu0 %v1468
    %1498 = vmatprep.subr.mxu0 0.0
    %1499 = vmatpush1.xpose.msra.mxu0 %v1465
    %1500 = vmatprep.subr.mxu0 0.0
    %1501 = vmatpush1.xpose.msra.mxu0 %v1462
    %1502 = vmatprep.subr.mxu0 0.0
    %1503 = vmatpush1.xpose.msra.mxu0 %v1459
    %1504 = vmatprep.subr.mxu0 0.0
    %1505 = vmatpush1.xpose.msra.mxu0 %v1456
    %1506 = vmatprep.subr.mxu0 0.0
    %1507 = vmatpush1.xpose.msra.mxu0 %v1453
    %1508 = vmatprep.subr.mxu0 0.0
    %1509 = vmatpush2.xpose.msra.mxu0 0.0
    %1510 = vmatprep.subr.mxu0 0.0
    %1511 = vmatpush2.xpose.msra.mxu0 0.0
    %1512 = vmatprep.subr.mxu0 0.0
    %1513 = vmatpush2.xpose.msra.mxu0 0.0
    %1514 = vmatprep.subr.mxu0 0.0
    %1515 = vmatpush2.xpose.msra.mxu0 0.0
    %1516 = vmatprep.subr.mxu0 0.0
    %1517 = vmatpush2.xpose.msra.mxu0 0.0
    %1518 = vmatprep.subr.mxu0 0.0
    %1519 = vmatpush2.xpose.msra.mxu0 0.0
    %1520 = vmatprep.subr.mxu0 0.0
    %1521 = vmatpush2.xpose.msra.mxu0 0.0
    %1522 = vmatprep.subr.mxu0 0.0
    %1523 = vmatpush2.xpose.msra.mxu0 0.0
    %1524 = vmatprep.subr.mxu0 0.0
    %1525 = vmatpush2.xpose.msra.mxu0 0.0
    %1526 = vmatprep.subr.mxu0 0.0
    %1527 = vmatpush2.xpose.msra.mxu0 0.0
    %1528 = vmatprep.subr.mxu0 0.0
    %1529 = vmatpush2.xpose.msra.mxu0 0.0
    %1530 = vmatprep.subr.mxu0 0.0
    %1531 = vmatpush2.xpose.msra.mxu0 0.0
    %1532 = vmatprep.subr.mxu0 0.0
    %1533 = vmatpush2.xpose.msra.mxu0 0.0
    %1534 = vmatprep.subr.mxu0 0.0
    %1535 = vmatpush2.xpose.msra.mxu0 0.0
    %1536 = vmatprep.subr.mxu0 0.0
    %1537 = vmatpush2.xpose.msra.mxu0 0.0
    %1538 = vmatprep.subr.mxu0 0.0
    %1539 = vmatpush2.xpose.msra.mxu0 0.0
    %1540 = vmatprep.mubr.f32.mxu0 0.0
    %1541 = vmatmul.mubr.f32.gmra.mxu0 %v1450
    %v1542 = vpop.f32.mrf.mxu0
    %v1543 = vadd.f32 0.0, %v1542
    %v1544 = vpop.f32.mrf.mxu0
    %1545 = vdwg.mxu0
    %v1546 = vrot.slane %v1448, 1
    %v1547 = vsel %vm1363, %v1546, 0
    %v1550 = vsel %vm1363, %v962, 0
    %v1553 = vsel %vm1363, %v967, 0
    %v1556 = vsel %vm1363, %v972, 0
    %v1559 = vsel %vm1363, %v977, 0
    %v1562 = vsel %vm1363, %v982, 0
    %v1565 = vsel %vm1363, %v987, 0
    %v1568 = vsel %vm1363, %v992, 0
    %v1571 = vsel %vm1363, %v997, 0
    %1573 = vmatprep.subr.mxu0 0.0
    %1574 = vmatpush1.xpose.msra.mxu0 0.0
    %1575 = vmatprep.subr.mxu0 0.0
    %1576 = vmatpush1.xpose.msra.mxu0 0.0
    %1577 = vmatprep.subr.mxu0 0.0
    %1578 = vmatpush1.xpose.msra.mxu0 0.0
    %1579 = vmatprep.subr.mxu0 0.0
    %1580 = vmatpush1.xpose.msra.mxu0 0.0
    %1581 = vmatprep.subr.mxu0 0.0
    %1582 = vmatpush1.xpose.msra.mxu0 0.0
    %1583 = vmatprep.subr.mxu0 0.0
    %1584 = vmatpush1.xpose.msra.mxu0 0.0
    %1585 = vmatprep.subr.mxu0 0.0
    %1586 = vmatpush1.xpose.msra.mxu0 0.0
    %1587 = vmatprep.subr.mxu0 0.0
    %1588 = vmatpush1.xpose.msra.mxu0 0.0
    %1589 = vmatprep.subr.mxu0 0.0
    %1590 = vmatpush1.xpose.msra.mxu0 %v1571
    %1591 = vmatprep.subr.mxu0 0.0
    %1592 = vmatpush1.xpose.msra.mxu0 %v1568
    %1593 = vmatprep.subr.mxu0 0.0
    %1594 = vmatpush1.xpose.msra.mxu0 %v1565
    %1595 = vmatprep.subr.mxu0 0.0
    %1596 = vmatpush1.xpose.msra.mxu0 %v1562
    %1597 = vmatprep.subr.mxu0 0.0
    %1598 = vmatpush1.xpose.msra.mxu0 %v1559
    %1599 = vmatprep.subr.mxu0 0.0
    %1600 = vmatpush1.xpose.msra.mxu0 %v1556
    %1601 = vmatprep.subr.mxu0 0.0
    %1602 = vmatpush1.xpose.msra.mxu0 %v1553
    %1603 = vmatprep.subr.mxu0 0.0
    %1604 = vmatpush1.xpose.msra.mxu0 %v1550
    %1605 = vmatprep.subr.mxu0 0.0
    %1606 = vmatpush2.xpose.msra.mxu0 0.0
    %1607 = vmatprep.subr.mxu0 0.0
    %1608 = vmatpush2.xpose.msra.mxu0 0.0
    %1609 = vmatprep.subr.mxu0 0.0
    %1610 = vmatpush2.xpose.msra.mxu0 0.0
    %1611 = vmatprep.subr.mxu0 0.0
    %1612 = vmatpush2.xpose.msra.mxu0 0.0
    %1613 = vmatprep.subr.mxu0 0.0
    %1614 = vmatpush2.xpose.msra.mxu0 0.0
    %1615 = vmatprep.subr.mxu0 0.0
    %1616 = vmatpush2.xpose.msra.mxu0 0.0
    %1617 = vmatprep.subr.mxu0 0.0
    %1618 = vmatpush2.xpose.msra.mxu0 0.0
    %1619 = vmatprep.subr.mxu0 0.0
    %1620 = vmatpush2.xpose.msra.mxu0 0.0
    %1621 = vmatprep.subr.mxu0 0.0
    %1622 = vmatpush2.xpose.msra.mxu0 0.0
    %1623 = vmatprep.subr.mxu0 0.0
    %1624 = vmatpush2.xpose.msra.mxu0 0.0
    %1625 = vmatprep.subr.mxu0 0.0
    %1626 = vmatpush2.xpose.msra.mxu0 0.0
    %1627 = vmatprep.subr.mxu0 0.0
    %1628 = vmatpush2.xpose.msra.mxu0 0.0
    %1629 = vmatprep.subr.mxu0 0.0
    %1630 = vmatpush2.xpose.msra.mxu0 0.0
    %1631 = vmatprep.subr.mxu0 0.0
    %1632 = vmatpush2.xpose.msra.mxu0 0.0
    %1633 = vmatprep.subr.mxu0 0.0
    %1634 = vmatpush2.xpose.msra.mxu0 0.0
    %1635 = vmatprep.subr.mxu0 0.0
    %1636 = vmatpush2.xpose.msra.mxu0 0.0
    %1637 = vmatprep.mubr.f32.mxu0 0.0
    %1638 = vmatmul.mubr.f32.gmra.mxu0 %v1547
    %v1639 = vpop.f32.mrf.mxu0
    %v1640 = vadd.f32 0.0, %v1639
    %v1641 = vpop.f32.mrf.mxu0
    %1642 = vdwg.mxu0
    %v1644 = vrot.slane %v1640, 7
    %vm1646 = vcmask 1040384
    %v1647 = vsel %vm1646, %v1543, %v1644
    %1649 = vrot.lane.b32.xlu0 %v1647, 32
    %v1650 = vpop.permute.xlu0 %1649
    %v1652 = vsel %vm1363, %v1354, %v1650
    %vm1653 = vcmask 785408
    %v1654 = vsel %vm1653, %v1652, 0.0
    %v1655 = vlaneseq
    %v1656 = vshrl.u32 %v1655, 7
    %v1657 = vsub.s32 0, %v1656
    %v1658 = vrot.slane %v1273, %v1657
    %1659 = vmatprep.subr.mxu0 0.0
    %1660 = vmatpush1.msra.mxu0 %v1196
    %1661 = vmatprep.subr.mxu0 0.0
    %1662 = vmatpush1.msra.mxu0 %v1195
    %1663 = vmatprep.subr.mxu0 0.0
    %1664 = vmatpush1.msra.mxu0 %v1194
    %1665 = vmatprep.subr.mxu0 0.0
    %1666 = vmatpush1.msra.mxu0 %v1193
    %1667 = vmatprep.subr.mxu0 0.0
    %1668 = vmatpush1.msra.mxu0 %v1190
    %1669 = vmatprep.subr.mxu0 0.0
    %1670 = vmatpush1.msra.mxu0 %v1185
    %1671 = vmatprep.subr.mxu0 0.0
    %1672 = vmatpush1.msra.mxu0 %v1180
    %1673 = vmatprep.subr.mxu0 0.0
    %1674 = vmatpush1.msra.mxu0 %v1175
    %1675 = vmatprep.subr.mxu0 0.0
    %1676 = vmatpush1.msra.mxu0 %v1170
    %1677 = vmatprep.subr.mxu0 0.0
    %1678 = vmatpush1.msra.mxu0 %v1165
    %1679 = vmatprep.subr.mxu0 0.0
    %1680 = vmatpush1.msra.mxu0 %v1160
    %1681 = vmatprep.subr.mxu0 0.0
    %1682 = vmatpush1.msra.mxu0 %v1155
    %1683 = vmatprep.subr.mxu0 0.0
    %1684 = vmatpush1.msra.mxu0 %v1150
    %1685 = vmatprep.subr.mxu0 0.0
    %1686 = vmatpush1.msra.mxu0 %v1145
    %1687 = vmatprep.subr.mxu0 0.0
    %1688 = vmatpush1.msra.mxu0 %v1140
    %1689 = vmatprep.subr.mxu0 0.0
    %1690 = vmatpush1.msra.mxu0 %v1135
    %1691 = vmatprep.subr.mxu0 0.0
    %1692 = vmatpush2.msra.mxu0 0.0
    %1693 = vmatprep.subr.mxu0 0.0
    %1694 = vmatpush2.msra.mxu0 0.0
    %1695 = vmatprep.subr.mxu0 0.0
    %1696 = vmatpush2.msra.mxu0 0.0
    %1697 = vmatprep.subr.mxu0 0.0
    %1698 = vmatpush2.msra.mxu0 0.0
    %1699 = vmatprep.subr.mxu0 0.0
    %1700 = vmatpush2.msra.mxu0 0.0
    %1701 = vmatprep.subr.mxu0 0.0
    %1702 = vmatpush2.msra.mxu0 0.0
    %1703 = vmatprep.subr.mxu0 0.0
    %1704 = vmatpush2.msra.mxu0 0.0
    %1705 = vmatprep.subr.mxu0 0.0
    %1706 = vmatpush2.msra.mxu0 0.0
    %1707 = vmatprep.subr.mxu0 0.0
    %1708 = vmatpush2.msra.mxu0 0.0
    %1709 = vmatprep.subr.mxu0 0.0
    %1710 = vmatpush2.msra.mxu0 0.0
    %1711 = vmatprep.subr.mxu0 0.0
    %1712 = vmatpush2.msra.mxu0 0.0
    %1713 = vmatprep.subr.mxu0 0.0
    %1714 = vmatpush2.msra.mxu0 0.0
    %1715 = vmatprep.subr.mxu0 0.0
    %1716 = vmatpush2.msra.mxu0 0.0
    %1717 = vmatprep.subr.mxu0 0.0
    %1718 = vmatpush2.msra.mxu0 0.0
    %1719 = vmatprep.subr.mxu0 0.0
    %1720 = vmatpush2.msra.mxu0 0.0
    %1721 = vmatprep.subr.mxu0 0.0
    %1722 = vmatpush2.msra.mxu0 0.0
    %1723 = vmatprep.mubr.f32.mxu0 0.0
    %1724 = vmatmul.mubr.f32.gmra.mxu0 %v1654
    %v1725 = vpop.f32.mrf.mxu0
    %v1726 = vadd.f32 %v1658, %v1725
    %v1727 = vpop.f32.mrf.mxu0
    %1728 = vdwg.mxu0
    %v1729 = vxor.u32 %v1726, 2147483648
    %v1730 = vmul.f32 %v1729, 1.442695
    %v1731 = vpow.pop %v1730
    %v1732 = vadd.f32 %v1731, 1.0
    %v1733 = vrcp.pop %v1732
    %v1734 = vmul.f32 1.0, %v1733
    %v1735 = vtanh.pop %v1726
    %v1736 = vmul.f32 %v1734, 0.0
    %1738 = vrot.lane.b32.xlu0 %v1735, 64
    %v1739 = vpop.permute.xlu0 %1738
    %v1741 = vmul.f32 %v1734, %v1739
    %1743 = vrot.lane.b32.xlu0 %v1741, 32
    %v1744 = vpop.permute.xlu0 %1743
    %v1746 = vadd.f32 %v1736, %v1744
    %v1747 = vtanh.pop %v1746
    %1749 = vrot.lane.b32.xlu0 %v1747, 64
    %v1750 = vpop.permute.xlu0 %1749
    %v1752 = vmul.f32 %v1734, %v1750
    %v1754 = vlaneseq
    %v1755 = vshrl.u32 %v1754, 7
    %v1756 = vsub.s32 0, %v1755
    %v1757 = vrot.slane %v1011, %v1756
    %1760 = vrot.lane.b32.xlu0 %v1752, 32
    %v1761 = vpop.permute.xlu0 %1760
    %v1762 = vsel %vm1363, %v1761, 0
    %1764 = vmatprep.subr.mxu0 0.0
    %1765 = vmatpush1.msra.mxu0 0.0
    %1766 = vmatprep.subr.mxu0 0.0
    %1767 = vmatpush1.msra.mxu0 0.0
    %1768 = vmatprep.subr.mxu0 0.0
    %1769 = vmatpush1.msra.mxu0 0.0
    %1770 = vmatprep.subr.mxu0 0.0
    %1771 = vmatpush1.msra.mxu0 0.0
    %1772 = vmatprep.subr.mxu0 0.0
    %1773 = vmatpush1.msra.mxu0 0.0
    %1774 = vmatprep.subr.mxu0 0.0
    %1775 = vmatpush1.msra.mxu0 0.0
    %1776 = vmatprep.subr.mxu0 0.0
    %1777 = vmatpush1.msra.mxu0 0.0
    %1778 = vmatprep.subr.mxu0 0.0
    %1779 = vmatpush1.msra.mxu0 0.0
    %1780 = vmatprep.subr.mxu0 0.0
    %1781 = vmatpush1.msra.mxu0 0.0
    %1782 = vmatprep.subr.mxu0 0.0
    %1783 = vmatpush1.msra.mxu0 0.0
    %1784 = vmatprep.subr.mxu0 0.0
    %1785 = vmatpush1.msra.mxu0 0.0
    %1786 = vmatprep.subr.mxu0 0.0
    %1787 = vmatpush1.msra.mxu0 0.0
    %1788 = vmatprep.subr.mxu0 0.0
    %1789 = vmatpush1.msra.mxu0 %v1010
    %1790 = vmatprep.subr.mxu0 0.0
    %1791 = vmatpush1.msra.mxu0 %v1009
    %1792 = vmatprep.subr.mxu0 0.0
    %1793 = vmatpush1.msra.mxu0 %v1008
    %1794 = vmatprep.subr.mxu0 0.0
    %1795 = vmatpush1.msra.mxu0 %v1007
    %1796 = vmatprep.subr.mxu0 0.0
    %1797 = vmatpush2.msra.mxu0 0.0
    %1798 = vmatprep.subr.mxu0 0.0
    %1799 = vmatpush2.msra.mxu0 0.0
    %1800 = vmatprep.subr.mxu0 0.0
    %1801 = vmatpush2.msra.mxu0 0.0
    %1802 = vmatprep.subr.mxu0 0.0
    %1803 = vmatpush2.msra.mxu0 0.0
    %1804 = vmatprep.subr.mxu0 0.0
    %1805 = vmatpush2.msra.mxu0 0.0
    %1806 = vmatprep.subr.mxu0 0.0
    %1807 = vmatpush2.msra.mxu0 0.0
    %1808 = vmatprep.subr.mxu0 0.0
    %1809 = vmatpush2.msra.mxu0 0.0
    %1810 = vmatprep.subr.mxu0 0.0
    %1811 = vmatpush2.msra.mxu0 0.0
    %1812 = vmatprep.subr.mxu0 0.0
    %1813 = vmatpush2.msra.mxu0 0.0
    %1814 = vmatprep.subr.mxu0 0.0
    %1815 = vmatpush2.msra.mxu0 0.0
    %1816 = vmatprep.subr.mxu0 0.0
    %1817 = vmatpush2.msra.mxu0 0.0
    %1818 = vmatprep.subr.mxu0 0.0
    %1819 = vmatpush2.msra.mxu0 0.0
    %1820 = vmatprep.subr.mxu0 0.0
    %1821 = vmatpush2.msra.mxu0 0.0
    %1822 = vmatprep.subr.mxu0 0.0
    %1823 = vmatpush2.msra.mxu0 0.0
    %1824 = vmatprep.subr.mxu0 0.0
    %1825 = vmatpush2.msra.mxu0 0.0
    %1826 = vmatprep.subr.mxu0 0.0
    %1827 = vmatpush2.msra.mxu0 0.0
    %1828 = vmatprep.mubr.f32.mxu0 0.0
    %1829 = vmatmul.mubr.f32.gmra.mxu0 %v1762
    %v1830 = vpop.f32.mrf.mxu0
    %v1831 = vadd.f32 %v1757, %v1830
    %v1832 = vpop.f32.mrf.mxu0
    %1833 = vdwg.mxu0
    %v1836 = vunpack.c.l.s4 1966171168
    %v1837 = vunpack.c.0.s8 %v1836
    %v1838 = vlaneseq
    %v1839 = vshrl.u32 %v1838, 7
    %v1840 = vsub.s32 %v1837, %v1839
    %v1841 = vrot.slane %v1831, %v1840
    %v1842 = vcombine.high %v1841, %v1841
    %v1844 = vunpack.c.l.s4 1966171168
    %v1845 = vunpack.c.0.s8 %v1844
    %v1846 = vlaneseq
    %v1847 = vshrl.u32 %v1846, 7
    %v1848 = vsub.s32 %v1845, %v1847
    %v1849 = vrot.slane %v1841, %v1848
    %v1851 = vunpack.c.l.s4 1966171168
    %v1852 = vunpack.c.0.s8 %v1851
    %v1853 = vlaneseq
    %v1854 = vshrl.u32 %v1853, 7
    %v1855 = vsub.s32 %v1852, %v1854
    %v1856 = vrot.slane %v1842, %v1855
    %vm1859 = vcmask 73728
    %1860 = vst.msk [vmem:[#allocation2] sm:$0x1] %vm1859, %v1849
    %1861 = vst.msk [vmem:[#allocation2 + $0x8] sm:$0x1] %vm1859, %v1856
    %vm1862 = vcmask 74752
    %v1863 = vsel %vm1862, %v1831, -inf
    %1864 = vmax.xlane.f32.xlu0 %v1863
    %v1865 = vpop.xlane.xlu0 %1864
    %vm1866 = vcmp.ge.f32.partialorder %v1831, %v1865
    %v1867 = vsel %vm1866, %v1275, 10
    %v1868 = vsel %vm1862, %v1867, 2147483647
    %v1869 = vand.u32 %v1868, 65535
    %v1870 = vshra.s32 %v1868, 16
    %v1871 = vcvt.s32.f32 %v1869
    %v1872 = vcvt.s32.f32 %v1870
    %1873 = vmin.xlane.f32.xlu0 %v1872
    %v1874 = vpop.xlane.xlu0 %1873
    %vm1875 = vcmp.eq.f32.partialorder %v1872, %v1874
    %v1876 = vsel %vm1875, %v1871, inf
    %1877 = vmin.xlane.f32.xlu0 %v1876
    %v1878 = vpop.xlane.xlu0 %1877
    %v1879 = vcvt.f32.s32 %v1878
    %v1880 = vcvt.f32.s32 %v1874
    %v1881 = vshll.u32 %v1880, 16
    %v1882 = vadd.s32 %v1881, %v1879
    %vm1883 = vcmp.eq.s32.totalorder %v1275, %v1882
    %v1884 = vsel %vm1883, 1, 0
    %v1885 = vcvt.s32.f32 %v1884
    %v1887 = vsel %vm1279, %v1885, 0
    %1889 = vmatprep.subr.mxu0 0.0
    %1890 = vmatpush1.msra.mxu0 0.0
    %1891 = vmatprep.subr.mxu0 0.0
    %1892 = vmatpush1.msra.mxu0 0.0
    %1893 = vmatprep.subr.mxu0 0.0
    %1894 = vmatpush1.msra.mxu0 0.0
    %1895 = vmatprep.subr.mxu0 0.0
    %1896 = vmatpush1.msra.mxu0 0.0
    %1897 = vmatprep.subr.mxu0 0.0
    %1898 = vmatpush1.msra.mxu0 0.0
    %1899 = vmatprep.subr.mxu0 0.0
    %1900 = vmatpush1.msra.mxu0 0.0
    %1901 = vmatprep.subr.mxu0 0.0
    %1902 = vmatpush1.msra.mxu0 0.0
    %1903 = vmatprep.subr.mxu0 0.0
    %1904 = vmatpush1.msra.mxu0 0.0
    %1905 = vmatprep.subr.mxu0 0.0
    %1906 = vmatpush1.msra.mxu0 0.0
    %1907 = vmatprep.subr.mxu0 0.0
    %1908 = vmatpush1.msra.mxu0 0.0
    %1909 = vmatprep.subr.mxu0 0.0
    %1910 = vmatpush1.msra.mxu0 0.0
    %1911 = vmatprep.subr.mxu0 0.0
    %1912 = vmatpush1.msra.mxu0 0.0
    %1913 = vmatprep.subr.mxu0 0.0
    %1914 = vmatpush1.msra.mxu0 0.0
    %1915 = vmatprep.subr.mxu0 0.0
    %1916 = vmatpush1.msra.mxu0 0.0
    %1917 = vmatprep.subr.mxu0 0.0
    %1918 = vmatpush1.msra.mxu0 %v1285
    %1919 = vmatprep.subr.mxu0 0.0
    %1920 = vmatpush1.msra.mxu0 %v1000
    %1921 = vmatprep.subr.mxu0 0.0
    %1922 = vmatpush2.msra.mxu0 0.0
    %1923 = vmatprep.subr.mxu0 0.0
    %1924 = vmatpush2.msra.mxu0 0.0
    %1925 = vmatprep.subr.mxu0 0.0
    %1926 = vmatpush2.msra.mxu0 0.0
    %1927 = vmatprep.subr.mxu0 0.0
    %1928 = vmatpush2.msra.mxu0 0.0
    %1929 = vmatprep.subr.mxu0 0.0
    %1930 = vmatpush2.msra.mxu0 0.0
    %1931 = vmatprep.subr.mxu0 0.0
    %1932 = vmatpush2.msra.mxu0 0.0
    %1933 = vmatprep.subr.mxu0 0.0
    %1934 = vmatpush2.msra.mxu0 0.0
    %1935 = vmatprep.subr.mxu0 0.0
    %1936 = vmatpush2.msra.mxu0 0.0
    %1937 = vmatprep.subr.mxu0 0.0
    %1938 = vmatpush2.msra.mxu0 0.0
    %1939 = vmatprep.subr.mxu0 0.0
    %1940 = vmatpush2.msra.mxu0 0.0
    %1941 = vmatprep.subr.mxu0 0.0
    %1942 = vmatpush2.msra.mxu0 0.0
    %1943 = vmatprep.subr.mxu0 0.0
    %1944 = vmatpush2.msra.mxu0 0.0
    %1945 = vmatprep.subr.mxu0 0.0
    %1946 = vmatpush2.msra.mxu0 0.0
    %1947 = vmatprep.subr.mxu0 0.0
    %1948 = vmatpush2.msra.mxu0 0.0
    %1949 = vmatprep.subr.mxu0 0.0
    %1950 = vmatpush2.msra.mxu0 0.0
    %1951 = vmatprep.subr.mxu0 0.0
    %1952 = vmatpush2.msra.mxu0 0.0
    %1953 = vmatprep.mubr.f32.mxu0 0.0
    %1954 = vmatmul.mubr.f32.gmra.mxu0 %v1887
    %v1955 = vpop.f32.mrf.mxu0
    %v1956 = vadd.f32 0.0, %v1955
    %v1957 = vpop.f32.mrf.mxu0
    %1958 = vdwg.mxu0
    %1959 = vmatprep.subr.mxu0 0.0
    %1960 = vmatpush1.msra.mxu0 0.0
    %1961 = vmatprep.subr.mxu0 0.0
    %1962 = vmatpush1.msra.mxu0 0.0
    %1963 = vmatprep.subr.mxu0 0.0
    %1964 = vmatpush1.msra.mxu0 0.0
    %1965 = vmatprep.subr.mxu0 0.0
    %1966 = vmatpush1.msra.mxu0 0.0
    %1967 = vmatprep.subr.mxu0 0.0
    %1968 = vmatpush1.msra.mxu0 0.0
    %1969 = vmatprep.subr.mxu0 0.0
    %1970 = vmatpush1.msra.mxu0 0.0
    %1971 = vmatprep.subr.mxu0 0.0
    %1972 = vmatpush1.msra.mxu0 0.0
    %1973 = vmatprep.subr.mxu0 0.0
    %1974 = vmatpush1.msra.mxu0 0.0
    %1975 = vmatprep.subr.mxu0 0.0
    %1976 = vmatpush1.msra.mxu0 0.0
    %1977 = vmatprep.subr.mxu0 0.0
    %1978 = vmatpush1.msra.mxu0 0.0
    %1979 = vmatprep.subr.mxu0 0.0
    %1980 = vmatpush1.msra.mxu0 0.0
    %1981 = vmatprep.subr.mxu0 0.0
    %1982 = vmatpush1.msra.mxu0 0.0
    %1983 = vmatprep.subr.mxu0 0.0
    %1984 = vmatpush1.msra.mxu0 %v1005
    %1985 = vmatprep.subr.mxu0 0.0
    %1986 = vmatpush1.msra.mxu0 %v1004
    %1987 = vmatprep.subr.mxu0 0.0
    %1988 = vmatpush1.msra.mxu0 %v1003
    %1989 = vmatprep.subr.mxu0 0.0
    %1990 = vmatpush1.msra.mxu0 %v1002
    %1991 = vmatprep.subr.mxu0 0.0
    %1992 = vmatpush2.msra.mxu0 0.0
    %1993 = vmatprep.subr.mxu0 0.0
    %1994 = vmatpush2.msra.mxu0 0.0
    %1995 = vmatprep.subr.mxu0 0.0
    %1996 = vmatpush2.msra.mxu0 0.0
    %1997 = vmatprep.subr.mxu0 0.0
    %1998 = vmatpush2.msra.mxu0 0.0
    %1999 = vmatprep.subr.mxu0 0.0
    %2000 = vmatpush2.msra.mxu0 0.0
    %2001 = vmatprep.subr.mxu0 0.0
    %2002 = vmatpush2.msra.mxu0 0.0
    %2003 = vmatprep.subr.mxu0 0.0
    %2004 = vmatpush2.msra.mxu0 0.0
    %2005 = vmatprep.subr.mxu0 0.0
    %2006 = vmatpush2.msra.mxu0 0.0
    %2007 = vmatprep.subr.mxu0 0.0
    %2008 = vmatpush2.msra.mxu0 0.0
    %2009 = vmatprep.subr.mxu0 0.0
    %2010 = vmatpush2.msra.mxu0 0.0
    %2011 = vmatprep.subr.mxu0 0.0
    %2012 = vmatpush2.msra.mxu0 0.0
    %2013 = vmatprep.subr.mxu0 0.0
    %2014 = vmatpush2.msra.mxu0 0.0
    %2015 = vmatprep.subr.mxu0 0.0
    %2016 = vmatpush2.msra.mxu0 0.0
    %2017 = vmatprep.subr.mxu0 0.0
    %2018 = vmatpush2.msra.mxu0 0.0
    %2019 = vmatprep.subr.mxu0 0.0
    %2020 = vmatpush2.msra.mxu0 0.0
    %2021 = vmatprep.subr.mxu0 0.0
    %2022 = vmatpush2.msra.mxu0 0.0
    %2023 = vmatprep.mubr.f32.mxu0 0.0
    %2024 = vmatmul.mubr.f32.gmra.mxu0 %v1762
    %v2025 = vpop.f32.mrf.mxu0
    %v2026 = vadd.f32 %v1361, %v2025
    %v2027 = vpop.f32.mrf.mxu0
    %2028 = vdwg.mxu0
    %v2029 = vsel %vm1437, %v2026, -inf
    %2030 = vmax.xlane.f32.xlu0 %v2029
    %v2031 = vpop.xlane.xlu0 %2030
    %v2032 = vsub.f32 %v2026, %v2031
    %v2033 = vmul.f32 %v2032, 1.442695
    %v2034 = vpow.pop %v2033
    %v2035 = vsel %vm1437, %v2034, 0.0
    %2036 = vadd.xlane.f32.xlu0 %v2035
    %v2037 = vpop.xlane.xlu0 %2036
    %v2038 = vrcp.pop %v2037
    %v2039 = vmul.f32 %v2034, %v2038
    %v2041 = vsel %vm1363, %v2039, 0
    %2043 = vmatprep.subr.mxu0 0.0
    %2044 = vmatpush1.xpose.msra.mxu0 0.0
    %2045 = vmatprep.subr.mxu0 0.0
    %2046 = vmatpush1.xpose.msra.mxu0 0.0
    %2047 = vmatprep.subr.mxu0 0.0
    %2048 = vmatpush1.xpose.msra.mxu0 0.0
    %2049 = vmatprep.subr.mxu0 0.0
    %2050 = vmatpush1.xpose.msra.mxu0 0.0
    %2051 = vmatprep.subr.mxu0 0.0
    %2052 = vmatpush1.xpose.msra.mxu0 0.0
    %2053 = vmatprep.subr.mxu0 0.0
    %2054 = vmatpush1.xpose.msra.mxu0 0.0
    %2055 = vmatprep.subr.mxu0 0.0
    %2056 = vmatpush1.xpose.msra.mxu0 0.0
    %2057 = vmatprep.subr.mxu0 0.0
    %2058 = vmatpush1.xpose.msra.mxu0 0.0
    %2059 = vmatprep.subr.mxu0 0.0
    %2060 = vmatpush1.xpose.msra.mxu0 %v1474
    %2061 = vmatprep.subr.mxu0 0.0
    %2062 = vmatpush1.xpose.msra.mxu0 %v1471
    %2063 = vmatprep.subr.mxu0 0.0
    %2064 = vmatpush1.xpose.msra.mxu0 %v1468
    %2065 = vmatprep.subr.mxu0 0.0
    %2066 = vmatpush1.xpose.msra.mxu0 %v1465
    %2067 = vmatprep.subr.mxu0 0.0
    %2068 = vmatpush1.xpose.msra.mxu0 %v1462
    %2069 = vmatprep.subr.mxu0 0.0
    %2070 = vmatpush1.xpose.msra.mxu0 %v1459
    %2071 = vmatprep.subr.mxu0 0.0
    %2072 = vmatpush1.xpose.msra.mxu0 %v1456
    %2073 = vmatprep.subr.mxu0 0.0
    %2074 = vmatpush1.xpose.msra.mxu0 %v1453
    %2075 = vmatprep.subr.mxu0 0.0
    %2076 = vmatpush2.xpose.msra.mxu0 0.0
    %2077 = vmatprep.subr.mxu0 0.0
    %2078 = vmatpush2.xpose.msra.mxu0 0.0
    %2079 = vmatprep.subr.mxu0 0.0
    %2080 = vmatpush2.xpose.msra.mxu0 0.0
    %2081 = vmatprep.subr.mxu0 0.0
    %2082 = vmatpush2.xpose.msra.mxu0 0.0
    %2083 = vmatprep.subr.mxu0 0.0
    %2084 = vmatpush2.xpose.msra.mxu0 0.0
    %2085 = vmatprep.subr.mxu0 0.0
    %2086 = vmatpush2.xpose.msra.mxu0 0.0
    %2087 = vmatprep.subr.mxu0 0.0
    %2088 = vmatpush2.xpose.msra.mxu0 0.0
    %2089 = vmatprep.subr.mxu0 0.0
    %2090 = vmatpush2.xpose.msra.mxu0 0.0
    %2091 = vmatprep.subr.mxu0 0.0
    %2092 = vmatpush2.xpose.msra.mxu0 0.0
    %2093 = vmatprep.subr.mxu0 0.0
    %2094 = vmatpush2.xpose.msra.mxu0 0.0
    %2095 = vmatprep.subr.mxu0 0.0
    %2096 = vmatpush2.xpose.msra.mxu0 0.0
    %2097 = vmatprep.subr.mxu0 0.0
    %2098 = vmatpush2.xpose.msra.mxu0 0.0
    %2099 = vmatprep.subr.mxu0 0.0
    %2100 = vmatpush2.xpose.msra.mxu0 0.0
    %2101 = vmatprep.subr.mxu0 0.0
    %2102 = vmatpush2.xpose.msra.mxu0 0.0
    %2103 = vmatprep.subr.mxu0 0.0
    %2104 = vmatpush2.xpose.msra.mxu0 0.0
    %2105 = vmatprep.subr.mxu0 0.0
    %2106 = vmatpush2.xpose.msra.mxu0 0.0
    %2107 = vmatprep.mubr.f32.mxu0 0.0
    %2108 = vmatmul.mubr.f32.gmra.mxu0 %v2041
    %v2109 = vpop.f32.mrf.mxu0
    %v2110 = vadd.f32 0.0, %v2109
    %v2111 = vpop.f32.mrf.mxu0
    %2112 = vdwg.mxu0
    %v2113 = vrot.slane %v2039, 1
    %v2114 = vsel %vm1363, %v2113, 0
    %2116 = vmatprep.subr.mxu0 0.0
    %2117 = vmatpush1.xpose.msra.mxu0 0.0
    %2118 = vmatprep.subr.mxu0 0.0
    %2119 = vmatpush1.xpose.msra.mxu0 0.0
    %2120 = vmatprep.subr.mxu0 0.0
    %2121 = vmatpush1.xpose.msra.mxu0 0.0
    %2122 = vmatprep.subr.mxu0 0.0
    %2123 = vmatpush1.xpose.msra.mxu0 0.0
    %2124 = vmatprep.subr.mxu0 0.0
    %2125 = vmatpush1.xpose.msra.mxu0 0.0
    %2126 = vmatprep.subr.mxu0 0.0
    %2127 = vmatpush1.xpose.msra.mxu0 0.0
    %2128 = vmatprep.subr.mxu0 0.0
    %2129 = vmatpush1.xpose.msra.mxu0 0.0
    %2130 = vmatprep.subr.mxu0 0.0
    %2131 = vmatpush1.xpose.msra.mxu0 0.0
    %2132 = vmatprep.subr.mxu0 0.0
    %2133 = vmatpush1.xpose.msra.mxu0 %v1571
    %2134 = vmatprep.subr.mxu0 0.0
    %2135 = vmatpush1.xpose.msra.mxu0 %v1568
    %2136 = vmatprep.subr.mxu0 0.0
    %2137 = vmatpush1.xpose.msra.mxu0 %v1565
    %2138 = vmatprep.subr.mxu0 0.0
    %2139 = vmatpush1.xpose.msra.mxu0 %v1562
    %2140 = vmatprep.subr.mxu0 0.0
    %2141 = vmatpush1.xpose.msra.mxu0 %v1559
    %2142 = vmatprep.subr.mxu0 0.0
    %2143 = vmatpush1.xpose.msra.mxu0 %v1556
    %2144 = vmatprep.subr.mxu0 0.0
    %2145 = vmatpush1.xpose.msra.mxu0 %v1553
    %2146 = vmatprep.subr.mxu0 0.0
    %2147 = vmatpush1.xpose.msra.mxu0 %v1550
    %2148 = vmatprep.subr.mxu0 0.0
    %2149 = vmatpush2.xpose.msra.mxu0 0.0
    %2150 = vmatprep.subr.mxu0 0.0
    %2151 = vmatpush2.xpose.msra.mxu0 0.0
    %2152 = vmatprep.subr.mxu0 0.0
    %2153 = vmatpush2.xpose.msra.mxu0 0.0
    %2154 = vmatprep.subr.mxu0 0.0
    %2155 = vmatpush2.xpose.msra.mxu0 0.0
    %2156 = vmatprep.subr.mxu0 0.0
    %2157 = vmatpush2.xpose.msra.mxu0 0.0
    %2158 = vmatprep.subr.mxu0 0.0
    %2159 = vmatpush2.xpose.msra.mxu0 0.0
    %2160 = vmatprep.subr.mxu0 0.0
    %2161 = vmatpush2.xpose.msra.mxu0 0.0
    %2162 = vmatprep.subr.mxu0 0.0
    %2163 = vmatpush2.xpose.msra.mxu0 0.0
    %2164 = vmatprep.subr.mxu0 0.0
    %2165 = vmatpush2.xpose.msra.mxu0 0.0
    %2166 = vmatprep.subr.mxu0 0.0
    %2167 = vmatpush2.xpose.msra.mxu0 0.0
    %2168 = vmatprep.subr.mxu0 0.0
    %2169 = vmatpush2.xpose.msra.mxu0 0.0
    %2170 = vmatprep.subr.mxu0 0.0
    %2171 = vmatpush2.xpose.msra.mxu0 0.0
    %2172 = vmatprep.subr.mxu0 0.0
    %2173 = vmatpush2.xpose.msra.mxu0 0.0
    %2174 = vmatprep.subr.mxu0 0.0
    %2175 = vmatpush2.xpose.msra.mxu0 0.0
    %2176 = vmatprep.subr.mxu0 0.0
    %2177 = vmatpush2.xpose.msra.mxu0 0.0
    %2178 = vmatprep.subr.mxu0 0.0
    %2179 = vmatpush2.xpose.msra.mxu0 0.0
    %2180 = vmatprep.mubr.f32.mxu0 0.0
    %2181 = vmatmul.mubr.f32.gmra.mxu0 %v2114
    %v2182 = vpop.f32.mrf.mxu0
    %v2183 = vadd.f32 0.0, %v2182
    %v2184 = vpop.f32.mrf.mxu0
    %2185 = vdwg.mxu0
    %v2187 = vrot.slane %v2183, 7
    %v2189 = vsel %vm1646, %v2110, %v2187
    %2191 = vrot.lane.b32.xlu0 %v2189, 32
    %v2192 = vpop.permute.xlu0 %2191
    %v2194 = vsel %vm1363, %v1956, %v2192
    %v2195 = vsel %vm1653, %v2194, %v1752
    %2196 = vmatprep.subr.mxu0 0.0
    %2197 = vmatpush1.msra.mxu0 %v1196
    %2198 = vmatprep.subr.mxu0 0.0
    %2199 = vmatpush1.msra.mxu0 %v1195
    %2200 = vmatprep.subr.mxu0 0.0
    %2201 = vmatpush1.msra.mxu0 %v1194
    %2202 = vmatprep.subr.mxu0 0.0
    %2203 = vmatpush1.msra.mxu0 %v1193
    %2204 = vmatprep.subr.mxu0 0.0
    %2205 = vmatpush1.msra.mxu0 %v1190
    %2206 = vmatprep.subr.mxu0 0.0
    %2207 = vmatpush1.msra.mxu0 %v1185
    %2208 = vmatprep.subr.mxu0 0.0
    %2209 = vmatpush1.msra.mxu0 %v1180
    %2210 = vmatprep.subr.mxu0 0.0
    %2211 = vmatpush1.msra.mxu0 %v1175
    %2212 = vmatprep.subr.mxu0 0.0
    %2213 = vmatpush1.msra.mxu0 %v1170
    %2214 = vmatprep.subr.mxu0 0.0
    %2215 = vmatpush1.msra.mxu0 %v1165
    %2216 = vmatprep.subr.mxu0 0.0
    %2217 = vmatpush1.msra.mxu0 %v1160
    %2218 = vmatprep.subr.mxu0 0.0
    %2219 = vmatpush1.msra.mxu0 %v1155
    %2220 = vmatprep.subr.mxu0 0.0
    %2221 = vmatpush1.msra.mxu0 %v1150
    %2222 = vmatprep.subr.mxu0 0.0
    %2223 = vmatpush1.msra.mxu0 %v1145
    %2224 = vmatprep.subr.mxu0 0.0
    %2225 = vmatpush1.msra.mxu0 %v1140
    %2226 = vmatprep.subr.mxu0 0.0
    %2227 = vmatpush1.msra.mxu0 %v1135
    %2228 = vmatprep.subr.mxu0 0.0
    %2229 = vmatpush2.msra.mxu0 0.0
    %2230 = vmatprep.subr.mxu0 0.0
    %2231 = vmatpush2.msra.mxu0 0.0
    %2232 = vmatprep.subr.mxu0 0.0
    %2233 = vmatpush2.msra.mxu0 0.0
    %2234 = vmatprep.subr.mxu0 0.0
    %2235 = vmatpush2.msra.mxu0 0.0
    %2236 = vmatprep.subr.mxu0 0.0
    %2237 = vmatpush2.msra.mxu0 0.0
    %2238 = vmatprep.subr.mxu0 0.0
    %2239 = vmatpush2.msra.mxu0 0.0
    %2240 = vmatprep.subr.mxu0 0.0
    %2241 = vmatpush2.msra.mxu0 0.0
    %2242 = vmatprep.subr.mxu0 0.0
    %2243 = vmatpush2.msra.mxu0 0.0
    %2244 = vmatprep.subr.mxu0 0.0
    %2245 = vmatpush2.msra.mxu0 0.0
    %2246 = vmatprep.subr.mxu0 0.0
    %2247 = vmatpush2.msra.mxu0 0.0
    %2248 = vmatprep.subr.mxu0 0.0
    %2249 = vmatpush2.msra.mxu0 0.0
    %2250 = vmatprep.subr.mxu0 0.0
    %2251 = vmatpush2.msra.mxu0 0.0
    %2252 = vmatprep.subr.mxu0 0.0
    %2253 = vmatpush2.msra.mxu0 0.0
    %2254 = vmatprep.subr.mxu0 0.0
    %2255 = vmatpush2.msra.mxu0 0.0
    %2256 = vmatprep.subr.mxu0 0.0
    %2257 = vmatpush2.msra.mxu0 0.0
    %2258 = vmatprep.subr.mxu0 0.0
    %2259 = vmatpush2.msra.mxu0 0.0
    %2260 = vmatprep.mubr.f32.mxu0 0.0
    %2261 = vmatmul.mubr.f32.gmra.mxu0 %v2195
    %v2262 = vpop.f32.mrf.mxu0
    %v2263 = vadd.f32 %v1658, %v2262
    %v2264 = vpop.f32.mrf.mxu0
    %2265 = vdwg.mxu0
    %v2266 = vxor.u32 %v2263, 2147483648
    %v2267 = vmul.f32 %v2266, 1.442695
    %v2268 = vpow.pop %v2267
    %v2269 = vadd.f32 %v2268, 1.0
    %v2270 = vrcp.pop %v2269
    %v2271 = vmul.f32 1.0, %v2270
    %v2272 = vtanh.pop %v2263
    %2273 = vrot.lane.b32.xlu0 %v1752, 64
    %v2274 = vpop.permute.xlu0 %2273
    %v2276 = vmul.f32 %v2271, %v2274
    %2278 = vrot.lane.b32.xlu0 %v2272, 64
    %v2279 = vpop.permute.xlu0 %2278
    %v2281 = vmul.f32 %v2271, %v2279
    %2283 = vrot.lane.b32.xlu0 %v2281, 32
    %v2284 = vpop.permute.xlu0 %2283
    %v2286 = vadd.f32 %v2276, %v2284
    %v2287 = vtanh.pop %v2286
    %2289 = vrot.lane.b32.xlu0 %v2287, 64
    %v2290 = vpop.permute.xlu0 %2289
    %v2292 = vmul.f32 %v2271, %v2290
    %2294 = vrot.lane.b32.xlu0 %v2292, 32
    %v2295 = vpop.permute.xlu0 %2294
    %v2296 = vsel %vm1363, %v2295, 0
    %2298 = vmatprep.subr.mxu0 0.0
    %2299 = vmatpush1.msra.mxu0 0.0
    %2300 = vmatprep.subr.mxu0 0.0
    %2301 = vmatpush1.msra.mxu0 0.0
    %2302 = vmatprep.subr.mxu0 0.0
    %2303 = vmatpush1.msra.mxu0 0.0
    %2304 = vmatprep.subr.mxu0 0.0
    %2305 = vmatpush1.msra.mxu0 0.0
    %2306 = vmatprep.subr.mxu0 0.0
    %2307 = vmatpush1.msra.mxu0 0.0
    %2308 = vmatprep.subr.mxu0 0.0
    %2309 = vmatpush1.msra.mxu0 0.0
    %2310 = vmatprep.subr.mxu0 0.0
    %2311 = vmatpush1.msra.mxu0 0.0
    %2312 = vmatprep.subr.mxu0 0.0
    %2313 = vmatpush1.msra.mxu0 0.0
    %2314 = vmatprep.subr.mxu0 0.0
    %2315 = vmatpush1.msra.mxu0 0.0
    %2316 = vmatprep.subr.mxu0 0.0
    %2317 = vmatpush1.msra.mxu0 0.0
    %2318 = vmatprep.subr.mxu0 0.0
    %2319 = vmatpush1.msra.mxu0 0.0
    %2320 = vmatprep.subr.mxu0 0.0
    %2321 = vmatpush1.msra.mxu0 0.0
    %2322 = vmatprep.subr.mxu0 0.0
    %2323 = vmatpush1.msra.mxu0 %v1010
    %2324 = vmatprep.subr.mxu0 0.0
    %2325 = vmatpush1.msra.mxu0 %v1009
    %2326 = vmatprep.subr.mxu0 0.0
    %2327 = vmatpush1.msra.mxu0 %v1008
    %2328 = vmatprep.subr.mxu0 0.0
    %2329 = vmatpush1.msra.mxu0 %v1007
    %2330 = vmatprep.subr.mxu0 0.0
    %2331 = vmatpush2.msra.mxu0 0.0
    %2332 = vmatprep.subr.mxu0 0.0
    %2333 = vmatpush2.msra.mxu0 0.0
    %2334 = vmatprep.subr.mxu0 0.0
    %2335 = vmatpush2.msra.mxu0 0.0
    %2336 = vmatprep.subr.mxu0 0.0
    %2337 = vmatpush2.msra.mxu0 0.0
    %2338 = vmatprep.subr.mxu0 0.0
    %2339 = vmatpush2.msra.mxu0 0.0
    %2340 = vmatprep.subr.mxu0 0.0
    %2341 = vmatpush2.msra.mxu0 0.0
    %2342 = vmatprep.subr.mxu0 0.0
    %2343 = vmatpush2.msra.mxu0 0.0
    %2344 = vmatprep.subr.mxu0 0.0
    %2345 = vmatpush2.msra.mxu0 0.0
    %2346 = vmatprep.subr.mxu0 0.0
    %2347 = vmatpush2.msra.mxu0 0.0
    %2348 = vmatprep.subr.mxu0 0.0
    %2349 = vmatpush2.msra.mxu0 0.0
    %2350 = vmatprep.subr.mxu0 0.0
    %2351 = vmatpush2.msra.mxu0 0.0
    %2352 = vmatprep.subr.mxu0 0.0
    %2353 = vmatpush2.msra.mxu0 0.0
    %2354 = vmatprep.subr.mxu0 0.0
    %2355 = vmatpush2.msra.mxu0 0.0
    %2356 = vmatprep.subr.mxu0 0.0
    %2357 = vmatpush2.msra.mxu0 0.0
    %2358 = vmatprep.subr.mxu0 0.0
    %2359 = vmatpush2.msra.mxu0 0.0
    %2360 = vmatprep.subr.mxu0 0.0
    %2361 = vmatpush2.msra.mxu0 0.0
    %2362 = vmatprep.mubr.f32.mxu0 0.0
    %2363 = vmatmul.mubr.f32.gmra.mxu0 %v2296
    %v2364 = vpop.f32.mrf.mxu0
    %v2365 = vadd.f32 %v1757, %v2364
    %v2366 = vpop.f32.mrf.mxu0
    %2367 = vdwg.mxu0
    %v2370 = vunpack.c.l.s4 1966171168
    %v2371 = vunpack.c.0.s8 %v2370
    %v2372 = vlaneseq
    %v2373 = vshrl.u32 %v2372, 7
    %v2374 = vsub.s32 %v2371, %v2373
    %v2375 = vrot.slane %v2365, %v2374
    %v2376 = vcombine.high %v2375, %v2375
    %v2378 = vunpack.c.l.s4 1966171168
    %v2379 = vunpack.c.0.s8 %v2378
    %v2380 = vlaneseq
    %v2381 = vshrl.u32 %v2380, 7
    %v2382 = vsub.s32 %v2379, %v2381
    %v2383 = vrot.slane %v2375, %v2382
    %v2385 = vunpack.c.l.s4 1966171168
    %v2386 = vunpack.c.0.s8 %v2385
    %v2387 = vlaneseq
    %v2388 = vshrl.u32 %v2387, 7
    %v2389 = vsub.s32 %v2386, %v2388
    %v2390 = vrot.slane %v2376, %v2389
    %2393 = vst.msk [vmem:[#allocation2 + $0x1] sm:$0x1] %vm1859, %v2383
    %2394 = vst.msk [vmem:[#allocation2 + $0x9] sm:$0x1] %vm1859, %v2390
    %v2395 = vsel %vm1862, %v2365, -inf
    %2396 = vmax.xlane.f32.xlu0 %v2395
    %v2397 = vpop.xlane.xlu0 %2396
    %vm2398 = vcmp.ge.f32.partialorder %v2365, %v2397
    %v2399 = vsel %vm2398, %v1275, 10
    %v2400 = vsel %vm1862, %v2399, 2147483647
    %v2401 = vand.u32 %v2400, 65535
    %v2402 = vshra.s32 %v2400, 16
    %v2403 = vcvt.s32.f32 %v2401
    %v2404 = vcvt.s32.f32 %v2402
    %2405 = vmin.xlane.f32.xlu0 %v2404
    %v2406 = vpop.xlane.xlu0 %2405
    %vm2407 = vcmp.eq.f32.partialorder %v2404, %v2406
    %v2408 = vsel %vm2407, %v2403, inf
    %2409 = vmin.xlane.f32.xlu0 %v2408
    %v2410 = vpop.xlane.xlu0 %2409
    %v2411 = vcvt.f32.s32 %v2410
    %v2412 = vcvt.f32.s32 %v2406
    %v2413 = vshll.u32 %v2412, 16
    %v2414 = vadd.s32 %v2413, %v2411
    %vm2415 = vcmp.eq.s32.totalorder %v1275, %v2414
    %v2416 = vsel %vm2415, 1, 0
    %v2417 = vcvt.s32.f32 %v2416
    %v2419 = vsel %vm1279, %v2417, 0
    %2421 = vmatprep.subr.mxu0 0.0
    %2422 = vmatpush1.msra.mxu0 0.0
    %2423 = vmatprep.subr.mxu0 0.0
    %2424 = vmatpush1.msra.mxu0 0.0
    %2425 = vmatprep.subr.mxu0 0.0
    %2426 = vmatpush1.msra.mxu0 0.0
    %2427 = vmatprep.subr.mxu0 0.0
    %2428 = vmatpush1.msra.mxu0 0.0
    %2429 = vmatprep.subr.mxu0 0.0
    %2430 = vmatpush1.msra.mxu0 0.0
    %2431 = vmatprep.subr.mxu0 0.0
    %2432 = vmatpush1.msra.mxu0 0.0
    %2433 = vmatprep.subr.mxu0 0.0
    %2434 = vmatpush1.msra.mxu0 0.0
    %2435 = vmatprep.subr.mxu0 0.0
    %2436 = vmatpush1.msra.mxu0 0.0
    %2437 = vmatprep.subr.mxu0 0.0
    %2438 = vmatpush1.msra.mxu0 0.0
    %2439 = vmatprep.subr.mxu0 0.0
    %2440 = vmatpush1.msra.mxu0 0.0
    %2441 = vmatprep.subr.mxu0 0.0
    %2442 = vmatpush1.msra.mxu0 0.0
    %2443 = vmatprep.subr.mxu0 0.0
    %2444 = vmatpush1.msra.mxu0 0.0
    %2445 = vmatprep.subr.mxu0 0.0
    %2446 = vmatpush1.msra.mxu0 0.0
    %2447 = vmatprep.subr.mxu0 0.0
    %2448 = vmatpush1.msra.mxu0 0.0
    %2449 = vmatprep.subr.mxu0 0.0
    %2450 = vmatpush1.msra.mxu0 %v1285
    %2451 = vmatprep.subr.mxu0 0.0
    %2452 = vmatpush1.msra.mxu0 %v1000
    %2453 = vmatprep.subr.mxu0 0.0
    %2454 = vmatpush2.msra.mxu0 0.0
    %2455 = vmatprep.subr.mxu0 0.0
    %2456 = vmatpush2.msra.mxu0 0.0
    %2457 = vmatprep.subr.mxu0 0.0
    %2458 = vmatpush2.msra.mxu0 0.0
    %2459 = vmatprep.subr.mxu0 0.0
    %2460 = vmatpush2.msra.mxu0 0.0
    %2461 = vmatprep.subr.mxu0 0.0
    %2462 = vmatpush2.msra.mxu0 0.0
    %2463 = vmatprep.subr.mxu0 0.0
    %2464 = vmatpush2.msra.mxu0 0.0
    %2465 = vmatprep.subr.mxu0 0.0
    %2466 = vmatpush2.msra.mxu0 0.0
    %2467 = vmatprep.subr.mxu0 0.0
    %2468 = vmatpush2.msra.mxu0 0.0
    %2469 = vmatprep.subr.mxu0 0.0
    %2470 = vmatpush2.msra.mxu0 0.0
    %2471 = vmatprep.subr.mxu0 0.0
    %2472 = vmatpush2.msra.mxu0 0.0
    %2473 = vmatprep.subr.mxu0 0.0
    %2474 = vmatpush2.msra.mxu0 0.0
    %2475 = vmatprep.subr.mxu0 0.0
    %2476 = vmatpush2.msra.mxu0 0.0
    %2477 = vmatprep.subr.mxu0 0.0
    %2478 = vmatpush2.msra.mxu0 0.0
    %2479 = vmatprep.subr.mxu0 0.0
    %2480 = vmatpush2.msra.mxu0 0.0
    %2481 = vmatprep.subr.mxu0 0.0
    %2482 = vmatpush2.msra.mxu0 0.0
    %2483 = vmatprep.subr.mxu0 0.0
    %2484 = vmatpush2.msra.mxu0 0.0
    %2485 = vmatprep.mubr.f32.mxu0 0.0
    %2486 = vmatmul.mubr.f32.gmra.mxu0 %v2419
    %v2487 = vpop.f32.mrf.mxu0
    %v2488 = vadd.f32 0.0, %v2487
    %v2489 = vpop.f32.mrf.mxu0
    %2490 = vdwg.mxu0
    %2491 = vmatprep.subr.mxu0 0.0
    %2492 = vmatpush1.msra.mxu0 0.0
    %2493 = vmatprep.subr.mxu0 0.0
    %2494 = vmatpush1.msra.mxu0 0.0
    %2495 = vmatprep.subr.mxu0 0.0
    %2496 = vmatpush1.msra.mxu0 0.0
    %2497 = vmatprep.subr.mxu0 0.0
    %2498 = vmatpush1.msra.mxu0 0.0
    %2499 = vmatprep.subr.mxu0 0.0
    %2500 = vmatpush1.msra.mxu0 0.0
    %2501 = vmatprep.subr.mxu0 0.0
    %2502 = vmatpush1.msra.mxu0 0.0
    %2503 = vmatprep.subr.mxu0 0.0
    %2504 = vmatpush1.msra.mxu0 0.0
    %2505 = vmatprep.subr.mxu0 0.0
    %2506 = vmatpush1.msra.mxu0 0.0
    %2507 = vmatprep.subr.mxu0 0.0
    %2508 = vmatpush1.msra.mxu0 0.0
    %2509 = vmatprep.subr.mxu0 0.0
    %2510 = vmatpush1.msra.mxu0 0.0
    %2511 = vmatprep.subr.mxu0 0.0
    %2512 = vmatpush1.msra.mxu0 0.0
    %2513 = vmatprep.subr.mxu0 0.0
    %2514 = vmatpush1.msra.mxu0 0.0
    %2515 = vmatprep.subr.mxu0 0.0
    %2516 = vmatpush1.msra.mxu0 %v1005
    %2517 = vmatprep.subr.mxu0 0.0
    %2518 = vmatpush1.msra.mxu0 %v1004
    %2519 = vmatprep.subr.mxu0 0.0
    %2520 = vmatpush1.msra.mxu0 %v1003
    %2521 = vmatprep.subr.mxu0 0.0
    %2522 = vmatpush1.msra.mxu0 %v1002
    %2523 = vmatprep.subr.mxu0 0.0
    %2524 = vmatpush2.msra.mxu0 0.0
    %2525 = vmatprep.subr.mxu0 0.0
    %2526 = vmatpush2.msra.mxu0 0.0
    %2527 = vmatprep.subr.mxu0 0.0
    %2528 = vmatpush2.msra.mxu0 0.0
    %2529 = vmatprep.subr.mxu0 0.0
    %2530 = vmatpush2.msra.mxu0 0.0
    %2531 = vmatprep.subr.mxu0 0.0
    %2532 = vmatpush2.msra.mxu0 0.0
    %2533 = vmatprep.subr.mxu0 0.0
    %2534 = vmatpush2.msra.mxu0 0.0
    %2535 = vmatprep.subr.mxu0 0.0
    %2536 = vmatpush2.msra.mxu0 0.0
    %2537 = vmatprep.subr.mxu0 0.0
    %2538 = vmatpush2.msra.mxu0 0.0
    %2539 = vmatprep.subr.mxu0 0.0
    %2540 = vmatpush2.msra.mxu0 0.0
    %2541 = vmatprep.subr.mxu0 0.0
    %2542 = vmatpush2.msra.mxu0 0.0
    %2543 = vmatprep.subr.mxu0 0.0
    %2544 = vmatpush2.msra.mxu0 0.0
    %2545 = vmatprep.subr.mxu0 0.0
    %2546 = vmatpush2.msra.mxu0 0.0
    %2547 = vmatprep.subr.mxu0 0.0
    %2548 = vmatpush2.msra.mxu0 0.0
    %2549 = vmatprep.subr.mxu0 0.0
    %2550 = vmatpush2.msra.mxu0 0.0
    %2551 = vmatprep.subr.mxu0 0.0
    %2552 = vmatpush2.msra.mxu0 0.0
    %2553 = vmatprep.subr.mxu0 0.0
    %2554 = vmatpush2.msra.mxu0 0.0
    %2555 = vmatprep.mubr.f32.mxu0 0.0
    %2556 = vmatmul.mubr.f32.gmra.mxu0 %v2296
    %v2557 = vpop.f32.mrf.mxu0
    %v2558 = vadd.f32 %v1361, %v2557
    %v2559 = vpop.f32.mrf.mxu0
    %2560 = vdwg.mxu0
    %v2561 = vsel %vm1437, %v2558, -inf
    %2562 = vmax.xlane.f32.xlu0 %v2561
    %v2563 = vpop.xlane.xlu0 %2562
    %v2564 = vsub.f32 %v2558, %v2563
    %v2565 = vmul.f32 %v2564, 1.442695
    %v2566 = vpow.pop %v2565
    %v2567 = vsel %vm1437, %v2566, 0.0
    %2568 = vadd.xlane.f32.xlu0 %v2567
    %v2569 = vpop.xlane.xlu0 %2568
    %v2570 = vrcp.pop %v2569
    %v2571 = vmul.f32 %v2566, %v2570
    %v2573 = vsel %vm1363, %v2571, 0
    %2575 = vmatprep.subr.mxu0 0.0
    %2576 = vmatpush1.xpose.msra.mxu0 0.0
    %2577 = vmatprep.subr.mxu0 0.0
    %2578 = vmatpush1.xpose.msra.mxu0 0.0
    %2579 = vmatprep.subr.mxu0 0.0
    %2580 = vmatpush1.xpose.msra.mxu0 0.0
    %2581 = vmatprep.subr.mxu0 0.0
    %2582 = vmatpush1.xpose.msra.mxu0 0.0
    %2583 = vmatprep.subr.mxu0 0.0
    %2584 = vmatpush1.xpose.msra.mxu0 0.0
    %2585 = vmatprep.subr.mxu0 0.0
    %2586 = vmatpush1.xpose.msra.mxu0 0.0
    %2587 = vmatprep.subr.mxu0 0.0
    %2588 = vmatpush1.xpose.msra.mxu0 0.0
    %2589 = vmatprep.subr.mxu0 0.0
    %2590 = vmatpush1.xpose.msra.mxu0 0.0
    %2591 = vmatprep.subr.mxu0 0.0
    %2592 = vmatpush1.xpose.msra.mxu0 %v1474
    %2593 = vmatprep.subr.mxu0 0.0
    %2594 = vmatpush1.xpose.msra.mxu0 %v1471
    %2595 = vmatprep.subr.mxu0 0.0
    %2596 = vmatpush1.xpose.msra.mxu0 %v1468
    %2597 = vmatprep.subr.mxu0 0.0
    %2598 = vmatpush1.xpose.msra.mxu0 %v1465
    %2599 = vmatprep.subr.mxu0 0.0
    %2600 = vmatpush1.xpose.msra.mxu0 %v1462
    %2601 = vmatprep.subr.mxu0 0.0
    %2602 = vmatpush1.xpose.msra.mxu0 %v1459
    %2603 = vmatprep.subr.mxu0 0.0
    %2604 = vmatpush1.xpose.msra.mxu0 %v1456
    %2605 = vmatprep.subr.mxu0 0.0
    %2606 = vmatpush1.xpose.msra.mxu0 %v1453
    %2607 = vmatprep.subr.mxu0 0.0
    %2608 = vmatpush2.xpose.msra.mxu0 0.0
    %2609 = vmatprep.subr.mxu0 0.0
    %2610 = vmatpush2.xpose.msra.mxu0 0.0
    %2611 = vmatprep.subr.mxu0 0.0
    %2612 = vmatpush2.xpose.msra.mxu0 0.0
    %2613 = vmatprep.subr.mxu0 0.0
    %2614 = vmatpush2.xpose.msra.mxu0 0.0
    %2615 = vmatprep.subr.mxu0 0.0
    %2616 = vmatpush2.xpose.msra.mxu0 0.0
    %2617 = vmatprep.subr.mxu0 0.0
    %2618 = vmatpush2.xpose.msra.mxu0 0.0
    %2619 = vmatprep.subr.mxu0 0.0
    %2620 = vmatpush2.xpose.msra.mxu0 0.0
    %2621 = vmatprep.subr.mxu0 0.0
    %2622 = vmatpush2.xpose.msra.mxu0 0.0
    %2623 = vmatprep.subr.mxu0 0.0
    %2624 = vmatpush2.xpose.msra.mxu0 0.0
    %2625 = vmatprep.subr.mxu0 0.0
    %2626 = vmatpush2.xpose.msra.mxu0 0.0
    %2627 = vmatprep.subr.mxu0 0.0
    %2628 = vmatpush2.xpose.msra.mxu0 0.0
    %2629 = vmatprep.subr.mxu0 0.0
    %2630 = vmatpush2.xpose.msra.mxu0 0.0
    %2631 = vmatprep.subr.mxu0 0.0
    %2632 = vmatpush2.xpose.msra.mxu0 0.0
    %2633 = vmatprep.subr.mxu0 0.0
    %2634 = vmatpush2.xpose.msra.mxu0 0.0
    %2635 = vmatprep.subr.mxu0 0.0
    %2636 = vmatpush2.xpose.msra.mxu0 0.0
    %2637 = vmatprep.subr.mxu0 0.0
    %2638 = vmatpush2.xpose.msra.mxu0 0.0
    %2639 = vmatprep.mubr.f32.mxu0 0.0
    %2640 = vmatmul.mubr.f32.gmra.mxu0 %v2573
    %v2641 = vpop.f32.mrf.mxu0
    %v2642 = vadd.f32 0.0, %v2641
    %v2643 = vpop.f32.mrf.mxu0
    %2644 = vdwg.mxu0
    %v2645 = vrot.slane %v2571, 1
    %v2646 = vsel %vm1363, %v2645, 0
    %2648 = vmatprep.subr.mxu0 0.0
    %2649 = vmatpush1.xpose.msra.mxu0 0.0
    %2650 = vmatprep.subr.mxu0 0.0
    %2651 = vmatpush1.xpose.msra.mxu0 0.0
    %2652 = vmatprep.subr.mxu0 0.0
    %2653 = vmatpush1.xpose.msra.mxu0 0.0
    %2654 = vmatprep.subr.mxu0 0.0
    %2655 = vmatpush1.xpose.msra.mxu0 0.0
    %2656 = vmatprep.subr.mxu0 0.0
    %2657 = vmatpush1.xpose.msra.mxu0 0.0
    %2658 = vmatprep.subr.mxu0 0.0
    %2659 = vmatpush1.xpose.msra.mxu0 0.0
    %2660 = vmatprep.subr.mxu0 0.0
    %2661 = vmatpush1.xpose.msra.mxu0 0.0
    %2662 = vmatprep.subr.mxu0 0.0
    %2663 = vmatpush1.xpose.msra.mxu0 0.0
    %2664 = vmatprep.subr.mxu0 0.0
    %2665 = vmatpush1.xpose.msra.mxu0 %v1571
    %2666 = vmatprep.subr.mxu0 0.0
    %2667 = vmatpush1.xpose.msra.mxu0 %v1568
    %2668 = vmatprep.subr.mxu0 0.0
    %2669 = vmatpush1.xpose.msra.mxu0 %v1565
    %2670 = vmatprep.subr.mxu0 0.0
    %2671 = vmatpush1.xpose.msra.mxu0 %v1562
    %2672 = vmatprep.subr.mxu0 0.0
    %2673 = vmatpush1.xpose.msra.mxu0 %v1559
    %2674 = vmatprep.subr.mxu0 0.0
    %2675 = vmatpush1.xpose.msra.mxu0 %v1556
    %2676 = vmatprep.subr.mxu0 0.0
    %2677 = vmatpush1.xpose.msra.mxu0 %v1553
    %2678 = vmatprep.subr.mxu0 0.0
    %2679 = vmatpush1.xpose.msra.mxu0 %v1550
    %2680 = vmatprep.subr.mxu0 0.0
    %2681 = vmatpush2.xpose.msra.mxu0 0.0
    %2682 = vmatprep.subr.mxu0 0.0
    %2683 = vmatpush2.xpose.msra.mxu0 0.0
    %2684 = vmatprep.subr.mxu0 0.0
    %2685 = vmatpush2.xpose.msra.mxu0 0.0
    %2686 = vmatprep.subr.mxu0 0.0
    %2687 = vmatpush2.xpose.msra.mxu0 0.0
    %2688 = vmatprep.subr.mxu0 0.0
    %2689 = vmatpush2.xpose.msra.mxu0 0.0
    %2690 = vmatprep.subr.mxu0 0.0
    %2691 = vmatpush2.xpose.msra.mxu0 0.0
    %2692 = vmatprep.subr.mxu0 0.0
    %2693 = vmatpush2.xpose.msra.mxu0 0.0
    %2694 = vmatprep.subr.mxu0 0.0
    %2695 = vmatpush2.xpose.msra.mxu0 0.0
    %2696 = vmatprep.subr.mxu0 0.0
    %2697 = vmatpush2.xpose.msra.mxu0 0.0
    %2698 = vmatprep.subr.mxu0 0.0
    %2699 = vmatpush2.xpose.msra.mxu0 0.0
    %2700 = vmatprep.subr.mxu0 0.0
    %2701 = vmatpush2.xpose.msra.mxu0 0.0
    %2702 = vmatprep.subr.mxu0 0.0
    %2703 = vmatpush2.xpose.msra.mxu0 0.0
    %2704 = vmatprep.subr.mxu0 0.0
    %2705 = vmatpush2.xpose.msra.mxu0 0.0
    %2706 = vmatprep.subr.mxu0 0.0
    %2707 = vmatpush2.xpose.msra.mxu0 0.0
    %2708 = vmatprep.subr.mxu0 0.0
    %2709 = vmatpush2.xpose.msra.mxu0 0.0
    %2710 = vmatprep.subr.mxu0 0.0
    %2711 = vmatpush2.xpose.msra.mxu0 0.0
    %2712 = vmatprep.mubr.f32.mxu0 0.0
    %2713 = vmatmul.mubr.f32.gmra.mxu0 %v2646
    %v2714 = vpop.f32.mrf.mxu0
    %v2715 = vadd.f32 0.0, %v2714
    %v2716 = vpop.f32.mrf.mxu0
    %2717 = vdwg.mxu0
    %v2719 = vrot.slane %v2715, 7
    %v2721 = vsel %vm1646, %v2642, %v2719
    %2723 = vrot.lane.b32.xlu0 %v2721, 32
    %v2724 = vpop.permute.xlu0 %2723
    %v2726 = vsel %vm1363, %v2488, %v2724
    %v2727 = vsel %vm1653, %v2726, %v2292
    %2728 = vmatprep.subr.mxu0 0.0
    %2729 = vmatpush1.msra.mxu0 %v1196
    %2730 = vmatprep.subr.mxu0 0.0
    %2731 = vmatpush1.msra.mxu0 %v1195
    %2732 = vmatprep.subr.mxu0 0.0
    %2733 = vmatpush1.msra.mxu0 %v1194
    %2734 = vmatprep.subr.mxu0 0.0
    %2735 = vmatpush1.msra.mxu0 %v1193
    %2736 = vmatprep.subr.mxu0 0.0
    %2737 = vmatpush1.msra.mxu0 %v1190
    %2738 = vmatprep.subr.mxu0 0.0
    %2739 = vmatpush1.msra.mxu0 %v1185
    %2740 = vmatprep.subr.mxu0 0.0
    %2741 = vmatpush1.msra.mxu0 %v1180
    %2742 = vmatprep.subr.mxu0 0.0
    %2743 = vmatpush1.msra.mxu0 %v1175
    %2744 = vmatprep.subr.mxu0 0.0
    %2745 = vmatpush1.msra.mxu0 %v1170
    %2746 = vmatprep.subr.mxu0 0.0
    %2747 = vmatpush1.msra.mxu0 %v1165
    %2748 = vmatprep.subr.mxu0 0.0
    %2749 = vmatpush1.msra.mxu0 %v1160
    %2750 = vmatprep.subr.mxu0 0.0
    %2751 = vmatpush1.msra.mxu0 %v1155
    %2752 = vmatprep.subr.mxu0 0.0
    %2753 = vmatpush1.msra.mxu0 %v1150
    %2754 = vmatprep.subr.mxu0 0.0
    %2755 = vmatpush1.msra.mxu0 %v1145
    %2756 = vmatprep.subr.mxu0 0.0
    %2757 = vmatpush1.msra.mxu0 %v1140
    %2758 = vmatprep.subr.mxu0 0.0
    %2759 = vmatpush1.msra.mxu0 %v1135
    %2760 = vmatprep.subr.mxu0 0.0
    %2761 = vmatpush2.msra.mxu0 0.0
    %2762 = vmatprep.subr.mxu0 0.0
    %2763 = vmatpush2.msra.mxu0 0.0
    %2764 = vmatprep.subr.mxu0 0.0
    %2765 = vmatpush2.msra.mxu0 0.0
    %2766 = vmatprep.subr.mxu0 0.0
    %2767 = vmatpush2.msra.mxu0 0.0
    %2768 = vmatprep.subr.mxu0 0.0
    %2769 = vmatpush2.msra.mxu0 0.0
    %2770 = vmatprep.subr.mxu0 0.0
    %2771 = vmatpush2.msra.mxu0 0.0
    %2772 = vmatprep.subr.mxu0 0.0
    %2773 = vmatpush2.msra.mxu0 0.0
    %2774 = vmatprep.subr.mxu0 0.0
    %2775 = vmatpush2.msra.mxu0 0.0
    %2776 = vmatprep.subr.mxu0 0.0
    %2777 = vmatpush2.msra.mxu0 0.0
    %2778 = vmatprep.subr.mxu0 0.0
    %2779 = vmatpush2.msra.mxu0 0.0
    %2780 = vmatprep.subr.mxu0 0.0
    %2781 = vmatpush2.msra.mxu0 0.0
    %2782 = vmatprep.subr.mxu0 0.0
    %2783 = vmatpush2.msra.mxu0 0.0
    %2784 = vmatprep.subr.mxu0 0.0
    %2785 = vmatpush2.msra.mxu0 0.0
    %2786 = vmatprep.subr.mxu0 0.0
    %2787 = vmatpush2.msra.mxu0 0.0
    %2788 = vmatprep.subr.mxu0 0.0
    %2789 = vmatpush2.msra.mxu0 0.0
    %2790 = vmatprep.subr.mxu0 0.0
    %2791 = vmatpush2.msra.mxu0 0.0
    %2792 = vmatprep.mubr.f32.mxu0 0.0
    %2793 = vmatmul.mubr.f32.gmra.mxu0 %v2727
    %v2794 = vpop.f32.mrf.mxu0
    %v2795 = vadd.f32 %v1658, %v2794
    %v2796 = vpop.f32.mrf.mxu0
    %2797 = vdwg.mxu0
    %v2798 = vxor.u32 %v2795, 2147483648
    %v2799 = vmul.f32 %v2798, 1.442695
    %v2800 = vpow.pop %v2799
    %v2801 = vadd.f32 %v2800, 1.0
    %v2802 = vrcp.pop %v2801
    %v2803 = vmul.f32 1.0, %v2802
    %v2804 = vtanh.pop %v2795
    %2805 = vrot.lane.b32.xlu0 %v2292, 64
    %v2806 = vpop.permute.xlu0 %2805
    %v2808 = vmul.f32 %v2803, %v2806
    %2810 = vrot.lane.b32.xlu0 %v2804, 64
    %v2811 = vpop.permute.xlu0 %2810
    %v2813 = vmul.f32 %v2803, %v2811
    %2815 = vrot.lane.b32.xlu0 %v2813, 32
    %v2816 = vpop.permute.xlu0 %2815
    %v2818 = vadd.f32 %v2808, %v2816
    %v2819 = vtanh.pop %v2818
    %2821 = vrot.lane.b32.xlu0 %v2819, 64
    %v2822 = vpop.permute.xlu0 %2821
    %v2824 = vmul.f32 %v2803, %v2822
    %2826 = vrot.lane.b32.xlu0 %v2824, 32
    %v2827 = vpop.permute.xlu0 %2826
    %v2828 = vsel %vm1363, %v2827, 0
    %2830 = vmatprep.subr.mxu0 0.0
    %2831 = vmatpush1.msra.mxu0 0.0
    %2832 = vmatprep.subr.mxu0 0.0
    %2833 = vmatpush1.msra.mxu0 0.0
    %2834 = vmatprep.subr.mxu0 0.0
    %2835 = vmatpush1.msra.mxu0 0.0
    %2836 = vmatprep.subr.mxu0 0.0
    %2837 = vmatpush1.msra.mxu0 0.0
    %2838 = vmatprep.subr.mxu0 0.0
    %2839 = vmatpush1.msra.mxu0 0.0
    %2840 = vmatprep.subr.mxu0 0.0
    %2841 = vmatpush1.msra.mxu0 0.0
    %2842 = vmatprep.subr.mxu0 0.0
    %2843 = vmatpush1.msra.mxu0 0.0
    %2844 = vmatprep.subr.mxu0 0.0
    %2845 = vmatpush1.msra.mxu0 0.0
    %2846 = vmatprep.subr.mxu0 0.0
    %2847 = vmatpush1.msra.mxu0 0.0
    %2848 = vmatprep.subr.mxu0 0.0
    %2849 = vmatpush1.msra.mxu0 0.0
    %2850 = vmatprep.subr.mxu0 0.0
    %2851 = vmatpush1.msra.mxu0 0.0
    %2852 = vmatprep.subr.mxu0 0.0
    %2853 = vmatpush1.msra.mxu0 0.0
    %2854 = vmatprep.subr.mxu0 0.0
    %2855 = vmatpush1.msra.mxu0 %v1010
    %2856 = vmatprep.subr.mxu0 0.0
    %2857 = vmatpush1.msra.mxu0 %v1009
    %2858 = vmatprep.subr.mxu0 0.0
    %2859 = vmatpush1.msra.mxu0 %v1008
    %2860 = vmatprep.subr.mxu0 0.0
    %2861 = vmatpush1.msra.mxu0 %v1007
    %2862 = vmatprep.subr.mxu0 0.0
    %2863 = vmatpush2.msra.mxu0 0.0
    %2864 = vmatprep.subr.mxu0 0.0
    %2865 = vmatpush2.msra.mxu0 0.0
    %2866 = vmatprep.subr.mxu0 0.0
    %2867 = vmatpush2.msra.mxu0 0.0
    %2868 = vmatprep.subr.mxu0 0.0
    %2869 = vmatpush2.msra.mxu0 0.0
    %2870 = vmatprep.subr.mxu0 0.0
    %2871 = vmatpush2.msra.mxu0 0.0
    %2872 = vmatprep.subr.mxu0 0.0
    %2873 = vmatpush2.msra.mxu0 0.0
    %2874 = vmatprep.subr.mxu0 0.0
    %2875 = vmatpush2.msra.mxu0 0.0
    %2876 = vmatprep.subr.mxu0 0.0
    %2877 = vmatpush2.msra.mxu0 0.0
    %2878 = vmatprep.subr.mxu0 0.0
    %2879 = vmatpush2.msra.mxu0 0.0
    %2880 = vmatprep.subr.mxu0 0.0
    %2881 = vmatpush2.msra.mxu0 0.0
    %2882 = vmatprep.subr.mxu0 0.0
    %2883 = vmatpush2.msra.mxu0 0.0
    %2884 = vmatprep.subr.mxu0 0.0
    %2885 = vmatpush2.msra.mxu0 0.0
    %2886 = vmatprep.subr.mxu0 0.0
    %2887 = vmatpush2.msra.mxu0 0.0
    %2888 = vmatprep.subr.mxu0 0.0
    %2889 = vmatpush2.msra.mxu0 0.0
    %2890 = vmatprep.subr.mxu0 0.0
    %2891 = vmatpush2.msra.mxu0 0.0
    %2892 = vmatprep.subr.mxu0 0.0
    %2893 = vmatpush2.msra.mxu0 0.0
    %2894 = vmatprep.mubr.f32.mxu0 0.0
    %2895 = vmatmul.mubr.f32.gmra.mxu0 %v2828
    %v2896 = vpop.f32.mrf.mxu0
    %v2897 = vadd.f32 %v1757, %v2896
    %v2898 = vpop.f32.mrf.mxu0
    %2899 = vdwg.mxu0
    %v2902 = vunpack.c.l.s4 1966171168
    %v2903 = vunpack.c.0.s8 %v2902
    %v2904 = vlaneseq
    %v2905 = vshrl.u32 %v2904, 7
    %v2906 = vsub.s32 %v2903, %v2905
    %v2907 = vrot.slane %v2897, %v2906
    %v2908 = vcombine.high %v2907, %v2907
    %v2910 = vunpack.c.l.s4 1966171168
    %v2911 = vunpack.c.0.s8 %v2910
    %v2912 = vlaneseq
    %v2913 = vshrl.u32 %v2912, 7
    %v2914 = vsub.s32 %v2911, %v2913
    %v2915 = vrot.slane %v2907, %v2914
    %v2917 = vunpack.c.l.s4 1966171168
    %v2918 = vunpack.c.0.s8 %v2917
    %v2919 = vlaneseq
    %v2920 = vshrl.u32 %v2919, 7
    %v2921 = vsub.s32 %v2918, %v2920
    %v2922 = vrot.slane %v2908, %v2921
    %2925 = vst.msk [vmem:[#allocation2 + $0x2] sm:$0x1] %vm1859, %v2915
    %2926 = vst.msk [vmem:[#allocation2 + $0xa] sm:$0x1] %vm1859, %v2922
    %v2927 = vsel %vm1862, %v2897, -inf
    %2928 = vmax.xlane.f32.xlu0 %v2927
    %v2929 = vpop.xlane.xlu0 %2928
    %vm2930 = vcmp.ge.f32.partialorder %v2897, %v2929
    %v2931 = vsel %vm2930, %v1275, 10
    %v2932 = vsel %vm1862, %v2931, 2147483647
    %v2933 = vand.u32 %v2932, 65535
    %v2934 = vshra.s32 %v2932, 16
    %v2935 = vcvt.s32.f32 %v2933
    %v2936 = vcvt.s32.f32 %v2934
    %2937 = vmin.xlane.f32.xlu0 %v2936
    %v2938 = vpop.xlane.xlu0 %2937
    %vm2939 = vcmp.eq.f32.partialorder %v2936, %v2938
    %v2940 = vsel %vm2939, %v2935, inf
    %2941 = vmin.xlane.f32.xlu0 %v2940
    %v2942 = vpop.xlane.xlu0 %2941
    %v2943 = vcvt.f32.s32 %v2942
    %v2944 = vcvt.f32.s32 %v2938
    %v2945 = vshll.u32 %v2944, 16
    %v2946 = vadd.s32 %v2945, %v2943
    %vm2947 = vcmp.eq.s32.totalorder %v1275, %v2946
    %v2948 = vsel %vm2947, 1, 0
    %v2949 = vcvt.s32.f32 %v2948
    %v2951 = vsel %vm1279, %v2949, 0
    %2953 = vmatprep.subr.mxu0 0.0
    %2954 = vmatpush1.msra.mxu0 0.0
    %2955 = vmatprep.subr.mxu0 0.0
    %2956 = vmatpush1.msra.mxu0 0.0
    %2957 = vmatprep.subr.mxu0 0.0
    %2958 = vmatpush1.msra.mxu0 0.0
    %2959 = vmatprep.subr.mxu0 0.0
    %2960 = vmatpush1.msra.mxu0 0.0
    %2961 = vmatprep.subr.mxu0 0.0
    %2962 = vmatpush1.msra.mxu0 0.0
    %2963 = vmatprep.subr.mxu0 0.0
    %2964 = vmatpush1.msra.mxu0 0.0
    %2965 = vmatprep.subr.mxu0 0.0
    %2966 = vmatpush1.msra.mxu0 0.0
    %2967 = vmatprep.subr.mxu0 0.0
    %2968 = vmatpush1.msra.mxu0 0.0
    %2969 = vmatprep.subr.mxu0 0.0
    %2970 = vmatpush1.msra.mxu0 0.0
    %2971 = vmatprep.subr.mxu0 0.0
    %2972 = vmatpush1.msra.mxu0 0.0
    %2973 = vmatprep.subr.mxu0 0.0
    %2974 = vmatpush1.msra.mxu0 0.0
    %2975 = vmatprep.subr.mxu0 0.0
    %2976 = vmatpush1.msra.mxu0 0.0
    %2977 = vmatprep.subr.mxu0 0.0
    %2978 = vmatpush1.msra.mxu0 0.0
    %2979 = vmatprep.subr.mxu0 0.0
    %2980 = vmatpush1.msra.mxu0 0.0
    %2981 = vmatprep.subr.mxu0 0.0
    %2982 = vmatpush1.msra.mxu0 %v1285
    %2983 = vmatprep.subr.mxu0 0.0
    %2984 = vmatpush1.msra.mxu0 %v1000
    %2985 = vmatprep.subr.mxu0 0.0
    %2986 = vmatpush2.msra.mxu0 0.0
    %2987 = vmatprep.subr.mxu0 0.0
    %2988 = vmatpush2.msra.mxu0 0.0
    %2989 = vmatprep.subr.mxu0 0.0
    %2990 = vmatpush2.msra.mxu0 0.0
    %2991 = vmatprep.subr.mxu0 0.0
    %2992 = vmatpush2.msra.mxu0 0.0
    %2993 = vmatprep.subr.mxu0 0.0
    %2994 = vmatpush2.msra.mxu0 0.0
    %2995 = vmatprep.subr.mxu0 0.0
    %2996 = vmatpush2.msra.mxu0 0.0
    %2997 = vmatprep.subr.mxu0 0.0
    %2998 = vmatpush2.msra.mxu0 0.0
    %2999 = vmatprep.subr.mxu0 0.0
    %3000 = vmatpush2.msra.mxu0 0.0
    %3001 = vmatprep.subr.mxu0 0.0
    %3002 = vmatpush2.msra.mxu0 0.0
    %3003 = vmatprep.subr.mxu0 0.0
    %3004 = vmatpush2.msra.mxu0 0.0
    %3005 = vmatprep.subr.mxu0 0.0
    %3006 = vmatpush2.msra.mxu0 0.0
    %3007 = vmatprep.subr.mxu0 0.0
    %3008 = vmatpush2.msra.mxu0 0.0
    %3009 = vmatprep.subr.mxu0 0.0
    %3010 = vmatpush2.msra.mxu0 0.0
    %3011 = vmatprep.subr.mxu0 0.0
    %3012 = vmatpush2.msra.mxu0 0.0
    %3013 = vmatprep.subr.mxu0 0.0
    %3014 = vmatpush2.msra.mxu0 0.0
    %3015 = vmatprep.subr.mxu0 0.0
    %3016 = vmatpush2.msra.mxu0 0.0
    %3017 = vmatprep.mubr.f32.mxu0 0.0
    %3018 = vmatmul.mubr.f32.gmra.mxu0 %v2951
    %v3019 = vpop.f32.mrf.mxu0
    %v3020 = vadd.f32 0.0, %v3019
    %v3021 = vpop.f32.mrf.mxu0
    %3022 = vdwg.mxu0
    %3023 = vmatprep.subr.mxu0 0.0
    %3024 = vmatpush1.msra.mxu0 0.0
    %3025 = vmatprep.subr.mxu0 0.0
    %3026 = vmatpush1.msra.mxu0 0.0
    %3027 = vmatprep.subr.mxu0 0.0
    %3028 = vmatpush1.msra.mxu0 0.0
    %3029 = vmatprep.subr.mxu0 0.0
    %3030 = vmatpush1.msra.mxu0 0.0
    %3031 = vmatprep.subr.mxu0 0.0
    %3032 = vmatpush1.msra.mxu0 0.0
    %3033 = vmatprep.subr.mxu0 0.0
    %3034 = vmatpush1.msra.mxu0 0.0
    %3035 = vmatprep.subr.mxu0 0.0
    %3036 = vmatpush1.msra.mxu0 0.0
    %3037 = vmatprep.subr.mxu0 0.0
    %3038 = vmatpush1.msra.mxu0 0.0
    %3039 = vmatprep.subr.mxu0 0.0
    %3040 = vmatpush1.msra.mxu0 0.0
    %3041 = vmatprep.subr.mxu0 0.0
    %3042 = vmatpush1.msra.mxu0 0.0
    %3043 = vmatprep.subr.mxu0 0.0
    %3044 = vmatpush1.msra.mxu0 0.0
    %3045 = vmatprep.subr.mxu0 0.0
    %3046 = vmatpush1.msra.mxu0 0.0
    %3047 = vmatprep.subr.mxu0 0.0
    %3048 = vmatpush1.msra.mxu0 %v1005
    %3049 = vmatprep.subr.mxu0 0.0
    %3050 = vmatpush1.msra.mxu0 %v1004
    %3051 = vmatprep.subr.mxu0 0.0
    %3052 = vmatpush1.msra.mxu0 %v1003
    %3053 = vmatprep.subr.mxu0 0.0
    %3054 = vmatpush1.msra.mxu0 %v1002
    %3055 = vmatprep.subr.mxu0 0.0
    %3056 = vmatpush2.msra.mxu0 0.0
    %3057 = vmatprep.subr.mxu0 0.0
    %3058 = vmatpush2.msra.mxu0 0.0
    %3059 = vmatprep.subr.mxu0 0.0
    %3060 = vmatpush2.msra.mxu0 0.0
    %3061 = vmatprep.subr.mxu0 0.0
    %3062 = vmatpush2.msra.mxu0 0.0
    %3063 = vmatprep.subr.mxu0 0.0
    %3064 = vmatpush2.msra.mxu0 0.0
    %3065 = vmatprep.subr.mxu0 0.0
    %3066 = vmatpush2.msra.mxu0 0.0
    %3067 = vmatprep.subr.mxu0 0.0
    %3068 = vmatpush2.msra.mxu0 0.0
    %3069 = vmatprep.subr.mxu0 0.0
    %3070 = vmatpush2.msra.mxu0 0.0
    %3071 = vmatprep.subr.mxu0 0.0
    %3072 = vmatpush2.msra.mxu0 0.0
    %3073 = vmatprep.subr.mxu0 0.0
    %3074 = vmatpush2.msra.mxu0 0.0
    %3075 = vmatprep.subr.mxu0 0.0
    %3076 = vmatpush2.msra.mxu0 0.0
    %3077 = vmatprep.subr.mxu0 0.0
    %3078 = vmatpush2.msra.mxu0 0.0
    %3079 = vmatprep.subr.mxu0 0.0
    %3080 = vmatpush2.msra.mxu0 0.0
    %3081 = vmatprep.subr.mxu0 0.0
    %3082 = vmatpush2.msra.mxu0 0.0
    %3083 = vmatprep.subr.mxu0 0.0
    %3084 = vmatpush2.msra.mxu0 0.0
    %3085 = vmatprep.subr.mxu0 0.0
    %3086 = vmatpush2.msra.mxu0 0.0
    %3087 = vmatprep.mubr.f32.mxu0 0.0
    %3088 = vmatmul.mubr.f32.gmra.mxu0 %v2828
    %v3089 = vpop.f32.mrf.mxu0
    %v3090 = vadd.f32 %v1361, %v3089
    %v3091 = vpop.f32.mrf.mxu0
    %3092 = vdwg.mxu0
    %v3093 = vsel %vm1437, %v3090, -inf
    %3094 = vmax.xlane.f32.xlu0 %v3093
    %v3095 = vpop.xlane.xlu0 %3094
    %v3096 = vsub.f32 %v3090, %v3095
    %v3097 = vmul.f32 %v3096, 1.442695
    %v3098 = vpow.pop %v3097
    %v3099 = vsel %vm1437, %v3098, 0.0
    %3100 = vadd.xlane.f32.xlu0 %v3099
    %v3101 = vpop.xlane.xlu0 %3100
    %v3102 = vrcp.pop %v3101
    %v3103 = vmul.f32 %v3098, %v3102
    %v3105 = vsel %vm1363, %v3103, 0
    %3107 = vmatprep.subr.mxu0 0.0
    %3108 = vmatpush1.xpose.msra.mxu0 0.0
    %3109 = vmatprep.subr.mxu0 0.0
    %3110 = vmatpush1.xpose.msra.mxu0 0.0
    %3111 = vmatprep.subr.mxu0 0.0
    %3112 = vmatpush1.xpose.msra.mxu0 0.0
    %3113 = vmatprep.subr.mxu0 0.0
    %3114 = vmatpush1.xpose.msra.mxu0 0.0
    %3115 = vmatprep.subr.mxu0 0.0
    %3116 = vmatpush1.xpose.msra.mxu0 0.0
    %3117 = vmatprep.subr.mxu0 0.0
    %3118 = vmatpush1.xpose.msra.mxu0 0.0
    %3119 = vmatprep.subr.mxu0 0.0
    %3120 = vmatpush1.xpose.msra.mxu0 0.0
    %3121 = vmatprep.subr.mxu0 0.0
    %3122 = vmatpush1.xpose.msra.mxu0 0.0
    %3123 = vmatprep.subr.mxu0 0.0
    %3124 = vmatpush1.xpose.msra.mxu0 %v1474
    %3125 = vmatprep.subr.mxu0 0.0
    %3126 = vmatpush1.xpose.msra.mxu0 %v1471
    %3127 = vmatprep.subr.mxu0 0.0
    %3128 = vmatpush1.xpose.msra.mxu0 %v1468
    %3129 = vmatprep.subr.mxu0 0.0
    %3130 = vmatpush1.xpose.msra.mxu0 %v1465
    %3131 = vmatprep.subr.mxu0 0.0
    %3132 = vmatpush1.xpose.msra.mxu0 %v1462
    %3133 = vmatprep.subr.mxu0 0.0
    %3134 = vmatpush1.xpose.msra.mxu0 %v1459
    %3135 = vmatprep.subr.mxu0 0.0
    %3136 = vmatpush1.xpose.msra.mxu0 %v1456
    %3137 = vmatprep.subr.mxu0 0.0
    %3138 = vmatpush1.xpose.msra.mxu0 %v1453
    %3139 = vmatprep.subr.mxu0 0.0
    %3140 = vmatpush2.xpose.msra.mxu0 0.0
    %3141 = vmatprep.subr.mxu0 0.0
    %3142 = vmatpush2.xpose.msra.mxu0 0.0
    %3143 = vmatprep.subr.mxu0 0.0
    %3144 = vmatpush2.xpose.msra.mxu0 0.0
    %3145 = vmatprep.subr.mxu0 0.0
    %3146 = vmatpush2.xpose.msra.mxu0 0.0
    %3147 = vmatprep.subr.mxu0 0.0
    %3148 = vmatpush2.xpose.msra.mxu0 0.0
    %3149 = vmatprep.subr.mxu0 0.0
    %3150 = vmatpush2.xpose.msra.mxu0 0.0
    %3151 = vmatprep.subr.mxu0 0.0
    %3152 = vmatpush2.xpose.msra.mxu0 0.0
    %3153 = vmatprep.subr.mxu0 0.0
    %3154 = vmatpush2.xpose.msra.mxu0 0.0
    %3155 = vmatprep.subr.mxu0 0.0
    %3156 = vmatpush2.xpose.msra.mxu0 0.0
    %3157 = vmatprep.subr.mxu0 0.0
    %3158 = vmatpush2.xpose.msra.mxu0 0.0
    %3159 = vmatprep.subr.mxu0 0.0
    %3160 = vmatpush2.xpose.msra.mxu0 0.0
    %3161 = vmatprep.subr.mxu0 0.0
    %3162 = vmatpush2.xpose.msra.mxu0 0.0
    %3163 = vmatprep.subr.mxu0 0.0
    %3164 = vmatpush2.xpose.msra.mxu0 0.0
    %3165 = vmatprep.subr.mxu0 0.0
    %3166 = vmatpush2.xpose.msra.mxu0 0.0
    %3167 = vmatprep.subr.mxu0 0.0
    %3168 = vmatpush2.xpose.msra.mxu0 0.0
    %3169 = vmatprep.subr.mxu0 0.0
    %3170 = vmatpush2.xpose.msra.mxu0 0.0
    %3171 = vmatprep.mubr.f32.mxu0 0.0
    %3172 = vmatmul.mubr.f32.gmra.mxu0 %v3105
    %v3173 = vpop.f32.mrf.mxu0
    %v3174 = vadd.f32 0.0, %v3173
    %v3175 = vpop.f32.mrf.mxu0
    %3176 = vdwg.mxu0
    %v3177 = vrot.slane %v3103, 1
    %v3178 = vsel %vm1363, %v3177, 0
    %3180 = vmatprep.subr.mxu0 0.0
    %3181 = vmatpush1.xpose.msra.mxu0 0.0
    %3182 = vmatprep.subr.mxu0 0.0
    %3183 = vmatpush1.xpose.msra.mxu0 0.0
    %3184 = vmatprep.subr.mxu0 0.0
    %3185 = vmatpush1.xpose.msra.mxu0 0.0
    %3186 = vmatprep.subr.mxu0 0.0
    %3187 = vmatpush1.xpose.msra.mxu0 0.0
    %3188 = vmatprep.subr.mxu0 0.0
    %3189 = vmatpush1.xpose.msra.mxu0 0.0
    %3190 = vmatprep.subr.mxu0 0.0
    %3191 = vmatpush1.xpose.msra.mxu0 0.0
    %3192 = vmatprep.subr.mxu0 0.0
    %3193 = vmatpush1.xpose.msra.mxu0 0.0
    %3194 = vmatprep.subr.mxu0 0.0
    %3195 = vmatpush1.xpose.msra.mxu0 0.0
    %3196 = vmatprep.subr.mxu0 0.0
    %3197 = vmatpush1.xpose.msra.mxu0 %v1571
    %3198 = vmatprep.subr.mxu0 0.0
    %3199 = vmatpush1.xpose.msra.mxu0 %v1568
    %3200 = vmatprep.subr.mxu0 0.0
    %3201 = vmatpush1.xpose.msra.mxu0 %v1565
    %3202 = vmatprep.subr.mxu0 0.0
    %3203 = vmatpush1.xpose.msra.mxu0 %v1562
    %3204 = vmatprep.subr.mxu0 0.0
    %3205 = vmatpush1.xpose.msra.mxu0 %v1559
    %3206 = vmatprep.subr.mxu0 0.0
    %3207 = vmatpush1.xpose.msra.mxu0 %v1556
    %3208 = vmatprep.subr.mxu0 0.0
    %3209 = vmatpush1.xpose.msra.mxu0 %v1553
    %3210 = vmatprep.subr.mxu0 0.0
    %3211 = vmatpush1.xpose.msra.mxu0 %v1550
    %3212 = vmatprep.subr.mxu0 0.0
    %3213 = vmatpush2.xpose.msra.mxu0 0.0
    %3214 = vmatprep.subr.mxu0 0.0
    %3215 = vmatpush2.xpose.msra.mxu0 0.0
    %3216 = vmatprep.subr.mxu0 0.0
    %3217 = vmatpush2.xpose.msra.mxu0 0.0
    %3218 = vmatprep.subr.mxu0 0.0
    %3219 = vmatpush2.xpose.msra.mxu0 0.0
    %3220 = vmatprep.subr.mxu0 0.0
    %3221 = vmatpush2.xpose.msra.mxu0 0.0
    %3222 = vmatprep.subr.mxu0 0.0
    %3223 = vmatpush2.xpose.msra.mxu0 0.0
    %3224 = vmatprep.subr.mxu0 0.0
    %3225 = vmatpush2.xpose.msra.mxu0 0.0
    %3226 = vmatprep.subr.mxu0 0.0
    %3227 = vmatpush2.xpose.msra.mxu0 0.0
    %3228 = vmatprep.subr.mxu0 0.0
    %3229 = vmatpush2.xpose.msra.mxu0 0.0
    %3230 = vmatprep.subr.mxu0 0.0
    %3231 = vmatpush2.xpose.msra.mxu0 0.0
    %3232 = vmatprep.subr.mxu0 0.0
    %3233 = vmatpush2.xpose.msra.mxu0 0.0
    %3234 = vmatprep.subr.mxu0 0.0
    %3235 = vmatpush2.xpose.msra.mxu0 0.0
    %3236 = vmatprep.subr.mxu0 0.0
    %3237 = vmatpush2.xpose.msra.mxu0 0.0
    %3238 = vmatprep.subr.mxu0 0.0
    %3239 = vmatpush2.xpose.msra.mxu0 0.0
    %3240 = vmatprep.subr.mxu0 0.0
    %3241 = vmatpush2.xpose.msra.mxu0 0.0
    %3242 = vmatprep.subr.mxu0 0.0
    %3243 = vmatpush2.xpose.msra.mxu0 0.0
    %3244 = vmatprep.mubr.f32.mxu0 0.0
    %3245 = vmatmul.mubr.f32.gmra.mxu0 %v3178
    %v3246 = vpop.f32.mrf.mxu0
    %v3247 = vadd.f32 0.0, %v3246
    %v3248 = vpop.f32.mrf.mxu0
    %3249 = vdwg.mxu0
    %v3251 = vrot.slane %v3247, 7
    %v3253 = vsel %vm1646, %v3174, %v3251
    %3255 = vrot.lane.b32.xlu0 %v3253, 32
    %v3256 = vpop.permute.xlu0 %3255
    %v3258 = vsel %vm1363, %v3020, %v3256
    %v3259 = vsel %vm1653, %v3258, %v2824
    %3260 = vmatprep.subr.mxu0 0.0
    %3261 = vmatpush1.msra.mxu0 %v1196
    %3262 = vmatprep.subr.mxu0 0.0
    %3263 = vmatpush1.msra.mxu0 %v1195
    %3264 = vmatprep.subr.mxu0 0.0
    %3265 = vmatpush1.msra.mxu0 %v1194
    %3266 = vmatprep.subr.mxu0 0.0
    %3267 = vmatpush1.msra.mxu0 %v1193
    %3268 = vmatprep.subr.mxu0 0.0
    %3269 = vmatpush1.msra.mxu0 %v1190
    %3270 = vmatprep.subr.mxu0 0.0
    %3271 = vmatpush1.msra.mxu0 %v1185
    %3272 = vmatprep.subr.mxu0 0.0
    %3273 = vmatpush1.msra.mxu0 %v1180
    %3274 = vmatprep.subr.mxu0 0.0
    %3275 = vmatpush1.msra.mxu0 %v1175
    %3276 = vmatprep.subr.mxu0 0.0
    %3277 = vmatpush1.msra.mxu0 %v1170
    %3278 = vmatprep.subr.mxu0 0.0
    %3279 = vmatpush1.msra.mxu0 %v1165
    %3280 = vmatprep.subr.mxu0 0.0
    %3281 = vmatpush1.msra.mxu0 %v1160
    %3282 = vmatprep.subr.mxu0 0.0
    %3283 = vmatpush1.msra.mxu0 %v1155
    %3284 = vmatprep.subr.mxu0 0.0
    %3285 = vmatpush1.msra.mxu0 %v1150
    %3286 = vmatprep.subr.mxu0 0.0
    %3287 = vmatpush1.msra.mxu0 %v1145
    %3288 = vmatprep.subr.mxu0 0.0
    %3289 = vmatpush1.msra.mxu0 %v1140
    %3290 = vmatprep.subr.mxu0 0.0
    %3291 = vmatpush1.msra.mxu0 %v1135
    %3292 = vmatprep.subr.mxu0 0.0
    %3293 = vmatpush2.msra.mxu0 0.0
    %3294 = vmatprep.subr.mxu0 0.0
    %3295 = vmatpush2.msra.mxu0 0.0
    %3296 = vmatprep.subr.mxu0 0.0
    %3297 = vmatpush2.msra.mxu0 0.0
    %3298 = vmatprep.subr.mxu0 0.0
    %3299 = vmatpush2.msra.mxu0 0.0
    %3300 = vmatprep.subr.mxu0 0.0
    %3301 = vmatpush2.msra.mxu0 0.0
    %3302 = vmatprep.subr.mxu0 0.0
    %3303 = vmatpush2.msra.mxu0 0.0
    %3304 = vmatprep.subr.mxu0 0.0
    %3305 = vmatpush2.msra.mxu0 0.0
    %3306 = vmatprep.subr.mxu0 0.0
    %3307 = vmatpush2.msra.mxu0 0.0
    %3308 = vmatprep.subr.mxu0 0.0
    %3309 = vmatpush2.msra.mxu0 0.0
    %3310 = vmatprep.subr.mxu0 0.0
    %3311 = vmatpush2.msra.mxu0 0.0
    %3312 = vmatprep.subr.mxu0 0.0
    %3313 = vmatpush2.msra.mxu0 0.0
    %3314 = vmatprep.subr.mxu0 0.0
    %3315 = vmatpush2.msra.mxu0 0.0
    %3316 = vmatprep.subr.mxu0 0.0
    %3317 = vmatpush2.msra.mxu0 0.0
    %3318 = vmatprep.subr.mxu0 0.0
    %3319 = vmatpush2.msra.mxu0 0.0
    %3320 = vmatprep.subr.mxu0 0.0
    %3321 = vmatpush2.msra.mxu0 0.0
    %3322 = vmatprep.subr.mxu0 0.0
    %3323 = vmatpush2.msra.mxu0 0.0
    %3324 = vmatprep.mubr.f32.mxu0 0.0
    %3325 = vmatmul.mubr.f32.gmra.mxu0 %v3259
    %v3326 = vpop.f32.mrf.mxu0
    %v3327 = vadd.f32 %v1658, %v3326
    %v3328 = vpop.f32.mrf.mxu0
    %3329 = vdwg.mxu0
    %v3330 = vxor.u32 %v3327, 2147483648
    %v3331 = vmul.f32 %v3330, 1.442695
    %v3332 = vpow.pop %v3331
    %v3333 = vadd.f32 %v3332, 1.0
    %v3334 = vrcp.pop %v3333
    %v3335 = vmul.f32 1.0, %v3334
    %v3336 = vtanh.pop %v3327
    %3337 = vrot.lane.b32.xlu0 %v2824, 64
    %v3338 = vpop.permute.xlu0 %3337
    %v3340 = vmul.f32 %v3335, %v3338
    %3342 = vrot.lane.b32.xlu0 %v3336, 64
    %v3343 = vpop.permute.xlu0 %3342
    %v3345 = vmul.f32 %v3335, %v3343
    %3347 = vrot.lane.b32.xlu0 %v3345, 32
    %v3348 = vpop.permute.xlu0 %3347
    %v3350 = vadd.f32 %v3340, %v3348
    %v3351 = vtanh.pop %v3350
    %3353 = vrot.lane.b32.xlu0 %v3351, 64
    %v3354 = vpop.permute.xlu0 %3353
    %v3356 = vmul.f32 %v3335, %v3354
    %3358 = vrot.lane.b32.xlu0 %v3356, 32
    %v3359 = vpop.permute.xlu0 %3358
    %v3360 = vsel %vm1363, %v3359, 0
    %3362 = vmatprep.subr.mxu0 0.0
    %3363 = vmatpush1.msra.mxu0 0.0
    %3364 = vmatprep.subr.mxu0 0.0
    %3365 = vmatpush1.msra.mxu0 0.0
    %3366 = vmatprep.subr.mxu0 0.0
    %3367 = vmatpush1.msra.mxu0 0.0
    %3368 = vmatprep.subr.mxu0 0.0
    %3369 = vmatpush1.msra.mxu0 0.0
    %3370 = vmatprep.subr.mxu0 0.0
    %3371 = vmatpush1.msra.mxu0 0.0
    %3372 = vmatprep.subr.mxu0 0.0
    %3373 = vmatpush1.msra.mxu0 0.0
    %3374 = vmatprep.subr.mxu0 0.0
    %3375 = vmatpush1.msra.mxu0 0.0
    %3376 = vmatprep.subr.mxu0 0.0
    %3377 = vmatpush1.msra.mxu0 0.0
    %3378 = vmatprep.subr.mxu0 0.0
    %3379 = vmatpush1.msra.mxu0 0.0
    %3380 = vmatprep.subr.mxu0 0.0
    %3381 = vmatpush1.msra.mxu0 0.0
    %3382 = vmatprep.subr.mxu0 0.0
    %3383 = vmatpush1.msra.mxu0 0.0
    %3384 = vmatprep.subr.mxu0 0.0
    %3385 = vmatpush1.msra.mxu0 0.0
    %3386 = vmatprep.subr.mxu0 0.0
    %3387 = vmatpush1.msra.mxu0 %v1010
    %3388 = vmatprep.subr.mxu0 0.0
    %3389 = vmatpush1.msra.mxu0 %v1009
    %3390 = vmatprep.subr.mxu0 0.0
    %3391 = vmatpush1.msra.mxu0 %v1008
    %3392 = vmatprep.subr.mxu0 0.0
    %3393 = vmatpush1.msra.mxu0 %v1007
    %3394 = vmatprep.subr.mxu0 0.0
    %3395 = vmatpush2.msra.mxu0 0.0
    %3396 = vmatprep.subr.mxu0 0.0
    %3397 = vmatpush2.msra.mxu0 0.0
    %3398 = vmatprep.subr.mxu0 0.0
    %3399 = vmatpush2.msra.mxu0 0.0
    %3400 = vmatprep.subr.mxu0 0.0
    %3401 = vmatpush2.msra.mxu0 0.0
    %3402 = vmatprep.subr.mxu0 0.0
    %3403 = vmatpush2.msra.mxu0 0.0
    %3404 = vmatprep.subr.mxu0 0.0
    %3405 = vmatpush2.msra.mxu0 0.0
    %3406 = vmatprep.subr.mxu0 0.0
    %3407 = vmatpush2.msra.mxu0 0.0
    %3408 = vmatprep.subr.mxu0 0.0
    %3409 = vmatpush2.msra.mxu0 0.0
    %3410 = vmatprep.subr.mxu0 0.0
    %3411 = vmatpush2.msra.mxu0 0.0
    %3412 = vmatprep.subr.mxu0 0.0
    %3413 = vmatpush2.msra.mxu0 0.0
    %3414 = vmatprep.subr.mxu0 0.0
    %3415 = vmatpush2.msra.mxu0 0.0
    %3416 = vmatprep.subr.mxu0 0.0
    %3417 = vmatpush2.msra.mxu0 0.0
    %3418 = vmatprep.subr.mxu0 0.0
    %3419 = vmatpush2.msra.mxu0 0.0
    %3420 = vmatprep.subr.mxu0 0.0
    %3421 = vmatpush2.msra.mxu0 0.0
    %3422 = vmatprep.subr.mxu0 0.0
    %3423 = vmatpush2.msra.mxu0 0.0
    %3424 = vmatprep.subr.mxu0 0.0
    %3425 = vmatpush2.msra.mxu0 0.0
    %3426 = vmatprep.mubr.f32.mxu0 0.0
    %3427 = vmatmul.mubr.f32.gmra.mxu0 %v3360
    %v3428 = vpop.f32.mrf.mxu0
    %v3429 = vadd.f32 %v1757, %v3428
    %v3430 = vpop.f32.mrf.mxu0
    %3431 = vdwg.mxu0
    %v3434 = vunpack.c.l.s4 1966171168
    %v3435 = vunpack.c.0.s8 %v3434
    %v3436 = vlaneseq
    %v3437 = vshrl.u32 %v3436, 7
    %v3438 = vsub.s32 %v3435, %v3437
    %v3439 = vrot.slane %v3429, %v3438
    %v3440 = vcombine.high %v3439, %v3439
    %v3442 = vunpack.c.l.s4 1966171168
    %v3443 = vunpack.c.0.s8 %v3442
    %v3444 = vlaneseq
    %v3445 = vshrl.u32 %v3444, 7
    %v3446 = vsub.s32 %v3443, %v3445
    %v3447 = vrot.slane %v3439, %v3446
    %v3449 = vunpack.c.l.s4 1966171168
    %v3450 = vunpack.c.0.s8 %v3449
    %v3451 = vlaneseq
    %v3452 = vshrl.u32 %v3451, 7
    %v3453 = vsub.s32 %v3450, %v3452
    %v3454 = vrot.slane %v3440, %v3453
    %3457 = vst.msk [vmem:[#allocation2 + $0x3] sm:$0x1] %vm1859, %v3447
    %3458 = vst.msk [vmem:[#allocation2 + $0xb] sm:$0x1] %vm1859, %v3454
    %v3459 = vsel %vm1862, %v3429, -inf
    %3460 = vmax.xlane.f32.xlu0 %v3459
    %v3461 = vpop.xlane.xlu0 %3460
    %vm3462 = vcmp.ge.f32.partialorder %v3429, %v3461
    %v3463 = vsel %vm3462, %v1275, 10
    %v3464 = vsel %vm1862, %v3463, 2147483647
    %v3465 = vand.u32 %v3464, 65535
    %v3466 = vshra.s32 %v3464, 16
    %v3467 = vcvt.s32.f32 %v3465
    %v3468 = vcvt.s32.f32 %v3466
    %3469 = vmin.xlane.f32.xlu0 %v3468
    %v3470 = vpop.xlane.xlu0 %3469
    %vm3471 = vcmp.eq.f32.partialorder %v3468, %v3470
    %v3472 = vsel %vm3471, %v3467, inf
    %3473 = vmin.xlane.f32.xlu0 %v3472
    %v3474 = vpop.xlane.xlu0 %3473
    %v3475 = vcvt.f32.s32 %v3474
    %v3476 = vcvt.f32.s32 %v3470
    %v3477 = vshll.u32 %v3476, 16
    %v3478 = vadd.s32 %v3477, %v3475
    %vm3479 = vcmp.eq.s32.totalorder %v1275, %v3478
    %v3480 = vsel %vm3479, 1, 0
    %v3481 = vcvt.s32.f32 %v3480
    %v3483 = vsel %vm1279, %v3481, 0
    %3485 = vmatprep.subr.mxu0 0.0
    %3486 = vmatpush1.msra.mxu0 0.0
    %3487 = vmatprep.subr.mxu0 0.0
    %3488 = vmatpush1.msra.mxu0 0.0
    %3489 = vmatprep.subr.mxu0 0.0
    %3490 = vmatpush1.msra.mxu0 0.0
    %3491 = vmatprep.subr.mxu0 0.0
    %3492 = vmatpush1.msra.mxu0 0.0
    %3493 = vmatprep.subr.mxu0 0.0
    %3494 = vmatpush1.msra.mxu0 0.0
    %3495 = vmatprep.subr.mxu0 0.0
    %3496 = vmatpush1.msra.mxu0 0.0
    %3497 = vmatprep.subr.mxu0 0.0
    %3498 = vmatpush1.msra.mxu0 0.0
    %3499 = vmatprep.subr.mxu0 0.0
    %3500 = vmatpush1.msra.mxu0 0.0
    %3501 = vmatprep.subr.mxu0 0.0
    %3502 = vmatpush1.msra.mxu0 0.0
    %3503 = vmatprep.subr.mxu0 0.0
    %3504 = vmatpush1.msra.mxu0 0.0
    %3505 = vmatprep.subr.mxu0 0.0
    %3506 = vmatpush1.msra.mxu0 0.0
    %3507 = vmatprep.subr.mxu0 0.0
    %3508 = vmatpush1.msra.mxu0 0.0
    %3509 = vmatprep.subr.mxu0 0.0
    %3510 = vmatpush1.msra.mxu0 0.0
    %3511 = vmatprep.subr.mxu0 0.0
    %3512 = vmatpush1.msra.mxu0 0.0
    %3513 = vmatprep.subr.mxu0 0.0
    %3514 = vmatpush1.msra.mxu0 %v1285
    %3515 = vmatprep.subr.mxu0 0.0
    %3516 = vmatpush1.msra.mxu0 %v1000
    %3517 = vmatprep.subr.mxu0 0.0
    %3518 = vmatpush2.msra.mxu0 0.0
    %3519 = vmatprep.subr.mxu0 0.0
    %3520 = vmatpush2.msra.mxu0 0.0
    %3521 = vmatprep.subr.mxu0 0.0
    %3522 = vmatpush2.msra.mxu0 0.0
    %3523 = vmatprep.subr.mxu0 0.0
    %3524 = vmatpush2.msra.mxu0 0.0
    %3525 = vmatprep.subr.mxu0 0.0
    %3526 = vmatpush2.msra.mxu0 0.0
    %3527 = vmatprep.subr.mxu0 0.0
    %3528 = vmatpush2.msra.mxu0 0.0
    %3529 = vmatprep.subr.mxu0 0.0
    %3530 = vmatpush2.msra.mxu0 0.0
    %3531 = vmatprep.subr.mxu0 0.0
    %3532 = vmatpush2.msra.mxu0 0.0
    %3533 = vmatprep.subr.mxu0 0.0
    %3534 = vmatpush2.msra.mxu0 0.0
    %3535 = vmatprep.subr.mxu0 0.0
    %3536 = vmatpush2.msra.mxu0 0.0
    %3537 = vmatprep.subr.mxu0 0.0
    %3538 = vmatpush2.msra.mxu0 0.0
    %3539 = vmatprep.subr.mxu0 0.0
    %3540 = vmatpush2.msra.mxu0 0.0
    %3541 = vmatprep.subr.mxu0 0.0
    %3542 = vmatpush2.msra.mxu0 0.0
    %3543 = vmatprep.subr.mxu0 0.0
    %3544 = vmatpush2.msra.mxu0 0.0
    %3545 = vmatprep.subr.mxu0 0.0
    %3546 = vmatpush2.msra.mxu0 0.0
    %3547 = vmatprep.subr.mxu0 0.0
    %3548 = vmatpush2.msra.mxu0 0.0
    %3549 = vmatprep.mubr.f32.mxu0 0.0
    %3550 = vmatmul.mubr.f32.gmra.mxu0 %v3483
    %v3551 = vpop.f32.mrf.mxu0
    %v3552 = vadd.f32 0.0, %v3551
    %v3553 = vpop.f32.mrf.mxu0
    %3554 = vdwg.mxu0
    %3555 = vmatprep.subr.mxu0 0.0
    %3556 = vmatpush1.msra.mxu0 0.0
    %3557 = vmatprep.subr.mxu0 0.0
    %3558 = vmatpush1.msra.mxu0 0.0
    %3559 = vmatprep.subr.mxu0 0.0
    %3560 = vmatpush1.msra.mxu0 0.0
    %3561 = vmatprep.subr.mxu0 0.0
    %3562 = vmatpush1.msra.mxu0 0.0
    %3563 = vmatprep.subr.mxu0 0.0
    %3564 = vmatpush1.msra.mxu0 0.0
    %3565 = vmatprep.subr.mxu0 0.0
    %3566 = vmatpush1.msra.mxu0 0.0
    %3567 = vmatprep.subr.mxu0 0.0
    %3568 = vmatpush1.msra.mxu0 0.0
    %3569 = vmatprep.subr.mxu0 0.0
    %3570 = vmatpush1.msra.mxu0 0.0
    %3571 = vmatprep.subr.mxu0 0.0
    %3572 = vmatpush1.msra.mxu0 0.0
    %3573 = vmatprep.subr.mxu0 0.0
    %3574 = vmatpush1.msra.mxu0 0.0
    %3575 = vmatprep.subr.mxu0 0.0
    %3576 = vmatpush1.msra.mxu0 0.0
    %3577 = vmatprep.subr.mxu0 0.0
    %3578 = vmatpush1.msra.mxu0 0.0
    %3579 = vmatprep.subr.mxu0 0.0
    %3580 = vmatpush1.msra.mxu0 %v1005
    %3581 = vmatprep.subr.mxu0 0.0
    %3582 = vmatpush1.msra.mxu0 %v1004
    %3583 = vmatprep.subr.mxu0 0.0
    %3584 = vmatpush1.msra.mxu0 %v1003
    %3585 = vmatprep.subr.mxu0 0.0
    %3586 = vmatpush1.msra.mxu0 %v1002
    %3587 = vmatprep.subr.mxu0 0.0
    %3588 = vmatpush2.msra.mxu0 0.0
    %3589 = vmatprep.subr.mxu0 0.0
    %3590 = vmatpush2.msra.mxu0 0.0
    %3591 = vmatprep.subr.mxu0 0.0
    %3592 = vmatpush2.msra.mxu0 0.0
    %3593 = vmatprep.subr.mxu0 0.0
    %3594 = vmatpush2.msra.mxu0 0.0
    %3595 = vmatprep.subr.mxu0 0.0
    %3596 = vmatpush2.msra.mxu0 0.0
    %3597 = vmatprep.subr.mxu0 0.0
    %3598 = vmatpush2.msra.mxu0 0.0
    %3599 = vmatprep.subr.mxu0 0.0
    %3600 = vmatpush2.msra.mxu0 0.0
    %3601 = vmatprep.subr.mxu0 0.0
    %3602 = vmatpush2.msra.mxu0 0.0
    %3603 = vmatprep.subr.mxu0 0.0
    %3604 = vmatpush2.msra.mxu0 0.0
    %3605 = vmatprep.subr.mxu0 0.0
    %3606 = vmatpush2.msra.mxu0 0.0
    %3607 = vmatprep.subr.mxu0 0.0
    %3608 = vmatpush2.msra.mxu0 0.0
    %3609 = vmatprep.subr.mxu0 0.0
    %3610 = vmatpush2.msra.mxu0 0.0
    %3611 = vmatprep.subr.mxu0 0.0
    %3612 = vmatpush2.msra.mxu0 0.0
    %3613 = vmatprep.subr.mxu0 0.0
    %3614 = vmatpush2.msra.mxu0 0.0
    %3615 = vmatprep.subr.mxu0 0.0
    %3616 = vmatpush2.msra.mxu0 0.0
    %3617 = vmatprep.subr.mxu0 0.0
    %3618 = vmatpush2.msra.mxu0 0.0
    %3619 = vmatprep.mubr.f32.mxu0 0.0
    %3620 = vmatmul.mubr.f32.gmra.mxu0 %v3360
    %v3621 = vpop.f32.mrf.mxu0
    %v3622 = vadd.f32 %v1361, %v3621
    %v3623 = vpop.f32.mrf.mxu0
    %3624 = vdwg.mxu0
    %v3625 = vsel %vm1437, %v3622, -inf
    %3626 = vmax.xlane.f32.xlu0 %v3625
    %v3627 = vpop.xlane.xlu0 %3626
    %v3628 = vsub.f32 %v3622, %v3627
    %v3629 = vmul.f32 %v3628, 1.442695
    %v3630 = vpow.pop %v3629
    %v3631 = vsel %vm1437, %v3630, 0.0
    %3632 = vadd.xlane.f32.xlu0 %v3631
    %v3633 = vpop.xlane.xlu0 %3632
    %v3634 = vrcp.pop %v3633
    %v3635 = vmul.f32 %v3630, %v3634
    %v3637 = vsel %vm1363, %v3635, 0
    %3639 = vmatprep.subr.mxu0 0.0
    %3640 = vmatpush1.xpose.msra.mxu0 0.0
    %3641 = vmatprep.subr.mxu0 0.0
    %3642 = vmatpush1.xpose.msra.mxu0 0.0
    %3643 = vmatprep.subr.mxu0 0.0
    %3644 = vmatpush1.xpose.msra.mxu0 0.0
    %3645 = vmatprep.subr.mxu0 0.0
    %3646 = vmatpush1.xpose.msra.mxu0 0.0
    %3647 = vmatprep.subr.mxu0 0.0
    %3648 = vmatpush1.xpose.msra.mxu0 0.0
    %3649 = vmatprep.subr.mxu0 0.0
    %3650 = vmatpush1.xpose.msra.mxu0 0.0
    %3651 = vmatprep.subr.mxu0 0.0
    %3652 = vmatpush1.xpose.msra.mxu0 0.0
    %3653 = vmatprep.subr.mxu0 0.0
    %3654 = vmatpush1.xpose.msra.mxu0 0.0
    %3655 = vmatprep.subr.mxu0 0.0
    %3656 = vmatpush1.xpose.msra.mxu0 %v1474
    %3657 = vmatprep.subr.mxu0 0.0
    %3658 = vmatpush1.xpose.msra.mxu0 %v1471
    %3659 = vmatprep.subr.mxu0 0.0
    %3660 = vmatpush1.xpose.msra.mxu0 %v1468
    %3661 = vmatprep.subr.mxu0 0.0
    %3662 = vmatpush1.xpose.msra.mxu0 %v1465
    %3663 = vmatprep.subr.mxu0 0.0
    %3664 = vmatpush1.xpose.msra.mxu0 %v1462
    %3665 = vmatprep.subr.mxu0 0.0
    %3666 = vmatpush1.xpose.msra.mxu0 %v1459
    %3667 = vmatprep.subr.mxu0 0.0
    %3668 = vmatpush1.xpose.msra.mxu0 %v1456
    %3669 = vmatprep.subr.mxu0 0.0
    %3670 = vmatpush1.xpose.msra.mxu0 %v1453
    %3671 = vmatprep.subr.mxu0 0.0
    %3672 = vmatpush2.xpose.msra.mxu0 0.0
    %3673 = vmatprep.subr.mxu0 0.0
    %3674 = vmatpush2.xpose.msra.mxu0 0.0
    %3675 = vmatprep.subr.mxu0 0.0
    %3676 = vmatpush2.xpose.msra.mxu0 0.0
    %3677 = vmatprep.subr.mxu0 0.0
    %3678 = vmatpush2.xpose.msra.mxu0 0.0
    %3679 = vmatprep.subr.mxu0 0.0
    %3680 = vmatpush2.xpose.msra.mxu0 0.0
    %3681 = vmatprep.subr.mxu0 0.0
    %3682 = vmatpush2.xpose.msra.mxu0 0.0
    %3683 = vmatprep.subr.mxu0 0.0
    %3684 = vmatpush2.xpose.msra.mxu0 0.0
    %3685 = vmatprep.subr.mxu0 0.0
    %3686 = vmatpush2.xpose.msra.mxu0 0.0
    %3687 = vmatprep.subr.mxu0 0.0
    %3688 = vmatpush2.xpose.msra.mxu0 0.0
    %3689 = vmatprep.subr.mxu0 0.0
    %3690 = vmatpush2.xpose.msra.mxu0 0.0
    %3691 = vmatprep.subr.mxu0 0.0
    %3692 = vmatpush2.xpose.msra.mxu0 0.0
    %3693 = vmatprep.subr.mxu0 0.0
    %3694 = vmatpush2.xpose.msra.mxu0 0.0
    %3695 = vmatprep.subr.mxu0 0.0
    %3696 = vmatpush2.xpose.msra.mxu0 0.0
    %3697 = vmatprep.subr.mxu0 0.0
    %3698 = vmatpush2.xpose.msra.mxu0 0.0
    %3699 = vmatprep.subr.mxu0 0.0
    %3700 = vmatpush2.xpose.msra.mxu0 0.0
    %3701 = vmatprep.subr.mxu0 0.0
    %3702 = vmatpush2.xpose.msra.mxu0 0.0
    %3703 = vmatprep.mubr.f32.mxu0 0.0
    %3704 = vmatmul.mubr.f32.gmra.mxu0 %v3637
    %v3705 = vpop.f32.mrf.mxu0
    %v3706 = vadd.f32 0.0, %v3705
    %v3707 = vpop.f32.mrf.mxu0
    %3708 = vdwg.mxu0
    %v3709 = vrot.slane %v3635, 1
    %v3710 = vsel %vm1363, %v3709, 0
    %3712 = vmatprep.subr.mxu0 0.0
    %3713 = vmatpush1.xpose.msra.mxu0 0.0
    %3714 = vmatprep.subr.mxu0 0.0
    %3715 = vmatpush1.xpose.msra.mxu0 0.0
    %3716 = vmatprep.subr.mxu0 0.0
    %3717 = vmatpush1.xpose.msra.mxu0 0.0
    %3718 = vmatprep.subr.mxu0 0.0
    %3719 = vmatpush1.xpose.msra.mxu0 0.0
    %3720 = vmatprep.subr.mxu0 0.0
    %3721 = vmatpush1.xpose.msra.mxu0 0.0
    %3722 = vmatprep.subr.mxu0 0.0
    %3723 = vmatpush1.xpose.msra.mxu0 0.0
    %3724 = vmatprep.subr.mxu0 0.0
    %3725 = vmatpush1.xpose.msra.mxu0 0.0
    %3726 = vmatprep.subr.mxu0 0.0
    %3727 = vmatpush1.xpose.msra.mxu0 0.0
    %3728 = vmatprep.subr.mxu0 0.0
    %3729 = vmatpush1.xpose.msra.mxu0 %v1571
    %3730 = vmatprep.subr.mxu0 0.0
    %3731 = vmatpush1.xpose.msra.mxu0 %v1568
    %3732 = vmatprep.subr.mxu0 0.0
    %3733 = vmatpush1.xpose.msra.mxu0 %v1565
    %3734 = vmatprep.subr.mxu0 0.0
    %3735 = vmatpush1.xpose.msra.mxu0 %v1562
    %3736 = vmatprep.subr.mxu0 0.0
    %3737 = vmatpush1.xpose.msra.mxu0 %v1559
    %3738 = vmatprep.subr.mxu0 0.0
    %3739 = vmatpush1.xpose.msra.mxu0 %v1556
    %3740 = vmatprep.subr.mxu0 0.0
    %3741 = vmatpush1.xpose.msra.mxu0 %v1553
    %3742 = vmatprep.subr.mxu0 0.0
    %3743 = vmatpush1.xpose.msra.mxu0 %v1550
    %3744 = vmatprep.subr.mxu0 0.0
    %3745 = vmatpush2.xpose.msra.mxu0 0.0
    %3746 = vmatprep.subr.mxu0 0.0
    %3747 = vmatpush2.xpose.msra.mxu0 0.0
    %3748 = vmatprep.subr.mxu0 0.0
    %3749 = vmatpush2.xpose.msra.mxu0 0.0
    %3750 = vmatprep.subr.mxu0 0.0
    %3751 = vmatpush2.xpose.msra.mxu0 0.0
    %3752 = vmatprep.subr.mxu0 0.0
    %3753 = vmatpush2.xpose.msra.mxu0 0.0
    %3754 = vmatprep.subr.mxu0 0.0
    %3755 = vmatpush2.xpose.msra.mxu0 0.0
    %3756 = vmatprep.subr.mxu0 0.0
    %3757 = vmatpush2.xpose.msra.mxu0 0.0
    %3758 = vmatprep.subr.mxu0 0.0
    %3759 = vmatpush2.xpose.msra.mxu0 0.0
    %3760 = vmatprep.subr.mxu0 0.0
    %3761 = vmatpush2.xpose.msra.mxu0 0.0
    %3762 = vmatprep.subr.mxu0 0.0
    %3763 = vmatpush2.xpose.msra.mxu0 0.0
    %3764 = vmatprep.subr.mxu0 0.0
    %3765 = vmatpush2.xpose.msra.mxu0 0.0
    %3766 = vmatprep.subr.mxu0 0.0
    %3767 = vmatpush2.xpose.msra.mxu0 0.0
    %3768 = vmatprep.subr.mxu0 0.0
    %3769 = vmatpush2.xpose.msra.mxu0 0.0
    %3770 = vmatprep.subr.mxu0 0.0
    %3771 = vmatpush2.xpose.msra.mxu0 0.0
    %3772 = vmatprep.subr.mxu0 0.0
    %3773 = vmatpush2.xpose.msra.mxu0 0.0
    %3774 = vmatprep.subr.mxu0 0.0
    %3775 = vmatpush2.xpose.msra.mxu0 0.0
    %3776 = vmatprep.mubr.f32.mxu0 0.0
    %3777 = vmatmul.mubr.f32.gmra.mxu0 %v3710
    %v3778 = vpop.f32.mrf.mxu0
    %v3779 = vadd.f32 0.0, %v3778
    %v3780 = vpop.f32.mrf.mxu0
    %3781 = vdwg.mxu0
    %v3783 = vrot.slane %v3779, 7
    %v3785 = vsel %vm1646, %v3706, %v3783
    %3787 = vrot.lane.b32.xlu0 %v3785, 32
    %v3788 = vpop.permute.xlu0 %3787
    %v3790 = vsel %vm1363, %v3552, %v3788
    %v3791 = vsel %vm1653, %v3790, %v3356
    %3792 = vmatprep.subr.mxu0 0.0
    %3793 = vmatpush1.msra.mxu0 %v1196
    %3794 = vmatprep.subr.mxu0 0.0
    %3795 = vmatpush1.msra.mxu0 %v1195
    %3796 = vmatprep.subr.mxu0 0.0
    %3797 = vmatpush1.msra.mxu0 %v1194
    %3798 = vmatprep.subr.mxu0 0.0
    %3799 = vmatpush1.msra.mxu0 %v1193
    %3800 = vmatprep.subr.mxu0 0.0
    %3801 = vmatpush1.msra.mxu0 %v1190
    %3802 = vmatprep.subr.mxu0 0.0
    %3803 = vmatpush1.msra.mxu0 %v1185
    %3804 = vmatprep.subr.mxu0 0.0
    %3805 = vmatpush1.msra.mxu0 %v1180
    %3806 = vmatprep.subr.mxu0 0.0
    %3807 = vmatpush1.msra.mxu0 %v1175
    %3808 = vmatprep.subr.mxu0 0.0
    %3809 = vmatpush1.msra.mxu0 %v1170
    %3810 = vmatprep.subr.mxu0 0.0
    %3811 = vmatpush1.msra.mxu0 %v1165
    %3812 = vmatprep.subr.mxu0 0.0
    %3813 = vmatpush1.msra.mxu0 %v1160
    %3814 = vmatprep.subr.mxu0 0.0
    %3815 = vmatpush1.msra.mxu0 %v1155
    %3816 = vmatprep.subr.mxu0 0.0
    %3817 = vmatpush1.msra.mxu0 %v1150
    %3818 = vmatprep.subr.mxu0 0.0
    %3819 = vmatpush1.msra.mxu0 %v1145
    %3820 = vmatprep.subr.mxu0 0.0
    %3821 = vmatpush1.msra.mxu0 %v1140
    %3822 = vmatprep.subr.mxu0 0.0
    %3823 = vmatpush1.msra.mxu0 %v1135
    %3824 = vmatprep.subr.mxu0 0.0
    %3825 = vmatpush2.msra.mxu0 0.0
    %3826 = vmatprep.subr.mxu0 0.0
    %3827 = vmatpush2.msra.mxu0 0.0
    %3828 = vmatprep.subr.mxu0 0.0
    %3829 = vmatpush2.msra.mxu0 0.0
    %3830 = vmatprep.subr.mxu0 0.0
    %3831 = vmatpush2.msra.mxu0 0.0
    %3832 = vmatprep.subr.mxu0 0.0
    %3833 = vmatpush2.msra.mxu0 0.0
    %3834 = vmatprep.subr.mxu0 0.0
    %3835 = vmatpush2.msra.mxu0 0.0
    %3836 = vmatprep.subr.mxu0 0.0
    %3837 = vmatpush2.msra.mxu0 0.0
    %3838 = vmatprep.subr.mxu0 0.0
    %3839 = vmatpush2.msra.mxu0 0.0
    %3840 = vmatprep.subr.mxu0 0.0
    %3841 = vmatpush2.msra.mxu0 0.0
    %3842 = vmatprep.subr.mxu0 0.0
    %3843 = vmatpush2.msra.mxu0 0.0
    %3844 = vmatprep.subr.mxu0 0.0
    %3845 = vmatpush2.msra.mxu0 0.0
    %3846 = vmatprep.subr.mxu0 0.0
    %3847 = vmatpush2.msra.mxu0 0.0
    %3848 = vmatprep.subr.mxu0 0.0
    %3849 = vmatpush2.msra.mxu0 0.0
    %3850 = vmatprep.subr.mxu0 0.0
    %3851 = vmatpush2.msra.mxu0 0.0
    %3852 = vmatprep.subr.mxu0 0.0
    %3853 = vmatpush2.msra.mxu0 0.0
    %3854 = vmatprep.subr.mxu0 0.0
    %3855 = vmatpush2.msra.mxu0 0.0
    %3856 = vmatprep.mubr.f32.mxu0 0.0
    %3857 = vmatmul.mubr.f32.gmra.mxu0 %v3791
    %v3858 = vpop.f32.mrf.mxu0
    %v3859 = vadd.f32 %v1658, %v3858
    %v3860 = vpop.f32.mrf.mxu0
    %3861 = vdwg.mxu0
    %v3862 = vxor.u32 %v3859, 2147483648
    %v3863 = vmul.f32 %v3862, 1.442695
    %v3864 = vpow.pop %v3863
    %v3865 = vadd.f32 %v3864, 1.0
    %v3866 = vrcp.pop %v3865
    %v3867 = vmul.f32 1.0, %v3866
    %v3868 = vtanh.pop %v3859
    %3869 = vrot.lane.b32.xlu0 %v3356, 64
    %v3870 = vpop.permute.xlu0 %3869
    %v3872 = vmul.f32 %v3867, %v3870
    %3874 = vrot.lane.b32.xlu0 %v3868, 64
    %v3875 = vpop.permute.xlu0 %3874
    %v3877 = vmul.f32 %v3867, %v3875
    %3879 = vrot.lane.b32.xlu0 %v3877, 32
    %v3880 = vpop.permute.xlu0 %3879
    %v3882 = vadd.f32 %v3872, %v3880
    %v3883 = vtanh.pop %v3882
    %3885 = vrot.lane.b32.xlu0 %v3883, 64
    %v3886 = vpop.permute.xlu0 %3885
    %v3888 = vmul.f32 %v3867, %v3886
    %3890 = vrot.lane.b32.xlu0 %v3888, 32
    %v3891 = vpop.permute.xlu0 %3890
    %v3892 = vsel %vm1363, %v3891, 0
    %3894 = vmatprep.subr.mxu0 0.0
    %3895 = vmatpush1.msra.mxu0 0.0
    %3896 = vmatprep.subr.mxu0 0.0
    %3897 = vmatpush1.msra.mxu0 0.0
    %3898 = vmatprep.subr.mxu0 0.0
    %3899 = vmatpush1.msra.mxu0 0.0
    %3900 = vmatprep.subr.mxu0 0.0
    %3901 = vmatpush1.msra.mxu0 0.0
    %3902 = vmatprep.subr.mxu0 0.0
    %3903 = vmatpush1.msra.mxu0 0.0
    %3904 = vmatprep.subr.mxu0 0.0
    %3905 = vmatpush1.msra.mxu0 0.0
    %3906 = vmatprep.subr.mxu0 0.0
    %3907 = vmatpush1.msra.mxu0 0.0
    %3908 = vmatprep.subr.mxu0 0.0
    %3909 = vmatpush1.msra.mxu0 0.0
    %3910 = vmatprep.subr.mxu0 0.0
    %3911 = vmatpush1.msra.mxu0 0.0
    %3912 = vmatprep.subr.mxu0 0.0
    %3913 = vmatpush1.msra.mxu0 0.0
    %3914 = vmatprep.subr.mxu0 0.0
    %3915 = vmatpush1.msra.mxu0 0.0
    %3916 = vmatprep.subr.mxu0 0.0
    %3917 = vmatpush1.msra.mxu0 0.0
    %3918 = vmatprep.subr.mxu0 0.0
    %3919 = vmatpush1.msra.mxu0 %v1010
    %3920 = vmatprep.subr.mxu0 0.0
    %3921 = vmatpush1.msra.mxu0 %v1009
    %3922 = vmatprep.subr.mxu0 0.0
    %3923 = vmatpush1.msra.mxu0 %v1008
    %3924 = vmatprep.subr.mxu0 0.0
    %3925 = vmatpush1.msra.mxu0 %v1007
    %3926 = vmatprep.subr.mxu0 0.0
    %3927 = vmatpush2.msra.mxu0 0.0
    %3928 = vmatprep.subr.mxu0 0.0
    %3929 = vmatpush2.msra.mxu0 0.0
    %3930 = vmatprep.subr.mxu0 0.0
    %3931 = vmatpush2.msra.mxu0 0.0
    %3932 = vmatprep.subr.mxu0 0.0
    %3933 = vmatpush2.msra.mxu0 0.0
    %3934 = vmatprep.subr.mxu0 0.0
    %3935 = vmatpush2.msra.mxu0 0.0
    %3936 = vmatprep.subr.mxu0 0.0
    %3937 = vmatpush2.msra.mxu0 0.0
    %3938 = vmatprep.subr.mxu0 0.0
    %3939 = vmatpush2.msra.mxu0 0.0
    %3940 = vmatprep.subr.mxu0 0.0
    %3941 = vmatpush2.msra.mxu0 0.0
    %3942 = vmatprep.subr.mxu0 0.0
    %3943 = vmatpush2.msra.mxu0 0.0
    %3944 = vmatprep.subr.mxu0 0.0
    %3945 = vmatpush2.msra.mxu0 0.0
    %3946 = vmatprep.subr.mxu0 0.0
    %3947 = vmatpush2.msra.mxu0 0.0
    %3948 = vmatprep.subr.mxu0 0.0
    %3949 = vmatpush2.msra.mxu0 0.0
    %3950 = vmatprep.subr.mxu0 0.0
    %3951 = vmatpush2.msra.mxu0 0.0
    %3952 = vmatprep.subr.mxu0 0.0
    %3953 = vmatpush2.msra.mxu0 0.0
    %3954 = vmatprep.subr.mxu0 0.0
    %3955 = vmatpush2.msra.mxu0 0.0
    %3956 = vmatprep.subr.mxu0 0.0
    %3957 = vmatpush2.msra.mxu0 0.0
    %3958 = vmatprep.mubr.f32.mxu0 0.0
    %3959 = vmatmul.mubr.f32.gmra.mxu0 %v3892
    %v3960 = vpop.f32.mrf.mxu0
    %v3961 = vadd.f32 %v1757, %v3960
    %v3962 = vpop.f32.mrf.mxu0
    %3963 = vdwg.mxu0
    %v3966 = vunpack.c.l.s4 1966171168
    %v3967 = vunpack.c.0.s8 %v3966
    %v3968 = vlaneseq
    %v3969 = vshrl.u32 %v3968, 7
    %v3970 = vsub.s32 %v3967, %v3969
    %v3971 = vrot.slane %v3961, %v3970
    %v3972 = vcombine.high %v3971, %v3971
    %v3974 = vunpack.c.l.s4 1966171168
    %v3975 = vunpack.c.0.s8 %v3974
    %v3976 = vlaneseq
    %v3977 = vshrl.u32 %v3976, 7
    %v3978 = vsub.s32 %v3975, %v3977
    %v3979 = vrot.slane %v3971, %v3978
    %v3981 = vunpack.c.l.s4 1966171168
    %v3982 = vunpack.c.0.s8 %v3981
    %v3983 = vlaneseq
    %v3984 = vshrl.u32 %v3983, 7
    %v3985 = vsub.s32 %v3982, %v3984
    %v3986 = vrot.slane %v3972, %v3985
    %3989 = vst.msk [vmem:[#allocation2 + $0x4] sm:$0x1] %vm1859, %v3979
    %3990 = vst.msk [vmem:[#allocation2 + $0xc] sm:$0x1] %vm1859, %v3986
    %v3991 = vsel %vm1862, %v3961, -inf
    %3992 = vmax.xlane.f32.xlu0 %v3991
    %v3993 = vpop.xlane.xlu0 %3992
    %vm3994 = vcmp.ge.f32.partialorder %v3961, %v3993
    %v3995 = vsel %vm3994, %v1275, 10
    %v3996 = vsel %vm1862, %v3995, 2147483647
    %v3997 = vand.u32 %v3996, 65535
    %v3998 = vshra.s32 %v3996, 16
    %v3999 = vcvt.s32.f32 %v3997
    %v4000 = vcvt.s32.f32 %v3998
    %4001 = vmin.xlane.f32.xlu0 %v4000
    %v4002 = vpop.xlane.xlu0 %4001
    %vm4003 = vcmp.eq.f32.partialorder %v4000, %v4002
    %v4004 = vsel %vm4003, %v3999, inf
    %4005 = vmin.xlane.f32.xlu0 %v4004
    %v4006 = vpop.xlane.xlu0 %4005
    %v4007 = vcvt.f32.s32 %v4006
    %v4008 = vcvt.f32.s32 %v4002
    %v4009 = vshll.u32 %v4008, 16
    %v4010 = vadd.s32 %v4009, %v4007
    %vm4011 = vcmp.eq.s32.totalorder %v1275, %v4010
    %v4012 = vsel %vm4011, 1, 0
    %v4013 = vcvt.s32.f32 %v4012
    %v4015 = vsel %vm1279, %v4013, 0
    %4017 = vmatprep.subr.mxu0 0.0
    %4018 = vmatpush1.msra.mxu0 0.0
    %4019 = vmatprep.subr.mxu0 0.0
    %4020 = vmatpush1.msra.mxu0 0.0
    %4021 = vmatprep.subr.mxu0 0.0
    %4022 = vmatpush1.msra.mxu0 0.0
    %4023 = vmatprep.subr.mxu0 0.0
    %4024 = vmatpush1.msra.mxu0 0.0
    %4025 = vmatprep.subr.mxu0 0.0
    %4026 = vmatpush1.msra.mxu0 0.0
    %4027 = vmatprep.subr.mxu0 0.0
    %4028 = vmatpush1.msra.mxu0 0.0
    %4029 = vmatprep.subr.mxu0 0.0
    %4030 = vmatpush1.msra.mxu0 0.0
    %4031 = vmatprep.subr.mxu0 0.0
    %4032 = vmatpush1.msra.mxu0 0.0
    %4033 = vmatprep.subr.mxu0 0.0
    %4034 = vmatpush1.msra.mxu0 0.0
    %4035 = vmatprep.subr.mxu0 0.0
    %4036 = vmatpush1.msra.mxu0 0.0
    %4037 = vmatprep.subr.mxu0 0.0
    %4038 = vmatpush1.msra.mxu0 0.0
    %4039 = vmatprep.subr.mxu0 0.0
    %4040 = vmatpush1.msra.mxu0 0.0
    %4041 = vmatprep.subr.mxu0 0.0
    %4042 = vmatpush1.msra.mxu0 0.0
    %4043 = vmatprep.subr.mxu0 0.0
    %4044 = vmatpush1.msra.mxu0 0.0
    %4045 = vmatprep.subr.mxu0 0.0
    %4046 = vmatpush1.msra.mxu0 %v1285
    %4047 = vmatprep.subr.mxu0 0.0
    %4048 = vmatpush1.msra.mxu0 %v1000
    %4049 = vmatprep.subr.mxu0 0.0
    %4050 = vmatpush2.msra.mxu0 0.0
    %4051 = vmatprep.subr.mxu0 0.0
    %4052 = vmatpush2.msra.mxu0 0.0
    %4053 = vmatprep.subr.mxu0 0.0
    %4054 = vmatpush2.msra.mxu0 0.0
    %4055 = vmatprep.subr.mxu0 0.0
    %4056 = vmatpush2.msra.mxu0 0.0
    %4057 = vmatprep.subr.mxu0 0.0
    %4058 = vmatpush2.msra.mxu0 0.0
    %4059 = vmatprep.subr.mxu0 0.0
    %4060 = vmatpush2.msra.mxu0 0.0
    %4061 = vmatprep.subr.mxu0 0.0
    %4062 = vmatpush2.msra.mxu0 0.0
    %4063 = vmatprep.subr.mxu0 0.0
    %4064 = vmatpush2.msra.mxu0 0.0
    %4065 = vmatprep.subr.mxu0 0.0
    %4066 = vmatpush2.msra.mxu0 0.0
    %4067 = vmatprep.subr.mxu0 0.0
    %4068 = vmatpush2.msra.mxu0 0.0
    %4069 = vmatprep.subr.mxu0 0.0
    %4070 = vmatpush2.msra.mxu0 0.0
    %4071 = vmatprep.subr.mxu0 0.0
    %4072 = vmatpush2.msra.mxu0 0.0
    %4073 = vmatprep.subr.mxu0 0.0
    %4074 = vmatpush2.msra.mxu0 0.0
    %4075 = vmatprep.subr.mxu0 0.0
    %4076 = vmatpush2.msra.mxu0 0.0
    %4077 = vmatprep.subr.mxu0 0.0
    %4078 = vmatpush2.msra.mxu0 0.0
    %4079 = vmatprep.subr.mxu0 0.0
    %4080 = vmatpush2.msra.mxu0 0.0
    %4081 = vmatprep.mubr.f32.mxu0 0.0
    %4082 = vmatmul.mubr.f32.gmra.mxu0 %v4015
    %v4083 = vpop.f32.mrf.mxu0
    %v4084 = vadd.f32 0.0, %v4083
    %v4085 = vpop.f32.mrf.mxu0
    %4086 = vdwg.mxu0
    %4087 = vmatprep.subr.mxu0 0.0
    %4088 = vmatpush1.msra.mxu0 0.0
    %4089 = vmatprep.subr.mxu0 0.0
    %4090 = vmatpush1.msra.mxu0 0.0
    %4091 = vmatprep.subr.mxu0 0.0
    %4092 = vmatpush1.msra.mxu0 0.0
    %4093 = vmatprep.subr.mxu0 0.0
    %4094 = vmatpush1.msra.mxu0 0.0
    %4095 = vmatprep.subr.mxu0 0.0
    %4096 = vmatpush1.msra.mxu0 0.0
    %4097 = vmatprep.subr.mxu0 0.0
    %4098 = vmatpush1.msra.mxu0 0.0
    %4099 = vmatprep.subr.mxu0 0.0
    %4100 = vmatpush1.msra.mxu0 0.0
    %4101 = vmatprep.subr.mxu0 0.0
    %4102 = vmatpush1.msra.mxu0 0.0
    %4103 = vmatprep.subr.mxu0 0.0
    %4104 = vmatpush1.msra.mxu0 0.0
    %4105 = vmatprep.subr.mxu0 0.0
    %4106 = vmatpush1.msra.mxu0 0.0
    %4107 = vmatprep.subr.mxu0 0.0
    %4108 = vmatpush1.msra.mxu0 0.0
    %4109 = vmatprep.subr.mxu0 0.0
    %4110 = vmatpush1.msra.mxu0 0.0
    %4111 = vmatprep.subr.mxu0 0.0
    %4112 = vmatpush1.msra.mxu0 %v1005
    %4113 = vmatprep.subr.mxu0 0.0
    %4114 = vmatpush1.msra.mxu0 %v1004
    %4115 = vmatprep.subr.mxu0 0.0
    %4116 = vmatpush1.msra.mxu0 %v1003
    %4117 = vmatprep.subr.mxu0 0.0
    %4118 = vmatpush1.msra.mxu0 %v1002
    %4119 = vmatprep.subr.mxu0 0.0
    %4120 = vmatpush2.msra.mxu0 0.0
    %4121 = vmatprep.subr.mxu0 0.0
    %4122 = vmatpush2.msra.mxu0 0.0
    %4123 = vmatprep.subr.mxu0 0.0
    %4124 = vmatpush2.msra.mxu0 0.0
    %4125 = vmatprep.subr.mxu0 0.0
    %4126 = vmatpush2.msra.mxu0 0.0
    %4127 = vmatprep.subr.mxu0 0.0
    %4128 = vmatpush2.msra.mxu0 0.0
    %4129 = vmatprep.subr.mxu0 0.0
    %4130 = vmatpush2.msra.mxu0 0.0
    %4131 = vmatprep.subr.mxu0 0.0
    %4132 = vmatpush2.msra.mxu0 0.0
    %4133 = vmatprep.subr.mxu0 0.0
    %4134 = vmatpush2.msra.mxu0 0.0
    %4135 = vmatprep.subr.mxu0 0.0
    %4136 = vmatpush2.msra.mxu0 0.0
    %4137 = vmatprep.subr.mxu0 0.0
    %4138 = vmatpush2.msra.mxu0 0.0
    %4139 = vmatprep.subr.mxu0 0.0
    %4140 = vmatpush2.msra.mxu0 0.0
    %4141 = vmatprep.subr.mxu0 0.0
    %4142 = vmatpush2.msra.mxu0 0.0
    %4143 = vmatprep.subr.mxu0 0.0
    %4144 = vmatpush2.msra.mxu0 0.0
    %4145 = vmatprep.subr.mxu0 0.0
    %4146 = vmatpush2.msra.mxu0 0.0
    %4147 = vmatprep.subr.mxu0 0.0
    %4148 = vmatpush2.msra.mxu0 0.0
    %4149 = vmatprep.subr.mxu0 0.0
    %4150 = vmatpush2.msra.mxu0 0.0
    %4151 = vmatprep.mubr.f32.mxu0 0.0
    %4152 = vmatmul.mubr.f32.gmra.mxu0 %v3892
    %v4153 = vpop.f32.mrf.mxu0
    %v4154 = vadd.f32 %v1361, %v4153
    %v4155 = vpop.f32.mrf.mxu0
    %4156 = vdwg.mxu0
    %v4157 = vsel %vm1437, %v4154, -inf
    %4158 = vmax.xlane.f32.xlu0 %v4157
    %v4159 = vpop.xlane.xlu0 %4158
    %v4160 = vsub.f32 %v4154, %v4159
    %v4161 = vmul.f32 %v4160, 1.442695
    %v4162 = vpow.pop %v4161
    %v4163 = vsel %vm1437, %v4162, 0.0
    %4164 = vadd.xlane.f32.xlu0 %v4163
    %v4165 = vpop.xlane.xlu0 %4164
    %v4166 = vrcp.pop %v4165
    %v4167 = vmul.f32 %v4162, %v4166
    %v4169 = vsel %vm1363, %v4167, 0
    %4171 = vmatprep.subr.mxu0 0.0
    %4172 = vmatpush1.xpose.msra.mxu0 0.0
    %4173 = vmatprep.subr.mxu0 0.0
    %4174 = vmatpush1.xpose.msra.mxu0 0.0
    %4175 = vmatprep.subr.mxu0 0.0
    %4176 = vmatpush1.xpose.msra.mxu0 0.0
    %4177 = vmatprep.subr.mxu0 0.0
    %4178 = vmatpush1.xpose.msra.mxu0 0.0
    %4179 = vmatprep.subr.mxu0 0.0
    %4180 = vmatpush1.xpose.msra.mxu0 0.0
    %4181 = vmatprep.subr.mxu0 0.0
    %4182 = vmatpush1.xpose.msra.mxu0 0.0
    %4183 = vmatprep.subr.mxu0 0.0
    %4184 = vmatpush1.xpose.msra.mxu0 0.0
    %4185 = vmatprep.subr.mxu0 0.0
    %4186 = vmatpush1.xpose.msra.mxu0 0.0
    %4187 = vmatprep.subr.mxu0 0.0
    %4188 = vmatpush1.xpose.msra.mxu0 %v1474
    %4189 = vmatprep.subr.mxu0 0.0
    %4190 = vmatpush1.xpose.msra.mxu0 %v1471
    %4191 = vmatprep.subr.mxu0 0.0
    %4192 = vmatpush1.xpose.msra.mxu0 %v1468
    %4193 = vmatprep.subr.mxu0 0.0
    %4194 = vmatpush1.xpose.msra.mxu0 %v1465
    %4195 = vmatprep.subr.mxu0 0.0
    %4196 = vmatpush1.xpose.msra.mxu0 %v1462
    %4197 = vmatprep.subr.mxu0 0.0
    %4198 = vmatpush1.xpose.msra.mxu0 %v1459
    %4199 = vmatprep.subr.mxu0 0.0
    %4200 = vmatpush1.xpose.msra.mxu0 %v1456
    %4201 = vmatprep.subr.mxu0 0.0
    %4202 = vmatpush1.xpose.msra.mxu0 %v1453
    %4203 = vmatprep.subr.mxu0 0.0
    %4204 = vmatpush2.xpose.msra.mxu0 0.0
    %4205 = vmatprep.subr.mxu0 0.0
    %4206 = vmatpush2.xpose.msra.mxu0 0.0
    %4207 = vmatprep.subr.mxu0 0.0
    %4208 = vmatpush2.xpose.msra.mxu0 0.0
    %4209 = vmatprep.subr.mxu0 0.0
    %4210 = vmatpush2.xpose.msra.mxu0 0.0
    %4211 = vmatprep.subr.mxu0 0.0
    %4212 = vmatpush2.xpose.msra.mxu0 0.0
    %4213 = vmatprep.subr.mxu0 0.0
    %4214 = vmatpush2.xpose.msra.mxu0 0.0
    %4215 = vmatprep.subr.mxu0 0.0
    %4216 = vmatpush2.xpose.msra.mxu0 0.0
    %4217 = vmatprep.subr.mxu0 0.0
    %4218 = vmatpush2.xpose.msra.mxu0 0.0
    %4219 = vmatprep.subr.mxu0 0.0
    %4220 = vmatpush2.xpose.msra.mxu0 0.0
    %4221 = vmatprep.subr.mxu0 0.0
    %4222 = vmatpush2.xpose.msra.mxu0 0.0
    %4223 = vmatprep.subr.mxu0 0.0
    %4224 = vmatpush2.xpose.msra.mxu0 0.0
    %4225 = vmatprep.subr.mxu0 0.0
    %4226 = vmatpush2.xpose.msra.mxu0 0.0
    %4227 = vmatprep.subr.mxu0 0.0
    %4228 = vmatpush2.xpose.msra.mxu0 0.0
    %4229 = vmatprep.subr.mxu0 0.0
    %4230 = vmatpush2.xpose.msra.mxu0 0.0
    %4231 = vmatprep.subr.mxu0 0.0
    %4232 = vmatpush2.xpose.msra.mxu0 0.0
    %4233 = vmatprep.subr.mxu0 0.0
    %4234 = vmatpush2.xpose.msra.mxu0 0.0
    %4235 = vmatprep.mubr.f32.mxu0 0.0
    %4236 = vmatmul.mubr.f32.gmra.mxu0 %v4169
    %v4237 = vpop.f32.mrf.mxu0
    %v4238 = vadd.f32 0.0, %v4237
    %v4239 = vpop.f32.mrf.mxu0
    %4240 = vdwg.mxu0
    %v4241 = vrot.slane %v4167, 1
    %v4242 = vsel %vm1363, %v4241, 0
    %4244 = vmatprep.subr.mxu0 0.0
    %4245 = vmatpush1.xpose.msra.mxu0 0.0
    %4246 = vmatprep.subr.mxu0 0.0
    %4247 = vmatpush1.xpose.msra.mxu0 0.0
    %4248 = vmatprep.subr.mxu0 0.0
    %4249 = vmatpush1.xpose.msra.mxu0 0.0
    %4250 = vmatprep.subr.mxu0 0.0
    %4251 = vmatpush1.xpose.msra.mxu0 0.0
    %4252 = vmatprep.subr.mxu0 0.0
    %4253 = vmatpush1.xpose.msra.mxu0 0.0
    %4254 = vmatprep.subr.mxu0 0.0
    %4255 = vmatpush1.xpose.msra.mxu0 0.0
    %4256 = vmatprep.subr.mxu0 0.0
    %4257 = vmatpush1.xpose.msra.mxu0 0.0
    %4258 = vmatprep.subr.mxu0 0.0
    %4259 = vmatpush1.xpose.msra.mxu0 0.0
    %4260 = vmatprep.subr.mxu0 0.0
    %4261 = vmatpush1.xpose.msra.mxu0 %v1571
    %4262 = vmatprep.subr.mxu0 0.0
    %4263 = vmatpush1.xpose.msra.mxu0 %v1568
    %4264 = vmatprep.subr.mxu0 0.0
    %4265 = vmatpush1.xpose.msra.mxu0 %v1565
    %4266 = vmatprep.subr.mxu0 0.0
    %4267 = vmatpush1.xpose.msra.mxu0 %v1562
    %4268 = vmatprep.subr.mxu0 0.0
    %4269 = vmatpush1.xpose.msra.mxu0 %v1559
    %4270 = vmatprep.subr.mxu0 0.0
    %4271 = vmatpush1.xpose.msra.mxu0 %v1556
    %4272 = vmatprep.subr.mxu0 0.0
    %4273 = vmatpush1.xpose.msra.mxu0 %v1553
    %4274 = vmatprep.subr.mxu0 0.0
    %4275 = vmatpush1.xpose.msra.mxu0 %v1550
    %4276 = vmatprep.subr.mxu0 0.0
    %4277 = vmatpush2.xpose.msra.mxu0 0.0
    %4278 = vmatprep.subr.mxu0 0.0
    %4279 = vmatpush2.xpose.msra.mxu0 0.0
    %4280 = vmatprep.subr.mxu0 0.0
    %4281 = vmatpush2.xpose.msra.mxu0 0.0
    %4282 = vmatprep.subr.mxu0 0.0
    %4283 = vmatpush2.xpose.msra.mxu0 0.0
    %4284 = vmatprep.subr.mxu0 0.0
    %4285 = vmatpush2.xpose.msra.mxu0 0.0
    %4286 = vmatprep.subr.mxu0 0.0
    %4287 = vmatpush2.xpose.msra.mxu0 0.0
    %4288 = vmatprep.subr.mxu0 0.0
    %4289 = vmatpush2.xpose.msra.mxu0 0.0
    %4290 = vmatprep.subr.mxu0 0.0
    %4291 = vmatpush2.xpose.msra.mxu0 0.0
    %4292 = vmatprep.subr.mxu0 0.0
    %4293 = vmatpush2.xpose.msra.mxu0 0.0
    %4294 = vmatprep.subr.mxu0 0.0
    %4295 = vmatpush2.xpose.msra.mxu0 0.0
    %4296 = vmatprep.subr.mxu0 0.0
    %4297 = vmatpush2.xpose.msra.mxu0 0.0
    %4298 = vmatprep.subr.mxu0 0.0
    %4299 = vmatpush2.xpose.msra.mxu0 0.0
    %4300 = vmatprep.subr.mxu0 0.0
    %4301 = vmatpush2.xpose.msra.mxu0 0.0
    %4302 = vmatprep.subr.mxu0 0.0
    %4303 = vmatpush2.xpose.msra.mxu0 0.0
    %4304 = vmatprep.subr.mxu0 0.0
    %4305 = vmatpush2.xpose.msra.mxu0 0.0
    %4306 = vmatprep.subr.mxu0 0.0
    %4307 = vmatpush2.xpose.msra.mxu0 0.0
    %4308 = vmatprep.mubr.f32.mxu0 0.0
    %4309 = vmatmul.mubr.f32.gmra.mxu0 %v4242
    %v4310 = vpop.f32.mrf.mxu0
    %v4311 = vadd.f32 0.0, %v4310
    %v4312 = vpop.f32.mrf.mxu0
    %4313 = vdwg.mxu0
    %v4315 = vrot.slane %v4311, 7
    %v4317 = vsel %vm1646, %v4238, %v4315
    %4319 = vrot.lane.b32.xlu0 %v4317, 32
    %v4320 = vpop.permute.xlu0 %4319
    %v4322 = vsel %vm1363, %v4084, %v4320
    %v4323 = vsel %vm1653, %v4322, %v3888
    %4324 = vmatprep.subr.mxu0 0.0
    %4325 = vmatpush1.msra.mxu0 %v1196
    %4326 = vmatprep.subr.mxu0 0.0
    %4327 = vmatpush1.msra.mxu0 %v1195
    %4328 = vmatprep.subr.mxu0 0.0
    %4329 = vmatpush1.msra.mxu0 %v1194
    %4330 = vmatprep.subr.mxu0 0.0
    %4331 = vmatpush1.msra.mxu0 %v1193
    %4332 = vmatprep.subr.mxu0 0.0
    %4333 = vmatpush1.msra.mxu0 %v1190
    %4334 = vmatprep.subr.mxu0 0.0
    %4335 = vmatpush1.msra.mxu0 %v1185
    %4336 = vmatprep.subr.mxu0 0.0
    %4337 = vmatpush1.msra.mxu0 %v1180
    %4338 = vmatprep.subr.mxu0 0.0
    %4339 = vmatpush1.msra.mxu0 %v1175
    %4340 = vmatprep.subr.mxu0 0.0
    %4341 = vmatpush1.msra.mxu0 %v1170
    %4342 = vmatprep.subr.mxu0 0.0
    %4343 = vmatpush1.msra.mxu0 %v1165
    %4344 = vmatprep.subr.mxu0 0.0
    %4345 = vmatpush1.msra.mxu0 %v1160
    %4346 = vmatprep.subr.mxu0 0.0
    %4347 = vmatpush1.msra.mxu0 %v1155
    %4348 = vmatprep.subr.mxu0 0.0
    %4349 = vmatpush1.msra.mxu0 %v1150
    %4350 = vmatprep.subr.mxu0 0.0
    %4351 = vmatpush1.msra.mxu0 %v1145
    %4352 = vmatprep.subr.mxu0 0.0
    %4353 = vmatpush1.msra.mxu0 %v1140
    %4354 = vmatprep.subr.mxu0 0.0
    %4355 = vmatpush1.msra.mxu0 %v1135
    %4356 = vmatprep.subr.mxu0 0.0
    %4357 = vmatpush2.msra.mxu0 0.0
    %4358 = vmatprep.subr.mxu0 0.0
    %4359 = vmatpush2.msra.mxu0 0.0
    %4360 = vmatprep.subr.mxu0 0.0
    %4361 = vmatpush2.msra.mxu0 0.0
    %4362 = vmatprep.subr.mxu0 0.0
    %4363 = vmatpush2.msra.mxu0 0.0
    %4364 = vmatprep.subr.mxu0 0.0
    %4365 = vmatpush2.msra.mxu0 0.0
    %4366 = vmatprep.subr.mxu0 0.0
    %4367 = vmatpush2.msra.mxu0 0.0
    %4368 = vmatprep.subr.mxu0 0.0
    %4369 = vmatpush2.msra.mxu0 0.0
    %4370 = vmatprep.subr.mxu0 0.0
    %4371 = vmatpush2.msra.mxu0 0.0
    %4372 = vmatprep.subr.mxu0 0.0
    %4373 = vmatpush2.msra.mxu0 0.0
    %4374 = vmatprep.subr.mxu0 0.0
    %4375 = vmatpush2.msra.mxu0 0.0
    %4376 = vmatprep.subr.mxu0 0.0
    %4377 = vmatpush2.msra.mxu0 0.0
    %4378 = vmatprep.subr.mxu0 0.0
    %4379 = vmatpush2.msra.mxu0 0.0
    %4380 = vmatprep.subr.mxu0 0.0
    %4381 = vmatpush2.msra.mxu0 0.0
    %4382 = vmatprep.subr.mxu0 0.0
    %4383 = vmatpush2.msra.mxu0 0.0
    %4384 = vmatprep.subr.mxu0 0.0
    %4385 = vmatpush2.msra.mxu0 0.0
    %4386 = vmatprep.subr.mxu0 0.0
    %4387 = vmatpush2.msra.mxu0 0.0
    %4388 = vmatprep.mubr.f32.mxu0 0.0
    %4389 = vmatmul.mubr.f32.gmra.mxu0 %v4323
    %v4390 = vpop.f32.mrf.mxu0
    %v4391 = vadd.f32 %v1658, %v4390
    %v4392 = vpop.f32.mrf.mxu0
    %4393 = vdwg.mxu0
    %v4394 = vxor.u32 %v4391, 2147483648
    %v4395 = vmul.f32 %v4394, 1.442695
    %v4396 = vpow.pop %v4395
    %v4397 = vadd.f32 %v4396, 1.0
    %v4398 = vrcp.pop %v4397
    %v4399 = vmul.f32 1.0, %v4398
    %v4400 = vtanh.pop %v4391
    %4401 = vrot.lane.b32.xlu0 %v3888, 64
    %v4402 = vpop.permute.xlu0 %4401
    %v4404 = vmul.f32 %v4399, %v4402
    %4406 = vrot.lane.b32.xlu0 %v4400, 64
    %v4407 = vpop.permute.xlu0 %4406
    %v4409 = vmul.f32 %v4399, %v4407
    %4411 = vrot.lane.b32.xlu0 %v4409, 32
    %v4412 = vpop.permute.xlu0 %4411
    %v4414 = vadd.f32 %v4404, %v4412
    %v4415 = vtanh.pop %v4414
    %4417 = vrot.lane.b32.xlu0 %v4415, 64
    %v4418 = vpop.permute.xlu0 %4417
    %v4420 = vmul.f32 %v4399, %v4418
    %4422 = vrot.lane.b32.xlu0 %v4420, 32
    %v4423 = vpop.permute.xlu0 %4422
    %v4424 = vsel %vm1363, %v4423, 0
    %4426 = vmatprep.subr.mxu0 0.0
    %4427 = vmatpush1.msra.mxu0 0.0
    %4428 = vmatprep.subr.mxu0 0.0
    %4429 = vmatpush1.msra.mxu0 0.0
    %4430 = vmatprep.subr.mxu0 0.0
    %4431 = vmatpush1.msra.mxu0 0.0
    %4432 = vmatprep.subr.mxu0 0.0
    %4433 = vmatpush1.msra.mxu0 0.0
    %4434 = vmatprep.subr.mxu0 0.0
    %4435 = vmatpush1.msra.mxu0 0.0
    %4436 = vmatprep.subr.mxu0 0.0
    %4437 = vmatpush1.msra.mxu0 0.0
    %4438 = vmatprep.subr.mxu0 0.0
    %4439 = vmatpush1.msra.mxu0 0.0
    %4440 = vmatprep.subr.mxu0 0.0
    %4441 = vmatpush1.msra.mxu0 0.0
    %4442 = vmatprep.subr.mxu0 0.0
    %4443 = vmatpush1.msra.mxu0 0.0
    %4444 = vmatprep.subr.mxu0 0.0
    %4445 = vmatpush1.msra.mxu0 0.0
    %4446 = vmatprep.subr.mxu0 0.0
    %4447 = vmatpush1.msra.mxu0 0.0
    %4448 = vmatprep.subr.mxu0 0.0
    %4449 = vmatpush1.msra.mxu0 0.0
    %4450 = vmatprep.subr.mxu0 0.0
    %4451 = vmatpush1.msra.mxu0 %v1010
    %4452 = vmatprep.subr.mxu0 0.0
    %4453 = vmatpush1.msra.mxu0 %v1009
    %4454 = vmatprep.subr.mxu0 0.0
    %4455 = vmatpush1.msra.mxu0 %v1008
    %4456 = vmatprep.subr.mxu0 0.0
    %4457 = vmatpush1.msra.mxu0 %v1007
    %4458 = vmatprep.subr.mxu0 0.0
    %4459 = vmatpush2.msra.mxu0 0.0
    %4460 = vmatprep.subr.mxu0 0.0
    %4461 = vmatpush2.msra.mxu0 0.0
    %4462 = vmatprep.subr.mxu0 0.0
    %4463 = vmatpush2.msra.mxu0 0.0
    %4464 = vmatprep.subr.mxu0 0.0
    %4465 = vmatpush2.msra.mxu0 0.0
    %4466 = vmatprep.subr.mxu0 0.0
    %4467 = vmatpush2.msra.mxu0 0.0
    %4468 = vmatprep.subr.mxu0 0.0
    %4469 = vmatpush2.msra.mxu0 0.0
    %4470 = vmatprep.subr.mxu0 0.0
    %4471 = vmatpush2.msra.mxu0 0.0
    %4472 = vmatprep.subr.mxu0 0.0
    %4473 = vmatpush2.msra.mxu0 0.0
    %4474 = vmatprep.subr.mxu0 0.0
    %4475 = vmatpush2.msra.mxu0 0.0
    %4476 = vmatprep.subr.mxu0 0.0
    %4477 = vmatpush2.msra.mxu0 0.0
    %4478 = vmatprep.subr.mxu0 0.0
    %4479 = vmatpush2.msra.mxu0 0.0
    %4480 = vmatprep.subr.mxu0 0.0
    %4481 = vmatpush2.msra.mxu0 0.0
    %4482 = vmatprep.subr.mxu0 0.0
    %4483 = vmatpush2.msra.mxu0 0.0
    %4484 = vmatprep.subr.mxu0 0.0
    %4485 = vmatpush2.msra.mxu0 0.0
    %4486 = vmatprep.subr.mxu0 0.0
    %4487 = vmatpush2.msra.mxu0 0.0
    %4488 = vmatprep.subr.mxu0 0.0
    %4489 = vmatpush2.msra.mxu0 0.0
    %4490 = vmatprep.mubr.f32.mxu0 0.0
    %4491 = vmatmul.mubr.f32.gmra.mxu0 %v4424
    %v4492 = vpop.f32.mrf.mxu0
    %v4493 = vadd.f32 %v1757, %v4492
    %v4494 = vpop.f32.mrf.mxu0
    %4495 = vdwg.mxu0
    %v4498 = vunpack.c.l.s4 1966171168
    %v4499 = vunpack.c.0.s8 %v4498
    %v4500 = vlaneseq
    %v4501 = vshrl.u32 %v4500, 7
    %v4502 = vsub.s32 %v4499, %v4501
    %v4503 = vrot.slane %v4493, %v4502
    %v4504 = vcombine.high %v4503, %v4503
    %v4506 = vunpack.c.l.s4 1966171168
    %v4507 = vunpack.c.0.s8 %v4506
    %v4508 = vlaneseq
    %v4509 = vshrl.u32 %v4508, 7
    %v4510 = vsub.s32 %v4507, %v4509
    %v4511 = vrot.slane %v4503, %v4510
    %v4513 = vunpack.c.l.s4 1966171168
    %v4514 = vunpack.c.0.s8 %v4513
    %v4515 = vlaneseq
    %v4516 = vshrl.u32 %v4515, 7
    %v4517 = vsub.s32 %v4514, %v4516
    %v4518 = vrot.slane %v4504, %v4517
    %4521 = vst.msk [vmem:[#allocation2 + $0x5] sm:$0x1] %vm1859, %v4511
    %4522 = vst.msk [vmem:[#allocation2 + $0xd] sm:$0x1] %vm1859, %v4518
    %v4523 = vsel %vm1862, %v4493, -inf
    %4524 = vmax.xlane.f32.xlu0 %v4523
    %v4525 = vpop.xlane.xlu0 %4524
    %vm4526 = vcmp.ge.f32.partialorder %v4493, %v4525
    %v4527 = vsel %vm4526, %v1275, 10
    %v4528 = vsel %vm1862, %v4527, 2147483647
    %v4529 = vand.u32 %v4528, 65535
    %v4530 = vshra.s32 %v4528, 16
    %v4531 = vcvt.s32.f32 %v4529
    %v4532 = vcvt.s32.f32 %v4530
    %4533 = vmin.xlane.f32.xlu0 %v4532
    %v4534 = vpop.xlane.xlu0 %4533
    %vm4535 = vcmp.eq.f32.partialorder %v4532, %v4534
    %v4536 = vsel %vm4535, %v4531, inf
    %4537 = vmin.xlane.f32.xlu0 %v4536
    %v4538 = vpop.xlane.xlu0 %4537
    %v4539 = vcvt.f32.s32 %v4538
    %v4540 = vcvt.f32.s32 %v4534
    %v4541 = vshll.u32 %v4540, 16
    %v4542 = vadd.s32 %v4541, %v4539
    %vm4543 = vcmp.eq.s32.totalorder %v1275, %v4542
    %v4544 = vsel %vm4543, 1, 0
    %v4545 = vcvt.s32.f32 %v4544
    %v4547 = vsel %vm1279, %v4545, 0
    %4549 = vmatprep.subr.mxu0 0.0
    %4550 = vmatpush1.msra.mxu0 0.0
    %4551 = vmatprep.subr.mxu0 0.0
    %4552 = vmatpush1.msra.mxu0 0.0
    %4553 = vmatprep.subr.mxu0 0.0
    %4554 = vmatpush1.msra.mxu0 0.0
    %4555 = vmatprep.subr.mxu0 0.0
    %4556 = vmatpush1.msra.mxu0 0.0
    %4557 = vmatprep.subr.mxu0 0.0
    %4558 = vmatpush1.msra.mxu0 0.0
    %4559 = vmatprep.subr.mxu0 0.0
    %4560 = vmatpush1.msra.mxu0 0.0
    %4561 = vmatprep.subr.mxu0 0.0
    %4562 = vmatpush1.msra.mxu0 0.0
    %4563 = vmatprep.subr.mxu0 0.0
    %4564 = vmatpush1.msra.mxu0 0.0
    %4565 = vmatprep.subr.mxu0 0.0
    %4566 = vmatpush1.msra.mxu0 0.0
    %4567 = vmatprep.subr.mxu0 0.0
    %4568 = vmatpush1.msra.mxu0 0.0
    %4569 = vmatprep.subr.mxu0 0.0
    %4570 = vmatpush1.msra.mxu0 0.0
    %4571 = vmatprep.subr.mxu0 0.0
    %4572 = vmatpush1.msra.mxu0 0.0
    %4573 = vmatprep.subr.mxu0 0.0
    %4574 = vmatpush1.msra.mxu0 0.0
    %4575 = vmatprep.subr.mxu0 0.0
    %4576 = vmatpush1.msra.mxu0 0.0
    %4577 = vmatprep.subr.mxu0 0.0
    %4578 = vmatpush1.msra.mxu0 %v1285
    %4579 = vmatprep.subr.mxu0 0.0
    %4580 = vmatpush1.msra.mxu0 %v1000
    %4581 = vmatprep.subr.mxu0 0.0
    %4582 = vmatpush2.msra.mxu0 0.0
    %4583 = vmatprep.subr.mxu0 0.0
    %4584 = vmatpush2.msra.mxu0 0.0
    %4585 = vmatprep.subr.mxu0 0.0
    %4586 = vmatpush2.msra.mxu0 0.0
    %4587 = vmatprep.subr.mxu0 0.0
    %4588 = vmatpush2.msra.mxu0 0.0
    %4589 = vmatprep.subr.mxu0 0.0
    %4590 = vmatpush2.msra.mxu0 0.0
    %4591 = vmatprep.subr.mxu0 0.0
    %4592 = vmatpush2.msra.mxu0 0.0
    %4593 = vmatprep.subr.mxu0 0.0
    %4594 = vmatpush2.msra.mxu0 0.0
    %4595 = vmatprep.subr.mxu0 0.0
    %4596 = vmatpush2.msra.mxu0 0.0
    %4597 = vmatprep.subr.mxu0 0.0
    %4598 = vmatpush2.msra.mxu0 0.0
    %4599 = vmatprep.subr.mxu0 0.0
    %4600 = vmatpush2.msra.mxu0 0.0
    %4601 = vmatprep.subr.mxu0 0.0
    %4602 = vmatpush2.msra.mxu0 0.0
    %4603 = vmatprep.subr.mxu0 0.0
    %4604 = vmatpush2.msra.mxu0 0.0
    %4605 = vmatprep.subr.mxu0 0.0
    %4606 = vmatpush2.msra.mxu0 0.0
    %4607 = vmatprep.subr.mxu0 0.0
    %4608 = vmatpush2.msra.mxu0 0.0
    %4609 = vmatprep.subr.mxu0 0.0
    %4610 = vmatpush2.msra.mxu0 0.0
    %4611 = vmatprep.subr.mxu0 0.0
    %4612 = vmatpush2.msra.mxu0 0.0
    %4613 = vmatprep.mubr.f32.mxu0 0.0
    %4614 = vmatmul.mubr.f32.gmra.mxu0 %v4547
    %v4615 = vpop.f32.mrf.mxu0
    %v4616 = vadd.f32 0.0, %v4615
    %v4617 = vpop.f32.mrf.mxu0
    %4618 = vdwg.mxu0
    %4619 = vmatprep.subr.mxu0 0.0
    %4620 = vmatpush1.msra.mxu0 0.0
    %4621 = vmatprep.subr.mxu0 0.0
    %4622 = vmatpush1.msra.mxu0 0.0
    %4623 = vmatprep.subr.mxu0 0.0
    %4624 = vmatpush1.msra.mxu0 0.0
    %4625 = vmatprep.subr.mxu0 0.0
    %4626 = vmatpush1.msra.mxu0 0.0
    %4627 = vmatprep.subr.mxu0 0.0
    %4628 = vmatpush1.msra.mxu0 0.0
    %4629 = vmatprep.subr.mxu0 0.0
    %4630 = vmatpush1.msra.mxu0 0.0
    %4631 = vmatprep.subr.mxu0 0.0
    %4632 = vmatpush1.msra.mxu0 0.0
    %4633 = vmatprep.subr.mxu0 0.0
    %4634 = vmatpush1.msra.mxu0 0.0
    %4635 = vmatprep.subr.mxu0 0.0
    %4636 = vmatpush1.msra.mxu0 0.0
    %4637 = vmatprep.subr.mxu0 0.0
    %4638 = vmatpush1.msra.mxu0 0.0
    %4639 = vmatprep.subr.mxu0 0.0
    %4640 = vmatpush1.msra.mxu0 0.0
    %4641 = vmatprep.subr.mxu0 0.0
    %4642 = vmatpush1.msra.mxu0 0.0
    %4643 = vmatprep.subr.mxu0 0.0
    %4644 = vmatpush1.msra.mxu0 %v1005
    %4645 = vmatprep.subr.mxu0 0.0
    %4646 = vmatpush1.msra.mxu0 %v1004
    %4647 = vmatprep.subr.mxu0 0.0
    %4648 = vmatpush1.msra.mxu0 %v1003
    %4649 = vmatprep.subr.mxu0 0.0
    %4650 = vmatpush1.msra.mxu0 %v1002
    %4651 = vmatprep.subr.mxu0 0.0
    %4652 = vmatpush2.msra.mxu0 0.0
    %4653 = vmatprep.subr.mxu0 0.0
    %4654 = vmatpush2.msra.mxu0 0.0
    %4655 = vmatprep.subr.mxu0 0.0
    %4656 = vmatpush2.msra.mxu0 0.0
    %4657 = vmatprep.subr.mxu0 0.0
    %4658 = vmatpush2.msra.mxu0 0.0
    %4659 = vmatprep.subr.mxu0 0.0
    %4660 = vmatpush2.msra.mxu0 0.0
    %4661 = vmatprep.subr.mxu0 0.0
    %4662 = vmatpush2.msra.mxu0 0.0
    %4663 = vmatprep.subr.mxu0 0.0
    %4664 = vmatpush2.msra.mxu0 0.0
    %4665 = vmatprep.subr.mxu0 0.0
    %4666 = vmatpush2.msra.mxu0 0.0
    %4667 = vmatprep.subr.mxu0 0.0
    %4668 = vmatpush2.msra.mxu0 0.0
    %4669 = vmatprep.subr.mxu0 0.0
    %4670 = vmatpush2.msra.mxu0 0.0
    %4671 = vmatprep.subr.mxu0 0.0
    %4672 = vmatpush2.msra.mxu0 0.0
    %4673 = vmatprep.subr.mxu0 0.0
    %4674 = vmatpush2.msra.mxu0 0.0
    %4675 = vmatprep.subr.mxu0 0.0
    %4676 = vmatpush2.msra.mxu0 0.0
    %4677 = vmatprep.subr.mxu0 0.0
    %4678 = vmatpush2.msra.mxu0 0.0
    %4679 = vmatprep.subr.mxu0 0.0
    %4680 = vmatpush2.msra.mxu0 0.0
    %4681 = vmatprep.subr.mxu0 0.0
    %4682 = vmatpush2.msra.mxu0 0.0
    %4683 = vmatprep.mubr.f32.mxu0 0.0
    %4684 = vmatmul.mubr.f32.gmra.mxu0 %v4424
    %v4685 = vpop.f32.mrf.mxu0
    %v4686 = vadd.f32 %v1361, %v4685
    %v4687 = vpop.f32.mrf.mxu0
    %4688 = vdwg.mxu0
    %v4689 = vsel %vm1437, %v4686, -inf
    %4690 = vmax.xlane.f32.xlu0 %v4689
    %v4691 = vpop.xlane.xlu0 %4690
    %v4692 = vsub.f32 %v4686, %v4691
    %v4693 = vmul.f32 %v4692, 1.442695
    %v4694 = vpow.pop %v4693
    %v4695 = vsel %vm1437, %v4694, 0.0
    %4696 = vadd.xlane.f32.xlu0 %v4695
    %v4697 = vpop.xlane.xlu0 %4696
    %v4698 = vrcp.pop %v4697
    %v4699 = vmul.f32 %v4694, %v4698
    %v4701 = vsel %vm1363, %v4699, 0
    %4703 = vmatprep.subr.mxu0 0.0
    %4704 = vmatpush1.xpose.msra.mxu0 0.0
    %4705 = vmatprep.subr.mxu0 0.0
    %4706 = vmatpush1.xpose.msra.mxu0 0.0
    %4707 = vmatprep.subr.mxu0 0.0
    %4708 = vmatpush1.xpose.msra.mxu0 0.0
    %4709 = vmatprep.subr.mxu0 0.0
    %4710 = vmatpush1.xpose.msra.mxu0 0.0
    %4711 = vmatprep.subr.mxu0 0.0
    %4712 = vmatpush1.xpose.msra.mxu0 0.0
    %4713 = vmatprep.subr.mxu0 0.0
    %4714 = vmatpush1.xpose.msra.mxu0 0.0
    %4715 = vmatprep.subr.mxu0 0.0
    %4716 = vmatpush1.xpose.msra.mxu0 0.0
    %4717 = vmatprep.subr.mxu0 0.0
    %4718 = vmatpush1.xpose.msra.mxu0 0.0
    %4719 = vmatprep.subr.mxu0 0.0
    %4720 = vmatpush1.xpose.msra.mxu0 %v1474
    %4721 = vmatprep.subr.mxu0 0.0
    %4722 = vmatpush1.xpose.msra.mxu0 %v1471
    %4723 = vmatprep.subr.mxu0 0.0
    %4724 = vmatpush1.xpose.msra.mxu0 %v1468
    %4725 = vmatprep.subr.mxu0 0.0
    %4726 = vmatpush1.xpose.msra.mxu0 %v1465
    %4727 = vmatprep.subr.mxu0 0.0
    %4728 = vmatpush1.xpose.msra.mxu0 %v1462
    %4729 = vmatprep.subr.mxu0 0.0
    %4730 = vmatpush1.xpose.msra.mxu0 %v1459
    %4731 = vmatprep.subr.mxu0 0.0
    %4732 = vmatpush1.xpose.msra.mxu0 %v1456
    %4733 = vmatprep.subr.mxu0 0.0
    %4734 = vmatpush1.xpose.msra.mxu0 %v1453
    %4735 = vmatprep.subr.mxu0 0.0
    %4736 = vmatpush2.xpose.msra.mxu0 0.0
    %4737 = vmatprep.subr.mxu0 0.0
    %4738 = vmatpush2.xpose.msra.mxu0 0.0
    %4739 = vmatprep.subr.mxu0 0.0
    %4740 = vmatpush2.xpose.msra.mxu0 0.0
    %4741 = vmatprep.subr.mxu0 0.0
    %4742 = vmatpush2.xpose.msra.mxu0 0.0
    %4743 = vmatprep.subr.mxu0 0.0
    %4744 = vmatpush2.xpose.msra.mxu0 0.0
    %4745 = vmatprep.subr.mxu0 0.0
    %4746 = vmatpush2.xpose.msra.mxu0 0.0
    %4747 = vmatprep.subr.mxu0 0.0
    %4748 = vmatpush2.xpose.msra.mxu0 0.0
    %4749 = vmatprep.subr.mxu0 0.0
    %4750 = vmatpush2.xpose.msra.mxu0 0.0
    %4751 = vmatprep.subr.mxu0 0.0
    %4752 = vmatpush2.xpose.msra.mxu0 0.0
    %4753 = vmatprep.subr.mxu0 0.0
    %4754 = vmatpush2.xpose.msra.mxu0 0.0
    %4755 = vmatprep.subr.mxu0 0.0
    %4756 = vmatpush2.xpose.msra.mxu0 0.0
    %4757 = vmatprep.subr.mxu0 0.0
    %4758 = vmatpush2.xpose.msra.mxu0 0.0
    %4759 = vmatprep.subr.mxu0 0.0
    %4760 = vmatpush2.xpose.msra.mxu0 0.0
    %4761 = vmatprep.subr.mxu0 0.0
    %4762 = vmatpush2.xpose.msra.mxu0 0.0
    %4763 = vmatprep.subr.mxu0 0.0
    %4764 = vmatpush2.xpose.msra.mxu0 0.0
    %4765 = vmatprep.subr.mxu0 0.0
    %4766 = vmatpush2.xpose.msra.mxu0 0.0
    %4767 = vmatprep.mubr.f32.mxu0 0.0
    %4768 = vmatmul.mubr.f32.gmra.mxu0 %v4701
    %v4769 = vpop.f32.mrf.mxu0
    %v4770 = vadd.f32 0.0, %v4769
    %v4771 = vpop.f32.mrf.mxu0
    %4772 = vdwg.mxu0
    %v4773 = vrot.slane %v4699, 1
    %v4774 = vsel %vm1363, %v4773, 0
    %4776 = vmatprep.subr.mxu0 0.0
    %4777 = vmatpush1.xpose.msra.mxu0 0.0
    %4778 = vmatprep.subr.mxu0 0.0
    %4779 = vmatpush1.xpose.msra.mxu0 0.0
    %4780 = vmatprep.subr.mxu0 0.0
    %4781 = vmatpush1.xpose.msra.mxu0 0.0
    %4782 = vmatprep.subr.mxu0 0.0
    %4783 = vmatpush1.xpose.msra.mxu0 0.0
    %4784 = vmatprep.subr.mxu0 0.0
    %4785 = vmatpush1.xpose.msra.mxu0 0.0
    %4786 = vmatprep.subr.mxu0 0.0
    %4787 = vmatpush1.xpose.msra.mxu0 0.0
    %4788 = vmatprep.subr.mxu0 0.0
    %4789 = vmatpush1.xpose.msra.mxu0 0.0
    %4790 = vmatprep.subr.mxu0 0.0
    %4791 = vmatpush1.xpose.msra.mxu0 0.0
    %4792 = vmatprep.subr.mxu0 0.0
    %4793 = vmatpush1.xpose.msra.mxu0 %v1571
    %4794 = vmatprep.subr.mxu0 0.0
    %4795 = vmatpush1.xpose.msra.mxu0 %v1568
    %4796 = vmatprep.subr.mxu0 0.0
    %4797 = vmatpush1.xpose.msra.mxu0 %v1565
    %4798 = vmatprep.subr.mxu0 0.0
    %4799 = vmatpush1.xpose.msra.mxu0 %v1562
    %4800 = vmatprep.subr.mxu0 0.0
    %4801 = vmatpush1.xpose.msra.mxu0 %v1559
    %4802 = vmatprep.subr.mxu0 0.0
    %4803 = vmatpush1.xpose.msra.mxu0 %v1556
    %4804 = vmatprep.subr.mxu0 0.0
    %4805 = vmatpush1.xpose.msra.mxu0 %v1553
    %4806 = vmatprep.subr.mxu0 0.0
    %4807 = vmatpush1.xpose.msra.mxu0 %v1550
    %4808 = vmatprep.subr.mxu0 0.0
    %4809 = vmatpush2.xpose.msra.mxu0 0.0
    %4810 = vmatprep.subr.mxu0 0.0
    %4811 = vmatpush2.xpose.msra.mxu0 0.0
    %4812 = vmatprep.subr.mxu0 0.0
    %4813 = vmatpush2.xpose.msra.mxu0 0.0
    %4814 = vmatprep.subr.mxu0 0.0
    %4815 = vmatpush2.xpose.msra.mxu0 0.0
    %4816 = vmatprep.subr.mxu0 0.0
    %4817 = vmatpush2.xpose.msra.mxu0 0.0
    %4818 = vmatprep.subr.mxu0 0.0
    %4819 = vmatpush2.xpose.msra.mxu0 0.0
    %4820 = vmatprep.subr.mxu0 0.0
    %4821 = vmatpush2.xpose.msra.mxu0 0.0
    %4822 = vmatprep.subr.mxu0 0.0
    %4823 = vmatpush2.xpose.msra.mxu0 0.0
    %4824 = vmatprep.subr.mxu0 0.0
    %4825 = vmatpush2.xpose.msra.mxu0 0.0
    %4826 = vmatprep.subr.mxu0 0.0
    %4827 = vmatpush2.xpose.msra.mxu0 0.0
    %4828 = vmatprep.subr.mxu0 0.0
    %4829 = vmatpush2.xpose.msra.mxu0 0.0
    %4830 = vmatprep.subr.mxu0 0.0
    %4831 = vmatpush2.xpose.msra.mxu0 0.0
    %4832 = vmatprep.subr.mxu0 0.0
    %4833 = vmatpush2.xpose.msra.mxu0 0.0
    %4834 = vmatprep.subr.mxu0 0.0
    %4835 = vmatpush2.xpose.msra.mxu0 0.0
    %4836 = vmatprep.subr.mxu0 0.0
    %4837 = vmatpush2.xpose.msra.mxu0 0.0
    %4838 = vmatprep.subr.mxu0 0.0
    %4839 = vmatpush2.xpose.msra.mxu0 0.0
    %4840 = vmatprep.mubr.f32.mxu0 0.0
    %4841 = vmatmul.mubr.f32.gmra.mxu0 %v4774
    %v4842 = vpop.f32.mrf.mxu0
    %v4843 = vadd.f32 0.0, %v4842
    %v4844 = vpop.f32.mrf.mxu0
    %4845 = vdwg.mxu0
    %v4847 = vrot.slane %v4843, 7
    %v4849 = vsel %vm1646, %v4770, %v4847
    %4851 = vrot.lane.b32.xlu0 %v4849, 32
    %v4852 = vpop.permute.xlu0 %4851
    %v4854 = vsel %vm1363, %v4616, %v4852
    %v4855 = vsel %vm1653, %v4854, %v4420
    %4856 = vmatprep.subr.mxu0 0.0
    %4857 = vmatpush1.msra.mxu0 %v1196
    %4858 = vmatprep.subr.mxu0 0.0
    %4859 = vmatpush1.msra.mxu0 %v1195
    %4860 = vmatprep.subr.mxu0 0.0
    %4861 = vmatpush1.msra.mxu0 %v1194
    %4862 = vmatprep.subr.mxu0 0.0
    %4863 = vmatpush1.msra.mxu0 %v1193
    %4864 = vmatprep.subr.mxu0 0.0
    %4865 = vmatpush1.msra.mxu0 %v1190
    %4866 = vmatprep.subr.mxu0 0.0
    %4867 = vmatpush1.msra.mxu0 %v1185
    %4868 = vmatprep.subr.mxu0 0.0
    %4869 = vmatpush1.msra.mxu0 %v1180
    %4870 = vmatprep.subr.mxu0 0.0
    %4871 = vmatpush1.msra.mxu0 %v1175
    %4872 = vmatprep.subr.mxu0 0.0
    %4873 = vmatpush1.msra.mxu0 %v1170
    %4874 = vmatprep.subr.mxu0 0.0
    %4875 = vmatpush1.msra.mxu0 %v1165
    %4876 = vmatprep.subr.mxu0 0.0
    %4877 = vmatpush1.msra.mxu0 %v1160
    %4878 = vmatprep.subr.mxu0 0.0
    %4879 = vmatpush1.msra.mxu0 %v1155
    %4880 = vmatprep.subr.mxu0 0.0
    %4881 = vmatpush1.msra.mxu0 %v1150
    %4882 = vmatprep.subr.mxu0 0.0
    %4883 = vmatpush1.msra.mxu0 %v1145
    %4884 = vmatprep.subr.mxu0 0.0
    %4885 = vmatpush1.msra.mxu0 %v1140
    %4886 = vmatprep.subr.mxu0 0.0
    %4887 = vmatpush1.msra.mxu0 %v1135
    %4888 = vmatprep.subr.mxu0 0.0
    %4889 = vmatpush2.msra.mxu0 0.0
    %4890 = vmatprep.subr.mxu0 0.0
    %4891 = vmatpush2.msra.mxu0 0.0
    %4892 = vmatprep.subr.mxu0 0.0
    %4893 = vmatpush2.msra.mxu0 0.0
    %4894 = vmatprep.subr.mxu0 0.0
    %4895 = vmatpush2.msra.mxu0 0.0
    %4896 = vmatprep.subr.mxu0 0.0
    %4897 = vmatpush2.msra.mxu0 0.0
    %4898 = vmatprep.subr.mxu0 0.0
    %4899 = vmatpush2.msra.mxu0 0.0
    %4900 = vmatprep.subr.mxu0 0.0
    %4901 = vmatpush2.msra.mxu0 0.0
    %4902 = vmatprep.subr.mxu0 0.0
    %4903 = vmatpush2.msra.mxu0 0.0
    %4904 = vmatprep.subr.mxu0 0.0
    %4905 = vmatpush2.msra.mxu0 0.0
    %4906 = vmatprep.subr.mxu0 0.0
    %4907 = vmatpush2.msra.mxu0 0.0
    %4908 = vmatprep.subr.mxu0 0.0
    %4909 = vmatpush2.msra.mxu0 0.0
    %4910 = vmatprep.subr.mxu0 0.0
    %4911 = vmatpush2.msra.mxu0 0.0
    %4912 = vmatprep.subr.mxu0 0.0
    %4913 = vmatpush2.msra.mxu0 0.0
    %4914 = vmatprep.subr.mxu0 0.0
    %4915 = vmatpush2.msra.mxu0 0.0
    %4916 = vmatprep.subr.mxu0 0.0
    %4917 = vmatpush2.msra.mxu0 0.0
    %4918 = vmatprep.subr.mxu0 0.0
    %4919 = vmatpush2.msra.mxu0 0.0
    %4920 = vmatprep.mubr.f32.mxu0 0.0
    %4921 = vmatmul.mubr.f32.gmra.mxu0 %v4855
    %v4922 = vpop.f32.mrf.mxu0
    %v4923 = vadd.f32 %v1658, %v4922
    %v4924 = vpop.f32.mrf.mxu0
    %4925 = vdwg.mxu0
    %v4926 = vxor.u32 %v4923, 2147483648
    %v4927 = vmul.f32 %v4926, 1.442695
    %v4928 = vpow.pop %v4927
    %v4929 = vadd.f32 %v4928, 1.0
    %v4930 = vrcp.pop %v4929
    %v4931 = vmul.f32 1.0, %v4930
    %v4932 = vtanh.pop %v4923
    %4933 = vrot.lane.b32.xlu0 %v4420, 64
    %v4934 = vpop.permute.xlu0 %4933
    %v4936 = vmul.f32 %v4931, %v4934
    %4938 = vrot.lane.b32.xlu0 %v4932, 64
    %v4939 = vpop.permute.xlu0 %4938
    %v4941 = vmul.f32 %v4931, %v4939
    %4943 = vrot.lane.b32.xlu0 %v4941, 32
    %v4944 = vpop.permute.xlu0 %4943
    %v4946 = vadd.f32 %v4936, %v4944
    %v4947 = vtanh.pop %v4946
    %4949 = vrot.lane.b32.xlu0 %v4947, 64
    %v4950 = vpop.permute.xlu0 %4949
    %v4952 = vmul.f32 %v4931, %v4950
    %4954 = vrot.lane.b32.xlu0 %v4952, 32
    %v4955 = vpop.permute.xlu0 %4954
    %v4956 = vsel %vm1363, %v4955, 0
    %4958 = vmatprep.subr.mxu0 0.0
    %4959 = vmatpush1.msra.mxu0 0.0
    %4960 = vmatprep.subr.mxu0 0.0
    %4961 = vmatpush1.msra.mxu0 0.0
    %4962 = vmatprep.subr.mxu0 0.0
    %4963 = vmatpush1.msra.mxu0 0.0
    %4964 = vmatprep.subr.mxu0 0.0
    %4965 = vmatpush1.msra.mxu0 0.0
    %4966 = vmatprep.subr.mxu0 0.0
    %4967 = vmatpush1.msra.mxu0 0.0
    %4968 = vmatprep.subr.mxu0 0.0
    %4969 = vmatpush1.msra.mxu0 0.0
    %4970 = vmatprep.subr.mxu0 0.0
    %4971 = vmatpush1.msra.mxu0 0.0
    %4972 = vmatprep.subr.mxu0 0.0
    %4973 = vmatpush1.msra.mxu0 0.0
    %4974 = vmatprep.subr.mxu0 0.0
    %4975 = vmatpush1.msra.mxu0 0.0
    %4976 = vmatprep.subr.mxu0 0.0
    %4977 = vmatpush1.msra.mxu0 0.0
    %4978 = vmatprep.subr.mxu0 0.0
    %4979 = vmatpush1.msra.mxu0 0.0
    %4980 = vmatprep.subr.mxu0 0.0
    %4981 = vmatpush1.msra.mxu0 0.0
    %4982 = vmatprep.subr.mxu0 0.0
    %4983 = vmatpush1.msra.mxu0 %v1010
    %4984 = vmatprep.subr.mxu0 0.0
    %4985 = vmatpush1.msra.mxu0 %v1009
    %4986 = vmatprep.subr.mxu0 0.0
    %4987 = vmatpush1.msra.mxu0 %v1008
    %4988 = vmatprep.subr.mxu0 0.0
    %4989 = vmatpush1.msra.mxu0 %v1007
    %4990 = vmatprep.subr.mxu0 0.0
    %4991 = vmatpush2.msra.mxu0 0.0
    %4992 = vmatprep.subr.mxu0 0.0
    %4993 = vmatpush2.msra.mxu0 0.0
    %4994 = vmatprep.subr.mxu0 0.0
    %4995 = vmatpush2.msra.mxu0 0.0
    %4996 = vmatprep.subr.mxu0 0.0
    %4997 = vmatpush2.msra.mxu0 0.0
    %4998 = vmatprep.subr.mxu0 0.0
    %4999 = vmatpush2.msra.mxu0 0.0
    %5000 = vmatprep.subr.mxu0 0.0
    %5001 = vmatpush2.msra.mxu0 0.0
    %5002 = vmatprep.subr.mxu0 0.0
    %5003 = vmatpush2.msra.mxu0 0.0
    %5004 = vmatprep.subr.mxu0 0.0
    %5005 = vmatpush2.msra.mxu0 0.0
    %5006 = vmatprep.subr.mxu0 0.0
    %5007 = vmatpush2.msra.mxu0 0.0
    %5008 = vmatprep.subr.mxu0 0.0
    %5009 = vmatpush2.msra.mxu0 0.0
    %5010 = vmatprep.subr.mxu0 0.0
    %5011 = vmatpush2.msra.mxu0 0.0
    %5012 = vmatprep.subr.mxu0 0.0
    %5013 = vmatpush2.msra.mxu0 0.0
    %5014 = vmatprep.subr.mxu0 0.0
    %5015 = vmatpush2.msra.mxu0 0.0
    %5016 = vmatprep.subr.mxu0 0.0
    %5017 = vmatpush2.msra.mxu0 0.0
    %5018 = vmatprep.subr.mxu0 0.0
    %5019 = vmatpush2.msra.mxu0 0.0
    %5020 = vmatprep.subr.mxu0 0.0
    %5021 = vmatpush2.msra.mxu0 0.0
    %5022 = vmatprep.mubr.f32.mxu0 0.0
    %5023 = vmatmul.mubr.f32.gmra.mxu0 %v4956
    %v5024 = vpop.f32.mrf.mxu0
    %v5025 = vadd.f32 %v1757, %v5024
    %v5026 = vpop.f32.mrf.mxu0
    %5027 = vdwg.mxu0
    %v5030 = vunpack.c.l.s4 1966171168
    %v5031 = vunpack.c.0.s8 %v5030
    %v5032 = vlaneseq
    %v5033 = vshrl.u32 %v5032, 7
    %v5034 = vsub.s32 %v5031, %v5033
    %v5035 = vrot.slane %v5025, %v5034
    %v5036 = vcombine.high %v5035, %v5035
    %v5038 = vunpack.c.l.s4 1966171168
    %v5039 = vunpack.c.0.s8 %v5038
    %v5040 = vlaneseq
    %v5041 = vshrl.u32 %v5040, 7
    %v5042 = vsub.s32 %v5039, %v5041
    %v5043 = vrot.slane %v5035, %v5042
    %v5045 = vunpack.c.l.s4 1966171168
    %v5046 = vunpack.c.0.s8 %v5045
    %v5047 = vlaneseq
    %v5048 = vshrl.u32 %v5047, 7
    %v5049 = vsub.s32 %v5046, %v5048
    %v5050 = vrot.slane %v5036, %v5049
    %5053 = vst.msk [vmem:[#allocation2 + $0x6] sm:$0x1] %vm1859, %v5043
    %5054 = vst.msk [vmem:[#allocation2 + $0xe] sm:$0x1] %vm1859, %v5050
    %v5055 = vsel %vm1862, %v5025, -inf
    %5056 = vmax.xlane.f32.xlu0 %v5055
    %v5057 = vpop.xlane.xlu0 %5056
    %vm5058 = vcmp.ge.f32.partialorder %v5025, %v5057
    %v5059 = vsel %vm5058, %v1275, 10
    %v5060 = vsel %vm1862, %v5059, 2147483647
    %v5061 = vand.u32 %v5060, 65535
    %v5062 = vshra.s32 %v5060, 16
    %v5063 = vcvt.s32.f32 %v5061
    %v5064 = vcvt.s32.f32 %v5062
    %5065 = vmin.xlane.f32.xlu0 %v5064
    %v5066 = vpop.xlane.xlu0 %5065
    %vm5067 = vcmp.eq.f32.partialorder %v5064, %v5066
    %v5068 = vsel %vm5067, %v5063, inf
    %5069 = vmin.xlane.f32.xlu0 %v5068
    %v5070 = vpop.xlane.xlu0 %5069
    %v5071 = vcvt.f32.s32 %v5070
    %v5072 = vcvt.f32.s32 %v5066
    %v5073 = vshll.u32 %v5072, 16
    %v5074 = vadd.s32 %v5073, %v5071
    %vm5075 = vcmp.eq.s32.totalorder %v1275, %v5074
    %v5076 = vsel %vm5075, 1, 0
    %v5077 = vcvt.s32.f32 %v5076
    %v5079 = vsel %vm1279, %v5077, 0
    %5081 = vmatprep.subr.mxu0 0.0
    %5082 = vmatpush1.msra.mxu0 0.0
    %5083 = vmatprep.subr.mxu0 0.0
    %5084 = vmatpush1.msra.mxu0 0.0
    %5085 = vmatprep.subr.mxu0 0.0
    %5086 = vmatpush1.msra.mxu0 0.0
    %5087 = vmatprep.subr.mxu0 0.0
    %5088 = vmatpush1.msra.mxu0 0.0
    %5089 = vmatprep.subr.mxu0 0.0
    %5090 = vmatpush1.msra.mxu0 0.0
    %5091 = vmatprep.subr.mxu0 0.0
    %5092 = vmatpush1.msra.mxu0 0.0
    %5093 = vmatprep.subr.mxu0 0.0
    %5094 = vmatpush1.msra.mxu0 0.0
    %5095 = vmatprep.subr.mxu0 0.0
    %5096 = vmatpush1.msra.mxu0 0.0
    %5097 = vmatprep.subr.mxu0 0.0
    %5098 = vmatpush1.msra.mxu0 0.0
    %5099 = vmatprep.subr.mxu0 0.0
    %5100 = vmatpush1.msra.mxu0 0.0
    %5101 = vmatprep.subr.mxu0 0.0
    %5102 = vmatpush1.msra.mxu0 0.0
    %5103 = vmatprep.subr.mxu0 0.0
    %5104 = vmatpush1.msra.mxu0 0.0
    %5105 = vmatprep.subr.mxu0 0.0
    %5106 = vmatpush1.msra.mxu0 0.0
    %5107 = vmatprep.subr.mxu0 0.0
    %5108 = vmatpush1.msra.mxu0 0.0
    %5109 = vmatprep.subr.mxu0 0.0
    %5110 = vmatpush1.msra.mxu0 %v1285
    %5111 = vmatprep.subr.mxu0 0.0
    %5112 = vmatpush1.msra.mxu0 %v1000
    %5113 = vmatprep.subr.mxu0 0.0
    %5114 = vmatpush2.msra.mxu0 0.0
    %5115 = vmatprep.subr.mxu0 0.0
    %5116 = vmatpush2.msra.mxu0 0.0
    %5117 = vmatprep.subr.mxu0 0.0
    %5118 = vmatpush2.msra.mxu0 0.0
    %5119 = vmatprep.subr.mxu0 0.0
    %5120 = vmatpush2.msra.mxu0 0.0
    %5121 = vmatprep.subr.mxu0 0.0
    %5122 = vmatpush2.msra.mxu0 0.0
    %5123 = vmatprep.subr.mxu0 0.0
    %5124 = vmatpush2.msra.mxu0 0.0
    %5125 = vmatprep.subr.mxu0 0.0
    %5126 = vmatpush2.msra.mxu0 0.0
    %5127 = vmatprep.subr.mxu0 0.0
    %5128 = vmatpush2.msra.mxu0 0.0
    %5129 = vmatprep.subr.mxu0 0.0
    %5130 = vmatpush2.msra.mxu0 0.0
    %5131 = vmatprep.subr.mxu0 0.0
    %5132 = vmatpush2.msra.mxu0 0.0
    %5133 = vmatprep.subr.mxu0 0.0
    %5134 = vmatpush2.msra.mxu0 0.0
    %5135 = vmatprep.subr.mxu0 0.0
    %5136 = vmatpush2.msra.mxu0 0.0
    %5137 = vmatprep.subr.mxu0 0.0
    %5138 = vmatpush2.msra.mxu0 0.0
    %5139 = vmatprep.subr.mxu0 0.0
    %5140 = vmatpush2.msra.mxu0 0.0
    %5141 = vmatprep.subr.mxu0 0.0
    %5142 = vmatpush2.msra.mxu0 0.0
    %5143 = vmatprep.subr.mxu0 0.0
    %5144 = vmatpush2.msra.mxu0 0.0
    %5145 = vmatprep.mubr.f32.mxu0 0.0
    %5146 = vmatmul.mubr.f32.gmra.mxu0 %v5079
    %v5147 = vpop.f32.mrf.mxu0
    %v5148 = vadd.f32 0.0, %v5147
    %v5149 = vpop.f32.mrf.mxu0
    %5150 = vdwg.mxu0
    %5151 = vmatprep.subr.mxu0 0.0
    %5152 = vmatpush1.msra.mxu0 0.0
    %5153 = vmatprep.subr.mxu0 0.0
    %5154 = vmatpush1.msra.mxu0 0.0
    %5155 = vmatprep.subr.mxu0 0.0
    %5156 = vmatpush1.msra.mxu0 0.0
    %5157 = vmatprep.subr.mxu0 0.0
    %5158 = vmatpush1.msra.mxu0 0.0
    %5159 = vmatprep.subr.mxu0 0.0
    %5160 = vmatpush1.msra.mxu0 0.0
    %5161 = vmatprep.subr.mxu0 0.0
    %5162 = vmatpush1.msra.mxu0 0.0
    %5163 = vmatprep.subr.mxu0 0.0
    %5164 = vmatpush1.msra.mxu0 0.0
    %5165 = vmatprep.subr.mxu0 0.0
    %5166 = vmatpush1.msra.mxu0 0.0
    %5167 = vmatprep.subr.mxu0 0.0
    %5168 = vmatpush1.msra.mxu0 0.0
    %5169 = vmatprep.subr.mxu0 0.0
    %5170 = vmatpush1.msra.mxu0 0.0
    %5171 = vmatprep.subr.mxu0 0.0
    %5172 = vmatpush1.msra.mxu0 0.0
    %5173 = vmatprep.subr.mxu0 0.0
    %5174 = vmatpush1.msra.mxu0 0.0
    %5175 = vmatprep.subr.mxu0 0.0
    %5176 = vmatpush1.msra.mxu0 %v1005
    %5177 = vmatprep.subr.mxu0 0.0
    %5178 = vmatpush1.msra.mxu0 %v1004
    %5179 = vmatprep.subr.mxu0 0.0
    %5180 = vmatpush1.msra.mxu0 %v1003
    %5181 = vmatprep.subr.mxu0 0.0
    %5182 = vmatpush1.msra.mxu0 %v1002
    %5183 = vmatprep.subr.mxu0 0.0
    %5184 = vmatpush2.msra.mxu0 0.0
    %5185 = vmatprep.subr.mxu0 0.0
    %5186 = vmatpush2.msra.mxu0 0.0
    %5187 = vmatprep.subr.mxu0 0.0
    %5188 = vmatpush2.msra.mxu0 0.0
    %5189 = vmatprep.subr.mxu0 0.0
    %5190 = vmatpush2.msra.mxu0 0.0
    %5191 = vmatprep.subr.mxu0 0.0
    %5192 = vmatpush2.msra.mxu0 0.0
    %5193 = vmatprep.subr.mxu0 0.0
    %5194 = vmatpush2.msra.mxu0 0.0
    %5195 = vmatprep.subr.mxu0 0.0
    %5196 = vmatpush2.msra.mxu0 0.0
    %5197 = vmatprep.subr.mxu0 0.0
    %5198 = vmatpush2.msra.mxu0 0.0
    %5199 = vmatprep.subr.mxu0 0.0
    %5200 = vmatpush2.msra.mxu0 0.0
    %5201 = vmatprep.subr.mxu0 0.0
    %5202 = vmatpush2.msra.mxu0 0.0
    %5203 = vmatprep.subr.mxu0 0.0
    %5204 = vmatpush2.msra.mxu0 0.0
    %5205 = vmatprep.subr.mxu0 0.0
    %5206 = vmatpush2.msra.mxu0 0.0
    %5207 = vmatprep.subr.mxu0 0.0
    %5208 = vmatpush2.msra.mxu0 0.0
    %5209 = vmatprep.subr.mxu0 0.0
    %5210 = vmatpush2.msra.mxu0 0.0
    %5211 = vmatprep.subr.mxu0 0.0
    %5212 = vmatpush2.msra.mxu0 0.0
    %5213 = vmatprep.subr.mxu0 0.0
    %5214 = vmatpush2.msra.mxu0 0.0
    %5215 = vmatprep.mubr.f32.mxu0 0.0
    %5216 = vmatmul.mubr.f32.gmra.mxu0 %v4956
    %v5217 = vpop.f32.mrf.mxu0
    %v5218 = vadd.f32 %v1361, %v5217
    %v5219 = vpop.f32.mrf.mxu0
    %5220 = vdwg.mxu0
    %v5221 = vsel %vm1437, %v5218, -inf
    %5222 = vmax.xlane.f32.xlu0 %v5221
    %v5223 = vpop.xlane.xlu0 %5222
    %v5224 = vsub.f32 %v5218, %v5223
    %v5225 = vmul.f32 %v5224, 1.442695
    %v5226 = vpow.pop %v5225
    %v5227 = vsel %vm1437, %v5226, 0.0
    %5228 = vadd.xlane.f32.xlu0 %v5227
    %v5229 = vpop.xlane.xlu0 %5228
    %v5230 = vrcp.pop %v5229
    %v5231 = vmul.f32 %v5226, %v5230
    %v5233 = vsel %vm1363, %v5231, 0
    %5235 = vmatprep.subr.mxu0 0.0
    %5236 = vmatpush1.xpose.msra.mxu0 0.0
    %5237 = vmatprep.subr.mxu0 0.0
    %5238 = vmatpush1.xpose.msra.mxu0 0.0
    %5239 = vmatprep.subr.mxu0 0.0
    %5240 = vmatpush1.xpose.msra.mxu0 0.0
    %5241 = vmatprep.subr.mxu0 0.0
    %5242 = vmatpush1.xpose.msra.mxu0 0.0
    %5243 = vmatprep.subr.mxu0 0.0
    %5244 = vmatpush1.xpose.msra.mxu0 0.0
    %5245 = vmatprep.subr.mxu0 0.0
    %5246 = vmatpush1.xpose.msra.mxu0 0.0
    %5247 = vmatprep.subr.mxu0 0.0
    %5248 = vmatpush1.xpose.msra.mxu0 0.0
    %5249 = vmatprep.subr.mxu0 0.0
    %5250 = vmatpush1.xpose.msra.mxu0 0.0
    %5251 = vmatprep.subr.mxu0 0.0
    %5252 = vmatpush1.xpose.msra.mxu0 %v1474
    %5253 = vmatprep.subr.mxu0 0.0
    %5254 = vmatpush1.xpose.msra.mxu0 %v1471
    %5255 = vmatprep.subr.mxu0 0.0
    %5256 = vmatpush1.xpose.msra.mxu0 %v1468
    %5257 = vmatprep.subr.mxu0 0.0
    %5258 = vmatpush1.xpose.msra.mxu0 %v1465
    %5259 = vmatprep.subr.mxu0 0.0
    %5260 = vmatpush1.xpose.msra.mxu0 %v1462
    %5261 = vmatprep.subr.mxu0 0.0
    %5262 = vmatpush1.xpose.msra.mxu0 %v1459
    %5263 = vmatprep.subr.mxu0 0.0
    %5264 = vmatpush1.xpose.msra.mxu0 %v1456
    %5265 = vmatprep.subr.mxu0 0.0
    %5266 = vmatpush1.xpose.msra.mxu0 %v1453
    %5267 = vmatprep.subr.mxu0 0.0
    %5268 = vmatpush2.xpose.msra.mxu0 0.0
    %5269 = vmatprep.subr.mxu0 0.0
    %5270 = vmatpush2.xpose.msra.mxu0 0.0
    %5271 = vmatprep.subr.mxu0 0.0
    %5272 = vmatpush2.xpose.msra.mxu0 0.0
    %5273 = vmatprep.subr.mxu0 0.0
    %5274 = vmatpush2.xpose.msra.mxu0 0.0
    %5275 = vmatprep.subr.mxu0 0.0
    %5276 = vmatpush2.xpose.msra.mxu0 0.0
    %5277 = vmatprep.subr.mxu0 0.0
    %5278 = vmatpush2.xpose.msra.mxu0 0.0
    %5279 = vmatprep.subr.mxu0 0.0
    %5280 = vmatpush2.xpose.msra.mxu0 0.0
    %5281 = vmatprep.subr.mxu0 0.0
    %5282 = vmatpush2.xpose.msra.mxu0 0.0
    %5283 = vmatprep.subr.mxu0 0.0
    %5284 = vmatpush2.xpose.msra.mxu0 0.0
    %5285 = vmatprep.subr.mxu0 0.0
    %5286 = vmatpush2.xpose.msra.mxu0 0.0
    %5287 = vmatprep.subr.mxu0 0.0
    %5288 = vmatpush2.xpose.msra.mxu0 0.0
    %5289 = vmatprep.subr.mxu0 0.0
    %5290 = vmatpush2.xpose.msra.mxu0 0.0
    %5291 = vmatprep.subr.mxu0 0.0
    %5292 = vmatpush2.xpose.msra.mxu0 0.0
    %5293 = vmatprep.subr.mxu0 0.0
    %5294 = vmatpush2.xpose.msra.mxu0 0.0
    %5295 = vmatprep.subr.mxu0 0.0
    %5296 = vmatpush2.xpose.msra.mxu0 0.0
    %5297 = vmatprep.subr.mxu0 0.0
    %5298 = vmatpush2.xpose.msra.mxu0 0.0
    %5299 = vmatprep.mubr.f32.mxu0 0.0
    %5300 = vmatmul.mubr.f32.gmra.mxu0 %v5233
    %v5301 = vpop.f32.mrf.mxu0
    %v5302 = vadd.f32 0.0, %v5301
    %v5303 = vpop.f32.mrf.mxu0
    %5304 = vdwg.mxu0
    %v5305 = vrot.slane %v5231, 1
    %v5306 = vsel %vm1363, %v5305, 0
    %5308 = vmatprep.subr.mxu0 0.0
    %5309 = vmatpush1.xpose.msra.mxu0 0.0
    %5310 = vmatprep.subr.mxu0 0.0
    %5311 = vmatpush1.xpose.msra.mxu0 0.0
    %5312 = vmatprep.subr.mxu0 0.0
    %5313 = vmatpush1.xpose.msra.mxu0 0.0
    %5314 = vmatprep.subr.mxu0 0.0
    %5315 = vmatpush1.xpose.msra.mxu0 0.0
    %5316 = vmatprep.subr.mxu0 0.0
    %5317 = vmatpush1.xpose.msra.mxu0 0.0
    %5318 = vmatprep.subr.mxu0 0.0
    %5319 = vmatpush1.xpose.msra.mxu0 0.0
    %5320 = vmatprep.subr.mxu0 0.0
    %5321 = vmatpush1.xpose.msra.mxu0 0.0
    %5322 = vmatprep.subr.mxu0 0.0
    %5323 = vmatpush1.xpose.msra.mxu0 0.0
    %5324 = vmatprep.subr.mxu0 0.0
    %5325 = vmatpush1.xpose.msra.mxu0 %v1571
    %5326 = vmatprep.subr.mxu0 0.0
    %5327 = vmatpush1.xpose.msra.mxu0 %v1568
    %5328 = vmatprep.subr.mxu0 0.0
    %5329 = vmatpush1.xpose.msra.mxu0 %v1565
    %5330 = vmatprep.subr.mxu0 0.0
    %5331 = vmatpush1.xpose.msra.mxu0 %v1562
    %5332 = vmatprep.subr.mxu0 0.0
    %5333 = vmatpush1.xpose.msra.mxu0 %v1559
    %5334 = vmatprep.subr.mxu0 0.0
    %5335 = vmatpush1.xpose.msra.mxu0 %v1556
    %5336 = vmatprep.subr.mxu0 0.0
    %5337 = vmatpush1.xpose.msra.mxu0 %v1553
    %5338 = vmatprep.subr.mxu0 0.0
    %5339 = vmatpush1.xpose.msra.mxu0 %v1550
    %5340 = vmatprep.subr.mxu0 0.0
    %5341 = vmatpush2.xpose.msra.mxu0 0.0
    %5342 = vmatprep.subr.mxu0 0.0
    %5343 = vmatpush2.xpose.msra.mxu0 0.0
    %5344 = vmatprep.subr.mxu0 0.0
    %5345 = vmatpush2.xpose.msra.mxu0 0.0
    %5346 = vmatprep.subr.mxu0 0.0
    %5347 = vmatpush2.xpose.msra.mxu0 0.0
    %5348 = vmatprep.subr.mxu0 0.0
    %5349 = vmatpush2.xpose.msra.mxu0 0.0
    %5350 = vmatprep.subr.mxu0 0.0
    %5351 = vmatpush2.xpose.msra.mxu0 0.0
    %5352 = vmatprep.subr.mxu0 0.0
    %5353 = vmatpush2.xpose.msra.mxu0 0.0
    %5354 = vmatprep.subr.mxu0 0.0
    %5355 = vmatpush2.xpose.msra.mxu0 0.0
    %5356 = vmatprep.subr.mxu0 0.0
    %5357 = vmatpush2.xpose.msra.mxu0 0.0
    %5358 = vmatprep.subr.mxu0 0.0
    %5359 = vmatpush2.xpose.msra.mxu0 0.0
    %5360 = vmatprep.subr.mxu0 0.0
    %5361 = vmatpush2.xpose.msra.mxu0 0.0
    %5362 = vmatprep.subr.mxu0 0.0
    %5363 = vmatpush2.xpose.msra.mxu0 0.0
    %5364 = vmatprep.subr.mxu0 0.0
    %5365 = vmatpush2.xpose.msra.mxu0 0.0
    %5366 = vmatprep.subr.mxu0 0.0
    %5367 = vmatpush2.xpose.msra.mxu0 0.0
    %5368 = vmatprep.subr.mxu0 0.0
    %5369 = vmatpush2.xpose.msra.mxu0 0.0
    %5370 = vmatprep.subr.mxu0 0.0
    %5371 = vmatpush2.xpose.msra.mxu0 0.0
    %5372 = vmatprep.mubr.f32.mxu0 0.0
    %5373 = vmatmul.mubr.f32.gmra.mxu0 %v5306
    %v5374 = vpop.f32.mrf.mxu0
    %v5375 = vadd.f32 0.0, %v5374
    %v5376 = vpop.f32.mrf.mxu0
    %5377 = vdwg.mxu0
    %v5379 = vrot.slane %v5375, 7
    %v5381 = vsel %vm1646, %v5302, %v5379
    %5383 = vrot.lane.b32.xlu0 %v5381, 32
    %v5384 = vpop.permute.xlu0 %5383
    %v5386 = vsel %vm1363, %v5148, %v5384
    %v5387 = vsel %vm1653, %v5386, %v4952
    %5388 = vmatprep.subr.mxu0 0.0
    %5389 = vmatpush1.msra.mxu0 %v1196
    %5390 = vmatprep.subr.mxu0 0.0
    %5391 = vmatpush1.msra.mxu0 %v1195
    %5392 = vmatprep.subr.mxu0 0.0
    %5393 = vmatpush1.msra.mxu0 %v1194
    %5394 = vmatprep.subr.mxu0 0.0
    %5395 = vmatpush1.msra.mxu0 %v1193
    %5396 = vmatprep.subr.mxu0 0.0
    %5397 = vmatpush1.msra.mxu0 %v1190
    %5398 = vmatprep.subr.mxu0 0.0
    %5399 = vmatpush1.msra.mxu0 %v1185
    %5400 = vmatprep.subr.mxu0 0.0
    %5401 = vmatpush1.msra.mxu0 %v1180
    %5402 = vmatprep.subr.mxu0 0.0
    %5403 = vmatpush1.msra.mxu0 %v1175
    %5404 = vmatprep.subr.mxu0 0.0
    %5405 = vmatpush1.msra.mxu0 %v1170
    %5406 = vmatprep.subr.mxu0 0.0
    %5407 = vmatpush1.msra.mxu0 %v1165
    %5408 = vmatprep.subr.mxu0 0.0
    %5409 = vmatpush1.msra.mxu0 %v1160
    %5410 = vmatprep.subr.mxu0 0.0
    %5411 = vmatpush1.msra.mxu0 %v1155
    %5412 = vmatprep.subr.mxu0 0.0
    %5413 = vmatpush1.msra.mxu0 %v1150
    %5414 = vmatprep.subr.mxu0 0.0
    %5415 = vmatpush1.msra.mxu0 %v1145
    %5416 = vmatprep.subr.mxu0 0.0
    %5417 = vmatpush1.msra.mxu0 %v1140
    %5418 = vmatprep.subr.mxu0 0.0
    %5419 = vmatpush1.msra.mxu0 %v1135
    %5420 = vmatprep.subr.mxu0 0.0
    %5421 = vmatpush2.msra.mxu0 0.0
    %5422 = vmatprep.subr.mxu0 0.0
    %5423 = vmatpush2.msra.mxu0 0.0
    %5424 = vmatprep.subr.mxu0 0.0
    %5425 = vmatpush2.msra.mxu0 0.0
    %5426 = vmatprep.subr.mxu0 0.0
    %5427 = vmatpush2.msra.mxu0 0.0
    %5428 = vmatprep.subr.mxu0 0.0
    %5429 = vmatpush2.msra.mxu0 0.0
    %5430 = vmatprep.subr.mxu0 0.0
    %5431 = vmatpush2.msra.mxu0 0.0
    %5432 = vmatprep.subr.mxu0 0.0
    %5433 = vmatpush2.msra.mxu0 0.0
    %5434 = vmatprep.subr.mxu0 0.0
    %5435 = vmatpush2.msra.mxu0 0.0
    %5436 = vmatprep.subr.mxu0 0.0
    %5437 = vmatpush2.msra.mxu0 0.0
    %5438 = vmatprep.subr.mxu0 0.0
    %5439 = vmatpush2.msra.mxu0 0.0
    %5440 = vmatprep.subr.mxu0 0.0
    %5441 = vmatpush2.msra.mxu0 0.0
    %5442 = vmatprep.subr.mxu0 0.0
    %5443 = vmatpush2.msra.mxu0 0.0
    %5444 = vmatprep.subr.mxu0 0.0
    %5445 = vmatpush2.msra.mxu0 0.0
    %5446 = vmatprep.subr.mxu0 0.0
    %5447 = vmatpush2.msra.mxu0 0.0
    %5448 = vmatprep.subr.mxu0 0.0
    %5449 = vmatpush2.msra.mxu0 0.0
    %5450 = vmatprep.subr.mxu0 0.0
    %5451 = vmatpush2.msra.mxu0 0.0
    %5452 = vmatprep.mubr.f32.mxu0 0.0
    %5453 = vmatmul.mubr.f32.gmra.mxu0 %v5387
    %v5454 = vpop.f32.mrf.mxu0
    %v5455 = vadd.f32 %v1658, %v5454
    %v5456 = vpop.f32.mrf.mxu0
    %5457 = vdwg.mxu0
    %v5458 = vxor.u32 %v5455, 2147483648
    %v5459 = vmul.f32 %v5458, 1.442695
    %v5460 = vpow.pop %v5459
    %v5461 = vadd.f32 %v5460, 1.0
    %v5462 = vrcp.pop %v5461
    %v5463 = vmul.f32 1.0, %v5462
    %v5464 = vtanh.pop %v5455
    %5465 = vrot.lane.b32.xlu0 %v4952, 64
    %v5466 = vpop.permute.xlu0 %5465
    %v5468 = vmul.f32 %v5463, %v5466
    %5470 = vrot.lane.b32.xlu0 %v5464, 64
    %v5471 = vpop.permute.xlu0 %5470
    %v5473 = vmul.f32 %v5463, %v5471
    %5475 = vrot.lane.b32.xlu0 %v5473, 32
    %v5476 = vpop.permute.xlu0 %5475
    %v5478 = vadd.f32 %v5468, %v5476
    %v5479 = vtanh.pop %v5478
    %5481 = vrot.lane.b32.xlu0 %v5479, 64
    %v5482 = vpop.permute.xlu0 %5481
    %v5484 = vmul.f32 %v5463, %v5482
    %5486 = vrot.lane.b32.xlu0 %v5484, 32
    %v5487 = vpop.permute.xlu0 %5486
    %v5488 = vsel %vm1363, %v5487, 0
    %5490 = vmatprep.subr.mxu0 0.0
    %5491 = vmatpush1.msra.mxu0 0.0
    %5492 = vmatprep.subr.mxu0 0.0
    %5493 = vmatpush1.msra.mxu0 0.0
    %5494 = vmatprep.subr.mxu0 0.0
    %5495 = vmatpush1.msra.mxu0 0.0
    %5496 = vmatprep.subr.mxu0 0.0
    %5497 = vmatpush1.msra.mxu0 0.0
    %5498 = vmatprep.subr.mxu0 0.0
    %5499 = vmatpush1.msra.mxu0 0.0
    %5500 = vmatprep.subr.mxu0 0.0
    %5501 = vmatpush1.msra.mxu0 0.0
    %5502 = vmatprep.subr.mxu0 0.0
    %5503 = vmatpush1.msra.mxu0 0.0
    %5504 = vmatprep.subr.mxu0 0.0
    %5505 = vmatpush1.msra.mxu0 0.0
    %5506 = vmatprep.subr.mxu0 0.0
    %5507 = vmatpush1.msra.mxu0 0.0
    %5508 = vmatprep.subr.mxu0 0.0
    %5509 = vmatpush1.msra.mxu0 0.0
    %5510 = vmatprep.subr.mxu0 0.0
    %5511 = vmatpush1.msra.mxu0 0.0
    %5512 = vmatprep.subr.mxu0 0.0
    %5513 = vmatpush1.msra.mxu0 0.0
    %5514 = vmatprep.subr.mxu0 0.0
    %5515 = vmatpush1.msra.mxu0 %v1010
    %5516 = vmatprep.subr.mxu0 0.0
    %5517 = vmatpush1.msra.mxu0 %v1009
    %5518 = vmatprep.subr.mxu0 0.0
    %5519 = vmatpush1.msra.mxu0 %v1008
    %5520 = vmatprep.subr.mxu0 0.0
    %5521 = vmatpush1.msra.mxu0 %v1007
    %5522 = vmatprep.subr.mxu0 0.0
    %5523 = vmatpush2.msra.mxu0 0.0
    %5524 = vmatprep.subr.mxu0 0.0
    %5525 = vmatpush2.msra.mxu0 0.0
    %5526 = vmatprep.subr.mxu0 0.0
    %5527 = vmatpush2.msra.mxu0 0.0
    %5528 = vmatprep.subr.mxu0 0.0
    %5529 = vmatpush2.msra.mxu0 0.0
    %5530 = vmatprep.subr.mxu0 0.0
    %5531 = vmatpush2.msra.mxu0 0.0
    %5532 = vmatprep.subr.mxu0 0.0
    %5533 = vmatpush2.msra.mxu0 0.0
    %5534 = vmatprep.subr.mxu0 0.0
    %5535 = vmatpush2.msra.mxu0 0.0
    %5536 = vmatprep.subr.mxu0 0.0
    %5537 = vmatpush2.msra.mxu0 0.0
    %5538 = vmatprep.subr.mxu0 0.0
    %5539 = vmatpush2.msra.mxu0 0.0
    %5540 = vmatprep.subr.mxu0 0.0
    %5541 = vmatpush2.msra.mxu0 0.0
    %5542 = vmatprep.subr.mxu0 0.0
    %5543 = vmatpush2.msra.mxu0 0.0
    %5544 = vmatprep.subr.mxu0 0.0
    %5545 = vmatpush2.msra.mxu0 0.0
    %5546 = vmatprep.subr.mxu0 0.0
    %5547 = vmatpush2.msra.mxu0 0.0
    %5548 = vmatprep.subr.mxu0 0.0
    %5549 = vmatpush2.msra.mxu0 0.0
    %5550 = vmatprep.subr.mxu0 0.0
    %5551 = vmatpush2.msra.mxu0 0.0
    %5552 = vmatprep.subr.mxu0 0.0
    %5553 = vmatpush2.msra.mxu0 0.0
    %5554 = vmatprep.mubr.f32.mxu0 0.0
    %5555 = vmatmul.mubr.f32.gmra.mxu0 %v5488
    %v5556 = vpop.f32.mrf.mxu0
    %v5557 = vadd.f32 %v1757, %v5556
    %v5558 = vpop.f32.mrf.mxu0
    %5559 = vdwg.mxu0
    %v5562 = vunpack.c.l.s4 1966171168
    %v5563 = vunpack.c.0.s8 %v5562
    %v5564 = vlaneseq
    %v5565 = vshrl.u32 %v5564, 7
    %v5566 = vsub.s32 %v5563, %v5565
    %v5567 = vrot.slane %v5557, %v5566
    %v5568 = vcombine.high %v5567, %v5567
    %v5570 = vunpack.c.l.s4 1966171168
    %v5571 = vunpack.c.0.s8 %v5570
    %v5572 = vlaneseq
    %v5573 = vshrl.u32 %v5572, 7
    %v5574 = vsub.s32 %v5571, %v5573
    %v5575 = vrot.slane %v5567, %v5574
    %v5577 = vunpack.c.l.s4 1966171168
    %v5578 = vunpack.c.0.s8 %v5577
    %v5579 = vlaneseq
    %v5580 = vshrl.u32 %v5579, 7
    %v5581 = vsub.s32 %v5578, %v5580
    %v5582 = vrot.slane %v5568, %v5581
    %5585 = vst.msk [vmem:[#allocation2 + $0x7] sm:$0x1] %vm1859, %v5575
    %5586 = vst.msk [vmem:[#allocation2 + $0xf] sm:$0x1] %vm1859, %v5582
    // Predicated region
    $region66: #{_lambda_.1} parent=1 // pred_check
      _
    $region67: #{_lambda_.1} parent=1 // pred_check_branch
      %5588 = sbr.rel (0) target = $region69
    $region68: #{_lambda_.1} parent=1 // pred_region
      %s5590 = ssub.s32 256, 256
      %5591 = vsyncadd [#allocation3], %s5590
      %s5592 = sshll.u32 [#allocation2], 4
      %s5593 = int_to_ptr.vmem [resolvable:$true] %s5592
      %5598 = dma.vmem_to_hbm [thread:$0]  %s5593, 256, %s16, [#allocation3], 128, 128, 8
    $region69: #{_lambda_.1} parent=1 // pred_fallthru
      _
    // Predicated region
    $region70: #{_lambda_.1} parent=1 // pred_check
      _
    $region71: #{_lambda_.1} parent=1 // pred_check_branch
      %5600 = sbr.rel (0) target = $region73
    $region72: #{_lambda_.1} parent=1 // pred_region
      %5601 = dma.done [#allocation3], 256
    $region73: #{_lambda_.1} parent=1 // pred_fallthru
      _
    %5602 = vsyncpa [#allocation3], 1

</llo_original>
